<compile_context>
chip_gen: v7x
topology: tpu7x:2x2x1
jax: 0.10.0
libtpu: 0.0.40
codegen_flags: <defaults>
</compile_context>

<pallas_src>
import functools

import jax
import jax.numpy as jnp
from jax.experimental import pallas as pl
from jax.experimental.pallas import tpu as pltpu

EPS = 1e-5
V_THRESHOLD = 1.0
_LANE = 128
_SUB = 8


def _round_up(x, m):
    return (x + m - 1) // m * m


def bn_fold(gamma, beta, mean, var):
    scale = gamma / jnp.sqrt(var + EPS)
    bias = beta - mean * scale
    return scale, bias


def _prep_weight(w_oihw, bn_scale, c_pad, dtype):
    """OIHW conv weight with BN scale folded in -> (9*c_pad, c_pad), tap-major
    (dy, dx), input channel minor — matches the dy-grouped column-slab layout."""
    cout, cin = w_oihw.shape[:2]
    w = w_oihw * bn_scale[:, None, None, None]                 # fold BN scale
    w = jnp.transpose(w, (2, 3, 1, 0)).reshape(9, cin, cout)   # (tap, Cin, Cout)
    w = jnp.pad(w, ((0, 0), (0, c_pad - cin), (0, c_pad - cout)))
    return w.reshape(9 * c_pad, c_pad).astype(dtype)


def _prep_threshold(bn_bias, c_pad):
    """IF threshold with BN bias folded in: spike = (scaled_conv >= 1 - bias).
    Padded lanes get threshold 1.0 (with zero weights they never spike)."""
    thr = V_THRESHOLD - bn_bias
    thr = jnp.pad(thr, (0, c_pad - bn_bias.shape[0]),
                  constant_values=V_THRESHOLD)
    return thr.reshape(1, c_pad).astype(jnp.float32)


def _make_block_kernel(H, W, WB, Cp, cnf, compute_dtype):
    HW = H * W

    def kernel(x_ref, w1_ref, thr1_ref, w2_ref, thr2_ref, out_ref,
               pad_ref, col_ref, acc_ref):
        # ---- zero ONLY the halo ring; interior is fully overwritten below ----
        pad_ref[0:1, :, :] = jnp.zeros((1, WB, Cp), compute_dtype)
        pad_ref[H + 1:H + 2, :, :] = jnp.zeros((1, WB, Cp), compute_dtype)
        pad_ref[1:H + 1, 0:1, :] = jnp.zeros((H, 1, Cp), compute_dtype)
        pad_ref[1:H + 1, W + 1:WB, :] = jnp.zeros((H, WB - W - 1, Cp),
                                                  compute_dtype)

        def conv3x3_if(w_ref, thr_ref):
            # dy-grouped im2col + 3 accumulated MXU dots (K = 3*Cp) into one
            # f32 accumulator.  One aligned full-width base read per dy; the
            # dx taps are sublane slices of that value (XLU overlaps MXU),
            # stored 128-lane-dense into the (HW, 3*Cp) column slab.
            for dy in range(3):
                base = pad_ref[dy:dy + H, :, :]                 # (H, WB, Cp)
                for dx in range(3):
                    col_ref[:, dx * Cp:(dx + 1) * Cp] = (
                        base[:, dx:dx + W, :].reshape(HW, Cp))
                part = jnp.dot(col_ref[...],
                               w_ref[dy * 3 * Cp:(dy + 1) * 3 * Cp, :],
                               preferred_element_type=jnp.float32)
                if dy == 0:
                    acc_ref[...] = part
                else:
                    acc_ref[...] += part
            return acc_ref[...] >= thr_ref[...]                 # (HW, Cp) bool

        # ---------------- conv1 -> BN1 -> IF1 --------------------------------
        pad_ref[1:H + 1, 1:W + 1, :] = x_ref[...]
        spike1 = conv3x3_if(w1_ref, thr1_ref).astype(compute_dtype)

        # ---------------- conv2 -> BN2 -> IF2 (spike1 never leaves VMEM) -----
        pad_ref[1:H + 1, 1:W + 1, :] = spike1.reshape(H, W, Cp)
        spike2 = conv3x3_if(w2_ref, thr2_ref).astype(jnp.float32)
        spike2 = spike2.reshape(H, W, Cp)

        # ---------------- SEW residual fusion --------------------------------
        res = x_ref[...].astype(jnp.float32)
        if cnf == 'ADD':
            out = spike2 + res
        elif cnf == 'AND':
            out = spike2 * res
        elif cnf == 'OR':
            out = spike2 + res - spike2 * res
        else:
            raise NotImplementedError(cnf)
        out_ref[...] = out.astype(out_ref.dtype)

    return kernel


@functools.partial(jax.jit,
                   static_argnames=("cnf", "compute_dtype", "layout"))
def basic_block_forward(x_nchw, w1, bn1, w2, bn2, cnf='ADD',
                        compute_dtype=jnp.bfloat16, layout='nchw'):
    """BasicBlock.forward with stride=1 and downsample=None (identity shortcut).

    layout='nchw'        -> (N, C, H, W) bf16 (module-compatible).
    layout='nhwc_padded' -> (N, H, W, Cp) bf16, lanes >= C are exactly 0
                            (preferred when chaining blocks: skips the
                            slice/transpose HBM passes)."""
    N, C, H, W = x_nchw.shape
    Cout = w1.shape[0]
    assert w1.shape == (Cout, C, 3, 3) and w2.shape == (Cout, Cout, 3, 3)
    assert C == Cout, "identity shortcut requires in_planes == out_planes"

    Cp = _round_up(C, _LANE)                      # lane-dense channel padding
    WB = _round_up(W + 2, _SUB)                   # padded-plane row width
    s1, b1 = bn_fold(*bn1)
    s2, b2 = bn_fold(*bn2)

    x = jnp.transpose(x_nchw, (0, 2, 3, 1))       # NCHW -> NHWC
    x_p = jnp.pad(x, ((0, 0), (0, 0), (0, 0), (0, Cp - C))).astype(compute_dtype)

    w1_p = _prep_weight(w1, s1, Cp, compute_dtype)
    w2_p = _prep_weight(w2, s2, Cp, compute_dtype)
    thr1 = _prep_threshold(b1, Cp)
    thr2 = _prep_threshold(b2, Cp)

    kernel = _make_block_kernel(H, W, WB, Cp, cnf, compute_dtype)

    cb = jnp.dtype(compute_dtype).itemsize
    scratch_bytes = ((H + 2) * WB * Cp * cb       # padded image plane
                     + H * W * 3 * Cp * cb        # column slab
                     + H * W * Cp * 4)            # f32 accumulator
    io_bytes = 2 * (H * W * Cp * cb) + 2 * (H * W * Cp * cb)   # x/out, 2-deep
    const_bytes = 2 * (9 * Cp * Cp * cb) + 2 * Cp * 4          # single-buffered
    need = scratch_bytes + io_bytes + const_bytes
    vmem_limit = int(min(64 * 2 ** 20, max(32 * 2 ** 20, 2 * need)))

    flops = N * 2 * (2 * H * W * (9 * Cp) * Cp)   # two 3x3 convs per image
    bytes_accessed = (N * H * W * Cp * cb         # input
                      + N * H * W * Cp * cb       # output (bf16)
                      + 2 * 9 * Cp * Cp * cb)     # folded weights

    def const_spec(shape):
        # Constant index map -> never re-fetched; single buffer saves VMEM.
        return pl.BlockSpec(shape, lambda n: (0, 0),
                            pipeline_mode=pl.Buffered(1))

    out_p = pl.pallas_call(
        kernel,
        out_shape=jax.ShapeDtypeStruct((N, H, W, Cp), compute_dtype),
        grid=(N,),
        in_specs=[
            pl.BlockSpec((None, H, W, Cp), lambda n: (n, 0, 0, 0)),
            const_spec((9 * Cp, Cp)),
            const_spec((1, Cp)),
            const_spec((9 * Cp, Cp)),
            const_spec((1, Cp)),
        ],
        out_specs=pl.BlockSpec((None, H, W, Cp), lambda n: (n, 0, 0, 0)),
        scratch_shapes=[
            pltpu.VMEM((H + 2, WB, Cp), compute_dtype),   # zero-halo image plane
            pltpu.VMEM((H * W, 3 * Cp), compute_dtype),   # dy-group column slab
            pltpu.VMEM((H * W, Cp), jnp.float32),         # f32 accumulator
        ],
        compiler_params=pltpu.CompilerParams(
            dimension_semantics=("parallel",),
            vmem_limit_bytes=vmem_limit),
        cost_estimate=pl.CostEstimate(flops=flops, transcendentals=0,
                                      bytes_accessed=bytes_accessed),
    )(x_p, w1_p, thr1, w2_p, thr2)

    if layout == 'nhwc_padded':
        return out_p
    out = out_p[..., :Cout]                       # drop lane padding
    return jnp.transpose(out, (0, 3, 1, 2))       # NHWC -> NCHW (bf16)


# ------------------------------ pure-JAX reference ---------------------------
def _sew(a, b, cnf):
    if cnf == 'ADD':
        return a + b
    if cnf == 'AND':
        return a * b
    if cnf == 'OR':
        return a + b - a * b
    raise NotImplementedError(cnf)


def _ref_forward(x_nchw, w1, bn1, w2, bn2, cnf, compute_dtype):
    """Reference with the same dtype rounding as the kernel.  Also returns the
    signed distance of each pre-activation to its IF threshold (NHWC) so the
    test can exclude positions whose spike legitimately depends on
    accumulation-order rounding."""
    s1, b1 = bn_fold(*bn1)
    s2, b2 = bn_fold(*bn2)
    x = jnp.transpose(x_nchw, (0, 2, 3, 1)).astype(compute_dtype).astype(jnp.float32)
    w1f = (w1 * s1[:, None, None, None]).astype(compute_dtype).astype(jnp.float32)
    w2f = (w2 * s2[:, None, None, None]).astype(compute_dtype).astype(jnp.float32)

    def conv(inp, w_oihw):
        return jax.lax.conv_general_dilated(
            inp, jnp.transpose(w_oihw, (2, 3, 1, 0)),
            window_strides=(1, 1), padding='SAME',
            dimension_numbers=('NHWC', 'HWIO', 'NHWC'))

    thr1 = (V_THRESHOLD - b1).reshape(1, 1, 1, -1)
    thr2 = (V_THRESHOLD - b2).reshape(1, 1, 1, -1)
    y1 = conv(x, w1f)
    o1 = (y1 >= thr1).astype(jnp.float32)
    y2 = conv(o1, w2f)
    o2 = (y2 >= thr2).astype(jnp.float32)
    out = _sew(o2, x, cnf)
    return jnp.transpose(out, (0, 3, 1, 2)), y1 - thr1, y2 - thr2


if __name__ == "__main__":
    key = jax.random.PRNGKey(0)
    N, C, H, W = 2, 4, 16, 16
    ks = jax.random.split(key, 12)
    cnf = 'ADD'

    x = jax.random.normal(ks[0], (N, C, H, W), jnp.float32)
    # conv weights (out_planes, in_planes, 3, 3), bias=False
    w1 = 0.3 * jax.random.normal(ks[1], (C, C, 3, 3), jnp.float32)
    w2 = 0.3 * jax.random.normal(ks[2], (C, C, 3, 3), jnp.float32)
    # BatchNorm2d params (gamma, beta, running_mean, running_var)
    bn1 = (1.0 + 0.1 * jax.random.normal(ks[3], (C,), jnp.float32),
           0.1 * jax.random.normal(ks[4], (C,), jnp.float32),
           0.05 * jax.random.normal(ks[5], (C,), jnp.float32),
           1.0 + 0.1 * jnp.abs(jax.random.normal(ks[6], (C,), jnp.float32)))
    bn2 = (1.0 + 0.1 * jax.random.normal(ks[7], (C,), jnp.float32),
           0.1 * jax.random.normal(ks[8], (C,), jnp.float32),
           0.05 * jax.random.normal(ks[9], (C,), jnp.float32),
           1.0 + 0.1 * jnp.abs(jax.random.normal(ks[10], (C,), jnp.float32)))

    out = basic_block_forward(x, w1, bn1, w2, bn2, cnf=cnf)
    out = jax.block_until_ready(out)
    assert out.shape == (N, C, H, W)
    assert out.dtype == jnp.bfloat16

    ref, d1, d2 = _ref_forward(x, w1, bn1, w2, bn2, cnf, jnp.bfloat16)
    ref_b = ref.astype(jnp.bfloat16).astype(jnp.float32)   # same output rounding
    out_f = out.astype(jnp.float32)

    # IF spikes are hard thresholds: positions whose pre-activation is within
    # `band` of the threshold may legitimately flip due to accumulation-order
    # rounding (expected behavior with bf16-folded weights); exclude them (and
    # the 3x3 conv2 footprint of a layer-1 flip).
    band = 1e-3
    near1 = jnp.any(jnp.abs(d1) < band, axis=-1, keepdims=True).astype(jnp.float32)
    near1 = jax.lax.reduce_window(near1, 0.0, jax.lax.max,
                                  (1, 3, 3, 1), (1, 1, 1, 1), 'SAME') > 0.0
    near2 = jnp.abs(d2) < band
    excl = jnp.transpose(near1 | near2, (0, 3, 1, 2))      # NHWC -> NCHW
    frac_excl = float(jnp.mean(excl.astype(jnp.float32)))
    ok = excl | (jnp.abs(out_f - ref_b) <= 1e-5)
    assert frac_excl < 0.05, f"too many near-threshold positions: {frac_excl:.3f}"
    assert bool(jnp.all(ok)), "Pallas output mismatches JAX reference"

    print("KERNEL_OK")
</pallas_src>

<mosaic_0001>
module attributes {stable_mosaic.version = 11 : i64} {
  func.func @kernel(%arg0: i32, %arg1: memref<1x16x16x128xbf16, #tpu.memory_space<vmem>>, %arg2: memref<1152x128xbf16, #tpu.memory_space<vmem>>, %arg3: memref<1x128xf32, #tpu.memory_space<vmem>>, %arg4: memref<1152x128xbf16, #tpu.memory_space<vmem>>, %arg5: memref<1x128xf32, #tpu.memory_space<vmem>>, %arg6: memref<1x16x16x128xbf16, #tpu.memory_space<vmem>>, %arg7: memref<18x24x128xbf16, #tpu.memory_space<vmem>>, %arg8: memref<256x384xbf16, #tpu.memory_space<vmem>>, %arg9: memref<256x128xf32, #tpu.memory_space<vmem>>) attributes {dimension_semantics = [#tpu.dimension_semantics<parallel>], iteration_bounds = array<i64: 2>, scalar_prefetch = 0 : i64, scratch_operands = 3 : i64, tpu.core_type = #tpu.core_type<tc>, window_params = [{transform_indices = @transform_0, window_bounds = array<i64: 1, 16, 16, 128>}, {pipeline_mode = #tpu.pipeline_mode<synchronous>, transform_indices = @transform_1, window_bounds = array<i64: 1152, 128>}, {pipeline_mode = #tpu.pipeline_mode<synchronous>, transform_indices = @transform_2, window_bounds = array<i64: 1, 128>}, {pipeline_mode = #tpu.pipeline_mode<synchronous>, transform_indices = @transform_3, window_bounds = array<i64: 1152, 128>}, {pipeline_mode = #tpu.pipeline_mode<synchronous>, transform_indices = @transform_4, window_bounds = array<i64: 1, 128>}, {transform_indices = @transform_5, window_bounds = array<i64: 1, 16, 16, 128>}]} {
    %cst = arith.constant 0.000000e+00 : bf16
    %0 = vector.broadcast %cst : bf16 to vector<1x24x128xbf16>
    %c0 = arith.constant 0 : index
    %c0_0 = arith.constant 0 : index
    %c0_1 = arith.constant 0 : index
    %1 = vector.load %arg7[%c0, %c0_0, %c0_1] : memref<18x24x128xbf16, #tpu.memory_space<vmem>>, vector<1x24x128xbf16>
    tpu.vector_store %arg7[%c0, %c0_0, %c0_1], %0 {strides = array<i32>} : memref<18x24x128xbf16, #tpu.memory_space<vmem>>, vector<1x24x128xbf16>,
    %cst_2 = arith.constant 0.000000e+00 : bf16
    %2 = vector.broadcast %cst_2 : bf16 to vector<1x24x128xbf16>
    %c17 = arith.constant 17 : index
    %c0_3 = arith.constant 0 : index
    %c0_4 = arith.constant 0 : index
    %3 = vector.load %arg7[%c17, %c0_3, %c0_4] : memref<18x24x128xbf16, #tpu.memory_space<vmem>>, vector<1x24x128xbf16>
    tpu.vector_store %arg7[%c17, %c0_3, %c0_4], %2 {strides = array<i32>} : memref<18x24x128xbf16, #tpu.memory_space<vmem>>, vector<1x24x128xbf16>,
    %cst_5 = arith.constant 0.000000e+00 : bf16
    %4 = vector.broadcast %cst_5 : bf16 to vector<16x1x128xbf16>
    %c1 = arith.constant 1 : index
    %c0_6 = arith.constant 0 : index
    %c0_7 = arith.constant 0 : index
    %5 = vector.load %arg7[%c1, %c0_6, %c0_7] : memref<18x24x128xbf16, #tpu.memory_space<vmem>>, vector<16x1x128xbf16>
    tpu.vector_store %arg7[%c1, %c0_6, %c0_7], %4 {strides = array<i32>} : memref<18x24x128xbf16, #tpu.memory_space<vmem>>, vector<16x1x128xbf16>,
    %cst_8 = arith.constant 0.000000e+00 : bf16
    %6 = vector.broadcast %cst_8 : bf16 to vector<16x7x128xbf16>
    %c1_9 = arith.constant 1 : index
    %c17_10 = arith.constant 17 : index
    %c0_11 = arith.constant 0 : index
    %7 = vector.load %arg7[%c1_9, %c17_10, %c0_11] : memref<18x24x128xbf16, #tpu.memory_space<vmem>>, vector<16x7x128xbf16>
    tpu.vector_store %arg7[%c1_9, %c17_10, %c0_11], %6 {strides = array<i32>} : memref<18x24x128xbf16, #tpu.memory_space<vmem>>, vector<16x7x128xbf16>,
    %c0_12 = arith.constant 0 : index
    %c0_13 = arith.constant 0 : index
    %c0_14 = arith.constant 0 : index
    %c0_15 = arith.constant 0 : index
    %8 = vector.load %arg1[%c0_12, %c0_13, %c0_14, %c0_15] : memref<1x16x16x128xbf16, #tpu.memory_space<vmem>>, vector<1x16x16x128xbf16>
    %9 = vector.shape_cast %8 : vector<1x16x16x128xbf16> to vector<16x16x128xbf16>
    %c1_16 = arith.constant 1 : index
    %c1_17 = arith.constant 1 : index
    %c0_18 = arith.constant 0 : index
    %10 = vector.load %arg7[%c1_16, %c1_17, %c0_18] : memref<18x24x128xbf16, #tpu.memory_space<vmem>>, vector<16x16x128xbf16>
    tpu.vector_store %arg7[%c1_16, %c1_17, %c0_18], %9 {strides = array<i32>} : memref<18x24x128xbf16, #tpu.memory_space<vmem>>, vector<16x16x128xbf16>,
    %c0_19 = arith.constant 0 : index
    %c0_20 = arith.constant 0 : index
    %c0_21 = arith.constant 0 : index
    %11 = vector.load %arg7[%c0_19, %c0_20, %c0_21] : memref<18x24x128xbf16, #tpu.memory_space<vmem>>, vector<16x24x128xbf16>
    %12 = vector.extract_strided_slice %11 {offsets = [0, 0, 0], sizes = [16, 16, 128], strides = [1, 1, 1]} : vector<16x24x128xbf16> to vector<16x16x128xbf16>
    %13 = vector.shape_cast %12 : vector<16x16x128xbf16> to vector<256x128xbf16>
    %c0_22 = arith.constant 0 : index
    %c0_23 = arith.constant 0 : index
    %14 = vector.load %arg8[%c0_22, %c0_23] : memref<256x384xbf16, #tpu.memory_space<vmem>>, vector<256x128xbf16>
    tpu.vector_store %arg8[%c0_22, %c0_23], %13 {strides = array<i32>} : memref<256x384xbf16, #tpu.memory_space<vmem>>, vector<256x128xbf16>,
    %15 = vector.extract_strided_slice %11 {offsets = [0, 1, 0], sizes = [16, 16, 128], strides = [1, 1, 1]} : vector<16x24x128xbf16> to vector<16x16x128xbf16>
    %16 = vector.shape_cast %15 : vector<16x16x128xbf16> to vector<256x128xbf16>
    %c0_24 = arith.constant 0 : index
    %c128 = arith.constant 128 : index
    %17 = vector.load %arg8[%c0_24, %c128] : memref<256x384xbf16, #tpu.memory_space<vmem>>, vector<256x128xbf16>
    tpu.vector_store %arg8[%c0_24, %c128], %16 {strides = array<i32>} : memref<256x384xbf16, #tpu.memory_space<vmem>>, vector<256x128xbf16>,
    %18 = vector.extract_strided_slice %11 {offsets = [0, 2, 0], sizes = [16, 16, 128], strides = [1, 1, 1]} : vector<16x24x128xbf16> to vector<16x16x128xbf16>
    %19 = vector.shape_cast %18 : vector<16x16x128xbf16> to vector<256x128xbf16>
    %c0_25 = arith.constant 0 : index
    %c256 = arith.constant 256 : index
    %20 = vector.load %arg8[%c0_25, %c256] : memref<256x384xbf16, #tpu.memory_space<vmem>>, vector<256x128xbf16>
    tpu.vector_store %arg8[%c0_25, %c256], %19 {strides = array<i32>} : memref<256x384xbf16, #tpu.memory_space<vmem>>, vector<256x128xbf16>,
    %c0_26 = arith.constant 0 : index
    %c0_27 = arith.constant 0 : index
    %21 = vector.load %arg8[%c0_26, %c0_27] : memref<256x384xbf16, #tpu.memory_space<vmem>>, vector<256x384xbf16>
    %c0_28 = arith.constant 0 : index
    %c0_29 = arith.constant 0 : index
    %22 = vector.load %arg2[%c0_28, %c0_29] : memref<1152x128xbf16, #tpu.memory_space<vmem>>, vector<384x128xbf16>
    %cst_30 = arith.constant dense<0.000000e+00> : vector<256x128xf32>
    %23 = tpu.matmul %21, %22, %cst_30 {dimension_numbers = #tpu.dot_dimension_numbers<[1], [0], [0], [1], [0, 0, 1, 1], [], []>} : vector<256x384xbf16>, vector<384x128xbf16>, vector<256x128xf32> -> vector<256x128xf32>
    %c0_31 = arith.constant 0 : index
    %c0_32 = arith.constant 0 : index
    %24 = vector.load %arg9[%c0_31, %c0_32] : memref<256x128xf32, #tpu.memory_space<vmem>>, vector<256x128xf32>
    tpu.vector_store %arg9[%c0_31, %c0_32], %23 {strides = array<i32>} : memref<256x128xf32, #tpu.memory_space<vmem>>, vector<256x128xf32>,
    %c1_33 = arith.constant 1 : index
    %c0_34 = arith.constant 0 : index
    %c0_35 = arith.constant 0 : index
    %25 = vector.load %arg7[%c1_33, %c0_34, %c0_35] : memref<18x24x128xbf16, #tpu.memory_space<vmem>>, vector<16x24x128xbf16>
    %26 = vector.extract_strided_slice %25 {offsets = [0, 0, 0], sizes = [16, 16, 128], strides = [1, 1, 1]} : vector<16x24x128xbf16> to vector<16x16x128xbf16>
    %27 = vector.shape_cast %26 : vector<16x16x128xbf16> to vector<256x128xbf16>
    %c0_36 = arith.constant 0 : index
    %c0_37 = arith.constant 0 : index
    %28 = vector.load %arg8[%c0_36, %c0_37] : memref<256x384xbf16, #tpu.memory_space<vmem>>, vector<256x128xbf16>
    tpu.vector_store %arg8[%c0_36, %c0_37], %27 {strides = array<i32>} : memref<256x384xbf16, #tpu.memory_space<vmem>>, vector<256x128xbf16>,
    %29 = vector.extract_strided_slice %25 {offsets = [0, 1, 0], sizes = [16, 16, 128], strides = [1, 1, 1]} : vector<16x24x128xbf16> to vector<16x16x128xbf16>
    %30 = vector.shape_cast %29 : vector<16x16x128xbf16> to vector<256x128xbf16>
    %c0_38 = arith.constant 0 : index
    %c128_39 = arith.constant 128 : index
    %31 = vector.load %arg8[%c0_38, %c128_39] : memref<256x384xbf16, #tpu.memory_space<vmem>>, vector<256x128xbf16>
    tpu.vector_store %arg8[%c0_38, %c128_39], %30 {strides = array<i32>} : memref<256x384xbf16, #tpu.memory_space<vmem>>, vector<256x128xbf16>,
    %32 = vector.extract_strided_slice %25 {offsets = [0, 2, 0], sizes = [16, 16, 128], strides = [1, 1, 1]} : vector<16x24x128xbf16> to vector<16x16x128xbf16>
    %33 = vector.shape_cast %32 : vector<16x16x128xbf16> to vector<256x128xbf16>
    %c0_40 = arith.constant 0 : index
    %c256_41 = arith.constant 256 : index
    %34 = vector.load %arg8[%c0_40, %c256_41] : memref<256x384xbf16, #tpu.memory_space<vmem>>, vector<256x128xbf16>
    tpu.vector_store %arg8[%c0_40, %c256_41], %33 {strides = array<i32>} : memref<256x384xbf16, #tpu.memory_space<vmem>>, vector<256x128xbf16>,
    %c0_42 = arith.constant 0 : index
    %c0_43 = arith.constant 0 : index
    %35 = vector.load %arg8[%c0_42, %c0_43] : memref<256x384xbf16, #tpu.memory_space<vmem>>, vector<256x384xbf16>
    %c384 = arith.constant 384 : index
    %c0_44 = arith.constant 0 : index
    %36 = vector.load %arg2[%c384, %c0_44] : memref<1152x128xbf16, #tpu.memory_space<vmem>>, vector<384x128xbf16>
    %cst_45 = arith.constant dense<0.000000e+00> : vector<256x128xf32>
    %37 = tpu.matmul %35, %36, %cst_45 {dimension_numbers = #tpu.dot_dimension_numbers<[1], [0], [0], [1], [0, 0, 1, 1], [], []>} : vector<256x384xbf16>, vector<384x128xbf16>, vector<256x128xf32> -> vector<256x128xf32>
    %c0_46 = arith.constant 0 : index
    %c0_47 = arith.constant 0 : index
    %38 = vector.load %arg9[%c0_46, %c0_47] : memref<256x128xf32, #tpu.memory_space<vmem>>, vector<256x128xf32>
    %39 = arith.addf %38, %37 : vector<256x128xf32>
    %c0_48 = arith.constant 0 : index
    %c0_49 = arith.constant 0 : index
    %40 = vector.load %arg9[%c0_48, %c0_49] : memref<256x128xf32, #tpu.memory_space<vmem>>, vector<256x128xf32>
    tpu.vector_store %arg9[%c0_48, %c0_49], %39 {strides = array<i32>} : memref<256x128xf32, #tpu.memory_space<vmem>>, vector<256x128xf32>,
    %c2 = arith.constant 2 : index
    %c0_50 = arith.constant 0 : index
    %c0_51 = arith.constant 0 : index
    %41 = vector.load %arg7[%c2, %c0_50, %c0_51] : memref<18x24x128xbf16, #tpu.memory_space<vmem>>, vector<16x24x128xbf16>
    %42 = vector.extract_strided_slice %41 {offsets = [0, 0, 0], sizes = [16, 16, 128], strides = [1, 1, 1]} : vector<16x24x128xbf16> to vector<16x16x128xbf16>
    %43 = vector.shape_cast %42 : vector<16x16x128xbf16> to vector<256x128xbf16>
    %c0_52 = arith.constant 0 : index
    %c0_53 = arith.constant 0 : index
    %44 = vector.load %arg8[%c0_52, %c0_53] : memref<256x384xbf16, #tpu.memory_space<vmem>>, vector<256x128xbf16>
    tpu.vector_store %arg8[%c0_52, %c0_53], %43 {strides = array<i32>} : memref<256x384xbf16, #tpu.memory_space<vmem>>, vector<256x128xbf16>,
    %45 = vector.extract_strided_slice %41 {offsets = [0, 1, 0], sizes = [16, 16, 128], strides = [1, 1, 1]} : vector<16x24x128xbf16> to vector<16x16x128xbf16>
    %46 = vector.shape_cast %45 : vector<16x16x128xbf16> to vector<256x128xbf16>
    %c0_54 = arith.constant 0 : index
    %c128_55 = arith.constant 128 : index
    %47 = vector.load %arg8[%c0_54, %c128_55] : memref<256x384xbf16, #tpu.memory_space<vmem>>, vector<256x128xbf16>
    tpu.vector_store %arg8[%c0_54, %c128_55], %46 {strides = array<i32>} : memref<256x384xbf16, #tpu.memory_space<vmem>>, vector<256x128xbf16>,
    %48 = vector.extract_strided_slice %41 {offsets = [0, 2, 0], sizes = [16, 16, 128], strides = [1, 1, 1]} : vector<16x24x128xbf16> to vector<16x16x128xbf16>
    %49 = vector.shape_cast %48 : vector<16x16x128xbf16> to vector<256x128xbf16>
    %c0_56 = arith.constant 0 : index
    %c256_57 = arith.constant 256 : index
    %50 = vector.load %arg8[%c0_56, %c256_57] : memref<256x384xbf16, #tpu.memory_space<vmem>>, vector<256x128xbf16>
    tpu.vector_store %arg8[%c0_56, %c256_57], %49 {strides = array<i32>} : memref<256x384xbf16, #tpu.memory_space<vmem>>, vector<256x128xbf16>,
    %c0_58 = arith.constant 0 : index
    %c0_59 = arith.constant 0 : index
    %51 = vector.load %arg8[%c0_58, %c0_59] : memref<256x384xbf16, #tpu.memory_space<vmem>>, vector<256x384xbf16>
    %c768 = arith.constant 768 : index
    %c0_60 = arith.constant 0 : index
    %52 = vector.load %arg2[%c768, %c0_60] : memref<1152x128xbf16, #tpu.memory_space<vmem>>, vector<384x128xbf16>
    %cst_61 = arith.constant dense<0.000000e+00> : vector<256x128xf32>
    %53 = tpu.matmul %51, %52, %cst_61 {dimension_numbers = #tpu.dot_dimension_numbers<[1], [0], [0], [1], [0, 0, 1, 1], [], []>} : vector<256x384xbf16>, vector<384x128xbf16>, vector<256x128xf32> -> vector<256x128xf32>
    %c0_62 = arith.constant 0 : index
    %c0_63 = arith.constant 0 : index
    %54 = vector.load %arg9[%c0_62, %c0_63] : memref<256x128xf32, #tpu.memory_space<vmem>>, vector<256x128xf32>
    %55 = arith.addf %54, %53 : vector<256x128xf32>
    %c0_64 = arith.constant 0 : index
    %c0_65 = arith.constant 0 : index
    %56 = vector.load %arg9[%c0_64, %c0_65] : memref<256x128xf32, #tpu.memory_space<vmem>>, vector<256x128xf32>
    tpu.vector_store %arg9[%c0_64, %c0_65], %55 {strides = array<i32>} : memref<256x128xf32, #tpu.memory_space<vmem>>, vector<256x128xf32>,
    %c0_66 = arith.constant 0 : index
    %c0_67 = arith.constant 0 : index
    %57 = vector.load %arg9[%c0_66, %c0_67] : memref<256x128xf32, #tpu.memory_space<vmem>>, vector<256x128xf32>
    %c0_68 = arith.constant 0 : index
    %c0_69 = arith.constant 0 : index
    %58 = vector.load %arg3[%c0_68, %c0_69] : memref<1x128xf32, #tpu.memory_space<vmem>>, vector<1x128xf32>
    %59 = vector.broadcast %58 : vector<1x128xf32> to vector<256x128xf32>
    %60 = arith.cmpf oge, %57, %59 : vector<256x128xf32>
    %61 = arith.extui %60 : vector<256x128xi1> to vector<256x128xi32>
    %62 = arith.sitofp %61 : vector<256x128xi32> to vector<256x128xf32>
    %63 = arith.truncf %62 : vector<256x128xf32> to vector<256x128xbf16>
    %64 = vector.shape_cast %63 : vector<256x128xbf16> to vector<16x16x128xbf16>
    %c1_70 = arith.constant 1 : index
    %c1_71 = arith.constant 1 : index
    %c0_72 = arith.constant 0 : index
    %65 = vector.load %arg7[%c1_70, %c1_71, %c0_72] : memref<18x24x128xbf16, #tpu.memory_space<vmem>>, vector<16x16x128xbf16>
    tpu.vector_store %arg7[%c1_70, %c1_71, %c0_72], %64 {strides = array<i32>} : memref<18x24x128xbf16, #tpu.memory_space<vmem>>, vector<16x16x128xbf16>,
    %c0_73 = arith.constant 0 : index
    %c0_74 = arith.constant 0 : index
    %c0_75 = arith.constant 0 : index
    %66 = vector.load %arg7[%c0_73, %c0_74, %c0_75] : memref<18x24x128xbf16, #tpu.memory_space<vmem>>, vector<16x24x128xbf16>
    %67 = vector.extract_strided_slice %66 {offsets = [0, 0, 0], sizes = [16, 16, 128], strides = [1, 1, 1]} : vector<16x24x128xbf16> to vector<16x16x128xbf16>
    %68 = vector.shape_cast %67 : vector<16x16x128xbf16> to vector<256x128xbf16>
    %c0_76 = arith.constant 0 : index
    %c0_77 = arith.constant 0 : index
    %69 = vector.load %arg8[%c0_76, %c0_77] : memref<256x384xbf16, #tpu.memory_space<vmem>>, vector<256x128xbf16>
    tpu.vector_store %arg8[%c0_76, %c0_77], %68 {strides = array<i32>} : memref<256x384xbf16, #tpu.memory_space<vmem>>, vector<256x128xbf16>,
    %70 = vector.extract_strided_slice %66 {offsets = [0, 1, 0], sizes = [16, 16, 128], strides = [1, 1, 1]} : vector<16x24x128xbf16> to vector<16x16x128xbf16>
    %71 = vector.shape_cast %70 : vector<16x16x128xbf16> to vector<256x128xbf16>
    %c0_78 = arith.constant 0 : index
    %c128_79 = arith.constant 128 : index
    %72 = vector.load %arg8[%c0_78, %c128_79] : memref<256x384xbf16, #tpu.memory_space<vmem>>, vector<256x128xbf16>
    tpu.vector_store %arg8[%c0_78, %c128_79], %71 {strides = array<i32>} : memref<256x384xbf16, #tpu.memory_space<vmem>>, vector<256x128xbf16>,
    %73 = vector.extract_strided_slice %66 {offsets = [0, 2, 0], sizes = [16, 16, 128], strides = [1, 1, 1]} : vector<16x24x128xbf16> to vector<16x16x128xbf16>
    %74 = vector.shape_cast %73 : vector<16x16x128xbf16> to vector<256x128xbf16>
    %c0_80 = arith.constant 0 : index
    %c256_81 = arith.constant 256 : index
    %75 = vector.load %arg8[%c0_80, %c256_81] : memref<256x384xbf16, #tpu.memory_space<vmem>>, vector<256x128xbf16>
    tpu.vector_store %arg8[%c0_80, %c256_81], %74 {strides = array<i32>} : memref<256x384xbf16, #tpu.memory_space<vmem>>, vector<256x128xbf16>,
    %c0_82 = arith.constant 0 : index
    %c0_83 = arith.constant 0 : index
    %76 = vector.load %arg8[%c0_82, %c0_83] : memref<256x384xbf16, #tpu.memory_space<vmem>>, vector<256x384xbf16>
    %c0_84 = arith.constant 0 : index
    %c0_85 = arith.constant 0 : index
    %77 = vector.load %arg4[%c0_84, %c0_85] : memref<1152x128xbf16, #tpu.memory_space<vmem>>, vector<384x128xbf16>
    %cst_86 = arith.constant dense<0.000000e+00> : vector<256x128xf32>
    %78 = tpu.matmul %76, %77, %cst_86 {dimension_numbers = #tpu.dot_dimension_numbers<[1], [0], [0], [1], [0, 0, 1, 1], [], []>} : vector<256x384xbf16>, vector<384x128xbf16>, vector<256x128xf32> -> vector<256x128xf32>
    %c0_87 = arith.constant 0 : index
    %c0_88 = arith.constant 0 : index
    %79 = vector.load %arg9[%c0_87, %c0_88] : memref<256x128xf32, #tpu.memory_space<vmem>>, vector<256x128xf32>
    tpu.vector_store %arg9[%c0_87, %c0_88], %78 {strides = array<i32>} : memref<256x128xf32, #tpu.memory_space<vmem>>, vector<256x128xf32>,
    %c1_89 = arith.constant 1 : index
    %c0_90 = arith.constant 0 : index
    %c0_91 = arith.constant 0 : index
    %80 = vector.load %arg7[%c1_89, %c0_90, %c0_91] : memref<18x24x128xbf16, #tpu.memory_space<vmem>>, vector<16x24x128xbf16>
    %81 = vector.extract_strided_slice %80 {offsets = [0, 0, 0], sizes = [16, 16, 128], strides = [1, 1, 1]} : vector<16x24x128xbf16> to vector<16x16x128xbf16>
    %82 = vector.shape_cast %81 : vector<16x16x128xbf16> to vector<256x128xbf16>
    %c0_92 = arith.constant 0 : index
    %c0_93 = arith.constant 0 : index
    %83 = vector.load %arg8[%c0_92, %c0_93] : memref<256x384xbf16, #tpu.memory_space<vmem>>, vector<256x128xbf16>
    tpu.vector_store %arg8[%c0_92, %c0_93], %82 {strides = array<i32>} : memref<256x384xbf16, #tpu.memory_space<vmem>>, vector<256x128xbf16>,
    %84 = vector.extract_strided_slice %80 {offsets = [0, 1, 0], sizes = [16, 16, 128], strides = [1, 1, 1]} : vector<16x24x128xbf16> to vector<16x16x128xbf16>
    %85 = vector.shape_cast %84 : vector<16x16x128xbf16> to vector<256x128xbf16>
    %c0_94 = arith.constant 0 : index
    %c128_95 = arith.constant 128 : index
    %86 = vector.load %arg8[%c0_94, %c128_95] : memref<256x384xbf16, #tpu.memory_space<vmem>>, vector<256x128xbf16>
    tpu.vector_store %arg8[%c0_94, %c128_95], %85 {strides = array<i32>} : memref<256x384xbf16, #tpu.memory_space<vmem>>, vector<256x128xbf16>,
    %87 = vector.extract_strided_slice %80 {offsets = [0, 2, 0], sizes = [16, 16, 128], strides = [1, 1, 1]} : vector<16x24x128xbf16> to vector<16x16x128xbf16>
    %88 = vector.shape_cast %87 : vector<16x16x128xbf16> to vector<256x128xbf16>
    %c0_96 = arith.constant 0 : index
    %c256_97 = arith.constant 256 : index
    %89 = vector.load %arg8[%c0_96, %c256_97] : memref<256x384xbf16, #tpu.memory_space<vmem>>, vector<256x128xbf16>
    tpu.vector_store %arg8[%c0_96, %c256_97], %88 {strides = array<i32>} : memref<256x384xbf16, #tpu.memory_space<vmem>>, vector<256x128xbf16>,
    %c0_98 = arith.constant 0 : index
    %c0_99 = arith.constant 0 : index
    %90 = vector.load %arg8[%c0_98, %c0_99] : memref<256x384xbf16, #tpu.memory_space<vmem>>, vector<256x384xbf16>
    %c384_100 = arith.constant 384 : index
    %c0_101 = arith.constant 0 : index
    %91 = vector.load %arg4[%c384_100, %c0_101] : memref<1152x128xbf16, #tpu.memory_space<vmem>>, vector<384x128xbf16>
    %cst_102 = arith.constant dense<0.000000e+00> : vector<256x128xf32>
    %92 = tpu.matmul %90, %91, %cst_102 {dimension_numbers = #tpu.dot_dimension_numbers<[1], [0], [0], [1], [0, 0, 1, 1], [], []>} : vector<256x384xbf16>, vector<384x128xbf16>, vector<256x128xf32> -> vector<256x128xf32>
    %c0_103 = arith.constant 0 : index
    %c0_104 = arith.constant 0 : index
    %93 = vector.load %arg9[%c0_103, %c0_104] : memref<256x128xf32, #tpu.memory_space<vmem>>, vector<256x128xf32>
    %94 = arith.addf %93, %92 : vector<256x128xf32>
    %c0_105 = arith.constant 0 : index
    %c0_106 = arith.constant 0 : index
    %95 = vector.load %arg9[%c0_105, %c0_106] : memref<256x128xf32, #tpu.memory_space<vmem>>, vector<256x128xf32>
    tpu.vector_store %arg9[%c0_105, %c0_106], %94 {strides = array<i32>} : memref<256x128xf32, #tpu.memory_space<vmem>>, vector<256x128xf32>,
    %c2_107 = arith.constant 2 : index
    %c0_108 = arith.constant 0 : index
    %c0_109 = arith.constant 0 : index
    %96 = vector.load %arg7[%c2_107, %c0_108, %c0_109] : memref<18x24x128xbf16, #tpu.memory_space<vmem>>, vector<16x24x128xbf16>
    %97 = vector.extract_strided_slice %96 {offsets = [0, 0, 0], sizes = [16, 16, 128], strides = [1, 1, 1]} : vector<16x24x128xbf16> to vector<16x16x128xbf16>
    %98 = vector.shape_cast %97 : vector<16x16x128xbf16> to vector<256x128xbf16>
    %c0_110 = arith.constant 0 : index
    %c0_111 = arith.constant 0 : index
    %99 = vector.load %arg8[%c0_110, %c0_111] : memref<256x384xbf16, #tpu.memory_space<vmem>>, vector<256x128xbf16>
    tpu.vector_store %arg8[%c0_110, %c0_111], %98 {strides = array<i32>} : memref<256x384xbf16, #tpu.memory_space<vmem>>, vector<256x128xbf16>,
    %100 = vector.extract_strided_slice %96 {offsets = [0, 1, 0], sizes = [16, 16, 128], strides = [1, 1, 1]} : vector<16x24x128xbf16> to vector<16x16x128xbf16>
    %101 = vector.shape_cast %100 : vector<16x16x128xbf16> to vector<256x128xbf16>
    %c0_112 = arith.constant 0 : index
    %c128_113 = arith.constant 128 : index
    %102 = vector.load %arg8[%c0_112, %c128_113] : memref<256x384xbf16, #tpu.memory_space<vmem>>, vector<256x128xbf16>
    tpu.vector_store %arg8[%c0_112, %c128_113], %101 {strides = array<i32>} : memref<256x384xbf16, #tpu.memory_space<vmem>>, vector<256x128xbf16>,
    %103 = vector.extract_strided_slice %96 {offsets = [0, 2, 0], sizes = [16, 16, 128], strides = [1, 1, 1]} : vector<16x24x128xbf16> to vector<16x16x128xbf16>
    %104 = vector.shape_cast %103 : vector<16x16x128xbf16> to vector<256x128xbf16>
    %c0_114 = arith.constant 0 : index
    %c256_115 = arith.constant 256 : index
    %105 = vector.load %arg8[%c0_114, %c256_115] : memref<256x384xbf16, #tpu.memory_space<vmem>>, vector<256x128xbf16>
    tpu.vector_store %arg8[%c0_114, %c256_115], %104 {strides = array<i32>} : memref<256x384xbf16, #tpu.memory_space<vmem>>, vector<256x128xbf16>,
    %c0_116 = arith.constant 0 : index
    %c0_117 = arith.constant 0 : index
    %106 = vector.load %arg8[%c0_116, %c0_117] : memref<256x384xbf16, #tpu.memory_space<vmem>>, vector<256x384xbf16>
    %c768_118 = arith.constant 768 : index
    %c0_119 = arith.constant 0 : index
    %107 = vector.load %arg4[%c768_118, %c0_119] : memref<1152x128xbf16, #tpu.memory_space<vmem>>, vector<384x128xbf16>
    %cst_120 = arith.constant dense<0.000000e+00> : vector<256x128xf32>
    %108 = tpu.matmul %106, %107, %cst_120 {dimension_numbers = #tpu.dot_dimension_numbers<[1], [0], [0], [1], [0, 0, 1, 1], [], []>} : vector<256x384xbf16>, vector<384x128xbf16>, vector<256x128xf32> -> vector<256x128xf32>
    %c0_121 = arith.constant 0 : index
    %c0_122 = arith.constant 0 : index
    %109 = vector.load %arg9[%c0_121, %c0_122] : memref<256x128xf32, #tpu.memory_space<vmem>>, vector<256x128xf32>
    %110 = arith.addf %109, %108 : vector<256x128xf32>
    %c0_123 = arith.constant 0 : index
    %c0_124 = arith.constant 0 : index
    %111 = vector.load %arg9[%c0_123, %c0_124] : memref<256x128xf32, #tpu.memory_space<vmem>>, vector<256x128xf32>
    tpu.vector_store %arg9[%c0_123, %c0_124], %110 {strides = array<i32>} : memref<256x128xf32, #tpu.memory_space<vmem>>, vector<256x128xf32>,
    %c0_125 = arith.constant 0 : index
    %c0_126 = arith.constant 0 : index
    %112 = vector.load %arg9[%c0_125, %c0_126] : memref<256x128xf32, #tpu.memory_space<vmem>>, vector<256x128xf32>
    %c0_127 = arith.constant 0 : index
    %c0_128 = arith.constant 0 : index
    %113 = vector.load %arg5[%c0_127, %c0_128] : memref<1x128xf32, #tpu.memory_space<vmem>>, vector<1x128xf32>
    %114 = vector.broadcast %113 : vector<1x128xf32> to vector<256x128xf32>
    %115 = arith.cmpf oge, %112, %114 : vector<256x128xf32>
    %116 = arith.extui %115 : vector<256x128xi1> to vector<256x128xi32>
    %117 = arith.sitofp %116 : vector<256x128xi32> to vector<256x128xf32>
    %118 = vector.shape_cast %117 : vector<256x128xf32> to vector<16x16x128xf32>
    %c0_129 = arith.constant 0 : index
    %c0_130 = arith.constant 0 : index
    %c0_131 = arith.constant 0 : index
    %c0_132 = arith.constant 0 : index
    %119 = vector.load %arg1[%c0_129, %c0_130, %c0_131, %c0_132] : memref<1x16x16x128xbf16, #tpu.memory_space<vmem>>, vector<1x16x16x128xbf16>
    %120 = vector.shape_cast %119 : vector<1x16x16x128xbf16> to vector<16x16x128xbf16>
    %121 = arith.extf %120 : vector<16x16x128xbf16> to vector<16x16x128xf32>
    %122 = arith.addf %118, %121 : vector<16x16x128xf32>
    %123 = arith.truncf %122 : vector<16x16x128xf32> to vector<16x16x128xbf16>
    %c0_133 = arith.constant 0 : index
    %c0_134 = arith.constant 0 : index
    %c0_135 = arith.constant 0 : index
    %c0_136 = arith.constant 0 : index
    %124 = vector.load %arg6[%c0_133, %c0_134, %c0_135, %c0_136] : memref<1x16x16x128xbf16, #tpu.memory_space<vmem>>, vector<1x16x16x128xbf16>
    %125 = vector.shape_cast %124 : vector<1x16x16x128xbf16> to vector<16x16x128xbf16>
    %126 = vector.shape_cast %123 : vector<16x16x128xbf16> to vector<1x16x16x128xbf16>
    tpu.vector_store %arg6[%c0_133, %c0_134, %c0_135, %c0_136], %126 {strides = array<i32>} : memref<1x16x16x128xbf16, #tpu.memory_space<vmem>>, vector<1x16x16x128xbf16>,
    return
  }
  func.func @transform_0(%arg0: i32) -> (i32, i32, i32, i32) {
    %c0_i32 = arith.constant 0 : i32
    %c0_i32_0 = arith.constant 0 : i32
    %c0_i32_1 = arith.constant 0 : i32
    %c0_i32_2 = arith.constant 0 : i32
    return %arg0, %c0_i32, %c0_i32_0, %c0_i32_1 : i32, i32, i32, i32
  }
  func.func @transform_1(%arg0: i32) -> (i32, i32) {
    %c0_i32 = arith.constant 0 : i32
    %c0_i32_0 = arith.constant 0 : i32
    %c0_i32_1 = arith.constant 0 : i32
    return %c0_i32, %c0_i32_0 : i32, i32
  }
  func.func @transform_2(%arg0: i32) -> (i32, i32) {
    %c0_i32 = arith.constant 0 : i32
    %c0_i32_0 = arith.constant 0 : i32
    %c0_i32_1 = arith.constant 0 : i32
    return %c0_i32, %c0_i32_0 : i32, i32
  }
  func.func @transform_3(%arg0: i32) -> (i32, i32) {
    %c0_i32 = arith.constant 0 : i32
    %c0_i32_0 = arith.constant 0 : i32
    %c0_i32_1 = arith.constant 0 : i32
    return %c0_i32, %c0_i32_0 : i32, i32
  }
  func.func @transform_4(%arg0: i32) -> (i32, i32) {
    %c0_i32 = arith.constant 0 : i32
    %c0_i32_0 = arith.constant 0 : i32
    %c0_i32_1 = arith.constant 0 : i32
    return %c0_i32, %c0_i32_0 : i32, i32
  }
  func.func @transform_5(%arg0: i32) -> (i32, i32, i32, i32) {
    %c0_i32 = arith.constant 0 : i32
    %c0_i32_0 = arith.constant 0 : i32
    %c0_i32_1 = arith.constant 0 : i32
    %c0_i32_2 = arith.constant 0 : i32
    return %arg0, %c0_i32, %c0_i32_0, %c0_i32_1 : i32, i32, i32, i32
  }
}

</mosaic_0001>

<llo_original>
// kernel: basic_block_forward.1
$region0: #{basic_block_forward.1}
  #allocation0 [shape = 'u32[]', space=smem, size = 0x4, offset = 0x4, fixed_abs, tag = 'smem constant byte address 0x4 - core index']
  #allocation1 [shape = 'u32[144,128]{1,0:T(1,128)}', space=vmem, size = 0x12000, scoped, tag = 'internal scratch']
  #allocation2 [shape = 'bf16[18,24,128]{2,1,0:T(8,128)(2,1)}', space=vmem, size = 0x1b000, scoped, tag = 'scratch operand']
  #allocation3 [shape = 'bf16[256,384]{1,0:T(16,128)(2,1)}', space=vmem, size = 0x30000, scoped, tag = 'scratch operand']
  #allocation4 [shape = 'f32[256,128]{1,0:T(8,128)}', space=vmem, size = 0x20000, scoped, tag = 'scratch operand']
  %s0 = inlined_call_operand.vmem [shape: bf16[2,16,16,128], index: 0, kind: input, shape index: {}]
  %s1 = inlined_call_operand.vmem [shape: bf16[1152,128], index: 1, kind: input, shape index: {}]
  %s2 = inlined_call_operand.vmem [shape: f32[1,128], index: 2, kind: input, shape index: {}]
  %s3 = inlined_call_operand.vmem [shape: bf16[1152,128], index: 3, kind: input, shape index: {}]
  %s4 = inlined_call_operand.vmem [shape: f32[1,128], index: 4, kind: input, shape index: {}]
  %s5 = inlined_call_operand.vmem [shape: bf16[2,16,16,128], index: 5, kind: output, shape index: {}]
  %s6 = sld [smem:[#allocation0]]
  $region53: #{basic_block_forward.1} parent=0
    _
  %s8 = ssub.s32 1, %s6
  %s9 = scalar_select 0, %s8, %s6
  loop: start=0, step=1, limit=4
  $region2: #{basic_block_forward.1} parent=0 // loop_pre_header
    _
  $region3: #{basic_block_forward.1} parent=0 // loop_header
    %s11 = sphi 0, %s15
    %p12 = scmp.ge.s32.totalorder %s11, 4
    %s21 = sphi 0, %s23
    %s24 = sphi 0, %s21
    %s25 = sphi 0, %s24
    %s41 = sphi 0, %s25
    %s45 = sphi 0, %s45
    %s47 = sphi 0, %s45
    %s48 = sphi 0, %s47
    %s62 = sphi 0, %s48
    %s66 = sphi 0, %s66
    %s68 = sphi 0, %s66
    %s69 = sphi 0, %s68
    %s83 = sphi 0, %s69
    %s87 = sphi 0, %s87
    %s89 = sphi 0, %s87
    %s90 = sphi 0, %s89
    %s104 = sphi 0, %s90
    %s108 = sphi 0, %s108
    %s110 = sphi 0, %s108
    %s111 = sphi 0, %s110
    %s125 = sphi 0, %s111
    %s131 = sphi 0, %s133
    %s134 = sphi 0, %s131
    %s135 = sphi 0, %s134
    %s151 = sphi 0, %s135
  $region4: #{basic_block_forward.1} parent=0 // loop_header_branch
    %14 = sbr.rel (%p12) target = $region8
  $region5: #{basic_block_forward.1} parent=0 // loop_body
    %s16 = ssub.s32 %s11, 1
    %s17 = ssub.s32 %s11, 2
    %s18 = sadd.s32 %s11, 1
    %s19 = ssub.s32 %s11, %s18
    %p20 = scmp.eq.s32.totalorder %s19, 0
    %s22 = sadd.s32 %s21, 1
    %s23 = scalar_select %p20, %s21, %s22
    %p26 = pneg %p20
    %p27 = scmp.eq.s32.totalorder %s11, 1
    %p28 = por %p26, %p27
    %p29 = scmp.ne.s32.totalorder %s21, %s24
    %p30 = scmp.eq.s32.totalorder %s11, 0
    %p31 = por %p29, %p30
    %p32 = scmp.ne.s32.totalorder %s21, %s24
    %p33 = scmp.eq.s32.totalorder %s16, 1
    %p34 = por %p32, %p33
    %p35 = scmp.ne.s32.totalorder %s24, %s25
    %p36 = scmp.eq.s32.totalorder %s16, 0
    %p37 = por %p35, %p36
    %p38 = scmp.ne.s32.totalorder %s24, %s25
    %p39 = scmp.eq.s32.totalorder %s17, 1
    %p40 = por %p38, %p39
    %p42 = scmp.ne.s32.totalorder %s25, %s41
    %p43 = scmp.eq.s32.totalorder %s17, 0
    %p44 = por %p42, %p43
    %s46 = sadd.s32 %s45, 1
    %p49 = scmp.eq.s32.totalorder %s11, 1
    %p50 = scmp.ne.s32.totalorder %s45, %s47
    %p51 = scmp.eq.s32.totalorder %s11, 0
    %p52 = por %p50, %p51
    %p53 = scmp.ne.s32.totalorder %s45, %s47
    %p54 = scmp.eq.s32.totalorder %s16, 1
    %p55 = por %p53, %p54
    %p56 = scmp.ne.s32.totalorder %s47, %s48
    %p57 = scmp.eq.s32.totalorder %s16, 0
    %p58 = por %p56, %p57
    %p59 = scmp.ne.s32.totalorder %s47, %s48
    %p60 = scmp.eq.s32.totalorder %s17, 1
    %p61 = por %p59, %p60
    %p63 = scmp.ne.s32.totalorder %s48, %s62
    %p64 = scmp.eq.s32.totalorder %s17, 0
    %p65 = por %p63, %p64
    %s67 = sadd.s32 %s66, 1
    %p70 = scmp.eq.s32.totalorder %s11, 1
    %p71 = scmp.ne.s32.totalorder %s66, %s68
    %p72 = scmp.eq.s32.totalorder %s11, 0
    %p73 = por %p71, %p72
    %p74 = scmp.ne.s32.totalorder %s66, %s68
    %p75 = scmp.eq.s32.totalorder %s16, 1
    %p76 = por %p74, %p75
    %p77 = scmp.ne.s32.totalorder %s68, %s69
    %p78 = scmp.eq.s32.totalorder %s16, 0
    %p79 = por %p77, %p78
    %p80 = scmp.ne.s32.totalorder %s68, %s69
    %p81 = scmp.eq.s32.totalorder %s17, 1
    %p82 = por %p80, %p81
    %p84 = scmp.ne.s32.totalorder %s69, %s83
    %p85 = scmp.eq.s32.totalorder %s17, 0
    %p86 = por %p84, %p85
    %s88 = sadd.s32 %s87, 1
    %p91 = scmp.eq.s32.totalorder %s11, 1
    %p92 = scmp.ne.s32.totalorder %s87, %s89
    %p93 = scmp.eq.s32.totalorder %s11, 0
    %p94 = por %p92, %p93
    %p95 = scmp.ne.s32.totalorder %s87, %s89
    %p96 = scmp.eq.s32.totalorder %s16, 1
    %p97 = por %p95, %p96
    %p98 = scmp.ne.s32.totalorder %s89, %s90
    %p99 = scmp.eq.s32.totalorder %s16, 0
    %p100 = por %p98, %p99
    %p101 = scmp.ne.s32.totalorder %s89, %s90
    %p102 = scmp.eq.s32.totalorder %s17, 1
    %p103 = por %p101, %p102
    %p105 = scmp.ne.s32.totalorder %s90, %s104
    %p106 = scmp.eq.s32.totalorder %s17, 0
    %p107 = por %p105, %p106
    %s109 = sadd.s32 %s108, 1
    %p112 = scmp.eq.s32.totalorder %s11, 1
    %p113 = scmp.ne.s32.totalorder %s108, %s110
    %p114 = scmp.eq.s32.totalorder %s11, 0
    %p115 = por %p113, %p114
    %p116 = scmp.ne.s32.totalorder %s108, %s110
    %p117 = scmp.eq.s32.totalorder %s16, 1
    %p118 = por %p116, %p117
    %p119 = scmp.ne.s32.totalorder %s110, %s111
    %p120 = scmp.eq.s32.totalorder %s16, 0
    %p121 = por %p119, %p120
    %p122 = scmp.ne.s32.totalorder %s110, %s111
    %p123 = scmp.eq.s32.totalorder %s17, 1
    %p124 = por %p122, %p123
    %p126 = scmp.ne.s32.totalorder %s111, %s125
    %p127 = scmp.eq.s32.totalorder %s17, 0
    %p128 = por %p126, %p127
    %s129 = ssub.s32 %s11, %s18
    %p130 = scmp.eq.s32.totalorder %s129, 0
    %s132 = sadd.s32 %s131, 1
    %s133 = scalar_select %p130, %s131, %s132
    %p136 = pneg %p130
    %p137 = scmp.eq.s32.totalorder %s11, 1
    %p138 = por %p136, %p137
    %p139 = scmp.ne.s32.totalorder %s131, %s134
    %p140 = scmp.eq.s32.totalorder %s11, 0
    %p141 = por %p139, %p140
    %p142 = scmp.ne.s32.totalorder %s131, %s134
    %p143 = scmp.eq.s32.totalorder %s16, 1
    %p144 = por %p142, %p143
    %p145 = scmp.ne.s32.totalorder %s134, %s135
    %p146 = scmp.eq.s32.totalorder %s16, 0
    %p147 = por %p145, %p146
    %p148 = scmp.ne.s32.totalorder %s134, %s135
    %p149 = scmp.eq.s32.totalorder %s17, 1
    %p150 = por %p148, %p149
    %p152 = scmp.ne.s32.totalorder %s135, %s151
    %p153 = scmp.eq.s32.totalorder %s17, 0
    %p154 = por %p152, %p153
    %p155 = scmp.le.s32.totalorder 1, %s11
    %p156 = scmp.lt.s32.totalorder %s11, 3
    %p157 = pnand %p155, %p156
    %p158 = pneg %p157
    // Predicated region
    $region9: #{basic_block_forward.1} parent=5 // pred_check
      _
    $region10: #{basic_block_forward.1} parent=5 // pred_check_branch
      %160 = sbr.rel (%p157) target = $region12
    $region11: #{basic_block_forward.1} parent=5 // pred_region
      %s161 = ssub.s32 %s11, 1
      // Predicated region
      $region13: #{basic_block_forward.1} parent=11 // pred_check
        %p162 = pneg %p58
      $region14: #{basic_block_forward.1} parent=11 // pred_check_branch
        %164 = sbr.rel (%p162) target = $region16
      $region15: #{basic_block_forward.1} parent=11 // pred_region
        _
      $region16: #{basic_block_forward.1} parent=11 // pred_fallthru
        _
      // Predicated region
      $region17: #{basic_block_forward.1} parent=11 // pred_check
        %p165 = pneg %p79
      $region18: #{basic_block_forward.1} parent=11 // pred_check_branch
        %167 = sbr.rel (%p165) target = $region20
      $region19: #{basic_block_forward.1} parent=11 // pred_region
        _
      $region20: #{basic_block_forward.1} parent=11 // pred_fallthru
        _
      // Predicated region
      $region21: #{basic_block_forward.1} parent=11 // pred_check
        %p168 = pneg %p100
      $region22: #{basic_block_forward.1} parent=11 // pred_check_branch
        %170 = sbr.rel (%p168) target = $region24
      $region23: #{basic_block_forward.1} parent=11 // pred_region
        _
      $region24: #{basic_block_forward.1} parent=11 // pred_fallthru
        _
      // Predicated region
      $region25: #{basic_block_forward.1} parent=11 // pred_check
        %p171 = pneg %p121
      $region26: #{basic_block_forward.1} parent=11 // pred_check_branch
        %173 = sbr.rel (%p171) target = $region28
      $region27: #{basic_block_forward.1} parent=11 // pred_region
        _
      $region28: #{basic_block_forward.1} parent=11 // pred_fallthru
        _
    $region12: #{basic_block_forward.1} parent=5 // pred_fallthru
      _
    %p174 = scmp.lt.s32.totalorder %s11, 2
    // Predicated region
    $region29: #{basic_block_forward.1} parent=5 // pred_check
      %p175 = pneg %p174
    $region30: #{basic_block_forward.1} parent=5 // pred_check_branch
      %177 = sbr.rel (%p175) target = $region32
    $region31: #{basic_block_forward.1} parent=5 // pred_region
      // Predicated region
      $region33: #{basic_block_forward.1} parent=31 // pred_check
        %p178 = pneg %p31
      $region34: #{basic_block_forward.1} parent=31 // pred_check_branch
        %180 = sbr.rel (%p178) target = $region36
      $region35: #{basic_block_forward.1} parent=31 // pred_region
        %p181 = scmp.lt.s32.totalorder %s11, 1
        %s182 = scalar_select %p181, %s11, 1
        %s183 = smul.addr %s182, 32
        %s184 = smul.addr %s183, 4
        %s185 = scalar_lea.vmem %s0, %s184
      $region36: #{basic_block_forward.1} parent=31 // pred_fallthru
        _
    $region32: #{basic_block_forward.1} parent=5 // pred_fallthru
      _
    %p186 = scmp.le.s32.totalorder 1, %s11
    %p187 = scmp.lt.s32.totalorder %s11, 3
    %p188 = pnand %p186, %p187
    %p189 = pneg %p188
    // Predicated region
    $region37: #{basic_block_forward.1} parent=5 // pred_check
      _
    $region38: #{basic_block_forward.1} parent=5 // pred_check_branch
      %191 = sbr.rel (%p188) target = $region40
    $region39: #{basic_block_forward.1} parent=5 // pred_region
      %s192 = ssub.s32 %s11, 1
      %p193 = scmp.lt.s32.totalorder %s16, 1
      %s194 = scalar_select %p193, %s16, 1
      %s195 = smul.addr %s194, 32
      %s196 = smul.addr %s195, 4
      %s197 = scalar_lea.vmem %s0, %s196
      %p198 = pneg %p37
      %p199 = pneg %p34
      %p200 = pneg %p58
      %p201 = pneg %p55
      %p202 = pneg %p79
      %p203 = pneg %p76
      %p204 = pneg %p100
      %p205 = pneg %p97
      %p206 = pneg %p121
      %p207 = pneg %p118
      %p208 = pneg %p147
      %p209 = pneg %p144
      %p210 = scmp.lt.s32.totalorder %s16, 1
      %s211 = scalar_select %p210, %s16, 1
      %s212 = smul.addr %s211, 32
      %s213 = smul.addr %s212, 4
      %s214 = scalar_lea.vmem %s5, %s213
      %p215 = scmp.lt.s32.totalorder %s16, 1
      %s216 = scalar_select %p215, %s16, 1
      %s217 = smul.addr %s216, 32
      %s218 = smul.addr %s217, 4
      %s219 = scalar_lea.vmem %s0, %s218
      %p220 = scmp.lt.s32.totalorder %s16, 1
      %s221 = scalar_select %p220, %s16, 1
      %s222 = smul.addr %s221, 32
      %s223 = smul.addr %s222, 4
      %s224 = scalar_lea.vmem %s5, %s223
      %226 = vst [vmem:[#allocation2] sm:$0xf] 0
      %227 = vst [vmem:[#allocation2 + $0x4] sm:$0xf] 0
      %228 = vst [vmem:[#allocation2 + $0x8] sm:$0xf] 0
      %s229 = scalar_lea.vmem [#allocation2], 204
      %230 = vst [vmem:[%s229] sm:$0xf] 0
      %231 = vst [vmem:[%s229 + $0x4] sm:$0xf] 0
      %232 = vst [vmem:[%s229 + $0x8] sm:$0xf] 0
      %s233 = scalar_lea.vmem [#allocation2], 12
      %vm234 = vcmask 1040384
      %vm235 = vsmask.f32 256
      %vm236 = vmand %vm234, %vm235
      %v237 = vld [vmem:[%s233] sm:$0x1]
      %v238 = vsel %vm236, 0, %v237
      %239 = vst [vmem:[%s233] sm:$0x1] %v238
      %v240 = vld [vmem:[%s233 + $0xc] sm:$0x1]
      %v241 = vsel %vm236, 0, %v240
      %242 = vst [vmem:[%s233 + $0xc] sm:$0x1] %v241
      %v243 = vld [vmem:[%s233 + $0x18] sm:$0x1]
      %v244 = vsel %vm236, 0, %v243
      %245 = vst [vmem:[%s233 + $0x18] sm:$0x1] %v244
      %v246 = vld [vmem:[%s233 + $0x24] sm:$0x1]
      %v247 = vsel %vm236, 0, %v246
      %248 = vst [vmem:[%s233 + $0x24] sm:$0x1] %v247
      %v249 = vld [vmem:[%s233 + $0x30] sm:$0x1]
      %v250 = vsel %vm236, 0, %v249
      %251 = vst [vmem:[%s233 + $0x30] sm:$0x1] %v250
      %v252 = vld [vmem:[%s233 + $0x3c] sm:$0x1]
      %v253 = vsel %vm236, 0, %v252
      %254 = vst [vmem:[%s233 + $0x3c] sm:$0x1] %v253
      %v255 = vld [vmem:[%s233 + $0x48] sm:$0x1]
      %v256 = vsel %vm236, 0, %v255
      %257 = vst [vmem:[%s233 + $0x48] sm:$0x1] %v256
      %v258 = vld [vmem:[%s233 + $0x54] sm:$0x1]
      %v259 = vsel %vm236, 0, %v258
      %260 = vst [vmem:[%s233 + $0x54] sm:$0x1] %v259
      %v261 = vld [vmem:[%s233 + $0x60] sm:$0x1]
      %v262 = vsel %vm236, 0, %v261
      %263 = vst [vmem:[%s233 + $0x60] sm:$0x1] %v262
      %v264 = vld [vmem:[%s233 + $0x6c] sm:$0x1]
      %v265 = vsel %vm236, 0, %v264
      %266 = vst [vmem:[%s233 + $0x6c] sm:$0x1] %v265
      %v267 = vld [vmem:[%s233 + $0x78] sm:$0x1]
      %v268 = vsel %vm236, 0, %v267
      %269 = vst [vmem:[%s233 + $0x78] sm:$0x1] %v268
      %v270 = vld [vmem:[%s233 + $0x84] sm:$0x1]
      %v271 = vsel %vm236, 0, %v270
      %272 = vst [vmem:[%s233 + $0x84] sm:$0x1] %v271
      %v273 = vld [vmem:[%s233 + $0x90] sm:$0x1]
      %v274 = vsel %vm236, 0, %v273
      %275 = vst [vmem:[%s233 + $0x90] sm:$0x1] %v274
      %v276 = vld [vmem:[%s233 + $0x9c] sm:$0x1]
      %v277 = vsel %vm236, 0, %v276
      %278 = vst [vmem:[%s233 + $0x9c] sm:$0x1] %v277
      %v279 = vld [vmem:[%s233 + $0xa8] sm:$0x1]
      %v280 = vsel %vm236, 0, %v279
      %281 = vst [vmem:[%s233 + $0xa8] sm:$0x1] %v280
      %v282 = vld [vmem:[%s233 + $0xb4] sm:$0x1]
      %v283 = vsel %vm236, 0, %v282
      %284 = vst [vmem:[%s233 + $0xb4] sm:$0x1] %v283
      %vm285 = vcmask 1043456
      %vm286 = vsmask.f32 7938
      %vm287 = vmand %vm285, %vm286
      %v288 = vld [vmem:[%s233 + $0x8] sm:$0xf]
      %v289 = vsel %vm287, 0, %v288
      %290 = vst [vmem:[%s233 + $0x8] sm:$0xf] %v289
      %v291 = vld [vmem:[%s233 + $0x14] sm:$0xf]
      %v292 = vsel %vm287, 0, %v291
      %293 = vst [vmem:[%s233 + $0x14] sm:$0xf] %v292
      %v294 = vld [vmem:[%s233 + $0x20] sm:$0xf]
      %v295 = vsel %vm287, 0, %v294
      %296 = vst [vmem:[%s233 + $0x20] sm:$0xf] %v295
      %v297 = vld [vmem:[%s233 + $0x2c] sm:$0xf]
      %v298 = vsel %vm287, 0, %v297
      %299 = vst [vmem:[%s233 + $0x2c] sm:$0xf] %v298
      %v300 = vld [vmem:[%s233 + $0x38] sm:$0xf]
      %v301 = vsel %vm287, 0, %v300
      %302 = vst [vmem:[%s233 + $0x38] sm:$0xf] %v301
      %v303 = vld [vmem:[%s233 + $0x44] sm:$0xf]
      %v304 = vsel %vm287, 0, %v303
      %305 = vst [vmem:[%s233 + $0x44] sm:$0xf] %v304
      %v306 = vld [vmem:[%s233 + $0x50] sm:$0xf]
      %v307 = vsel %vm287, 0, %v306
      %308 = vst [vmem:[%s233 + $0x50] sm:$0xf] %v307
      %v309 = vld [vmem:[%s233 + $0x5c] sm:$0xf]
      %v310 = vsel %vm287, 0, %v309
      %311 = vst [vmem:[%s233 + $0x5c] sm:$0xf] %v310
      %v312 = vld [vmem:[%s233 + $0x68] sm:$0xf]
      %v313 = vsel %vm287, 0, %v312
      %314 = vst [vmem:[%s233 + $0x68] sm:$0xf] %v313
      %v315 = vld [vmem:[%s233 + $0x74] sm:$0xf]
      %v316 = vsel %vm287, 0, %v315
      %317 = vst [vmem:[%s233 + $0x74] sm:$0xf] %v316
      %v318 = vld [vmem:[%s233 + $0x80] sm:$0xf]
      %v319 = vsel %vm287, 0, %v318
      %320 = vst [vmem:[%s233 + $0x80] sm:$0xf] %v319
      %v321 = vld [vmem:[%s233 + $0x8c] sm:$0xf]
      %v322 = vsel %vm287, 0, %v321
      %323 = vst [vmem:[%s233 + $0x8c] sm:$0xf] %v322
      %v324 = vld [vmem:[%s233 + $0x98] sm:$0xf]
      %v325 = vsel %vm287, 0, %v324
      %326 = vst [vmem:[%s233 + $0x98] sm:$0xf] %v325
      %v327 = vld [vmem:[%s233 + $0xa4] sm:$0xf]
      %v328 = vsel %vm287, 0, %v327
      %329 = vst [vmem:[%s233 + $0xa4] sm:$0xf] %v328
      %v330 = vld [vmem:[%s233 + $0xb0] sm:$0xf]
      %v331 = vsel %vm287, 0, %v330
      %332 = vst [vmem:[%s233 + $0xb0] sm:$0xf] %v331
      %v333 = vld [vmem:[%s233 + $0xbc] sm:$0xf]
      %v334 = vsel %vm287, 0, %v333
      %335 = vst [vmem:[%s233 + $0xbc] sm:$0xf] %v334
      %v336 = vld [vmem:[%s219] sm:$0xf]
      %v337 = vld [vmem:[%s219 + $0x4] sm:$0xf]
      %v338 = vld [vmem:[%s219 + $0x8] sm:$0xf]
      %v339 = vld [vmem:[%s219 + $0xc] sm:$0xf]
      %v340 = vld [vmem:[%s219 + $0x10] sm:$0xf]
      %v341 = vld [vmem:[%s219 + $0x14] sm:$0xf]
      %v342 = vld [vmem:[%s219 + $0x18] sm:$0xf]
      %v343 = vld [vmem:[%s219 + $0x1c] sm:$0xf]
      %v344 = vld [vmem:[%s219 + $0x20] sm:$0xf]
      %v345 = vld [vmem:[%s219 + $0x24] sm:$0xf]
      %v346 = vld [vmem:[%s219 + $0x28] sm:$0xf]
      %v347 = vld [vmem:[%s219 + $0x2c] sm:$0xf]
      %v348 = vld [vmem:[%s219 + $0x30] sm:$0xf]
      %v349 = vld [vmem:[%s219 + $0x34] sm:$0xf]
      %v350 = vld [vmem:[%s219 + $0x38] sm:$0xf]
      %v351 = vld [vmem:[%s219 + $0x3c] sm:$0xf]
      %v352 = vld [vmem:[%s219 + $0x40] sm:$0xf]
      %v353 = vld [vmem:[%s219 + $0x44] sm:$0xf]
      %v354 = vld [vmem:[%s219 + $0x48] sm:$0xf]
      %v355 = vld [vmem:[%s219 + $0x4c] sm:$0xf]
      %v356 = vld [vmem:[%s219 + $0x50] sm:$0xf]
      %v357 = vld [vmem:[%s219 + $0x54] sm:$0xf]
      %v358 = vld [vmem:[%s219 + $0x58] sm:$0xf]
      %v359 = vld [vmem:[%s219 + $0x5c] sm:$0xf]
      %v360 = vld [vmem:[%s219 + $0x60] sm:$0xf]
      %v361 = vld [vmem:[%s219 + $0x64] sm:$0xf]
      %v362 = vld [vmem:[%s219 + $0x68] sm:$0xf]
      %v363 = vld [vmem:[%s219 + $0x6c] sm:$0xf]
      %v364 = vld [vmem:[%s219 + $0x70] sm:$0xf]
      %v365 = vld [vmem:[%s219 + $0x74] sm:$0xf]
      %v366 = vld [vmem:[%s219 + $0x78] sm:$0xf]
      %v367 = vld [vmem:[%s219 + $0x7c] sm:$0xf]
      %vm368 = vsmask.f32 4368
      %vm369 = vmor %vm235, %vm368
      %v371 = vshrl.u32 %v336, 16
      %v373 = vrot.slane %v371, 7
      %v374 = vshll.u32 %v336, 16
      %v376 = vor.u32 %v373, %v374
      %v377 = vrot.slane %v373, 4
      %v379 = vshrl.u32 %v337, 16
      %v381 = vrot.slane %v379, 7
      %v382 = vshll.u32 %v337, 16
      %v384 = vor.u32 %v381, %v382
      %v385 = vsel %vm369, %v377, %v384
      %v386 = vrot.slane %v381, 4
      %v388 = vshrl.u32 %v338, 16
      %v390 = vrot.slane %v388, 7
      %v391 = vshll.u32 %v338, 16
      %v393 = vor.u32 %v390, %v391
      %v394 = vrot.slane %v390, 4
      %v396 = vshrl.u32 %v339, 16
      %v398 = vrot.slane %v396, 7
      %v399 = vshll.u32 %v339, 16
      %v401 = vor.u32 %v398, %v399
      %v402 = vsel %vm369, %v394, %v401
      %v403 = vrot.slane %v398, 4
      %v405 = vshrl.u32 %v340, 16
      %v407 = vrot.slane %v405, 7
      %v408 = vshll.u32 %v340, 16
      %v410 = vor.u32 %v407, %v408
      %v411 = vrot.slane %v407, 4
      %v413 = vshrl.u32 %v341, 16
      %v415 = vrot.slane %v413, 7
      %v416 = vshll.u32 %v341, 16
      %v418 = vor.u32 %v415, %v416
      %v419 = vsel %vm369, %v411, %v418
      %v420 = vrot.slane %v415, 4
      %v422 = vshrl.u32 %v342, 16
      %v424 = vrot.slane %v422, 7
      %v425 = vshll.u32 %v342, 16
      %v427 = vor.u32 %v424, %v425
      %v428 = vrot.slane %v424, 4
      %v430 = vshrl.u32 %v343, 16
      %v432 = vrot.slane %v430, 7
      %v433 = vshll.u32 %v343, 16
      %v435 = vor.u32 %v432, %v433
      %v436 = vsel %vm369, %v428, %v435
      %v437 = vrot.slane %v432, 4
      %v439 = vshrl.u32 %v344, 16
      %v441 = vrot.slane %v439, 7
      %v442 = vshll.u32 %v344, 16
      %v444 = vor.u32 %v441, %v442
      %v445 = vrot.slane %v441, 4
      %v447 = vshrl.u32 %v345, 16
      %v449 = vrot.slane %v447, 7
      %v450 = vshll.u32 %v345, 16
      %v452 = vor.u32 %v449, %v450
      %v453 = vsel %vm369, %v445, %v452
      %v454 = vrot.slane %v449, 4
      %v456 = vshrl.u32 %v346, 16
      %v458 = vrot.slane %v456, 7
      %v459 = vshll.u32 %v346, 16
      %v461 = vor.u32 %v458, %v459
      %v462 = vrot.slane %v458, 4
      %v464 = vshrl.u32 %v347, 16
      %v466 = vrot.slane %v464, 7
      %v467 = vshll.u32 %v347, 16
      %v469 = vor.u32 %v466, %v467
      %v470 = vsel %vm369, %v462, %v469
      %v471 = vrot.slane %v466, 4
      %v473 = vshrl.u32 %v348, 16
      %v475 = vrot.slane %v473, 7
      %v476 = vshll.u32 %v348, 16
      %v478 = vor.u32 %v475, %v476
      %v479 = vrot.slane %v475, 4
      %v481 = vshrl.u32 %v349, 16
      %v483 = vrot.slane %v481, 7
      %v484 = vshll.u32 %v349, 16
      %v486 = vor.u32 %v483, %v484
      %v487 = vsel %vm369, %v479, %v486
      %v488 = vrot.slane %v483, 4
      %v490 = vshrl.u32 %v350, 16
      %v492 = vrot.slane %v490, 7
      %v493 = vshll.u32 %v350, 16
      %v495 = vor.u32 %v492, %v493
      %v496 = vrot.slane %v492, 4
      %v498 = vshrl.u32 %v351, 16
      %v500 = vrot.slane %v498, 7
      %v501 = vshll.u32 %v351, 16
      %v503 = vor.u32 %v500, %v501
      %v504 = vsel %vm369, %v496, %v503
      %v505 = vrot.slane %v500, 4
      %v507 = vshrl.u32 %v352, 16
      %v509 = vrot.slane %v507, 7
      %v510 = vshll.u32 %v352, 16
      %v512 = vor.u32 %v509, %v510
      %v513 = vrot.slane %v509, 4
      %v515 = vshrl.u32 %v353, 16
      %v517 = vrot.slane %v515, 7
      %v518 = vshll.u32 %v353, 16
      %v520 = vor.u32 %v517, %v518
      %v521 = vsel %vm369, %v513, %v520
      %v522 = vrot.slane %v517, 4
      %v524 = vshrl.u32 %v354, 16
      %v526 = vrot.slane %v524, 7
      %v527 = vshll.u32 %v354, 16
      %v529 = vor.u32 %v526, %v527
      %v530 = vrot.slane %v526, 4
      %v532 = vshrl.u32 %v355, 16
      %v534 = vrot.slane %v532, 7
      %v535 = vshll.u32 %v355, 16
      %v537 = vor.u32 %v534, %v535
      %v538 = vsel %vm369, %v530, %v537
      %v539 = vrot.slane %v534, 4
      %v541 = vshrl.u32 %v356, 16
      %v543 = vrot.slane %v541, 7
      %v544 = vshll.u32 %v356, 16
      %v546 = vor.u32 %v543, %v544
      %v547 = vrot.slane %v543, 4
      %v549 = vshrl.u32 %v357, 16
      %v551 = vrot.slane %v549, 7
      %v552 = vshll.u32 %v357, 16
      %v554 = vor.u32 %v551, %v552
      %v555 = vsel %vm369, %v547, %v554
      %v556 = vrot.slane %v551, 4
      %v558 = vshrl.u32 %v358, 16
      %v560 = vrot.slane %v558, 7
      %v561 = vshll.u32 %v358, 16
      %v563 = vor.u32 %v560, %v561
      %v564 = vrot.slane %v560, 4
      %v566 = vshrl.u32 %v359, 16
      %v568 = vrot.slane %v566, 7
      %v569 = vshll.u32 %v359, 16
      %v571 = vor.u32 %v568, %v569
      %v572 = vsel %vm369, %v564, %v571
      %v573 = vrot.slane %v568, 4
      %v575 = vshrl.u32 %v360, 16
      %v577 = vrot.slane %v575, 7
      %v578 = vshll.u32 %v360, 16
      %v580 = vor.u32 %v577, %v578
      %v581 = vrot.slane %v577, 4
      %v583 = vshrl.u32 %v361, 16
      %v585 = vrot.slane %v583, 7
      %v586 = vshll.u32 %v361, 16
      %v588 = vor.u32 %v585, %v586
      %v589 = vsel %vm369, %v581, %v588
      %v590 = vrot.slane %v585, 4
      %v592 = vshrl.u32 %v362, 16
      %v594 = vrot.slane %v592, 7
      %v595 = vshll.u32 %v362, 16
      %v597 = vor.u32 %v594, %v595
      %v598 = vrot.slane %v594, 4
      %v600 = vshrl.u32 %v363, 16
      %v602 = vrot.slane %v600, 7
      %v603 = vshll.u32 %v363, 16
      %v605 = vor.u32 %v602, %v603
      %v606 = vsel %vm369, %v598, %v605
      %v607 = vrot.slane %v602, 4
      %v609 = vshrl.u32 %v364, 16
      %v611 = vrot.slane %v609, 7
      %v612 = vshll.u32 %v364, 16
      %v614 = vor.u32 %v611, %v612
      %v615 = vrot.slane %v611, 4
      %v617 = vshrl.u32 %v365, 16
      %v619 = vrot.slane %v617, 7
      %v620 = vshll.u32 %v365, 16
      %v622 = vor.u32 %v619, %v620
      %v623 = vsel %vm369, %v615, %v622
      %v624 = vrot.slane %v619, 4
      %v626 = vshrl.u32 %v366, 16
      %v628 = vrot.slane %v626, 7
      %v629 = vshll.u32 %v366, 16
      %v631 = vor.u32 %v628, %v629
      %v632 = vrot.slane %v628, 4
      %v634 = vshrl.u32 %v367, 16
      %v636 = vrot.slane %v634, 7
      %v637 = vshll.u32 %v367, 16
      %v639 = vor.u32 %v636, %v637
      %v640 = vsel %vm369, %v632, %v639
      %v641 = vrot.slane %v636, 4
      %v690 = vld [vmem:[%s233] sm:$0xf]
      %v691 = vsel %vm287, %v376, %v690
      %692 = vst [vmem:[%s233] sm:$0xf] %v691
      %693 = vst [vmem:[%s233 + $0x4] sm:$0xf] %v385
      %v694 = vld [vmem:[%s233 + $0x8] sm:$0x1]
      %v695 = vsel %vm236, %v386, %v694
      %696 = vst [vmem:[%s233 + $0x8] sm:$0x1] %v695
      %v697 = vld [vmem:[%s233 + $0xc] sm:$0xf]
      %v698 = vsel %vm287, %v393, %v697
      %699 = vst [vmem:[%s233 + $0xc] sm:$0xf] %v698
      %700 = vst [vmem:[%s233 + $0x10] sm:$0xf] %v402
      %v701 = vld [vmem:[%s233 + $0x14] sm:$0x1]
      %v702 = vsel %vm236, %v403, %v701
      %703 = vst [vmem:[%s233 + $0x14] sm:$0x1] %v702
      %v704 = vld [vmem:[%s233 + $0x18] sm:$0xf]
      %v705 = vsel %vm287, %v410, %v704
      %706 = vst [vmem:[%s233 + $0x18] sm:$0xf] %v705
      %707 = vst [vmem:[%s233 + $0x1c] sm:$0xf] %v419
      %v708 = vld [vmem:[%s233 + $0x20] sm:$0x1]
      %v709 = vsel %vm236, %v420, %v708
      %710 = vst [vmem:[%s233 + $0x20] sm:$0x1] %v709
      %v711 = vld [vmem:[%s233 + $0x24] sm:$0xf]
      %v712 = vsel %vm287, %v427, %v711
      %713 = vst [vmem:[%s233 + $0x24] sm:$0xf] %v712
      %714 = vst [vmem:[%s233 + $0x28] sm:$0xf] %v436
      %v715 = vld [vmem:[%s233 + $0x2c] sm:$0x1]
      %v716 = vsel %vm236, %v437, %v715
      %717 = vst [vmem:[%s233 + $0x2c] sm:$0x1] %v716
      %v718 = vld [vmem:[%s233 + $0x30] sm:$0xf]
      %v719 = vsel %vm287, %v444, %v718
      %720 = vst [vmem:[%s233 + $0x30] sm:$0xf] %v719
      %721 = vst [vmem:[%s233 + $0x34] sm:$0xf] %v453
      %v722 = vld [vmem:[%s233 + $0x38] sm:$0x1]
      %v723 = vsel %vm236, %v454, %v722
      %724 = vst [vmem:[%s233 + $0x38] sm:$0x1] %v723
      %v725 = vld [vmem:[%s233 + $0x3c] sm:$0xf]
      %v726 = vsel %vm287, %v461, %v725
      %727 = vst [vmem:[%s233 + $0x3c] sm:$0xf] %v726
      %728 = vst [vmem:[%s233 + $0x40] sm:$0xf] %v470
      %v729 = vld [vmem:[%s233 + $0x44] sm:$0x1]
      %v730 = vsel %vm236, %v471, %v729
      %731 = vst [vmem:[%s233 + $0x44] sm:$0x1] %v730
      %v732 = vld [vmem:[%s233 + $0x48] sm:$0xf]
      %v733 = vsel %vm287, %v478, %v732
      %734 = vst [vmem:[%s233 + $0x48] sm:$0xf] %v733
      %735 = vst [vmem:[%s233 + $0x4c] sm:$0xf] %v487
      %v736 = vld [vmem:[%s233 + $0x50] sm:$0x1]
      %v737 = vsel %vm236, %v488, %v736
      %738 = vst [vmem:[%s233 + $0x50] sm:$0x1] %v737
      %v739 = vld [vmem:[%s233 + $0x54] sm:$0xf]
      %v740 = vsel %vm287, %v495, %v739
      %741 = vst [vmem:[%s233 + $0x54] sm:$0xf] %v740
      %742 = vst [vmem:[%s233 + $0x58] sm:$0xf] %v504
      %v743 = vld [vmem:[%s233 + $0x5c] sm:$0x1]
      %v744 = vsel %vm236, %v505, %v743
      %745 = vst [vmem:[%s233 + $0x5c] sm:$0x1] %v744
      %v746 = vld [vmem:[%s233 + $0x60] sm:$0xf]
      %v747 = vsel %vm287, %v512, %v746
      %748 = vst [vmem:[%s233 + $0x60] sm:$0xf] %v747
      %749 = vst [vmem:[%s233 + $0x64] sm:$0xf] %v521
      %v750 = vld [vmem:[%s233 + $0x68] sm:$0x1]
      %v751 = vsel %vm236, %v522, %v750
      %752 = vst [vmem:[%s233 + $0x68] sm:$0x1] %v751
      %v753 = vld [vmem:[%s233 + $0x6c] sm:$0xf]
      %v754 = vsel %vm287, %v529, %v753
      %755 = vst [vmem:[%s233 + $0x6c] sm:$0xf] %v754
      %756 = vst [vmem:[%s233 + $0x70] sm:$0xf] %v538
      %v757 = vld [vmem:[%s233 + $0x74] sm:$0x1]
      %v758 = vsel %vm236, %v539, %v757
      %759 = vst [vmem:[%s233 + $0x74] sm:$0x1] %v758
      %v760 = vld [vmem:[%s233 + $0x78] sm:$0xf]
      %v761 = vsel %vm287, %v546, %v760
      %762 = vst [vmem:[%s233 + $0x78] sm:$0xf] %v761
      %763 = vst [vmem:[%s233 + $0x7c] sm:$0xf] %v555
      %v764 = vld [vmem:[%s233 + $0x80] sm:$0x1]
      %v765 = vsel %vm236, %v556, %v764
      %766 = vst [vmem:[%s233 + $0x80] sm:$0x1] %v765
      %v767 = vld [vmem:[%s233 + $0x84] sm:$0xf]
      %v768 = vsel %vm287, %v563, %v767
      %769 = vst [vmem:[%s233 + $0x84] sm:$0xf] %v768
      %770 = vst [vmem:[%s233 + $0x88] sm:$0xf] %v572
      %v771 = vld [vmem:[%s233 + $0x8c] sm:$0x1]
      %v772 = vsel %vm236, %v573, %v771
      %773 = vst [vmem:[%s233 + $0x8c] sm:$0x1] %v772
      %v774 = vld [vmem:[%s233 + $0x90] sm:$0xf]
      %v775 = vsel %vm287, %v580, %v774
      %776 = vst [vmem:[%s233 + $0x90] sm:$0xf] %v775
      %777 = vst [vmem:[%s233 + $0x94] sm:$0xf] %v589
      %v778 = vld [vmem:[%s233 + $0x98] sm:$0x1]
      %v779 = vsel %vm236, %v590, %v778
      %780 = vst [vmem:[%s233 + $0x98] sm:$0x1] %v779
      %v781 = vld [vmem:[%s233 + $0x9c] sm:$0xf]
      %v782 = vsel %vm287, %v597, %v781
      %783 = vst [vmem:[%s233 + $0x9c] sm:$0xf] %v782
      %784 = vst [vmem:[%s233 + $0xa0] sm:$0xf] %v606
      %v785 = vld [vmem:[%s233 + $0xa4] sm:$0x1]
      %v786 = vsel %vm236, %v607, %v785
      %787 = vst [vmem:[%s233 + $0xa4] sm:$0x1] %v786
      %v788 = vld [vmem:[%s233 + $0xa8] sm:$0xf]
      %v789 = vsel %vm287, %v614, %v788
      %790 = vst [vmem:[%s233 + $0xa8] sm:$0xf] %v789
      %791 = vst [vmem:[%s233 + $0xac] sm:$0xf] %v623
      %v792 = vld [vmem:[%s233 + $0xb0] sm:$0x1]
      %v793 = vsel %vm236, %v624, %v792
      %794 = vst [vmem:[%s233 + $0xb0] sm:$0x1] %v793
      %v795 = vld [vmem:[%s233 + $0xb4] sm:$0xf]
      %v796 = vsel %vm287, %v631, %v795
      %797 = vst [vmem:[%s233 + $0xb4] sm:$0xf] %v796
      %798 = vst [vmem:[%s233 + $0xb8] sm:$0xf] %v640
      %v799 = vld [vmem:[%s233 + $0xbc] sm:$0x1]
      %v800 = vsel %vm236, %v641, %v799
      %801 = vst [vmem:[%s233 + $0xbc] sm:$0x1] %v800
      %v802 = vld [vmem:[#allocation2] sm:$0xf]
      %v803 = vld [vmem:[#allocation2 + $0x4] sm:$0xf]
      %v804 = vld [vmem:[#allocation2 + $0x8] sm:$0xf]
      %v805 = vld [vmem:[#allocation2 + $0xc] sm:$0xf]
      %v806 = vld [vmem:[#allocation2 + $0x10] sm:$0xf]
      %v807 = vld [vmem:[#allocation2 + $0x14] sm:$0xf]
      %v808 = vld [vmem:[#allocation2 + $0x18] sm:$0xf]
      %v809 = vld [vmem:[#allocation2 + $0x1c] sm:$0xf]
      %v810 = vld [vmem:[#allocation2 + $0x20] sm:$0xf]
      %v811 = vld [vmem:[#allocation2 + $0x24] sm:$0xf]
      %v812 = vld [vmem:[#allocation2 + $0x28] sm:$0xf]
      %v813 = vld [vmem:[#allocation2 + $0x2c] sm:$0xf]
      %v814 = vld [vmem:[#allocation2 + $0x30] sm:$0xf]
      %v815 = vld [vmem:[#allocation2 + $0x34] sm:$0xf]
      %v816 = vld [vmem:[#allocation2 + $0x38] sm:$0xf]
      %v817 = vld [vmem:[#allocation2 + $0x3c] sm:$0xf]
      %v818 = vld [vmem:[#allocation2 + $0x40] sm:$0xf]
      %v819 = vld [vmem:[#allocation2 + $0x44] sm:$0xf]
      %v820 = vld [vmem:[#allocation2 + $0x48] sm:$0xf]
      %v821 = vld [vmem:[#allocation2 + $0x4c] sm:$0xf]
      %v822 = vld [vmem:[#allocation2 + $0x50] sm:$0xf]
      %v823 = vld [vmem:[#allocation2 + $0x54] sm:$0xf]
      %v824 = vld [vmem:[#allocation2 + $0x58] sm:$0xf]
      %v825 = vld [vmem:[#allocation2 + $0x5c] sm:$0xf]
      %v826 = vld [vmem:[#allocation2 + $0x60] sm:$0xf]
      %v827 = vld [vmem:[#allocation2 + $0x64] sm:$0xf]
      %v828 = vld [vmem:[#allocation2 + $0x68] sm:$0xf]
      %v829 = vld [vmem:[#allocation2 + $0x6c] sm:$0xf]
      %v830 = vld [vmem:[#allocation2 + $0x70] sm:$0xf]
      %v831 = vld [vmem:[#allocation2 + $0x74] sm:$0xf]
      %v832 = vld [vmem:[#allocation2 + $0x78] sm:$0xf]
      %v833 = vld [vmem:[#allocation2 + $0x7c] sm:$0xf]
      %v834 = vld [vmem:[#allocation2 + $0x80] sm:$0xf]
      %v835 = vld [vmem:[#allocation2 + $0x84] sm:$0xf]
      %v836 = vld [vmem:[#allocation2 + $0x88] sm:$0xf]
      %v837 = vld [vmem:[#allocation2 + $0x8c] sm:$0xf]
      %v838 = vld [vmem:[#allocation2 + $0x90] sm:$0xf]
      %v839 = vld [vmem:[#allocation2 + $0x94] sm:$0xf]
      %v840 = vld [vmem:[#allocation2 + $0x98] sm:$0xf]
      %v841 = vld [vmem:[#allocation2 + $0x9c] sm:$0xf]
      %v842 = vld [vmem:[#allocation2 + $0xa0] sm:$0xf]
      %v843 = vld [vmem:[#allocation2 + $0xa4] sm:$0xf]
      %v844 = vld [vmem:[#allocation2 + $0xa8] sm:$0xf]
      %v845 = vld [vmem:[#allocation2 + $0xac] sm:$0xf]
      %v846 = vld [vmem:[#allocation2 + $0xb0] sm:$0xf]
      %v847 = vld [vmem:[#allocation2 + $0xb4] sm:$0xf]
      %v848 = vld [vmem:[#allocation2 + $0xb8] sm:$0xf]
      %v849 = vld [vmem:[#allocation2 + $0xbc] sm:$0xf]
      %v882 = vunpack.c.l.b16 %v802
      %v883 = vunpack.c.l.b16 %v803
      %v884 = vunpack.c.l.b16 %v805
      %v885 = vunpack.c.l.b16 %v806
      %v886 = vunpack.c.l.b16 %v808
      %v887 = vunpack.c.l.b16 %v809
      %v888 = vunpack.c.l.b16 %v811
      %v889 = vunpack.c.l.b16 %v812
      %v890 = vunpack.c.l.b16 %v814
      %v891 = vunpack.c.l.b16 %v815
      %v892 = vunpack.c.l.b16 %v817
      %v893 = vunpack.c.l.b16 %v818
      %v894 = vunpack.c.l.b16 %v820
      %v895 = vunpack.c.l.b16 %v821
      %v896 = vunpack.c.l.b16 %v823
      %v897 = vunpack.c.l.b16 %v824
      %v898 = vunpack.c.l.b16 %v826
      %v899 = vunpack.c.l.b16 %v827
      %v900 = vunpack.c.l.b16 %v829
      %v901 = vunpack.c.l.b16 %v830
      %v902 = vunpack.c.l.b16 %v832
      %v903 = vunpack.c.l.b16 %v833
      %v904 = vunpack.c.l.b16 %v835
      %v905 = vunpack.c.l.b16 %v836
      %v906 = vunpack.c.l.b16 %v838
      %v907 = vunpack.c.l.b16 %v839
      %v908 = vunpack.c.l.b16 %v841
      %v909 = vunpack.c.l.b16 %v842
      %v910 = vunpack.c.l.b16 %v844
      %v911 = vunpack.c.l.b16 %v845
      %v912 = vunpack.c.l.b16 %v847
      %v913 = vunpack.c.l.b16 %v848
      %v914 = vpack.c.b16 %v883, %v882
      %v915 = vpack.c.b16 %v885, %v884
      %v916 = vpack.c.b16 %v887, %v886
      %v917 = vpack.c.b16 %v889, %v888
      %v918 = vpack.c.b16 %v891, %v890
      %v919 = vpack.c.b16 %v893, %v892
      %v920 = vpack.c.b16 %v895, %v894
      %v921 = vpack.c.b16 %v897, %v896
      %v922 = vpack.c.b16 %v899, %v898
      %v923 = vpack.c.b16 %v901, %v900
      %v924 = vpack.c.b16 %v903, %v902
      %v925 = vpack.c.b16 %v905, %v904
      %v926 = vpack.c.b16 %v907, %v906
      %v927 = vpack.c.b16 %v909, %v908
      %v928 = vpack.c.b16 %v911, %v910
      %v929 = vpack.c.b16 %v913, %v912
      %946 = vst [vmem:[#allocation3] sm:$0xff] %v914
      %947 = vst [vmem:[#allocation3 + $0x18] sm:$0xff] %v915
      %948 = vst [vmem:[#allocation3 + $0x30] sm:$0xff] %v916
      %949 = vst [vmem:[#allocation3 + $0x48] sm:$0xff] %v917
      %950 = vst [vmem:[#allocation3 + $0x60] sm:$0xff] %v918
      %951 = vst [vmem:[#allocation3 + $0x78] sm:$0xff] %v919
      %952 = vst [vmem:[#allocation3 + $0x90] sm:$0xff] %v920
      %953 = vst [vmem:[#allocation3 + $0xa8] sm:$0xff] %v921
      %954 = vst [vmem:[#allocation3 + $0xc0] sm:$0xff] %v922
      %955 = vst [vmem:[#allocation3 + $0xd8] sm:$0xff] %v923
      %956 = vst [vmem:[#allocation3 + $0xf0] sm:$0xff] %v924
      %957 = vst [vmem:[#allocation3 + $0x108] sm:$0xff] %v925
      %958 = vst [vmem:[#allocation3 + $0x120] sm:$0xff] %v926
      %959 = vst [vmem:[#allocation3 + $0x138] sm:$0xff] %v927
      %960 = vst [vmem:[#allocation3 + $0x150] sm:$0xff] %v928
      %961 = vst [vmem:[#allocation3 + $0x168] sm:$0xff] %v929
      %vm962 = vsmask.f32 3328
      %vm963 = vsmask.f32 7440
      %vm964 = vmor %vm962, %vm963
      %v966 = vshrl.u32 %v802, 16
      %v968 = vrot.slane %v966, 4
      %v969 = vshll.u32 %v802, 16
      %v971 = vrot.slane %v969, 5
      %v972 = vor.u32 %v968, %v971
      %v973 = vrot.slane %v972, 4
      %v975 = vshll.u32 %v803, 16
      %v977 = vrot.slane %v975, 5
      %v978 = vsel %vm964, %v973, %v977
      %v979 = vshrl.u32 %v803, 16
      %v981 = vrot.slane %v979, 4
      %v982 = vor.u32 %v981, %v977
      %v983 = vrot.slane %v982, 4
      %v985 = vshll.u32 %v804, 16
      %v987 = vrot.slane %v985, 5
      %v988 = vsel %vm964, %v983, %v987
      %v990 = vshrl.u32 %v805, 16
      %v992 = vrot.slane %v990, 4
      %v993 = vshll.u32 %v805, 16
      %v995 = vrot.slane %v993, 5
      %v996 = vor.u32 %v992, %v995
      %v997 = vrot.slane %v996, 4
      %v999 = vshll.u32 %v806, 16
      %v1001 = vrot.slane %v999, 5
      %v1002 = vsel %vm964, %v997, %v1001
      %v1003 = vshrl.u32 %v806, 16
      %v1005 = vrot.slane %v1003, 4
      %v1006 = vor.u32 %v1005, %v1001
      %v1007 = vrot.slane %v1006, 4
      %v1009 = vshll.u32 %v807, 16
      %v1011 = vrot.slane %v1009, 5
      %v1012 = vsel %vm964, %v1007, %v1011
      %v1014 = vshrl.u32 %v808, 16
      %v1016 = vrot.slane %v1014, 4
      %v1017 = vshll.u32 %v808, 16
      %v1019 = vrot.slane %v1017, 5
      %v1020 = vor.u32 %v1016, %v1019
      %v1021 = vrot.slane %v1020, 4
      %v1023 = vshll.u32 %v809, 16
      %v1025 = vrot.slane %v1023, 5
      %v1026 = vsel %vm964, %v1021, %v1025
      %v1027 = vshrl.u32 %v809, 16
      %v1029 = vrot.slane %v1027, 4
      %v1030 = vor.u32 %v1029, %v1025
      %v1031 = vrot.slane %v1030, 4
      %v1033 = vshll.u32 %v810, 16
      %v1035 = vrot.slane %v1033, 5
      %v1036 = vsel %vm964, %v1031, %v1035
      %v1038 = vshrl.u32 %v811, 16
      %v1040 = vrot.slane %v1038, 4
      %v1041 = vshll.u32 %v811, 16
      %v1043 = vrot.slane %v1041, 5
      %v1044 = vor.u32 %v1040, %v1043
      %v1045 = vrot.slane %v1044, 4
      %v1047 = vshll.u32 %v812, 16
      %v1049 = vrot.slane %v1047, 5
      %v1050 = vsel %vm964, %v1045, %v1049
      %v1051 = vshrl.u32 %v812, 16
      %v1053 = vrot.slane %v1051, 4
      %v1054 = vor.u32 %v1053, %v1049
      %v1055 = vrot.slane %v1054, 4
      %v1057 = vshll.u32 %v813, 16
      %v1059 = vrot.slane %v1057, 5
      %v1060 = vsel %vm964, %v1055, %v1059
      %v1062 = vshrl.u32 %v814, 16
      %v1064 = vrot.slane %v1062, 4
      %v1065 = vshll.u32 %v814, 16
      %v1067 = vrot.slane %v1065, 5
      %v1068 = vor.u32 %v1064, %v1067
      %v1069 = vrot.slane %v1068, 4
      %v1071 = vshll.u32 %v815, 16
      %v1073 = vrot.slane %v1071, 5
      %v1074 = vsel %vm964, %v1069, %v1073
      %v1075 = vshrl.u32 %v815, 16
      %v1077 = vrot.slane %v1075, 4
      %v1078 = vor.u32 %v1077, %v1073
      %v1079 = vrot.slane %v1078, 4
      %v1081 = vshll.u32 %v816, 16
      %v1083 = vrot.slane %v1081, 5
      %v1084 = vsel %vm964, %v1079, %v1083
      %v1086 = vshrl.u32 %v817, 16
      %v1088 = vrot.slane %v1086, 4
      %v1089 = vshll.u32 %v817, 16
      %v1091 = vrot.slane %v1089, 5
      %v1092 = vor.u32 %v1088, %v1091
      %v1093 = vrot.slane %v1092, 4
      %v1095 = vshll.u32 %v818, 16
      %v1097 = vrot.slane %v1095, 5
      %v1098 = vsel %vm964, %v1093, %v1097
      %v1099 = vshrl.u32 %v818, 16
      %v1101 = vrot.slane %v1099, 4
      %v1102 = vor.u32 %v1101, %v1097
      %v1103 = vrot.slane %v1102, 4
      %v1105 = vshll.u32 %v819, 16
      %v1107 = vrot.slane %v1105, 5
      %v1108 = vsel %vm964, %v1103, %v1107
      %v1110 = vshrl.u32 %v820, 16
      %v1112 = vrot.slane %v1110, 4
      %v1113 = vshll.u32 %v820, 16
      %v1115 = vrot.slane %v1113, 5
      %v1116 = vor.u32 %v1112, %v1115
      %v1117 = vrot.slane %v1116, 4
      %v1119 = vshll.u32 %v821, 16
      %v1121 = vrot.slane %v1119, 5
      %v1122 = vsel %vm964, %v1117, %v1121
      %v1123 = vshrl.u32 %v821, 16
      %v1125 = vrot.slane %v1123, 4
      %v1126 = vor.u32 %v1125, %v1121
      %v1127 = vrot.slane %v1126, 4
      %v1129 = vshll.u32 %v822, 16
      %v1131 = vrot.slane %v1129, 5
      %v1132 = vsel %vm964, %v1127, %v1131
      %v1134 = vshrl.u32 %v823, 16
      %v1136 = vrot.slane %v1134, 4
      %v1137 = vshll.u32 %v823, 16
      %v1139 = vrot.slane %v1137, 5
      %v1140 = vor.u32 %v1136, %v1139
      %v1141 = vrot.slane %v1140, 4
      %v1143 = vshll.u32 %v824, 16
      %v1145 = vrot.slane %v1143, 5
      %v1146 = vsel %vm964, %v1141, %v1145
      %v1147 = vshrl.u32 %v824, 16
      %v1149 = vrot.slane %v1147, 4
      %v1150 = vor.u32 %v1149, %v1145
      %v1151 = vrot.slane %v1150, 4
      %v1153 = vshll.u32 %v825, 16
      %v1155 = vrot.slane %v1153, 5
      %v1156 = vsel %vm964, %v1151, %v1155
      %v1158 = vshrl.u32 %v826, 16
      %v1160 = vrot.slane %v1158, 4
      %v1161 = vshll.u32 %v826, 16
      %v1163 = vrot.slane %v1161, 5
      %v1164 = vor.u32 %v1160, %v1163
      %v1165 = vrot.slane %v1164, 4
      %v1167 = vshll.u32 %v827, 16
      %v1169 = vrot.slane %v1167, 5
      %v1170 = vsel %vm964, %v1165, %v1169
      %v1171 = vshrl.u32 %v827, 16
      %v1173 = vrot.slane %v1171, 4
      %v1174 = vor.u32 %v1173, %v1169
      %v1175 = vrot.slane %v1174, 4
      %v1177 = vshll.u32 %v828, 16
      %v1179 = vrot.slane %v1177, 5
      %v1180 = vsel %vm964, %v1175, %v1179
      %v1182 = vshrl.u32 %v829, 16
      %v1184 = vrot.slane %v1182, 4
      %v1185 = vshll.u32 %v829, 16
      %v1187 = vrot.slane %v1185, 5
      %v1188 = vor.u32 %v1184, %v1187
      %v1189 = vrot.slane %v1188, 4
      %v1191 = vshll.u32 %v830, 16
      %v1193 = vrot.slane %v1191, 5
      %v1194 = vsel %vm964, %v1189, %v1193
      %v1195 = vshrl.u32 %v830, 16
      %v1197 = vrot.slane %v1195, 4
      %v1198 = vor.u32 %v1197, %v1193
      %v1199 = vrot.slane %v1198, 4
      %v1201 = vshll.u32 %v831, 16
      %v1203 = vrot.slane %v1201, 5
      %v1204 = vsel %vm964, %v1199, %v1203
      %v1206 = vshrl.u32 %v832, 16
      %v1208 = vrot.slane %v1206, 4
      %v1209 = vshll.u32 %v832, 16
      %v1211 = vrot.slane %v1209, 5
      %v1212 = vor.u32 %v1208, %v1211
      %v1213 = vrot.slane %v1212, 4
      %v1215 = vshll.u32 %v833, 16
      %v1217 = vrot.slane %v1215, 5
      %v1218 = vsel %vm964, %v1213, %v1217
      %v1219 = vshrl.u32 %v833, 16
      %v1221 = vrot.slane %v1219, 4
      %v1222 = vor.u32 %v1221, %v1217
      %v1223 = vrot.slane %v1222, 4
      %v1225 = vshll.u32 %v834, 16
      %v1227 = vrot.slane %v1225, 5
      %v1228 = vsel %vm964, %v1223, %v1227
      %v1230 = vshrl.u32 %v835, 16
      %v1232 = vrot.slane %v1230, 4
      %v1233 = vshll.u32 %v835, 16
      %v1235 = vrot.slane %v1233, 5
      %v1236 = vor.u32 %v1232, %v1235
      %v1237 = vrot.slane %v1236, 4
      %v1239 = vshll.u32 %v836, 16
      %v1241 = vrot.slane %v1239, 5
      %v1242 = vsel %vm964, %v1237, %v1241
      %v1243 = vshrl.u32 %v836, 16
      %v1245 = vrot.slane %v1243, 4
      %v1246 = vor.u32 %v1245, %v1241
      %v1247 = vrot.slane %v1246, 4
      %v1249 = vshll.u32 %v837, 16
      %v1251 = vrot.slane %v1249, 5
      %v1252 = vsel %vm964, %v1247, %v1251
      %v1254 = vshrl.u32 %v838, 16
      %v1256 = vrot.slane %v1254, 4
      %v1257 = vshll.u32 %v838, 16
      %v1259 = vrot.slane %v1257, 5
      %v1260 = vor.u32 %v1256, %v1259
      %v1261 = vrot.slane %v1260, 4
      %v1263 = vshll.u32 %v839, 16
      %v1265 = vrot.slane %v1263, 5
      %v1266 = vsel %vm964, %v1261, %v1265
      %v1267 = vshrl.u32 %v839, 16
      %v1269 = vrot.slane %v1267, 4
      %v1270 = vor.u32 %v1269, %v1265
      %v1271 = vrot.slane %v1270, 4
      %v1273 = vshll.u32 %v840, 16
      %v1275 = vrot.slane %v1273, 5
      %v1276 = vsel %vm964, %v1271, %v1275
      %v1278 = vshrl.u32 %v841, 16
      %v1280 = vrot.slane %v1278, 4
      %v1281 = vshll.u32 %v841, 16
      %v1283 = vrot.slane %v1281, 5
      %v1284 = vor.u32 %v1280, %v1283
      %v1285 = vrot.slane %v1284, 4
      %v1287 = vshll.u32 %v842, 16
      %v1289 = vrot.slane %v1287, 5
      %v1290 = vsel %vm964, %v1285, %v1289
      %v1291 = vshrl.u32 %v842, 16
      %v1293 = vrot.slane %v1291, 4
      %v1294 = vor.u32 %v1293, %v1289
      %v1295 = vrot.slane %v1294, 4
      %v1297 = vshll.u32 %v843, 16
      %v1299 = vrot.slane %v1297, 5
      %v1300 = vsel %vm964, %v1295, %v1299
      %v1302 = vshrl.u32 %v844, 16
      %v1304 = vrot.slane %v1302, 4
      %v1305 = vshll.u32 %v844, 16
      %v1307 = vrot.slane %v1305, 5
      %v1308 = vor.u32 %v1304, %v1307
      %v1309 = vrot.slane %v1308, 4
      %v1311 = vshll.u32 %v845, 16
      %v1313 = vrot.slane %v1311, 5
      %v1314 = vsel %vm964, %v1309, %v1313
      %v1315 = vshrl.u32 %v845, 16
      %v1317 = vrot.slane %v1315, 4
      %v1318 = vor.u32 %v1317, %v1313
      %v1319 = vrot.slane %v1318, 4
      %v1321 = vshll.u32 %v846, 16
      %v1323 = vrot.slane %v1321, 5
      %v1324 = vsel %vm964, %v1319, %v1323
      %v1326 = vshrl.u32 %v847, 16
      %v1328 = vrot.slane %v1326, 4
      %v1329 = vshll.u32 %v847, 16
      %v1331 = vrot.slane %v1329, 5
      %v1332 = vor.u32 %v1328, %v1331
      %v1333 = vrot.slane %v1332, 4
      %v1335 = vshll.u32 %v848, 16
      %v1337 = vrot.slane %v1335, 5
      %v1338 = vsel %vm964, %v1333, %v1337
      %v1339 = vshrl.u32 %v848, 16
      %v1341 = vrot.slane %v1339, 4
      %v1342 = vor.u32 %v1341, %v1337
      %v1343 = vrot.slane %v1342, 4
      %v1345 = vshll.u32 %v849, 16
      %v1347 = vrot.slane %v1345, 5
      %v1348 = vsel %vm964, %v1343, %v1347
      %v1349 = vunpack.c.l.b16 %v978
      %v1350 = vunpack.c.l.b16 %v988
      %v1351 = vunpack.c.l.b16 %v1002
      %v1352 = vunpack.c.l.b16 %v1012
      %v1353 = vunpack.c.l.b16 %v1026
      %v1354 = vunpack.c.l.b16 %v1036
      %v1355 = vunpack.c.l.b16 %v1050
      %v1356 = vunpack.c.l.b16 %v1060
      %v1357 = vunpack.c.l.b16 %v1074
      %v1358 = vunpack.c.l.b16 %v1084
      %v1359 = vunpack.c.l.b16 %v1098
      %v1360 = vunpack.c.l.b16 %v1108
      %v1361 = vunpack.c.l.b16 %v1122
      %v1362 = vunpack.c.l.b16 %v1132
      %v1363 = vunpack.c.l.b16 %v1146
      %v1364 = vunpack.c.l.b16 %v1156
      %v1365 = vunpack.c.l.b16 %v1170
      %v1366 = vunpack.c.l.b16 %v1180
      %v1367 = vunpack.c.l.b16 %v1194
      %v1368 = vunpack.c.l.b16 %v1204
      %v1369 = vunpack.c.l.b16 %v1218
      %v1370 = vunpack.c.l.b16 %v1228
      %v1371 = vunpack.c.l.b16 %v1242
      %v1372 = vunpack.c.l.b16 %v1252
      %v1373 = vunpack.c.l.b16 %v1266
      %v1374 = vunpack.c.l.b16 %v1276
      %v1375 = vunpack.c.l.b16 %v1290
      %v1376 = vunpack.c.l.b16 %v1300
      %v1377 = vunpack.c.l.b16 %v1314
      %v1378 = vunpack.c.l.b16 %v1324
      %v1379 = vunpack.c.l.b16 %v1338
      %v1380 = vunpack.c.l.b16 %v1348
      %v1381 = vpack.c.b16 %v1350, %v1349
      %v1382 = vpack.c.b16 %v1352, %v1351
      %v1383 = vpack.c.b16 %v1354, %v1353
      %v1384 = vpack.c.b16 %v1356, %v1355
      %v1385 = vpack.c.b16 %v1358, %v1357
      %v1386 = vpack.c.b16 %v1360, %v1359
      %v1387 = vpack.c.b16 %v1362, %v1361
      %v1388 = vpack.c.b16 %v1364, %v1363
      %v1389 = vpack.c.b16 %v1366, %v1365
      %v1390 = vpack.c.b16 %v1368, %v1367
      %v1391 = vpack.c.b16 %v1370, %v1369
      %v1392 = vpack.c.b16 %v1372, %v1371
      %v1393 = vpack.c.b16 %v1374, %v1373
      %v1394 = vpack.c.b16 %v1376, %v1375
      %v1395 = vpack.c.b16 %v1378, %v1377
      %v1396 = vpack.c.b16 %v1380, %v1379
      %1413 = vst [vmem:[#allocation3 + $0x8] sm:$0xff] %v1381
      %1414 = vst [vmem:[#allocation3 + $0x20] sm:$0xff] %v1382
      %1415 = vst [vmem:[#allocation3 + $0x38] sm:$0xff] %v1383
      %1416 = vst [vmem:[#allocation3 + $0x50] sm:$0xff] %v1384
      %1417 = vst [vmem:[#allocation3 + $0x68] sm:$0xff] %v1385
      %1418 = vst [vmem:[#allocation3 + $0x80] sm:$0xff] %v1386
      %1419 = vst [vmem:[#allocation3 + $0x98] sm:$0xff] %v1387
      %1420 = vst [vmem:[#allocation3 + $0xb0] sm:$0xff] %v1388
      %1421 = vst [vmem:[#allocation3 + $0xc8] sm:$0xff] %v1389
      %1422 = vst [vmem:[#allocation3 + $0xe0] sm:$0xff] %v1390
      %1423 = vst [vmem:[#allocation3 + $0xf8] sm:$0xff] %v1391
      %1424 = vst [vmem:[#allocation3 + $0x110] sm:$0xff] %v1392
      %1425 = vst [vmem:[#allocation3 + $0x128] sm:$0xff] %v1393
      %1426 = vst [vmem:[#allocation3 + $0x140] sm:$0xff] %v1394
      %1427 = vst [vmem:[#allocation3 + $0x158] sm:$0xff] %v1395
      %1428 = vst [vmem:[#allocation3 + $0x170] sm:$0xff] %v1396
      %vm1445 = vcmask 1042432
      %vm1446 = vcmask 1046532
      %vm1447 = vmor %vm1445, %vm1446
      %v1448 = vrot.slane %v802, 5
      %v1449 = vrot.slane %v1448, 4
      %v1450 = vrot.slane %v803, 5
      %v1451 = vsel %vm1447, %v1449, %v1450
      %v1452 = vrot.slane %v1450, 4
      %v1453 = vrot.slane %v804, 5
      %v1454 = vsel %vm1447, %v1452, %v1453
      %v1455 = vrot.slane %v805, 5
      %v1456 = vrot.slane %v1455, 4
      %v1457 = vrot.slane %v806, 5
      %v1458 = vsel %vm1447, %v1456, %v1457
      %v1459 = vrot.slane %v1457, 4
      %v1460 = vrot.slane %v807, 5
      %v1461 = vsel %vm1447, %v1459, %v1460
      %v1462 = vrot.slane %v808, 5
      %v1463 = vrot.slane %v1462, 4
      %v1464 = vrot.slane %v809, 5
      %v1465 = vsel %vm1447, %v1463, %v1464
      %v1466 = vrot.slane %v1464, 4
      %v1467 = vrot.slane %v810, 5
      %v1468 = vsel %vm1447, %v1466, %v1467
      %v1469 = vrot.slane %v811, 5
      %v1470 = vrot.slane %v1469, 4
      %v1471 = vrot.slane %v812, 5
      %v1472 = vsel %vm1447, %v1470, %v1471
      %v1473 = vrot.slane %v1471, 4
      %v1474 = vrot.slane %v813, 5
      %v1475 = vsel %vm1447, %v1473, %v1474
      %v1476 = vrot.slane %v814, 5
      %v1477 = vrot.slane %v1476, 4
      %v1478 = vrot.slane %v815, 5
      %v1479 = vsel %vm1447, %v1477, %v1478
      %v1480 = vrot.slane %v1478, 4
      %v1481 = vrot.slane %v816, 5
      %v1482 = vsel %vm1447, %v1480, %v1481
      %v1483 = vrot.slane %v817, 5
      %v1484 = vrot.slane %v1483, 4
      %v1485 = vrot.slane %v818, 5
      %v1486 = vsel %vm1447, %v1484, %v1485
      %v1487 = vrot.slane %v1485, 4
      %v1488 = vrot.slane %v819, 5
      %v1489 = vsel %vm1447, %v1487, %v1488
      %v1490 = vrot.slane %v820, 5
      %v1491 = vrot.slane %v1490, 4
      %v1492 = vrot.slane %v821, 5
      %v1493 = vsel %vm1447, %v1491, %v1492
      %v1494 = vrot.slane %v1492, 4
      %v1495 = vrot.slane %v822, 5
      %v1496 = vsel %vm1447, %v1494, %v1495
      %v1497 = vrot.slane %v823, 5
      %v1498 = vrot.slane %v1497, 4
      %v1499 = vrot.slane %v824, 5
      %v1500 = vsel %vm1447, %v1498, %v1499
      %v1501 = vrot.slane %v1499, 4
      %v1502 = vrot.slane %v825, 5
      %v1503 = vsel %vm1447, %v1501, %v1502
      %v1504 = vrot.slane %v826, 5
      %v1505 = vrot.slane %v1504, 4
      %v1506 = vrot.slane %v827, 5
      %v1507 = vsel %vm1447, %v1505, %v1506
      %v1508 = vrot.slane %v1506, 4
      %v1509 = vrot.slane %v828, 5
      %v1510 = vsel %vm1447, %v1508, %v1509
      %v1511 = vrot.slane %v829, 5
      %v1512 = vrot.slane %v1511, 4
      %v1513 = vrot.slane %v830, 5
      %v1514 = vsel %vm1447, %v1512, %v1513
      %v1515 = vrot.slane %v1513, 4
      %v1516 = vrot.slane %v831, 5
      %v1517 = vsel %vm1447, %v1515, %v1516
      %v1518 = vrot.slane %v832, 5
      %v1519 = vrot.slane %v1518, 4
      %v1520 = vrot.slane %v833, 5
      %v1521 = vsel %vm1447, %v1519, %v1520
      %v1522 = vrot.slane %v1520, 4
      %v1523 = vrot.slane %v834, 5
      %v1524 = vsel %vm1447, %v1522, %v1523
      %v1525 = vrot.slane %v835, 5
      %v1526 = vrot.slane %v1525, 4
      %v1527 = vrot.slane %v836, 5
      %v1528 = vsel %vm1447, %v1526, %v1527
      %v1529 = vrot.slane %v1527, 4
      %v1530 = vrot.slane %v837, 5
      %v1531 = vsel %vm1447, %v1529, %v1530
      %v1532 = vrot.slane %v838, 5
      %v1533 = vrot.slane %v1532, 4
      %v1534 = vrot.slane %v839, 5
      %v1535 = vsel %vm1447, %v1533, %v1534
      %v1536 = vrot.slane %v1534, 4
      %v1537 = vrot.slane %v840, 5
      %v1538 = vsel %vm1447, %v1536, %v1537
      %v1539 = vrot.slane %v841, 5
      %v1540 = vrot.slane %v1539, 4
      %v1541 = vrot.slane %v842, 5
      %v1542 = vsel %vm1447, %v1540, %v1541
      %v1543 = vrot.slane %v1541, 4
      %v1544 = vrot.slane %v843, 5
      %v1545 = vsel %vm1447, %v1543, %v1544
      %v1546 = vrot.slane %v844, 5
      %v1547 = vrot.slane %v1546, 4
      %v1548 = vrot.slane %v845, 5
      %v1549 = vsel %vm1447, %v1547, %v1548
      %v1550 = vrot.slane %v1548, 4
      %v1551 = vrot.slane %v846, 5
      %v1552 = vsel %vm1447, %v1550, %v1551
      %v1553 = vrot.slane %v847, 5
      %v1554 = vrot.slane %v1553, 4
      %v1555 = vrot.slane %v848, 5
      %v1556 = vsel %vm1447, %v1554, %v1555
      %v1557 = vrot.slane %v1555, 4
      %v1558 = vrot.slane %v849, 5
      %v1559 = vsel %vm1447, %v1557, %v1558
      %v1560 = vunpack.c.l.b16 %v1451
      %v1561 = vunpack.c.l.b16 %v1454
      %v1562 = vunpack.c.l.b16 %v1458
      %v1563 = vunpack.c.l.b16 %v1461
      %v1564 = vunpack.c.l.b16 %v1465
      %v1565 = vunpack.c.l.b16 %v1468
      %v1566 = vunpack.c.l.b16 %v1472
      %v1567 = vunpack.c.l.b16 %v1475
      %v1568 = vunpack.c.l.b16 %v1479
      %v1569 = vunpack.c.l.b16 %v1482
      %v1570 = vunpack.c.l.b16 %v1486
      %v1571 = vunpack.c.l.b16 %v1489
      %v1572 = vunpack.c.l.b16 %v1493
      %v1573 = vunpack.c.l.b16 %v1496
      %v1574 = vunpack.c.l.b16 %v1500
      %v1575 = vunpack.c.l.b16 %v1503
      %v1576 = vunpack.c.l.b16 %v1507
      %v1577 = vunpack.c.l.b16 %v1510
      %v1578 = vunpack.c.l.b16 %v1514
      %v1579 = vunpack.c.l.b16 %v1517
      %v1580 = vunpack.c.l.b16 %v1521
      %v1581 = vunpack.c.l.b16 %v1524
      %v1582 = vunpack.c.l.b16 %v1528
      %v1583 = vunpack.c.l.b16 %v1531
      %v1584 = vunpack.c.l.b16 %v1535
      %v1585 = vunpack.c.l.b16 %v1538
      %v1586 = vunpack.c.l.b16 %v1542
      %v1587 = vunpack.c.l.b16 %v1545
      %v1588 = vunpack.c.l.b16 %v1549
      %v1589 = vunpack.c.l.b16 %v1552
      %v1590 = vunpack.c.l.b16 %v1556
      %v1591 = vunpack.c.l.b16 %v1559
      %v1592 = vpack.c.b16 %v1561, %v1560
      %v1593 = vpack.c.b16 %v1563, %v1562
      %v1594 = vpack.c.b16 %v1565, %v1564
      %v1595 = vpack.c.b16 %v1567, %v1566
      %v1596 = vpack.c.b16 %v1569, %v1568
      %v1597 = vpack.c.b16 %v1571, %v1570
      %v1598 = vpack.c.b16 %v1573, %v1572
      %v1599 = vpack.c.b16 %v1575, %v1574
      %v1600 = vpack.c.b16 %v1577, %v1576
      %v1601 = vpack.c.b16 %v1579, %v1578
      %v1602 = vpack.c.b16 %v1581, %v1580
      %v1603 = vpack.c.b16 %v1583, %v1582
      %v1604 = vpack.c.b16 %v1585, %v1584
      %v1605 = vpack.c.b16 %v1587, %v1586
      %v1606 = vpack.c.b16 %v1589, %v1588
      %v1607 = vpack.c.b16 %v1591, %v1590
      %1624 = vst [vmem:[#allocation3 + $0x10] sm:$0xff] %v1592
      %1625 = vst [vmem:[#allocation3 + $0x28] sm:$0xff] %v1593
      %1626 = vst [vmem:[#allocation3 + $0x40] sm:$0xff] %v1594
      %1627 = vst [vmem:[#allocation3 + $0x58] sm:$0xff] %v1595
      %1628 = vst [vmem:[#allocation3 + $0x70] sm:$0xff] %v1596
      %1629 = vst [vmem:[#allocation3 + $0x88] sm:$0xff] %v1597
      %1630 = vst [vmem:[#allocation3 + $0xa0] sm:$0xff] %v1598
      %1631 = vst [vmem:[#allocation3 + $0xb8] sm:$0xff] %v1599
      %1632 = vst [vmem:[#allocation3 + $0xd0] sm:$0xff] %v1600
      %1633 = vst [vmem:[#allocation3 + $0xe8] sm:$0xff] %v1601
      %1634 = vst [vmem:[#allocation3 + $0x100] sm:$0xff] %v1602
      %1635 = vst [vmem:[#allocation3 + $0x118] sm:$0xff] %v1603
      %1636 = vst [vmem:[#allocation3 + $0x130] sm:$0xff] %v1604
      %1637 = vst [vmem:[#allocation3 + $0x148] sm:$0xff] %v1605
      %1638 = vst [vmem:[#allocation3 + $0x160] sm:$0xff] %v1606
      %1639 = vst [vmem:[#allocation3 + $0x178] sm:$0xff] %v1607
      %v1640 = vld [vmem:[#allocation3] sm:$0xff]
      %v1641 = vld [vmem:[#allocation3 + $0x8] sm:$0xff]
      %v1642 = vld [vmem:[#allocation3 + $0x10] sm:$0xff]
      %v1643 = vld [vmem:[#allocation3 + $0x18] sm:$0xff]
      %v1644 = vld [vmem:[#allocation3 + $0x20] sm:$0xff]
      %v1645 = vld [vmem:[#allocation3 + $0x28] sm:$0xff]
      %v1646 = vld [vmem:[#allocation3 + $0x30] sm:$0xff]
      %v1647 = vld [vmem:[#allocation3 + $0x38] sm:$0xff]
      %v1648 = vld [vmem:[#allocation3 + $0x40] sm:$0xff]
      %v1649 = vld [vmem:[#allocation3 + $0x48] sm:$0xff]
      %v1650 = vld [vmem:[#allocation3 + $0x50] sm:$0xff]
      %v1651 = vld [vmem:[#allocation3 + $0x58] sm:$0xff]
      %v1652 = vld [vmem:[#allocation3 + $0x60] sm:$0xff]
      %v1653 = vld [vmem:[#allocation3 + $0x68] sm:$0xff]
      %v1654 = vld [vmem:[#allocation3 + $0x70] sm:$0xff]
      %v1655 = vld [vmem:[#allocation3 + $0x78] sm:$0xff]
      %v1656 = vld [vmem:[#allocation3 + $0x80] sm:$0xff]
      %v1657 = vld [vmem:[#allocation3 + $0x88] sm:$0xff]
      %v1658 = vld [vmem:[#allocation3 + $0x90] sm:$0xff]
      %v1659 = vld [vmem:[#allocation3 + $0x98] sm:$0xff]
      %v1660 = vld [vmem:[#allocation3 + $0xa0] sm:$0xff]
      %v1661 = vld [vmem:[#allocation3 + $0xa8] sm:$0xff]
      %v1662 = vld [vmem:[#allocation3 + $0xb0] sm:$0xff]
      %v1663 = vld [vmem:[#allocation3 + $0xb8] sm:$0xff]
      %v1664 = vld [vmem:[#allocation3 + $0xc0] sm:$0xff]
      %v1665 = vld [vmem:[#allocation3 + $0xc8] sm:$0xff]
      %v1666 = vld [vmem:[#allocation3 + $0xd0] sm:$0xff]
      %v1667 = vld [vmem:[#allocation3 + $0xd8] sm:$0xff]
      %v1668 = vld [vmem:[#allocation3 + $0xe0] sm:$0xff]
      %v1669 = vld [vmem:[#allocation3 + $0xe8] sm:$0xff]
      %v1670 = vld [vmem:[#allocation3 + $0xf0] sm:$0xff]
      %v1671 = vld [vmem:[#allocation3 + $0xf8] sm:$0xff]
      %v1672 = vld [vmem:[#allocation3 + $0x100] sm:$0xff]
      %v1673 = vld [vmem:[#allocation3 + $0x108] sm:$0xff]
      %v1674 = vld [vmem:[#allocation3 + $0x110] sm:$0xff]
      %v1675 = vld [vmem:[#allocation3 + $0x118] sm:$0xff]
      %v1676 = vld [vmem:[#allocation3 + $0x120] sm:$0xff]
      %v1677 = vld [vmem:[#allocation3 + $0x128] sm:$0xff]
      %v1678 = vld [vmem:[#allocation3 + $0x130] sm:$0xff]
      %v1679 = vld [vmem:[#allocation3 + $0x138] sm:$0xff]
      %v1680 = vld [vmem:[#allocation3 + $0x140] sm:$0xff]
      %v1681 = vld [vmem:[#allocation3 + $0x148] sm:$0xff]
      %v1682 = vld [vmem:[#allocation3 + $0x150] sm:$0xff]
      %v1683 = vld [vmem:[#allocation3 + $0x158] sm:$0xff]
      %v1684 = vld [vmem:[#allocation3 + $0x160] sm:$0xff]
      %v1685 = vld [vmem:[#allocation3 + $0x168] sm:$0xff]
      %v1686 = vld [vmem:[#allocation3 + $0x170] sm:$0xff]
      %v1687 = vld [vmem:[#allocation3 + $0x178] sm:$0xff]
      %v1688 = vld [vmem:[%s1] sm:$0xf]
      %v1689 = vld [vmem:[%s1 + $0x4] sm:$0xf]
      %v1690 = vld [vmem:[%s1 + $0x8] sm:$0xf]
      %v1691 = vld [vmem:[%s1 + $0xc] sm:$0xf]
      %v1692 = vld [vmem:[%s1 + $0x10] sm:$0xf]
      %v1693 = vld [vmem:[%s1 + $0x14] sm:$0xf]
      %v1694 = vld [vmem:[%s1 + $0x18] sm:$0xf]
      %v1695 = vld [vmem:[%s1 + $0x1c] sm:$0xf]
      %v1696 = vld [vmem:[%s1 + $0x20] sm:$0xf]
      %v1697 = vld [vmem:[%s1 + $0x24] sm:$0xf]
      %v1698 = vld [vmem:[%s1 + $0x28] sm:$0xf]
      %v1699 = vld [vmem:[%s1 + $0x2c] sm:$0xf]
      %v1700 = vld [vmem:[%s1 + $0x30] sm:$0xf]
      %v1701 = vld [vmem:[%s1 + $0x34] sm:$0xf]
      %v1702 = vld [vmem:[%s1 + $0x38] sm:$0xf]
      %v1703 = vld [vmem:[%s1 + $0x3c] sm:$0xf]
      %v1704 = vld [vmem:[%s1 + $0x40] sm:$0xf]
      %v1705 = vld [vmem:[%s1 + $0x44] sm:$0xf]
      %v1706 = vld [vmem:[%s1 + $0x48] sm:$0xf]
      %v1707 = vld [vmem:[%s1 + $0x4c] sm:$0xf]
      %v1708 = vld [vmem:[%s1 + $0x50] sm:$0xf]
      %v1709 = vld [vmem:[%s1 + $0x54] sm:$0xf]
      %v1710 = vld [vmem:[%s1 + $0x58] sm:$0xf]
      %v1711 = vld [vmem:[%s1 + $0x5c] sm:$0xf]
      %v1712 = vld [vmem:[%s1 + $0x60] sm:$0xf]
      %v1713 = vld [vmem:[%s1 + $0x64] sm:$0xf]
      %v1714 = vld [vmem:[%s1 + $0x68] sm:$0xf]
      %v1715 = vld [vmem:[%s1 + $0x6c] sm:$0xf]
      %v1716 = vld [vmem:[%s1 + $0x70] sm:$0xf]
      %v1717 = vld [vmem:[%s1 + $0x74] sm:$0xf]
      %v1718 = vld [vmem:[%s1 + $0x78] sm:$0xf]
      %v1719 = vld [vmem:[%s1 + $0x7c] sm:$0xf]
      %v1720 = vld [vmem:[%s1 + $0x80] sm:$0xf]
      %v1721 = vld [vmem:[%s1 + $0x84] sm:$0xf]
      %v1722 = vld [vmem:[%s1 + $0x88] sm:$0xf]
      %v1723 = vld [vmem:[%s1 + $0x8c] sm:$0xf]
      %v1724 = vld [vmem:[%s1 + $0x90] sm:$0xf]
      %v1725 = vld [vmem:[%s1 + $0x94] sm:$0xf]
      %v1726 = vld [vmem:[%s1 + $0x98] sm:$0xf]
      %v1727 = vld [vmem:[%s1 + $0x9c] sm:$0xf]
      %v1728 = vld [vmem:[%s1 + $0xa0] sm:$0xf]
      %v1729 = vld [vmem:[%s1 + $0xa4] sm:$0xf]
      %v1730 = vld [vmem:[%s1 + $0xa8] sm:$0xf]
      %v1731 = vld [vmem:[%s1 + $0xac] sm:$0xf]
      %v1732 = vld [vmem:[%s1 + $0xb0] sm:$0xf]
      %v1733 = vld [vmem:[%s1 + $0xb4] sm:$0xf]
      %v1734 = vld [vmem:[%s1 + $0xb8] sm:$0xf]
      %v1735 = vld [vmem:[%s1 + $0xbc] sm:$0xf]
      %v1784 = vunpack.c.l.b16 %v1688
      %v1785 = vunpack.c.l.b16 %v1689
      %v1786 = vunpack.c.l.b16 %v1690
      %v1787 = vunpack.c.l.b16 %v1691
      %v1788 = vunpack.c.l.b16 %v1692
      %v1789 = vunpack.c.l.b16 %v1693
      %v1790 = vunpack.c.l.b16 %v1694
      %v1791 = vunpack.c.l.b16 %v1695
      %v1792 = vunpack.c.l.b16 %v1696
      %v1793 = vunpack.c.l.b16 %v1697
      %v1794 = vunpack.c.l.b16 %v1698
      %v1795 = vunpack.c.l.b16 %v1699
      %v1796 = vunpack.c.l.b16 %v1700
      %v1797 = vunpack.c.l.b16 %v1701
      %v1798 = vunpack.c.l.b16 %v1702
      %v1799 = vunpack.c.l.b16 %v1703
      %v1800 = vunpack.c.l.b16 %v1704
      %v1801 = vunpack.c.l.b16 %v1705
      %v1802 = vunpack.c.l.b16 %v1706
      %v1803 = vunpack.c.l.b16 %v1707
      %v1804 = vunpack.c.l.b16 %v1708
      %v1805 = vunpack.c.l.b16 %v1709
      %v1806 = vunpack.c.l.b16 %v1710
      %v1807 = vunpack.c.l.b16 %v1711
      %v1808 = vunpack.c.l.b16 %v1712
      %v1809 = vunpack.c.l.b16 %v1713
      %v1810 = vunpack.c.l.b16 %v1714
      %v1811 = vunpack.c.l.b16 %v1715
      %v1812 = vunpack.c.l.b16 %v1716
      %v1813 = vunpack.c.l.b16 %v1717
      %v1814 = vunpack.c.l.b16 %v1718
      %v1815 = vunpack.c.l.b16 %v1719
      %v1816 = vunpack.c.l.b16 %v1720
      %v1817 = vunpack.c.l.b16 %v1721
      %v1818 = vunpack.c.l.b16 %v1722
      %v1819 = vunpack.c.l.b16 %v1723
      %v1820 = vunpack.c.l.b16 %v1724
      %v1821 = vunpack.c.l.b16 %v1725
      %v1822 = vunpack.c.l.b16 %v1726
      %v1823 = vunpack.c.l.b16 %v1727
      %v1824 = vunpack.c.l.b16 %v1728
      %v1825 = vunpack.c.l.b16 %v1729
      %v1826 = vunpack.c.l.b16 %v1730
      %v1827 = vunpack.c.l.b16 %v1731
      %v1828 = vunpack.c.l.b16 %v1732
      %v1829 = vunpack.c.l.b16 %v1733
      %v1830 = vunpack.c.l.b16 %v1734
      %v1831 = vunpack.c.l.b16 %v1735
      %v1832 = vpack.c.b16 %v1785, %v1784
      %v1833 = vpack.c.b16 %v1787, %v1786
      %v1834 = vpack.c.b16 %v1789, %v1788
      %v1835 = vpack.c.b16 %v1791, %v1790
      %v1836 = vpack.c.b16 %v1793, %v1792
      %v1837 = vpack.c.b16 %v1795, %v1794
      %v1838 = vpack.c.b16 %v1797, %v1796
      %v1839 = vpack.c.b16 %v1799, %v1798
      %v1840 = vpack.c.b16 %v1801, %v1800
      %v1841 = vpack.c.b16 %v1803, %v1802
      %v1842 = vpack.c.b16 %v1805, %v1804
      %v1843 = vpack.c.b16 %v1807, %v1806
      %v1844 = vpack.c.b16 %v1809, %v1808
      %v1845 = vpack.c.b16 %v1811, %v1810
      %v1846 = vpack.c.b16 %v1813, %v1812
      %v1847 = vpack.c.b16 %v1815, %v1814
      %v1848 = vpack.c.b16 %v1817, %v1816
      %v1849 = vpack.c.b16 %v1819, %v1818
      %v1850 = vpack.c.b16 %v1821, %v1820
      %v1851 = vpack.c.b16 %v1823, %v1822
      %v1852 = vpack.c.b16 %v1825, %v1824
      %v1853 = vpack.c.b16 %v1827, %v1826
      %v1854 = vpack.c.b16 %v1829, %v1828
      %v1855 = vpack.c.b16 %v1831, %v1830
      %1880 = vmatprep.subr.bf16.mxu0 0
      %1881 = vmatpush1.bf16.msra.mxu0 %v1832
      %1882 = vmatprep.subr.bf16.mxu0 0
      %1883 = vmatpush1.bf16.msra.mxu0 %v1833
      %1884 = vmatprep.subr.bf16.mxu0 0
      %1885 = vmatpush1.bf16.msra.mxu0 %v1834
      %1886 = vmatprep.subr.bf16.mxu0 0
      %1887 = vmatpush1.bf16.msra.mxu0 %v1835
      %1888 = vmatprep.subr.bf16.mxu0 0
      %1889 = vmatpush1.bf16.msra.mxu0 %v1836
      %1890 = vmatprep.subr.bf16.mxu0 0
      %1891 = vmatpush1.bf16.msra.mxu0 %v1837
      %1892 = vmatprep.subr.bf16.mxu0 0
      %1893 = vmatpush1.bf16.msra.mxu0 %v1838
      %1894 = vmatprep.subr.bf16.mxu0 0
      %1895 = vmatpush1.bf16.msra.mxu0 %v1839
      %1896 = vmatprep.subr.bf16.mxu0 0
      %1897 = vmatpush1.bf16.msra.mxu0 %v1840
      %1898 = vmatprep.subr.bf16.mxu0 0
      %1899 = vmatpush1.bf16.msra.mxu0 %v1841
      %1900 = vmatprep.subr.bf16.mxu0 0
      %1901 = vmatpush1.bf16.msra.mxu0 %v1842
      %1902 = vmatprep.subr.bf16.mxu0 0
      %1903 = vmatpush1.bf16.msra.mxu0 %v1843
      %1904 = vmatprep.subr.bf16.mxu0 0
      %1905 = vmatpush1.bf16.msra.mxu0 %v1844
      %1906 = vmatprep.subr.bf16.mxu0 0
      %1907 = vmatpush1.bf16.msra.mxu0 %v1845
      %1908 = vmatprep.subr.bf16.mxu0 0
      %1909 = vmatpush1.bf16.msra.mxu0 %v1846
      %1910 = vmatprep.subr.bf16.mxu0 0
      %1911 = vmatpush1.bf16.msra.mxu0 %v1847
      %1912 = vmatprep.mubr.bf16.mxu0 %v1641
      %1913 = vmatmul.mubr.bf16.gmra.mrb[0].mxu0 %v1640
      %v1914 = vpop.f32.mrb[0].mxu0
      %v1915 = vadd.f32 0.0, %v1914
      %v1916 = vpop.f32.mrb[0].mxu0
      %v1917 = vpop.f32.mrb[0].mxu0
      %v1918 = vadd.f32 0.0, %v1917
      %v1919 = vpop.f32.mrb[0].mxu0
      %1920 = vmatprep.mubr.bf16.mxu0 %v1644
      %1921 = vmatmul.mubr.bf16.gmra.mrb[0].mxu0 %v1643
      %v1922 = vpop.f32.mrb[0].mxu0
      %v1923 = vadd.f32 0.0, %v1922
      %v1924 = vpop.f32.mrb[0].mxu0
      %v1925 = vpop.f32.mrb[0].mxu0
      %v1926 = vadd.f32 0.0, %v1925
      %v1927 = vpop.f32.mrb[0].mxu0
      %1928 = vmatprep.mubr.bf16.mxu0 %v1647
      %1929 = vmatmul.mubr.bf16.gmra.mrb[0].mxu0 %v1646
      %v1930 = vpop.f32.mrb[0].mxu0
      %v1931 = vadd.f32 0.0, %v1930
      %v1932 = vpop.f32.mrb[0].mxu0
      %v1933 = vpop.f32.mrb[0].mxu0
      %v1934 = vadd.f32 0.0, %v1933
      %v1935 = vpop.f32.mrb[0].mxu0
      %1936 = vmatprep.mubr.bf16.mxu0 %v1650
      %1937 = vmatmul.mubr.bf16.gmra.mrb[0].mxu0 %v1649
      %v1938 = vpop.f32.mrb[0].mxu0
      %v1939 = vadd.f32 0.0, %v1938
      %v1940 = vpop.f32.mrb[0].mxu0
      %v1941 = vpop.f32.mrb[0].mxu0
      %v1942 = vadd.f32 0.0, %v1941
      %v1943 = vpop.f32.mrb[0].mxu0
      %1944 = vmatprep.mubr.bf16.mxu0 %v1653
      %1945 = vmatmul.mubr.bf16.gmra.mrb[0].mxu0 %v1652
      %v1946 = vpop.f32.mrb[0].mxu0
      %v1947 = vadd.f32 0.0, %v1946
      %v1948 = vpop.f32.mrb[0].mxu0
      %v1949 = vpop.f32.mrb[0].mxu0
      %v1950 = vadd.f32 0.0, %v1949
      %v1951 = vpop.f32.mrb[0].mxu0
      %1952 = vmatprep.mubr.bf16.mxu0 %v1656
      %1953 = vmatmul.mubr.bf16.gmra.mrb[0].mxu0 %v1655
      %v1954 = vpop.f32.mrb[0].mxu0
      %v1955 = vadd.f32 0.0, %v1954
      %v1956 = vpop.f32.mrb[0].mxu0
      %v1957 = vpop.f32.mrb[0].mxu0
      %v1958 = vadd.f32 0.0, %v1957
      %v1959 = vpop.f32.mrb[0].mxu0
      %1960 = vmatprep.mubr.bf16.mxu0 %v1659
      %1961 = vmatmul.mubr.bf16.gmra.mrb[0].mxu0 %v1658
      %v1962 = vpop.f32.mrb[0].mxu0
      %v1963 = vadd.f32 0.0, %v1962
      %v1964 = vpop.f32.mrb[0].mxu0
      %v1965 = vpop.f32.mrb[0].mxu0
      %v1966 = vadd.f32 0.0, %v1965
      %v1967 = vpop.f32.mrb[0].mxu0
      %1968 = vmatprep.mubr.bf16.mxu0 %v1662
      %1969 = vmatmul.mubr.bf16.gmra.mrb[0].mxu0 %v1661
      %v1970 = vpop.f32.mrb[0].mxu0
      %v1971 = vadd.f32 0.0, %v1970
      %v1972 = vpop.f32.mrb[0].mxu0
      %v1973 = vpop.f32.mrb[0].mxu0
      %v1974 = vadd.f32 0.0, %v1973
      %v1975 = vpop.f32.mrb[0].mxu0
      %1976 = vmatprep.mubr.bf16.mxu0 %v1665
      %1977 = vmatmul.mubr.bf16.gmra.mrb[0].mxu0 %v1664
      %v1978 = vpop.f32.mrb[0].mxu0
      %v1979 = vadd.f32 0.0, %v1978
      %v1980 = vpop.f32.mrb[0].mxu0
      %v1981 = vpop.f32.mrb[0].mxu0
      %v1982 = vadd.f32 0.0, %v1981
      %v1983 = vpop.f32.mrb[0].mxu0
      %1984 = vmatprep.mubr.bf16.mxu0 %v1668
      %1985 = vmatmul.mubr.bf16.gmra.mrb[0].mxu0 %v1667
      %v1986 = vpop.f32.mrb[0].mxu0
      %v1987 = vadd.f32 0.0, %v1986
      %v1988 = vpop.f32.mrb[0].mxu0
      %v1989 = vpop.f32.mrb[0].mxu0
      %v1990 = vadd.f32 0.0, %v1989
      %v1991 = vpop.f32.mrb[0].mxu0
      %1992 = vmatprep.mubr.bf16.mxu0 %v1671
      %1993 = vmatmul.mubr.bf16.gmra.mrb[0].mxu0 %v1670
      %v1994 = vpop.f32.mrb[0].mxu0
      %v1995 = vadd.f32 0.0, %v1994
      %v1996 = vpop.f32.mrb[0].mxu0
      %v1997 = vpop.f32.mrb[0].mxu0
      %v1998 = vadd.f32 0.0, %v1997
      %v1999 = vpop.f32.mrb[0].mxu0
      %2000 = vmatprep.mubr.bf16.mxu0 %v1674
      %2001 = vmatmul.mubr.bf16.gmra.mrb[0].mxu0 %v1673
      %v2002 = vpop.f32.mrb[0].mxu0
      %v2003 = vadd.f32 0.0, %v2002
      %v2004 = vpop.f32.mrb[0].mxu0
      %v2005 = vpop.f32.mrb[0].mxu0
      %v2006 = vadd.f32 0.0, %v2005
      %v2007 = vpop.f32.mrb[0].mxu0
      %2008 = vmatprep.mubr.bf16.mxu0 %v1677
      %2009 = vmatmul.mubr.bf16.gmra.mrb[0].mxu0 %v1676
      %v2010 = vpop.f32.mrb[0].mxu0
      %v2011 = vadd.f32 0.0, %v2010
      %v2012 = vpop.f32.mrb[0].mxu0
      %v2013 = vpop.f32.mrb[0].mxu0
      %v2014 = vadd.f32 0.0, %v2013
      %v2015 = vpop.f32.mrb[0].mxu0
      %2016 = vmatprep.mubr.bf16.mxu0 %v1680
      %2017 = vmatmul.mubr.bf16.gmra.mrb[0].mxu0 %v1679
      %v2018 = vpop.f32.mrb[0].mxu0
      %v2019 = vadd.f32 0.0, %v2018
      %v2020 = vpop.f32.mrb[0].mxu0
      %v2021 = vpop.f32.mrb[0].mxu0
      %v2022 = vadd.f32 0.0, %v2021
      %v2023 = vpop.f32.mrb[0].mxu0
      %2024 = vmatprep.mubr.bf16.mxu0 %v1683
      %2025 = vmatmul.mubr.bf16.gmra.mrb[0].mxu0 %v1682
      %v2026 = vpop.f32.mrb[0].mxu0
      %v2027 = vadd.f32 0.0, %v2026
      %v2028 = vpop.f32.mrb[0].mxu0
      %v2029 = vpop.f32.mrb[0].mxu0
      %v2030 = vadd.f32 0.0, %v2029
      %v2031 = vpop.f32.mrb[0].mxu0
      %2032 = vmatprep.mubr.bf16.mxu0 %v1686
      %2033 = vmatmul.mubr.bf16.gmra.mrb[0].mxu0 %v1685
      %v2034 = vpop.f32.mrb[0].mxu0
      %v2035 = vadd.f32 0.0, %v2034
      %v2036 = vpop.f32.mrb[0].mxu0
      %v2037 = vpop.f32.mrb[0].mxu0
      %v2038 = vadd.f32 0.0, %v2037
      %v2039 = vpop.f32.mrb[0].mxu0
      %2040 = vdwg.mxu0
      %2041 = vmatprep.subr.bf16.mxu0 0
      %2042 = vmatpush1.bf16.msra.mxu0 %v1848
      %2043 = vmatprep.subr.bf16.mxu0 0
      %2044 = vmatpush1.bf16.msra.mxu0 %v1849
      %2045 = vmatprep.subr.bf16.mxu0 0
      %2046 = vmatpush1.bf16.msra.mxu0 %v1850
      %2047 = vmatprep.subr.bf16.mxu0 0
      %2048 = vmatpush1.bf16.msra.mxu0 %v1851
      %2049 = vmatprep.subr.bf16.mxu0 0
      %2050 = vmatpush1.bf16.msra.mxu0 %v1852
      %2051 = vmatprep.subr.bf16.mxu0 0
      %2052 = vmatpush1.bf16.msra.mxu0 %v1853
      %2053 = vmatprep.subr.bf16.mxu0 0
      %2054 = vmatpush1.bf16.msra.mxu0 %v1854
      %2055 = vmatprep.subr.bf16.mxu0 0
      %2056 = vmatpush1.bf16.msra.mxu0 %v1855
      %2057 = vmatprep.subr.bf16.mxu0 0
      %2058 = vmatpush1.bf16.msra.mxu0 0
      %2059 = vmatprep.subr.bf16.mxu0 0
      %2060 = vmatpush1.bf16.msra.mxu0 0
      %2061 = vmatprep.subr.bf16.mxu0 0
      %2062 = vmatpush1.bf16.msra.mxu0 0
      %2063 = vmatprep.subr.bf16.mxu0 0
      %2064 = vmatpush1.bf16.msra.mxu0 0
      %2065 = vmatprep.subr.bf16.mxu0 0
      %2066 = vmatpush1.bf16.msra.mxu0 0
      %2067 = vmatprep.subr.bf16.mxu0 0
      %2068 = vmatpush1.bf16.msra.mxu0 0
      %2069 = vmatprep.subr.bf16.mxu0 0
      %2070 = vmatpush1.bf16.msra.mxu0 0
      %2071 = vmatprep.subr.bf16.mxu0 0
      %2072 = vmatpush1.bf16.msra.mxu0 0
      %2073 = vmatprep.mubr.bf16.mxu0 0
      %2074 = vmatmul.mubr.bf16.gmra.mrb[0].mxu0 %v1642
      %v2075 = vpop.f32.mrb[0].mxu0
      %v2076 = vadd.f32 %v1915, %v2075
      %v2077 = vpop.f32.mrb[0].mxu0
      %v2078 = vpop.f32.mrb[0].mxu0
      %v2079 = vadd.f32 %v1918, %v2078
      %v2080 = vpop.f32.mrb[0].mxu0
      %2081 = vmatprep.mubr.bf16.mxu0 0
      %2082 = vmatmul.mubr.bf16.gmra.mrb[0].mxu0 %v1645
      %v2083 = vpop.f32.mrb[0].mxu0
      %v2084 = vadd.f32 %v1923, %v2083
      %v2085 = vpop.f32.mrb[0].mxu0
      %v2086 = vpop.f32.mrb[0].mxu0
      %v2087 = vadd.f32 %v1926, %v2086
      %v2088 = vpop.f32.mrb[0].mxu0
      %2089 = vmatprep.mubr.bf16.mxu0 0
      %2090 = vmatmul.mubr.bf16.gmra.mrb[0].mxu0 %v1648
      %v2091 = vpop.f32.mrb[0].mxu0
      %v2092 = vadd.f32 %v1931, %v2091
      %v2093 = vpop.f32.mrb[0].mxu0
      %v2094 = vpop.f32.mrb[0].mxu0
      %v2095 = vadd.f32 %v1934, %v2094
      %v2096 = vpop.f32.mrb[0].mxu0
      %2097 = vmatprep.mubr.bf16.mxu0 0
      %2098 = vmatmul.mubr.bf16.gmra.mrb[0].mxu0 %v1651
      %v2099 = vpop.f32.mrb[0].mxu0
      %v2100 = vadd.f32 %v1939, %v2099
      %v2101 = vpop.f32.mrb[0].mxu0
      %v2102 = vpop.f32.mrb[0].mxu0
      %v2103 = vadd.f32 %v1942, %v2102
      %v2104 = vpop.f32.mrb[0].mxu0
      %2105 = vmatprep.mubr.bf16.mxu0 0
      %2106 = vmatmul.mubr.bf16.gmra.mrb[0].mxu0 %v1654
      %v2107 = vpop.f32.mrb[0].mxu0
      %v2108 = vadd.f32 %v1947, %v2107
      %v2109 = vpop.f32.mrb[0].mxu0
      %v2110 = vpop.f32.mrb[0].mxu0
      %v2111 = vadd.f32 %v1950, %v2110
      %v2112 = vpop.f32.mrb[0].mxu0
      %2113 = vmatprep.mubr.bf16.mxu0 0
      %2114 = vmatmul.mubr.bf16.gmra.mrb[0].mxu0 %v1657
      %v2115 = vpop.f32.mrb[0].mxu0
      %v2116 = vadd.f32 %v1955, %v2115
      %v2117 = vpop.f32.mrb[0].mxu0
      %v2118 = vpop.f32.mrb[0].mxu0
      %v2119 = vadd.f32 %v1958, %v2118
      %v2120 = vpop.f32.mrb[0].mxu0
      %2121 = vmatprep.mubr.bf16.mxu0 0
      %2122 = vmatmul.mubr.bf16.gmra.mrb[0].mxu0 %v1660
      %v2123 = vpop.f32.mrb[0].mxu0
      %v2124 = vadd.f32 %v1963, %v2123
      %v2125 = vpop.f32.mrb[0].mxu0
      %v2126 = vpop.f32.mrb[0].mxu0
      %v2127 = vadd.f32 %v1966, %v2126
      %v2128 = vpop.f32.mrb[0].mxu0
      %2129 = vmatprep.mubr.bf16.mxu0 0
      %2130 = vmatmul.mubr.bf16.gmra.mrb[0].mxu0 %v1663
      %v2131 = vpop.f32.mrb[0].mxu0
      %v2132 = vadd.f32 %v1971, %v2131
      %v2133 = vpop.f32.mrb[0].mxu0
      %v2134 = vpop.f32.mrb[0].mxu0
      %v2135 = vadd.f32 %v1974, %v2134
      %v2136 = vpop.f32.mrb[0].mxu0
      %2137 = vmatprep.mubr.bf16.mxu0 0
      %2138 = vmatmul.mubr.bf16.gmra.mrb[0].mxu0 %v1666
      %v2139 = vpop.f32.mrb[0].mxu0
      %v2140 = vadd.f32 %v1979, %v2139
      %v2141 = vpop.f32.mrb[0].mxu0
      %v2142 = vpop.f32.mrb[0].mxu0
      %v2143 = vadd.f32 %v1982, %v2142
      %v2144 = vpop.f32.mrb[0].mxu0
      %2145 = vmatprep.mubr.bf16.mxu0 0
      %2146 = vmatmul.mubr.bf16.gmra.mrb[0].mxu0 %v1669
      %v2147 = vpop.f32.mrb[0].mxu0
      %v2148 = vadd.f32 %v1987, %v2147
      %v2149 = vpop.f32.mrb[0].mxu0
      %v2150 = vpop.f32.mrb[0].mxu0
      %v2151 = vadd.f32 %v1990, %v2150
      %v2152 = vpop.f32.mrb[0].mxu0
      %2153 = vmatprep.mubr.bf16.mxu0 0
      %2154 = vmatmul.mubr.bf16.gmra.mrb[0].mxu0 %v1672
      %v2155 = vpop.f32.mrb[0].mxu0
      %v2156 = vadd.f32 %v1995, %v2155
      %v2157 = vpop.f32.mrb[0].mxu0
      %v2158 = vpop.f32.mrb[0].mxu0
      %v2159 = vadd.f32 %v1998, %v2158
      %v2160 = vpop.f32.mrb[0].mxu0
      %2161 = vmatprep.mubr.bf16.mxu0 0
      %2162 = vmatmul.mubr.bf16.gmra.mrb[0].mxu0 %v1675
      %v2163 = vpop.f32.mrb[0].mxu0
      %v2164 = vadd.f32 %v2003, %v2163
      %v2165 = vpop.f32.mrb[0].mxu0
      %v2166 = vpop.f32.mrb[0].mxu0
      %v2167 = vadd.f32 %v2006, %v2166
      %v2168 = vpop.f32.mrb[0].mxu0
      %2169 = vmatprep.mubr.bf16.mxu0 0
      %2170 = vmatmul.mubr.bf16.gmra.mrb[0].mxu0 %v1678
      %v2171 = vpop.f32.mrb[0].mxu0
      %v2172 = vadd.f32 %v2011, %v2171
      %v2173 = vpop.f32.mrb[0].mxu0
      %v2174 = vpop.f32.mrb[0].mxu0
      %v2175 = vadd.f32 %v2014, %v2174
      %v2176 = vpop.f32.mrb[0].mxu0
      %2177 = vmatprep.mubr.bf16.mxu0 0
      %2178 = vmatmul.mubr.bf16.gmra.mrb[0].mxu0 %v1681
      %v2179 = vpop.f32.mrb[0].mxu0
      %v2180 = vadd.f32 %v2019, %v2179
      %v2181 = vpop.f32.mrb[0].mxu0
      %v2182 = vpop.f32.mrb[0].mxu0
      %v2183 = vadd.f32 %v2022, %v2182
      %v2184 = vpop.f32.mrb[0].mxu0
      %2185 = vmatprep.mubr.bf16.mxu0 0
      %2186 = vmatmul.mubr.bf16.gmra.mrb[0].mxu0 %v1684
      %v2187 = vpop.f32.mrb[0].mxu0
      %v2188 = vadd.f32 %v2027, %v2187
      %v2189 = vpop.f32.mrb[0].mxu0
      %v2190 = vpop.f32.mrb[0].mxu0
      %v2191 = vadd.f32 %v2030, %v2190
      %v2192 = vpop.f32.mrb[0].mxu0
      %2193 = vmatprep.mubr.bf16.mxu0 0
      %2194 = vmatmul.mubr.bf16.gmra.mrb[0].mxu0 %v1687
      %v2195 = vpop.f32.mrb[0].mxu0
      %v2196 = vadd.f32 %v2035, %v2195
      %v2197 = vpop.f32.mrb[0].mxu0
      %v2198 = vpop.f32.mrb[0].mxu0
      %v2199 = vadd.f32 %v2038, %v2198
      %v2200 = vpop.f32.mrb[0].mxu0
      %2201 = vdwg.mxu0
      %2202 = vst [vmem:[#allocation4] sm:$0xff] %v2076
      %2203 = vst [vmem:[#allocation4 + $0x8] sm:$0xff] %v2079
      %2204 = vst [vmem:[#allocation4 + $0x10] sm:$0xff] %v2084
      %2205 = vst [vmem:[#allocation4 + $0x18] sm:$0xff] %v2087
      %2206 = vst [vmem:[#allocation4 + $0x20] sm:$0xff] %v2092
      %2207 = vst [vmem:[#allocation4 + $0x28] sm:$0xff] %v2095
      %2208 = vst [vmem:[#allocation4 + $0x30] sm:$0xff] %v2100
      %2209 = vst [vmem:[#allocation4 + $0x38] sm:$0xff] %v2103
      %2210 = vst [vmem:[#allocation4 + $0x40] sm:$0xff] %v2108
      %2211 = vst [vmem:[#allocation4 + $0x48] sm:$0xff] %v2111
      %2212 = vst [vmem:[#allocation4 + $0x50] sm:$0xff] %v2116
      %2213 = vst [vmem:[#allocation4 + $0x58] sm:$0xff] %v2119
      %2214 = vst [vmem:[#allocation4 + $0x60] sm:$0xff] %v2124
      %2215 = vst [vmem:[#allocation4 + $0x68] sm:$0xff] %v2127
      %2216 = vst [vmem:[#allocation4 + $0x70] sm:$0xff] %v2132
      %2217 = vst [vmem:[#allocation4 + $0x78] sm:$0xff] %v2135
      %2218 = vst [vmem:[#allocation4 + $0x80] sm:$0xff] %v2140
      %2219 = vst [vmem:[#allocation4 + $0x88] sm:$0xff] %v2143
      %2220 = vst [vmem:[#allocation4 + $0x90] sm:$0xff] %v2148
      %2221 = vst [vmem:[#allocation4 + $0x98] sm:$0xff] %v2151
      %2222 = vst [vmem:[#allocation4 + $0xa0] sm:$0xff] %v2156
      %2223 = vst [vmem:[#allocation4 + $0xa8] sm:$0xff] %v2159
      %2224 = vst [vmem:[#allocation4 + $0xb0] sm:$0xff] %v2164
      %2225 = vst [vmem:[#allocation4 + $0xb8] sm:$0xff] %v2167
      %2226 = vst [vmem:[#allocation4 + $0xc0] sm:$0xff] %v2172
      %2227 = vst [vmem:[#allocation4 + $0xc8] sm:$0xff] %v2175
      %2228 = vst [vmem:[#allocation4 + $0xd0] sm:$0xff] %v2180
      %2229 = vst [vmem:[#allocation4 + $0xd8] sm:$0xff] %v2183
      %2230 = vst [vmem:[#allocation4 + $0xe0] sm:$0xff] %v2188
      %2231 = vst [vmem:[#allocation4 + $0xe8] sm:$0xff] %v2191
      %2232 = vst [vmem:[#allocation4 + $0xf0] sm:$0xff] %v2196
      %2233 = vst [vmem:[#allocation4 + $0xf8] sm:$0xff] %v2199
      %v2234 = vld [vmem:[%s233] sm:$0xf]
      %v2235 = vld [vmem:[%s233 + $0x4] sm:$0xf]
      %v2236 = vld [vmem:[%s233 + $0x8] sm:$0xf]
      %v2237 = vld [vmem:[%s233 + $0xc] sm:$0xf]
      %v2238 = vld [vmem:[%s233 + $0x10] sm:$0xf]
      %v2239 = vld [vmem:[%s233 + $0x14] sm:$0xf]
      %v2240 = vld [vmem:[%s233 + $0x18] sm:$0xf]
      %v2241 = vld [vmem:[%s233 + $0x1c] sm:$0xf]
      %v2242 = vld [vmem:[%s233 + $0x20] sm:$0xf]
      %v2243 = vld [vmem:[%s233 + $0x24] sm:$0xf]
      %v2244 = vld [vmem:[%s233 + $0x28] sm:$0xf]
      %v2245 = vld [vmem:[%s233 + $0x2c] sm:$0xf]
      %v2246 = vld [vmem:[%s233 + $0x30] sm:$0xf]
      %v2247 = vld [vmem:[%s233 + $0x34] sm:$0xf]
      %v2248 = vld [vmem:[%s233 + $0x38] sm:$0xf]
      %v2249 = vld [vmem:[%s233 + $0x3c] sm:$0xf]
      %v2250 = vld [vmem:[%s233 + $0x40] sm:$0xf]
      %v2251 = vld [vmem:[%s233 + $0x44] sm:$0xf]
      %v2252 = vld [vmem:[%s233 + $0x48] sm:$0xf]
      %v2253 = vld [vmem:[%s233 + $0x4c] sm:$0xf]
      %v2254 = vld [vmem:[%s233 + $0x50] sm:$0xf]
      %v2255 = vld [vmem:[%s233 + $0x54] sm:$0xf]
      %v2256 = vld [vmem:[%s233 + $0x58] sm:$0xf]
      %v2257 = vld [vmem:[%s233 + $0x5c] sm:$0xf]
      %v2258 = vld [vmem:[%s233 + $0x60] sm:$0xf]
      %v2259 = vld [vmem:[%s233 + $0x64] sm:$0xf]
      %v2260 = vld [vmem:[%s233 + $0x68] sm:$0xf]
      %v2261 = vld [vmem:[%s233 + $0x6c] sm:$0xf]
      %v2262 = vld [vmem:[%s233 + $0x70] sm:$0xf]
      %v2263 = vld [vmem:[%s233 + $0x74] sm:$0xf]
      %v2264 = vld [vmem:[%s233 + $0x78] sm:$0xf]
      %v2265 = vld [vmem:[%s233 + $0x7c] sm:$0xf]
      %v2266 = vld [vmem:[%s233 + $0x80] sm:$0xf]
      %v2267 = vld [vmem:[%s233 + $0x84] sm:$0xf]
      %v2268 = vld [vmem:[%s233 + $0x88] sm:$0xf]
      %v2269 = vld [vmem:[%s233 + $0x8c] sm:$0xf]
      %v2270 = vld [vmem:[%s233 + $0x90] sm:$0xf]
      %v2271 = vld [vmem:[%s233 + $0x94] sm:$0xf]
      %v2272 = vld [vmem:[%s233 + $0x98] sm:$0xf]
      %v2273 = vld [vmem:[%s233 + $0x9c] sm:$0xf]
      %v2274 = vld [vmem:[%s233 + $0xa0] sm:$0xf]
      %v2275 = vld [vmem:[%s233 + $0xa4] sm:$0xf]
      %v2276 = vld [vmem:[%s233 + $0xa8] sm:$0xf]
      %v2277 = vld [vmem:[%s233 + $0xac] sm:$0xf]
      %v2278 = vld [vmem:[%s233 + $0xb0] sm:$0xf]
      %v2279 = vld [vmem:[%s233 + $0xb4] sm:$0xf]
      %v2280 = vld [vmem:[%s233 + $0xb8] sm:$0xf]
      %v2281 = vld [vmem:[%s233 + $0xbc] sm:$0xf]
      %v2314 = vunpack.c.l.b16 %v2234
      %v2315 = vunpack.c.l.b16 %v2235
      %v2316 = vunpack.c.l.b16 %v2237
      %v2317 = vunpack.c.l.b16 %v2238
      %v2318 = vunpack.c.l.b16 %v2240
      %v2319 = vunpack.c.l.b16 %v2241
      %v2320 = vunpack.c.l.b16 %v2243
      %v2321 = vunpack.c.l.b16 %v2244
      %v2322 = vunpack.c.l.b16 %v2246
      %v2323 = vunpack.c.l.b16 %v2247
      %v2324 = vunpack.c.l.b16 %v2249
      %v2325 = vunpack.c.l.b16 %v2250
      %v2326 = vunpack.c.l.b16 %v2252
      %v2327 = vunpack.c.l.b16 %v2253
      %v2328 = vunpack.c.l.b16 %v2255
      %v2329 = vunpack.c.l.b16 %v2256
      %v2330 = vunpack.c.l.b16 %v2258
      %v2331 = vunpack.c.l.b16 %v2259
      %v2332 = vunpack.c.l.b16 %v2261
      %v2333 = vunpack.c.l.b16 %v2262
      %v2334 = vunpack.c.l.b16 %v2264
      %v2335 = vunpack.c.l.b16 %v2265
      %v2336 = vunpack.c.l.b16 %v2267
      %v2337 = vunpack.c.l.b16 %v2268
      %v2338 = vunpack.c.l.b16 %v2270
      %v2339 = vunpack.c.l.b16 %v2271
      %v2340 = vunpack.c.l.b16 %v2273
      %v2341 = vunpack.c.l.b16 %v2274
      %v2342 = vunpack.c.l.b16 %v2276
      %v2343 = vunpack.c.l.b16 %v2277
      %v2344 = vunpack.c.l.b16 %v2279
      %v2345 = vunpack.c.l.b16 %v2280
      %v2346 = vpack.c.b16 %v2315, %v2314
      %v2347 = vpack.c.b16 %v2317, %v2316
      %v2348 = vpack.c.b16 %v2319, %v2318
      %v2349 = vpack.c.b16 %v2321, %v2320
      %v2350 = vpack.c.b16 %v2323, %v2322
      %v2351 = vpack.c.b16 %v2325, %v2324
      %v2352 = vpack.c.b16 %v2327, %v2326
      %v2353 = vpack.c.b16 %v2329, %v2328
      %v2354 = vpack.c.b16 %v2331, %v2330
      %v2355 = vpack.c.b16 %v2333, %v2332
      %v2356 = vpack.c.b16 %v2335, %v2334
      %v2357 = vpack.c.b16 %v2337, %v2336
      %v2358 = vpack.c.b16 %v2339, %v2338
      %v2359 = vpack.c.b16 %v2341, %v2340
      %v2360 = vpack.c.b16 %v2343, %v2342
      %v2361 = vpack.c.b16 %v2345, %v2344
      %2378 = vst [vmem:[#allocation3] sm:$0xff] %v2346
      %2379 = vst [vmem:[#allocation3 + $0x18] sm:$0xff] %v2347
      %2380 = vst [vmem:[#allocation3 + $0x30] sm:$0xff] %v2348
      %2381 = vst [vmem:[#allocation3 + $0x48] sm:$0xff] %v2349
      %2382 = vst [vmem:[#allocation3 + $0x60] sm:$0xff] %v2350
      %2383 = vst [vmem:[#allocation3 + $0x78] sm:$0xff] %v2351
      %2384 = vst [vmem:[#allocation3 + $0x90] sm:$0xff] %v2352
      %2385 = vst [vmem:[#allocation3 + $0xa8] sm:$0xff] %v2353
      %2386 = vst [vmem:[#allocation3 + $0xc0] sm:$0xff] %v2354
      %2387 = vst [vmem:[#allocation3 + $0xd8] sm:$0xff] %v2355
      %2388 = vst [vmem:[#allocation3 + $0xf0] sm:$0xff] %v2356
      %2389 = vst [vmem:[#allocation3 + $0x108] sm:$0xff] %v2357
      %2390 = vst [vmem:[#allocation3 + $0x120] sm:$0xff] %v2358
      %2391 = vst [vmem:[#allocation3 + $0x138] sm:$0xff] %v2359
      %2392 = vst [vmem:[#allocation3 + $0x150] sm:$0xff] %v2360
      %2393 = vst [vmem:[#allocation3 + $0x168] sm:$0xff] %v2361
      %v2395 = vshrl.u32 %v2234, 16
      %v2397 = vrot.slane %v2395, 4
      %v2398 = vshll.u32 %v2234, 16
      %v2400 = vrot.slane %v2398, 5
      %v2401 = vor.u32 %v2397, %v2400
      %v2402 = vrot.slane %v2401, 4
      %v2404 = vshll.u32 %v2235, 16
      %v2406 = vrot.slane %v2404, 5
      %v2407 = vsel %vm964, %v2402, %v2406
      %v2408 = vshrl.u32 %v2235, 16
      %v2410 = vrot.slane %v2408, 4
      %v2411 = vor.u32 %v2410, %v2406
      %v2412 = vrot.slane %v2411, 4
      %v2414 = vshll.u32 %v2236, 16
      %v2416 = vrot.slane %v2414, 5
      %v2417 = vsel %vm964, %v2412, %v2416
      %v2419 = vshrl.u32 %v2237, 16
      %v2421 = vrot.slane %v2419, 4
      %v2422 = vshll.u32 %v2237, 16
      %v2424 = vrot.slane %v2422, 5
      %v2425 = vor.u32 %v2421, %v2424
      %v2426 = vrot.slane %v2425, 4
      %v2428 = vshll.u32 %v2238, 16
      %v2430 = vrot.slane %v2428, 5
      %v2431 = vsel %vm964, %v2426, %v2430
      %v2432 = vshrl.u32 %v2238, 16
      %v2434 = vrot.slane %v2432, 4
      %v2435 = vor.u32 %v2434, %v2430
      %v2436 = vrot.slane %v2435, 4
      %v2438 = vshll.u32 %v2239, 16
      %v2440 = vrot.slane %v2438, 5
      %v2441 = vsel %vm964, %v2436, %v2440
      %v2443 = vshrl.u32 %v2240, 16
      %v2445 = vrot.slane %v2443, 4
      %v2446 = vshll.u32 %v2240, 16
      %v2448 = vrot.slane %v2446, 5
      %v2449 = vor.u32 %v2445, %v2448
      %v2450 = vrot.slane %v2449, 4
      %v2452 = vshll.u32 %v2241, 16
      %v2454 = vrot.slane %v2452, 5
      %v2455 = vsel %vm964, %v2450, %v2454
      %v2456 = vshrl.u32 %v2241, 16
      %v2458 = vrot.slane %v2456, 4
      %v2459 = vor.u32 %v2458, %v2454
      %v2460 = vrot.slane %v2459, 4
      %v2462 = vshll.u32 %v2242, 16
      %v2464 = vrot.slane %v2462, 5
      %v2465 = vsel %vm964, %v2460, %v2464
      %v2467 = vshrl.u32 %v2243, 16
      %v2469 = vrot.slane %v2467, 4
      %v2470 = vshll.u32 %v2243, 16
      %v2472 = vrot.slane %v2470, 5
      %v2473 = vor.u32 %v2469, %v2472
      %v2474 = vrot.slane %v2473, 4
      %v2476 = vshll.u32 %v2244, 16
      %v2478 = vrot.slane %v2476, 5
      %v2479 = vsel %vm964, %v2474, %v2478
      %v2480 = vshrl.u32 %v2244, 16
      %v2482 = vrot.slane %v2480, 4
      %v2483 = vor.u32 %v2482, %v2478
      %v2484 = vrot.slane %v2483, 4
      %v2486 = vshll.u32 %v2245, 16
      %v2488 = vrot.slane %v2486, 5
      %v2489 = vsel %vm964, %v2484, %v2488
      %v2491 = vshrl.u32 %v2246, 16
      %v2493 = vrot.slane %v2491, 4
      %v2494 = vshll.u32 %v2246, 16
      %v2496 = vrot.slane %v2494, 5
      %v2497 = vor.u32 %v2493, %v2496
      %v2498 = vrot.slane %v2497, 4
      %v2500 = vshll.u32 %v2247, 16
      %v2502 = vrot.slane %v2500, 5
      %v2503 = vsel %vm964, %v2498, %v2502
      %v2504 = vshrl.u32 %v2247, 16
      %v2506 = vrot.slane %v2504, 4
      %v2507 = vor.u32 %v2506, %v2502
      %v2508 = vrot.slane %v2507, 4
      %v2510 = vshll.u32 %v2248, 16
      %v2512 = vrot.slane %v2510, 5
      %v2513 = vsel %vm964, %v2508, %v2512
      %v2515 = vshrl.u32 %v2249, 16
      %v2517 = vrot.slane %v2515, 4
      %v2518 = vshll.u32 %v2249, 16
      %v2520 = vrot.slane %v2518, 5
      %v2521 = vor.u32 %v2517, %v2520
      %v2522 = vrot.slane %v2521, 4
      %v2524 = vshll.u32 %v2250, 16
      %v2526 = vrot.slane %v2524, 5
      %v2527 = vsel %vm964, %v2522, %v2526
      %v2528 = vshrl.u32 %v2250, 16
      %v2530 = vrot.slane %v2528, 4
      %v2531 = vor.u32 %v2530, %v2526
      %v2532 = vrot.slane %v2531, 4
      %v2534 = vshll.u32 %v2251, 16
      %v2536 = vrot.slane %v2534, 5
      %v2537 = vsel %vm964, %v2532, %v2536
      %v2539 = vshrl.u32 %v2252, 16
      %v2541 = vrot.slane %v2539, 4
      %v2542 = vshll.u32 %v2252, 16
      %v2544 = vrot.slane %v2542, 5
      %v2545 = vor.u32 %v2541, %v2544
      %v2546 = vrot.slane %v2545, 4
      %v2548 = vshll.u32 %v2253, 16
      %v2550 = vrot.slane %v2548, 5
      %v2551 = vsel %vm964, %v2546, %v2550
      %v2552 = vshrl.u32 %v2253, 16
      %v2554 = vrot.slane %v2552, 4
      %v2555 = vor.u32 %v2554, %v2550
      %v2556 = vrot.slane %v2555, 4
      %v2558 = vshll.u32 %v2254, 16
      %v2560 = vrot.slane %v2558, 5
      %v2561 = vsel %vm964, %v2556, %v2560
      %v2563 = vshrl.u32 %v2255, 16
      %v2565 = vrot.slane %v2563, 4
      %v2566 = vshll.u32 %v2255, 16
      %v2568 = vrot.slane %v2566, 5
      %v2569 = vor.u32 %v2565, %v2568
      %v2570 = vrot.slane %v2569, 4
      %v2572 = vshll.u32 %v2256, 16
      %v2574 = vrot.slane %v2572, 5
      %v2575 = vsel %vm964, %v2570, %v2574
      %v2576 = vshrl.u32 %v2256, 16
      %v2578 = vrot.slane %v2576, 4
      %v2579 = vor.u32 %v2578, %v2574
      %v2580 = vrot.slane %v2579, 4
      %v2582 = vshll.u32 %v2257, 16
      %v2584 = vrot.slane %v2582, 5
      %v2585 = vsel %vm964, %v2580, %v2584
      %v2587 = vshrl.u32 %v2258, 16
      %v2589 = vrot.slane %v2587, 4
      %v2590 = vshll.u32 %v2258, 16
      %v2592 = vrot.slane %v2590, 5
      %v2593 = vor.u32 %v2589, %v2592
      %v2594 = vrot.slane %v2593, 4
      %v2596 = vshll.u32 %v2259, 16
      %v2598 = vrot.slane %v2596, 5
      %v2599 = vsel %vm964, %v2594, %v2598
      %v2600 = vshrl.u32 %v2259, 16
      %v2602 = vrot.slane %v2600, 4
      %v2603 = vor.u32 %v2602, %v2598
      %v2604 = vrot.slane %v2603, 4
      %v2606 = vshll.u32 %v2260, 16
      %v2608 = vrot.slane %v2606, 5
      %v2609 = vsel %vm964, %v2604, %v2608
      %v2611 = vshrl.u32 %v2261, 16
      %v2613 = vrot.slane %v2611, 4
      %v2614 = vshll.u32 %v2261, 16
      %v2616 = vrot.slane %v2614, 5
      %v2617 = vor.u32 %v2613, %v2616
      %v2618 = vrot.slane %v2617, 4
      %v2620 = vshll.u32 %v2262, 16
      %v2622 = vrot.slane %v2620, 5
      %v2623 = vsel %vm964, %v2618, %v2622
      %v2624 = vshrl.u32 %v2262, 16
      %v2626 = vrot.slane %v2624, 4
      %v2627 = vor.u32 %v2626, %v2622
      %v2628 = vrot.slane %v2627, 4
      %v2630 = vshll.u32 %v2263, 16
      %v2632 = vrot.slane %v2630, 5
      %v2633 = vsel %vm964, %v2628, %v2632
      %v2635 = vshrl.u32 %v2264, 16
      %v2637 = vrot.slane %v2635, 4
      %v2638 = vshll.u32 %v2264, 16
      %v2640 = vrot.slane %v2638, 5
      %v2641 = vor.u32 %v2637, %v2640
      %v2642 = vrot.slane %v2641, 4
      %v2644 = vshll.u32 %v2265, 16
      %v2646 = vrot.slane %v2644, 5
      %v2647 = vsel %vm964, %v2642, %v2646
      %v2648 = vshrl.u32 %v2265, 16
      %v2650 = vrot.slane %v2648, 4
      %v2651 = vor.u32 %v2650, %v2646
      %v2652 = vrot.slane %v2651, 4
      %v2654 = vshll.u32 %v2266, 16
      %v2656 = vrot.slane %v2654, 5
      %v2657 = vsel %vm964, %v2652, %v2656
      %v2659 = vshrl.u32 %v2267, 16
      %v2661 = vrot.slane %v2659, 4
      %v2662 = vshll.u32 %v2267, 16
      %v2664 = vrot.slane %v2662, 5
      %v2665 = vor.u32 %v2661, %v2664
      %v2666 = vrot.slane %v2665, 4
      %v2668 = vshll.u32 %v2268, 16
      %v2670 = vrot.slane %v2668, 5
      %v2671 = vsel %vm964, %v2666, %v2670
      %v2672 = vshrl.u32 %v2268, 16
      %v2674 = vrot.slane %v2672, 4
      %v2675 = vor.u32 %v2674, %v2670
      %v2676 = vrot.slane %v2675, 4
      %v2678 = vshll.u32 %v2269, 16
      %v2680 = vrot.slane %v2678, 5
      %v2681 = vsel %vm964, %v2676, %v2680
      %v2683 = vshrl.u32 %v2270, 16
      %v2685 = vrot.slane %v2683, 4
      %v2686 = vshll.u32 %v2270, 16
      %v2688 = vrot.slane %v2686, 5
      %v2689 = vor.u32 %v2685, %v2688
      %v2690 = vrot.slane %v2689, 4
      %v2692 = vshll.u32 %v2271, 16
      %v2694 = vrot.slane %v2692, 5
      %v2695 = vsel %vm964, %v2690, %v2694
      %v2696 = vshrl.u32 %v2271, 16
      %v2698 = vrot.slane %v2696, 4
      %v2699 = vor.u32 %v2698, %v2694
      %v2700 = vrot.slane %v2699, 4
      %v2702 = vshll.u32 %v2272, 16
      %v2704 = vrot.slane %v2702, 5
      %v2705 = vsel %vm964, %v2700, %v2704
      %v2707 = vshrl.u32 %v2273, 16
      %v2709 = vrot.slane %v2707, 4
      %v2710 = vshll.u32 %v2273, 16
      %v2712 = vrot.slane %v2710, 5
      %v2713 = vor.u32 %v2709, %v2712
      %v2714 = vrot.slane %v2713, 4
      %v2716 = vshll.u32 %v2274, 16
      %v2718 = vrot.slane %v2716, 5
      %v2719 = vsel %vm964, %v2714, %v2718
      %v2720 = vshrl.u32 %v2274, 16
      %v2722 = vrot.slane %v2720, 4
      %v2723 = vor.u32 %v2722, %v2718
      %v2724 = vrot.slane %v2723, 4
      %v2726 = vshll.u32 %v2275, 16
      %v2728 = vrot.slane %v2726, 5
      %v2729 = vsel %vm964, %v2724, %v2728
      %v2731 = vshrl.u32 %v2276, 16
      %v2733 = vrot.slane %v2731, 4
      %v2734 = vshll.u32 %v2276, 16
      %v2736 = vrot.slane %v2734, 5
      %v2737 = vor.u32 %v2733, %v2736
      %v2738 = vrot.slane %v2737, 4
      %v2740 = vshll.u32 %v2277, 16
      %v2742 = vrot.slane %v2740, 5
      %v2743 = vsel %vm964, %v2738, %v2742
      %v2744 = vshrl.u32 %v2277, 16
      %v2746 = vrot.slane %v2744, 4
      %v2747 = vor.u32 %v2746, %v2742
      %v2748 = vrot.slane %v2747, 4
      %v2750 = vshll.u32 %v2278, 16
      %v2752 = vrot.slane %v2750, 5
      %v2753 = vsel %vm964, %v2748, %v2752
      %v2755 = vshrl.u32 %v2279, 16
      %v2757 = vrot.slane %v2755, 4
      %v2758 = vshll.u32 %v2279, 16
      %v2760 = vrot.slane %v2758, 5
      %v2761 = vor.u32 %v2757, %v2760
      %v2762 = vrot.slane %v2761, 4
      %v2764 = vshll.u32 %v2280, 16
      %v2766 = vrot.slane %v2764, 5
      %v2767 = vsel %vm964, %v2762, %v2766
      %v2768 = vshrl.u32 %v2280, 16
      %v2770 = vrot.slane %v2768, 4
      %v2771 = vor.u32 %v2770, %v2766
      %v2772 = vrot.slane %v2771, 4
      %v2774 = vshll.u32 %v2281, 16
      %v2776 = vrot.slane %v2774, 5
      %v2777 = vsel %vm964, %v2772, %v2776
      %v2778 = vunpack.c.l.b16 %v2407
      %v2779 = vunpack.c.l.b16 %v2417
      %v2780 = vunpack.c.l.b16 %v2431
      %v2781 = vunpack.c.l.b16 %v2441
      %v2782 = vunpack.c.l.b16 %v2455
      %v2783 = vunpack.c.l.b16 %v2465
      %v2784 = vunpack.c.l.b16 %v2479
      %v2785 = vunpack.c.l.b16 %v2489
      %v2786 = vunpack.c.l.b16 %v2503
      %v2787 = vunpack.c.l.b16 %v2513
      %v2788 = vunpack.c.l.b16 %v2527
      %v2789 = vunpack.c.l.b16 %v2537
      %v2790 = vunpack.c.l.b16 %v2551
      %v2791 = vunpack.c.l.b16 %v2561
      %v2792 = vunpack.c.l.b16 %v2575
      %v2793 = vunpack.c.l.b16 %v2585
      %v2794 = vunpack.c.l.b16 %v2599
      %v2795 = vunpack.c.l.b16 %v2609
      %v2796 = vunpack.c.l.b16 %v2623
      %v2797 = vunpack.c.l.b16 %v2633
      %v2798 = vunpack.c.l.b16 %v2647
      %v2799 = vunpack.c.l.b16 %v2657
      %v2800 = vunpack.c.l.b16 %v2671
      %v2801 = vunpack.c.l.b16 %v2681
      %v2802 = vunpack.c.l.b16 %v2695
      %v2803 = vunpack.c.l.b16 %v2705
      %v2804 = vunpack.c.l.b16 %v2719
      %v2805 = vunpack.c.l.b16 %v2729
      %v2806 = vunpack.c.l.b16 %v2743
      %v2807 = vunpack.c.l.b16 %v2753
      %v2808 = vunpack.c.l.b16 %v2767
      %v2809 = vunpack.c.l.b16 %v2777
      %v2810 = vpack.c.b16 %v2779, %v2778
      %v2811 = vpack.c.b16 %v2781, %v2780
      %v2812 = vpack.c.b16 %v2783, %v2782
      %v2813 = vpack.c.b16 %v2785, %v2784
      %v2814 = vpack.c.b16 %v2787, %v2786
      %v2815 = vpack.c.b16 %v2789, %v2788
      %v2816 = vpack.c.b16 %v2791, %v2790
      %v2817 = vpack.c.b16 %v2793, %v2792
      %v2818 = vpack.c.b16 %v2795, %v2794
      %v2819 = vpack.c.b16 %v2797, %v2796
      %v2820 = vpack.c.b16 %v2799, %v2798
      %v2821 = vpack.c.b16 %v2801, %v2800
      %v2822 = vpack.c.b16 %v2803, %v2802
      %v2823 = vpack.c.b16 %v2805, %v2804
      %v2824 = vpack.c.b16 %v2807, %v2806
      %v2825 = vpack.c.b16 %v2809, %v2808
      %2842 = vst [vmem:[#allocation3 + $0x8] sm:$0xff] %v2810
      %2843 = vst [vmem:[#allocation3 + $0x20] sm:$0xff] %v2811
      %2844 = vst [vmem:[#allocation3 + $0x38] sm:$0xff] %v2812
      %2845 = vst [vmem:[#allocation3 + $0x50] sm:$0xff] %v2813
      %2846 = vst [vmem:[#allocation3 + $0x68] sm:$0xff] %v2814
      %2847 = vst [vmem:[#allocation3 + $0x80] sm:$0xff] %v2815
      %2848 = vst [vmem:[#allocation3 + $0x98] sm:$0xff] %v2816
      %2849 = vst [vmem:[#allocation3 + $0xb0] sm:$0xff] %v2817
      %2850 = vst [vmem:[#allocation3 + $0xc8] sm:$0xff] %v2818
      %2851 = vst [vmem:[#allocation3 + $0xe0] sm:$0xff] %v2819
      %2852 = vst [vmem:[#allocation3 + $0xf8] sm:$0xff] %v2820
      %2853 = vst [vmem:[#allocation3 + $0x110] sm:$0xff] %v2821
      %2854 = vst [vmem:[#allocation3 + $0x128] sm:$0xff] %v2822
      %2855 = vst [vmem:[#allocation3 + $0x140] sm:$0xff] %v2823
      %2856 = vst [vmem:[#allocation3 + $0x158] sm:$0xff] %v2824
      %2857 = vst [vmem:[#allocation3 + $0x170] sm:$0xff] %v2825
      %v2874 = vrot.slane %v2234, 5
      %v2875 = vrot.slane %v2874, 4
      %v2876 = vrot.slane %v2235, 5
      %v2877 = vsel %vm1447, %v2875, %v2876
      %v2878 = vrot.slane %v2876, 4
      %v2879 = vrot.slane %v2236, 5
      %v2880 = vsel %vm1447, %v2878, %v2879
      %v2881 = vrot.slane %v2237, 5
      %v2882 = vrot.slane %v2881, 4
      %v2883 = vrot.slane %v2238, 5
      %v2884 = vsel %vm1447, %v2882, %v2883
      %v2885 = vrot.slane %v2883, 4
      %v2886 = vrot.slane %v2239, 5
      %v2887 = vsel %vm1447, %v2885, %v2886
      %v2888 = vrot.slane %v2240, 5
      %v2889 = vrot.slane %v2888, 4
      %v2890 = vrot.slane %v2241, 5
      %v2891 = vsel %vm1447, %v2889, %v2890
      %v2892 = vrot.slane %v2890, 4
      %v2893 = vrot.slane %v2242, 5
      %v2894 = vsel %vm1447, %v2892, %v2893
      %v2895 = vrot.slane %v2243, 5
      %v2896 = vrot.slane %v2895, 4
      %v2897 = vrot.slane %v2244, 5
      %v2898 = vsel %vm1447, %v2896, %v2897
      %v2899 = vrot.slane %v2897, 4
      %v2900 = vrot.slane %v2245, 5
      %v2901 = vsel %vm1447, %v2899, %v2900
      %v2902 = vrot.slane %v2246, 5
      %v2903 = vrot.slane %v2902, 4
      %v2904 = vrot.slane %v2247, 5
      %v2905 = vsel %vm1447, %v2903, %v2904
      %v2906 = vrot.slane %v2904, 4
      %v2907 = vrot.slane %v2248, 5
      %v2908 = vsel %vm1447, %v2906, %v2907
      %v2909 = vrot.slane %v2249, 5
      %v2910 = vrot.slane %v2909, 4
      %v2911 = vrot.slane %v2250, 5
      %v2912 = vsel %vm1447, %v2910, %v2911
      %v2913 = vrot.slane %v2911, 4
      %v2914 = vrot.slane %v2251, 5
      %v2915 = vsel %vm1447, %v2913, %v2914
      %v2916 = vrot.slane %v2252, 5
      %v2917 = vrot.slane %v2916, 4
      %v2918 = vrot.slane %v2253, 5
      %v2919 = vsel %vm1447, %v2917, %v2918
      %v2920 = vrot.slane %v2918, 4
      %v2921 = vrot.slane %v2254, 5
      %v2922 = vsel %vm1447, %v2920, %v2921
      %v2923 = vrot.slane %v2255, 5
      %v2924 = vrot.slane %v2923, 4
      %v2925 = vrot.slane %v2256, 5
      %v2926 = vsel %vm1447, %v2924, %v2925
      %v2927 = vrot.slane %v2925, 4
      %v2928 = vrot.slane %v2257, 5
      %v2929 = vsel %vm1447, %v2927, %v2928
      %v2930 = vrot.slane %v2258, 5
      %v2931 = vrot.slane %v2930, 4
      %v2932 = vrot.slane %v2259, 5
      %v2933 = vsel %vm1447, %v2931, %v2932
      %v2934 = vrot.slane %v2932, 4
      %v2935 = vrot.slane %v2260, 5
      %v2936 = vsel %vm1447, %v2934, %v2935
      %v2937 = vrot.slane %v2261, 5
      %v2938 = vrot.slane %v2937, 4
      %v2939 = vrot.slane %v2262, 5
      %v2940 = vsel %vm1447, %v2938, %v2939
      %v2941 = vrot.slane %v2939, 4
      %v2942 = vrot.slane %v2263, 5
      %v2943 = vsel %vm1447, %v2941, %v2942
      %v2944 = vrot.slane %v2264, 5
      %v2945 = vrot.slane %v2944, 4
      %v2946 = vrot.slane %v2265, 5
      %v2947 = vsel %vm1447, %v2945, %v2946
      %v2948 = vrot.slane %v2946, 4
      %v2949 = vrot.slane %v2266, 5
      %v2950 = vsel %vm1447, %v2948, %v2949
      %v2951 = vrot.slane %v2267, 5
      %v2952 = vrot.slane %v2951, 4
      %v2953 = vrot.slane %v2268, 5
      %v2954 = vsel %vm1447, %v2952, %v2953
      %v2955 = vrot.slane %v2953, 4
      %v2956 = vrot.slane %v2269, 5
      %v2957 = vsel %vm1447, %v2955, %v2956
      %v2958 = vrot.slane %v2270, 5
      %v2959 = vrot.slane %v2958, 4
      %v2960 = vrot.slane %v2271, 5
      %v2961 = vsel %vm1447, %v2959, %v2960
      %v2962 = vrot.slane %v2960, 4
      %v2963 = vrot.slane %v2272, 5
      %v2964 = vsel %vm1447, %v2962, %v2963
      %v2965 = vrot.slane %v2273, 5
      %v2966 = vrot.slane %v2965, 4
      %v2967 = vrot.slane %v2274, 5
      %v2968 = vsel %vm1447, %v2966, %v2967
      %v2969 = vrot.slane %v2967, 4
      %v2970 = vrot.slane %v2275, 5
      %v2971 = vsel %vm1447, %v2969, %v2970
      %v2972 = vrot.slane %v2276, 5
      %v2973 = vrot.slane %v2972, 4
      %v2974 = vrot.slane %v2277, 5
      %v2975 = vsel %vm1447, %v2973, %v2974
      %v2976 = vrot.slane %v2974, 4
      %v2977 = vrot.slane %v2278, 5
      %v2978 = vsel %vm1447, %v2976, %v2977
      %v2979 = vrot.slane %v2279, 5
      %v2980 = vrot.slane %v2979, 4
      %v2981 = vrot.slane %v2280, 5
      %v2982 = vsel %vm1447, %v2980, %v2981
      %v2983 = vrot.slane %v2981, 4
      %v2984 = vrot.slane %v2281, 5
      %v2985 = vsel %vm1447, %v2983, %v2984
      %v2986 = vunpack.c.l.b16 %v2877
      %v2987 = vunpack.c.l.b16 %v2880
      %v2988 = vunpack.c.l.b16 %v2884
      %v2989 = vunpack.c.l.b16 %v2887
      %v2990 = vunpack.c.l.b16 %v2891
      %v2991 = vunpack.c.l.b16 %v2894
      %v2992 = vunpack.c.l.b16 %v2898
      %v2993 = vunpack.c.l.b16 %v2901
      %v2994 = vunpack.c.l.b16 %v2905
      %v2995 = vunpack.c.l.b16 %v2908
      %v2996 = vunpack.c.l.b16 %v2912
      %v2997 = vunpack.c.l.b16 %v2915
      %v2998 = vunpack.c.l.b16 %v2919
      %v2999 = vunpack.c.l.b16 %v2922
      %v3000 = vunpack.c.l.b16 %v2926
      %v3001 = vunpack.c.l.b16 %v2929
      %v3002 = vunpack.c.l.b16 %v2933
      %v3003 = vunpack.c.l.b16 %v2936
      %v3004 = vunpack.c.l.b16 %v2940
      %v3005 = vunpack.c.l.b16 %v2943
      %v3006 = vunpack.c.l.b16 %v2947
      %v3007 = vunpack.c.l.b16 %v2950
      %v3008 = vunpack.c.l.b16 %v2954
      %v3009 = vunpack.c.l.b16 %v2957
      %v3010 = vunpack.c.l.b16 %v2961
      %v3011 = vunpack.c.l.b16 %v2964
      %v3012 = vunpack.c.l.b16 %v2968
      %v3013 = vunpack.c.l.b16 %v2971
      %v3014 = vunpack.c.l.b16 %v2975
      %v3015 = vunpack.c.l.b16 %v2978
      %v3016 = vunpack.c.l.b16 %v2982
      %v3017 = vunpack.c.l.b16 %v2985
      %v3018 = vpack.c.b16 %v2987, %v2986
      %v3019 = vpack.c.b16 %v2989, %v2988
      %v3020 = vpack.c.b16 %v2991, %v2990
      %v3021 = vpack.c.b16 %v2993, %v2992
      %v3022 = vpack.c.b16 %v2995, %v2994
      %v3023 = vpack.c.b16 %v2997, %v2996
      %v3024 = vpack.c.b16 %v2999, %v2998
      %v3025 = vpack.c.b16 %v3001, %v3000
      %v3026 = vpack.c.b16 %v3003, %v3002
      %v3027 = vpack.c.b16 %v3005, %v3004
      %v3028 = vpack.c.b16 %v3007, %v3006
      %v3029 = vpack.c.b16 %v3009, %v3008
      %v3030 = vpack.c.b16 %v3011, %v3010
      %v3031 = vpack.c.b16 %v3013, %v3012
      %v3032 = vpack.c.b16 %v3015, %v3014
      %v3033 = vpack.c.b16 %v3017, %v3016
      %3050 = vst [vmem:[#allocation3 + $0x10] sm:$0xff] %v3018
      %3051 = vst [vmem:[#allocation3 + $0x28] sm:$0xff] %v3019
      %3052 = vst [vmem:[#allocation3 + $0x40] sm:$0xff] %v3020
      %3053 = vst [vmem:[#allocation3 + $0x58] sm:$0xff] %v3021
      %3054 = vst [vmem:[#allocation3 + $0x70] sm:$0xff] %v3022
      %3055 = vst [vmem:[#allocation3 + $0x88] sm:$0xff] %v3023
      %3056 = vst [vmem:[#allocation3 + $0xa0] sm:$0xff] %v3024
      %3057 = vst [vmem:[#allocation3 + $0xb8] sm:$0xff] %v3025
      %3058 = vst [vmem:[#allocation3 + $0xd0] sm:$0xff] %v3026
      %3059 = vst [vmem:[#allocation3 + $0xe8] sm:$0xff] %v3027
      %3060 = vst [vmem:[#allocation3 + $0x100] sm:$0xff] %v3028
      %3061 = vst [vmem:[#allocation3 + $0x118] sm:$0xff] %v3029
      %3062 = vst [vmem:[#allocation3 + $0x130] sm:$0xff] %v3030
      %3063 = vst [vmem:[#allocation3 + $0x148] sm:$0xff] %v3031
      %3064 = vst [vmem:[#allocation3 + $0x160] sm:$0xff] %v3032
      %3065 = vst [vmem:[#allocation3 + $0x178] sm:$0xff] %v3033
      %v3066 = vld [vmem:[#allocation3] sm:$0xff]
      %v3067 = vld [vmem:[#allocation3 + $0x8] sm:$0xff]
      %v3068 = vld [vmem:[#allocation3 + $0x10] sm:$0xff]
      %v3069 = vld [vmem:[#allocation3 + $0x18] sm:$0xff]
      %v3070 = vld [vmem:[#allocation3 + $0x20] sm:$0xff]
      %v3071 = vld [vmem:[#allocation3 + $0x28] sm:$0xff]
      %v3072 = vld [vmem:[#allocation3 + $0x30] sm:$0xff]
      %v3073 = vld [vmem:[#allocation3 + $0x38] sm:$0xff]
      %v3074 = vld [vmem:[#allocation3 + $0x40] sm:$0xff]
      %v3075 = vld [vmem:[#allocation3 + $0x48] sm:$0xff]
      %v3076 = vld [vmem:[#allocation3 + $0x50] sm:$0xff]
      %v3077 = vld [vmem:[#allocation3 + $0x58] sm:$0xff]
      %v3078 = vld [vmem:[#allocation3 + $0x60] sm:$0xff]
      %v3079 = vld [vmem:[#allocation3 + $0x68] sm:$0xff]
      %v3080 = vld [vmem:[#allocation3 + $0x70] sm:$0xff]
      %v3081 = vld [vmem:[#allocation3 + $0x78] sm:$0xff]
      %v3082 = vld [vmem:[#allocation3 + $0x80] sm:$0xff]
      %v3083 = vld [vmem:[#allocation3 + $0x88] sm:$0xff]
      %v3084 = vld [vmem:[#allocation3 + $0x90] sm:$0xff]
      %v3085 = vld [vmem:[#allocation3 + $0x98] sm:$0xff]
      %v3086 = vld [vmem:[#allocation3 + $0xa0] sm:$0xff]
      %v3087 = vld [vmem:[#allocation3 + $0xa8] sm:$0xff]
      %v3088 = vld [vmem:[#allocation3 + $0xb0] sm:$0xff]
      %v3089 = vld [vmem:[#allocation3 + $0xb8] sm:$0xff]
      %v3090 = vld [vmem:[#allocation3 + $0xc0] sm:$0xff]
      %v3091 = vld [vmem:[#allocation3 + $0xc8] sm:$0xff]
      %v3092 = vld [vmem:[#allocation3 + $0xd0] sm:$0xff]
      %v3093 = vld [vmem:[#allocation3 + $0xd8] sm:$0xff]
      %v3094 = vld [vmem:[#allocation3 + $0xe0] sm:$0xff]
      %v3095 = vld [vmem:[#allocation3 + $0xe8] sm:$0xff]
      %v3096 = vld [vmem:[#allocation3 + $0xf0] sm:$0xff]
      %v3097 = vld [vmem:[#allocation3 + $0xf8] sm:$0xff]
      %v3098 = vld [vmem:[#allocation3 + $0x100] sm:$0xff]
      %v3099 = vld [vmem:[#allocation3 + $0x108] sm:$0xff]
      %v3100 = vld [vmem:[#allocation3 + $0x110] sm:$0xff]
      %v3101 = vld [vmem:[#allocation3 + $0x118] sm:$0xff]
      %v3102 = vld [vmem:[#allocation3 + $0x120] sm:$0xff]
      %v3103 = vld [vmem:[#allocation3 + $0x128] sm:$0xff]
      %v3104 = vld [vmem:[#allocation3 + $0x130] sm:$0xff]
      %v3105 = vld [vmem:[#allocation3 + $0x138] sm:$0xff]
      %v3106 = vld [vmem:[#allocation3 + $0x140] sm:$0xff]
      %v3107 = vld [vmem:[#allocation3 + $0x148] sm:$0xff]
      %v3108 = vld [vmem:[#allocation3 + $0x150] sm:$0xff]
      %v3109 = vld [vmem:[#allocation3 + $0x158] sm:$0xff]
      %v3110 = vld [vmem:[#allocation3 + $0x160] sm:$0xff]
      %v3111 = vld [vmem:[#allocation3 + $0x168] sm:$0xff]
      %v3112 = vld [vmem:[#allocation3 + $0x170] sm:$0xff]
      %v3113 = vld [vmem:[#allocation3 + $0x178] sm:$0xff]
      %v3114 = vld [vmem:[%s1 + $0xc0] sm:$0xf]
      %v3115 = vld [vmem:[%s1 + $0xc4] sm:$0xf]
      %v3116 = vld [vmem:[%s1 + $0xc8] sm:$0xf]
      %v3117 = vld [vmem:[%s1 + $0xcc] sm:$0xf]
      %v3118 = vld [vmem:[%s1 + $0xd0] sm:$0xf]
      %v3119 = vld [vmem:[%s1 + $0xd4] sm:$0xf]
      %v3120 = vld [vmem:[%s1 + $0xd8] sm:$0xf]
      %v3121 = vld [vmem:[%s1 + $0xdc] sm:$0xf]
      %v3122 = vld [vmem:[%s1 + $0xe0] sm:$0xf]
      %v3123 = vld [vmem:[%s1 + $0xe4] sm:$0xf]
      %v3124 = vld [vmem:[%s1 + $0xe8] sm:$0xf]
      %v3125 = vld [vmem:[%s1 + $0xec] sm:$0xf]
      %v3126 = vld [vmem:[%s1 + $0xf0] sm:$0xf]
      %v3127 = vld [vmem:[%s1 + $0xf4] sm:$0xf]
      %v3128 = vld [vmem:[%s1 + $0xf8] sm:$0xf]
      %v3129 = vld [vmem:[%s1 + $0xfc] sm:$0xf]
      %v3130 = vld [vmem:[%s1 + $0x100] sm:$0xf]
      %v3131 = vld [vmem:[%s1 + $0x104] sm:$0xf]
      %v3132 = vld [vmem:[%s1 + $0x108] sm:$0xf]
      %v3133 = vld [vmem:[%s1 + $0x10c] sm:$0xf]
      %v3134 = vld [vmem:[%s1 + $0x110] sm:$0xf]
      %v3135 = vld [vmem:[%s1 + $0x114] sm:$0xf]
      %v3136 = vld [vmem:[%s1 + $0x118] sm:$0xf]
      %v3137 = vld [vmem:[%s1 + $0x11c] sm:$0xf]
      %v3138 = vld [vmem:[%s1 + $0x120] sm:$0xf]
      %v3139 = vld [vmem:[%s1 + $0x124] sm:$0xf]
      %v3140 = vld [vmem:[%s1 + $0x128] sm:$0xf]
      %v3141 = vld [vmem:[%s1 + $0x12c] sm:$0xf]
      %v3142 = vld [vmem:[%s1 + $0x130] sm:$0xf]
      %v3143 = vld [vmem:[%s1 + $0x134] sm:$0xf]
      %v3144 = vld [vmem:[%s1 + $0x138] sm:$0xf]
      %v3145 = vld [vmem:[%s1 + $0x13c] sm:$0xf]
      %v3146 = vld [vmem:[%s1 + $0x140] sm:$0xf]
      %v3147 = vld [vmem:[%s1 + $0x144] sm:$0xf]
      %v3148 = vld [vmem:[%s1 + $0x148] sm:$0xf]
      %v3149 = vld [vmem:[%s1 + $0x14c] sm:$0xf]
      %v3150 = vld [vmem:[%s1 + $0x150] sm:$0xf]
      %v3151 = vld [vmem:[%s1 + $0x154] sm:$0xf]
      %v3152 = vld [vmem:[%s1 + $0x158] sm:$0xf]
      %v3153 = vld [vmem:[%s1 + $0x15c] sm:$0xf]
      %v3154 = vld [vmem:[%s1 + $0x160] sm:$0xf]
      %v3155 = vld [vmem:[%s1 + $0x164] sm:$0xf]
      %v3156 = vld [vmem:[%s1 + $0x168] sm:$0xf]
      %v3157 = vld [vmem:[%s1 + $0x16c] sm:$0xf]
      %v3158 = vld [vmem:[%s1 + $0x170] sm:$0xf]
      %v3159 = vld [vmem:[%s1 + $0x174] sm:$0xf]
      %v3160 = vld [vmem:[%s1 + $0x178] sm:$0xf]
      %v3161 = vld [vmem:[%s1 + $0x17c] sm:$0xf]
      %v3210 = vunpack.c.l.b16 %v3114
      %v3211 = vunpack.c.l.b16 %v3115
      %v3212 = vunpack.c.l.b16 %v3116
      %v3213 = vunpack.c.l.b16 %v3117
      %v3214 = vunpack.c.l.b16 %v3118
      %v3215 = vunpack.c.l.b16 %v3119
      %v3216 = vunpack.c.l.b16 %v3120
      %v3217 = vunpack.c.l.b16 %v3121
      %v3218 = vunpack.c.l.b16 %v3122
      %v3219 = vunpack.c.l.b16 %v3123
      %v3220 = vunpack.c.l.b16 %v3124
      %v3221 = vunpack.c.l.b16 %v3125
      %v3222 = vunpack.c.l.b16 %v3126
      %v3223 = vunpack.c.l.b16 %v3127
      %v3224 = vunpack.c.l.b16 %v3128
      %v3225 = vunpack.c.l.b16 %v3129
      %v3226 = vunpack.c.l.b16 %v3130
      %v3227 = vunpack.c.l.b16 %v3131
      %v3228 = vunpack.c.l.b16 %v3132
      %v3229 = vunpack.c.l.b16 %v3133
      %v3230 = vunpack.c.l.b16 %v3134
      %v3231 = vunpack.c.l.b16 %v3135
      %v3232 = vunpack.c.l.b16 %v3136
      %v3233 = vunpack.c.l.b16 %v3137
      %v3234 = vunpack.c.l.b16 %v3138
      %v3235 = vunpack.c.l.b16 %v3139
      %v3236 = vunpack.c.l.b16 %v3140
      %v3237 = vunpack.c.l.b16 %v3141
      %v3238 = vunpack.c.l.b16 %v3142
      %v3239 = vunpack.c.l.b16 %v3143
      %v3240 = vunpack.c.l.b16 %v3144
      %v3241 = vunpack.c.l.b16 %v3145
      %v3242 = vunpack.c.l.b16 %v3146
      %v3243 = vunpack.c.l.b16 %v3147
      %v3244 = vunpack.c.l.b16 %v3148
      %v3245 = vunpack.c.l.b16 %v3149
      %v3246 = vunpack.c.l.b16 %v3150
      %v3247 = vunpack.c.l.b16 %v3151
      %v3248 = vunpack.c.l.b16 %v3152
      %v3249 = vunpack.c.l.b16 %v3153
      %v3250 = vunpack.c.l.b16 %v3154
      %v3251 = vunpack.c.l.b16 %v3155
      %v3252 = vunpack.c.l.b16 %v3156
      %v3253 = vunpack.c.l.b16 %v3157
      %v3254 = vunpack.c.l.b16 %v3158
      %v3255 = vunpack.c.l.b16 %v3159
      %v3256 = vunpack.c.l.b16 %v3160
      %v3257 = vunpack.c.l.b16 %v3161
      %v3258 = vpack.c.b16 %v3211, %v3210
      %v3259 = vpack.c.b16 %v3213, %v3212
      %v3260 = vpack.c.b16 %v3215, %v3214
      %v3261 = vpack.c.b16 %v3217, %v3216
      %v3262 = vpack.c.b16 %v3219, %v3218
      %v3263 = vpack.c.b16 %v3221, %v3220
      %v3264 = vpack.c.b16 %v3223, %v3222
      %v3265 = vpack.c.b16 %v3225, %v3224
      %v3266 = vpack.c.b16 %v3227, %v3226
      %v3267 = vpack.c.b16 %v3229, %v3228
      %v3268 = vpack.c.b16 %v3231, %v3230
      %v3269 = vpack.c.b16 %v3233, %v3232
      %v3270 = vpack.c.b16 %v3235, %v3234
      %v3271 = vpack.c.b16 %v3237, %v3236
      %v3272 = vpack.c.b16 %v3239, %v3238
      %v3273 = vpack.c.b16 %v3241, %v3240
      %v3274 = vpack.c.b16 %v3243, %v3242
      %v3275 = vpack.c.b16 %v3245, %v3244
      %v3276 = vpack.c.b16 %v3247, %v3246
      %v3277 = vpack.c.b16 %v3249, %v3248
      %v3278 = vpack.c.b16 %v3251, %v3250
      %v3279 = vpack.c.b16 %v3253, %v3252
      %v3280 = vpack.c.b16 %v3255, %v3254
      %v3281 = vpack.c.b16 %v3257, %v3256
      %3306 = vmatprep.subr.bf16.mxu0 0
      %3307 = vmatpush1.bf16.msra.mxu0 %v3258
      %3308 = vmatprep.subr.bf16.mxu0 0
      %3309 = vmatpush1.bf16.msra.mxu0 %v3259
      %3310 = vmatprep.subr.bf16.mxu0 0
      %3311 = vmatpush1.bf16.msra.mxu0 %v3260
      %3312 = vmatprep.subr.bf16.mxu0 0
      %3313 = vmatpush1.bf16.msra.mxu0 %v3261
      %3314 = vmatprep.subr.bf16.mxu0 0
      %3315 = vmatpush1.bf16.msra.mxu0 %v3262
      %3316 = vmatprep.subr.bf16.mxu0 0
      %3317 = vmatpush1.bf16.msra.mxu0 %v3263
      %3318 = vmatprep.subr.bf16.mxu0 0
      %3319 = vmatpush1.bf16.msra.mxu0 %v3264
      %3320 = vmatprep.subr.bf16.mxu0 0
      %3321 = vmatpush1.bf16.msra.mxu0 %v3265
      %3322 = vmatprep.subr.bf16.mxu0 0
      %3323 = vmatpush1.bf16.msra.mxu0 %v3266
      %3324 = vmatprep.subr.bf16.mxu0 0
      %3325 = vmatpush1.bf16.msra.mxu0 %v3267
      %3326 = vmatprep.subr.bf16.mxu0 0
      %3327 = vmatpush1.bf16.msra.mxu0 %v3268
      %3328 = vmatprep.subr.bf16.mxu0 0
      %3329 = vmatpush1.bf16.msra.mxu0 %v3269
      %3330 = vmatprep.subr.bf16.mxu0 0
      %3331 = vmatpush1.bf16.msra.mxu0 %v3270
      %3332 = vmatprep.subr.bf16.mxu0 0
      %3333 = vmatpush1.bf16.msra.mxu0 %v3271
      %3334 = vmatprep.subr.bf16.mxu0 0
      %3335 = vmatpush1.bf16.msra.mxu0 %v3272
      %3336 = vmatprep.subr.bf16.mxu0 0
      %3337 = vmatpush1.bf16.msra.mxu0 %v3273
      %3338 = vmatprep.mubr.bf16.mxu0 %v3067
      %3339 = vmatmul.mubr.bf16.gmra.mrb[0].mxu0 %v3066
      %v3340 = vpop.f32.mrb[0].mxu0
      %v3341 = vadd.f32 0.0, %v3340
      %v3342 = vpop.f32.mrb[0].mxu0
      %v3343 = vpop.f32.mrb[0].mxu0
      %v3344 = vadd.f32 0.0, %v3343
      %v3345 = vpop.f32.mrb[0].mxu0
      %3346 = vmatprep.mubr.bf16.mxu0 %v3070
      %3347 = vmatmul.mubr.bf16.gmra.mrb[0].mxu0 %v3069
      %v3348 = vpop.f32.mrb[0].mxu0
      %v3349 = vadd.f32 0.0, %v3348
      %v3350 = vpop.f32.mrb[0].mxu0
      %v3351 = vpop.f32.mrb[0].mxu0
      %v3352 = vadd.f32 0.0, %v3351
      %v3353 = vpop.f32.mrb[0].mxu0
      %3354 = vmatprep.mubr.bf16.mxu0 %v3073
      %3355 = vmatmul.mubr.bf16.gmra.mrb[0].mxu0 %v3072
      %v3356 = vpop.f32.mrb[0].mxu0
      %v3357 = vadd.f32 0.0, %v3356
      %v3358 = vpop.f32.mrb[0].mxu0
      %v3359 = vpop.f32.mrb[0].mxu0
      %v3360 = vadd.f32 0.0, %v3359
      %v3361 = vpop.f32.mrb[0].mxu0
      %3362 = vmatprep.mubr.bf16.mxu0 %v3076
      %3363 = vmatmul.mubr.bf16.gmra.mrb[0].mxu0 %v3075
      %v3364 = vpop.f32.mrb[0].mxu0
      %v3365 = vadd.f32 0.0, %v3364
      %v3366 = vpop.f32.mrb[0].mxu0
      %v3367 = vpop.f32.mrb[0].mxu0
      %v3368 = vadd.f32 0.0, %v3367
      %v3369 = vpop.f32.mrb[0].mxu0
      %3370 = vmatprep.mubr.bf16.mxu0 %v3079
      %3371 = vmatmul.mubr.bf16.gmra.mrb[0].mxu0 %v3078
      %v3372 = vpop.f32.mrb[0].mxu0
      %v3373 = vadd.f32 0.0, %v3372
      %v3374 = vpop.f32.mrb[0].mxu0
      %v3375 = vpop.f32.mrb[0].mxu0
      %v3376 = vadd.f32 0.0, %v3375
      %v3377 = vpop.f32.mrb[0].mxu0
      %3378 = vmatprep.mubr.bf16.mxu0 %v3082
      %3379 = vmatmul.mubr.bf16.gmra.mrb[0].mxu0 %v3081
      %v3380 = vpop.f32.mrb[0].mxu0
      %v3381 = vadd.f32 0.0, %v3380
      %v3382 = vpop.f32.mrb[0].mxu0
      %v3383 = vpop.f32.mrb[0].mxu0
      %v3384 = vadd.f32 0.0, %v3383
      %v3385 = vpop.f32.mrb[0].mxu0
      %3386 = vmatprep.mubr.bf16.mxu0 %v3085
      %3387 = vmatmul.mubr.bf16.gmra.mrb[0].mxu0 %v3084
      %v3388 = vpop.f32.mrb[0].mxu0
      %v3389 = vadd.f32 0.0, %v3388
      %v3390 = vpop.f32.mrb[0].mxu0
      %v3391 = vpop.f32.mrb[0].mxu0
      %v3392 = vadd.f32 0.0, %v3391
      %v3393 = vpop.f32.mrb[0].mxu0
      %3394 = vmatprep.mubr.bf16.mxu0 %v3088
      %3395 = vmatmul.mubr.bf16.gmra.mrb[0].mxu0 %v3087
      %v3396 = vpop.f32.mrb[0].mxu0
      %v3397 = vadd.f32 0.0, %v3396
      %v3398 = vpop.f32.mrb[0].mxu0
      %v3399 = vpop.f32.mrb[0].mxu0
      %v3400 = vadd.f32 0.0, %v3399
      %v3401 = vpop.f32.mrb[0].mxu0
      %3402 = vmatprep.mubr.bf16.mxu0 %v3091
      %3403 = vmatmul.mubr.bf16.gmra.mrb[0].mxu0 %v3090
      %v3404 = vpop.f32.mrb[0].mxu0
      %v3405 = vadd.f32 0.0, %v3404
      %v3406 = vpop.f32.mrb[0].mxu0
      %v3407 = vpop.f32.mrb[0].mxu0
      %v3408 = vadd.f32 0.0, %v3407
      %v3409 = vpop.f32.mrb[0].mxu0
      %3410 = vmatprep.mubr.bf16.mxu0 %v3094
      %3411 = vmatmul.mubr.bf16.gmra.mrb[0].mxu0 %v3093
      %v3412 = vpop.f32.mrb[0].mxu0
      %v3413 = vadd.f32 0.0, %v3412
      %v3414 = vpop.f32.mrb[0].mxu0
      %v3415 = vpop.f32.mrb[0].mxu0
      %v3416 = vadd.f32 0.0, %v3415
      %v3417 = vpop.f32.mrb[0].mxu0
      %3418 = vmatprep.mubr.bf16.mxu0 %v3097
      %3419 = vmatmul.mubr.bf16.gmra.mrb[0].mxu0 %v3096
      %v3420 = vpop.f32.mrb[0].mxu0
      %v3421 = vadd.f32 0.0, %v3420
      %v3422 = vpop.f32.mrb[0].mxu0
      %v3423 = vpop.f32.mrb[0].mxu0
      %v3424 = vadd.f32 0.0, %v3423
      %v3425 = vpop.f32.mrb[0].mxu0
      %3426 = vmatprep.mubr.bf16.mxu0 %v3100
      %3427 = vmatmul.mubr.bf16.gmra.mrb[0].mxu0 %v3099
      %v3428 = vpop.f32.mrb[0].mxu0
      %v3429 = vadd.f32 0.0, %v3428
      %v3430 = vpop.f32.mrb[0].mxu0
      %v3431 = vpop.f32.mrb[0].mxu0
      %v3432 = vadd.f32 0.0, %v3431
      %v3433 = vpop.f32.mrb[0].mxu0
      %3434 = vmatprep.mubr.bf16.mxu0 %v3103
      %3435 = vmatmul.mubr.bf16.gmra.mrb[0].mxu0 %v3102
      %v3436 = vpop.f32.mrb[0].mxu0
      %v3437 = vadd.f32 0.0, %v3436
      %v3438 = vpop.f32.mrb[0].mxu0
      %v3439 = vpop.f32.mrb[0].mxu0
      %v3440 = vadd.f32 0.0, %v3439
      %v3441 = vpop.f32.mrb[0].mxu0
      %3442 = vmatprep.mubr.bf16.mxu0 %v3106
      %3443 = vmatmul.mubr.bf16.gmra.mrb[0].mxu0 %v3105
      %v3444 = vpop.f32.mrb[0].mxu0
      %v3445 = vadd.f32 0.0, %v3444
      %v3446 = vpop.f32.mrb[0].mxu0
      %v3447 = vpop.f32.mrb[0].mxu0
      %v3448 = vadd.f32 0.0, %v3447
      %v3449 = vpop.f32.mrb[0].mxu0
      %3450 = vmatprep.mubr.bf16.mxu0 %v3109
      %3451 = vmatmul.mubr.bf16.gmra.mrb[0].mxu0 %v3108
      %v3452 = vpop.f32.mrb[0].mxu0
      %v3453 = vadd.f32 0.0, %v3452
      %v3454 = vpop.f32.mrb[0].mxu0
      %v3455 = vpop.f32.mrb[0].mxu0
      %v3456 = vadd.f32 0.0, %v3455
      %v3457 = vpop.f32.mrb[0].mxu0
      %3458 = vmatprep.mubr.bf16.mxu0 %v3112
      %3459 = vmatmul.mubr.bf16.gmra.mrb[0].mxu0 %v3111
      %v3460 = vpop.f32.mrb[0].mxu0
      %v3461 = vadd.f32 0.0, %v3460
      %v3462 = vpop.f32.mrb[0].mxu0
      %v3463 = vpop.f32.mrb[0].mxu0
      %v3464 = vadd.f32 0.0, %v3463
      %v3465 = vpop.f32.mrb[0].mxu0
      %3466 = vdwg.mxu0
      %3467 = vmatprep.subr.bf16.mxu0 0
      %3468 = vmatpush1.bf16.msra.mxu0 %v3274
      %3469 = vmatprep.subr.bf16.mxu0 0
      %3470 = vmatpush1.bf16.msra.mxu0 %v3275
      %3471 = vmatprep.subr.bf16.mxu0 0
      %3472 = vmatpush1.bf16.msra.mxu0 %v3276
      %3473 = vmatprep.subr.bf16.mxu0 0
      %3474 = vmatpush1.bf16.msra.mxu0 %v3277
      %3475 = vmatprep.subr.bf16.mxu0 0
      %3476 = vmatpush1.bf16.msra.mxu0 %v3278
      %3477 = vmatprep.subr.bf16.mxu0 0
      %3478 = vmatpush1.bf16.msra.mxu0 %v3279
      %3479 = vmatprep.subr.bf16.mxu0 0
      %3480 = vmatpush1.bf16.msra.mxu0 %v3280
      %3481 = vmatprep.subr.bf16.mxu0 0
      %3482 = vmatpush1.bf16.msra.mxu0 %v3281
      %3483 = vmatprep.subr.bf16.mxu0 0
      %3484 = vmatpush1.bf16.msra.mxu0 0
      %3485 = vmatprep.subr.bf16.mxu0 0
      %3486 = vmatpush1.bf16.msra.mxu0 0
      %3487 = vmatprep.subr.bf16.mxu0 0
      %3488 = vmatpush1.bf16.msra.mxu0 0
      %3489 = vmatprep.subr.bf16.mxu0 0
      %3490 = vmatpush1.bf16.msra.mxu0 0
      %3491 = vmatprep.subr.bf16.mxu0 0
      %3492 = vmatpush1.bf16.msra.mxu0 0
      %3493 = vmatprep.subr.bf16.mxu0 0
      %3494 = vmatpush1.bf16.msra.mxu0 0
      %3495 = vmatprep.subr.bf16.mxu0 0
      %3496 = vmatpush1.bf16.msra.mxu0 0
      %3497 = vmatprep.subr.bf16.mxu0 0
      %3498 = vmatpush1.bf16.msra.mxu0 0
      %3499 = vmatprep.mubr.bf16.mxu0 0
      %3500 = vmatmul.mubr.bf16.gmra.mrb[0].mxu0 %v3068
      %v3501 = vpop.f32.mrb[0].mxu0
      %v3502 = vadd.f32 %v3341, %v3501
      %v3503 = vpop.f32.mrb[0].mxu0
      %v3504 = vpop.f32.mrb[0].mxu0
      %v3505 = vadd.f32 %v3344, %v3504
      %v3506 = vpop.f32.mrb[0].mxu0
      %3507 = vmatprep.mubr.bf16.mxu0 0
      %3508 = vmatmul.mubr.bf16.gmra.mrb[0].mxu0 %v3071
      %v3509 = vpop.f32.mrb[0].mxu0
      %v3510 = vadd.f32 %v3349, %v3509
      %v3511 = vpop.f32.mrb[0].mxu0
      %v3512 = vpop.f32.mrb[0].mxu0
      %v3513 = vadd.f32 %v3352, %v3512
      %v3514 = vpop.f32.mrb[0].mxu0
      %3515 = vmatprep.mubr.bf16.mxu0 0
      %3516 = vmatmul.mubr.bf16.gmra.mrb[0].mxu0 %v3074
      %v3517 = vpop.f32.mrb[0].mxu0
      %v3518 = vadd.f32 %v3357, %v3517
      %v3519 = vpop.f32.mrb[0].mxu0
      %v3520 = vpop.f32.mrb[0].mxu0
      %v3521 = vadd.f32 %v3360, %v3520
      %v3522 = vpop.f32.mrb[0].mxu0
      %3523 = vmatprep.mubr.bf16.mxu0 0
      %3524 = vmatmul.mubr.bf16.gmra.mrb[0].mxu0 %v3077
      %v3525 = vpop.f32.mrb[0].mxu0
      %v3526 = vadd.f32 %v3365, %v3525
      %v3527 = vpop.f32.mrb[0].mxu0
      %v3528 = vpop.f32.mrb[0].mxu0
      %v3529 = vadd.f32 %v3368, %v3528
      %v3530 = vpop.f32.mrb[0].mxu0
      %3531 = vmatprep.mubr.bf16.mxu0 0
      %3532 = vmatmul.mubr.bf16.gmra.mrb[0].mxu0 %v3080
      %v3533 = vpop.f32.mrb[0].mxu0
      %v3534 = vadd.f32 %v3373, %v3533
      %v3535 = vpop.f32.mrb[0].mxu0
      %v3536 = vpop.f32.mrb[0].mxu0
      %v3537 = vadd.f32 %v3376, %v3536
      %v3538 = vpop.f32.mrb[0].mxu0
      %3539 = vmatprep.mubr.bf16.mxu0 0
      %3540 = vmatmul.mubr.bf16.gmra.mrb[0].mxu0 %v3083
      %v3541 = vpop.f32.mrb[0].mxu0
      %v3542 = vadd.f32 %v3381, %v3541
      %v3543 = vpop.f32.mrb[0].mxu0
      %v3544 = vpop.f32.mrb[0].mxu0
      %v3545 = vadd.f32 %v3384, %v3544
      %v3546 = vpop.f32.mrb[0].mxu0
      %3547 = vmatprep.mubr.bf16.mxu0 0
      %3548 = vmatmul.mubr.bf16.gmra.mrb[0].mxu0 %v3086
      %v3549 = vpop.f32.mrb[0].mxu0
      %v3550 = vadd.f32 %v3389, %v3549
      %v3551 = vpop.f32.mrb[0].mxu0
      %v3552 = vpop.f32.mrb[0].mxu0
      %v3553 = vadd.f32 %v3392, %v3552
      %v3554 = vpop.f32.mrb[0].mxu0
      %3555 = vmatprep.mubr.bf16.mxu0 0
      %3556 = vmatmul.mubr.bf16.gmra.mrb[0].mxu0 %v3089
      %v3557 = vpop.f32.mrb[0].mxu0
      %v3558 = vadd.f32 %v3397, %v3557
      %v3559 = vpop.f32.mrb[0].mxu0
      %v3560 = vpop.f32.mrb[0].mxu0
      %v3561 = vadd.f32 %v3400, %v3560
      %v3562 = vpop.f32.mrb[0].mxu0
      %3563 = vmatprep.mubr.bf16.mxu0 0
      %3564 = vmatmul.mubr.bf16.gmra.mrb[0].mxu0 %v3092
      %v3565 = vpop.f32.mrb[0].mxu0
      %v3566 = vadd.f32 %v3405, %v3565
      %v3567 = vpop.f32.mrb[0].mxu0
      %v3568 = vpop.f32.mrb[0].mxu0
      %v3569 = vadd.f32 %v3408, %v3568
      %v3570 = vpop.f32.mrb[0].mxu0
      %3571 = vmatprep.mubr.bf16.mxu0 0
      %3572 = vmatmul.mubr.bf16.gmra.mrb[0].mxu0 %v3095
      %v3573 = vpop.f32.mrb[0].mxu0
      %v3574 = vadd.f32 %v3413, %v3573
      %v3575 = vpop.f32.mrb[0].mxu0
      %v3576 = vpop.f32.mrb[0].mxu0
      %v3577 = vadd.f32 %v3416, %v3576
      %v3578 = vpop.f32.mrb[0].mxu0
      %3579 = vmatprep.mubr.bf16.mxu0 0
      %3580 = vmatmul.mubr.bf16.gmra.mrb[0].mxu0 %v3098
      %v3581 = vpop.f32.mrb[0].mxu0
      %v3582 = vadd.f32 %v3421, %v3581
      %v3583 = vpop.f32.mrb[0].mxu0
      %v3584 = vpop.f32.mrb[0].mxu0
      %v3585 = vadd.f32 %v3424, %v3584
      %v3586 = vpop.f32.mrb[0].mxu0
      %3587 = vmatprep.mubr.bf16.mxu0 0
      %3588 = vmatmul.mubr.bf16.gmra.mrb[0].mxu0 %v3101
      %v3589 = vpop.f32.mrb[0].mxu0
      %v3590 = vadd.f32 %v3429, %v3589
      %v3591 = vpop.f32.mrb[0].mxu0
      %v3592 = vpop.f32.mrb[0].mxu0
      %v3593 = vadd.f32 %v3432, %v3592
      %v3594 = vpop.f32.mrb[0].mxu0
      %3595 = vmatprep.mubr.bf16.mxu0 0
      %3596 = vmatmul.mubr.bf16.gmra.mrb[0].mxu0 %v3104
      %v3597 = vpop.f32.mrb[0].mxu0
      %v3598 = vadd.f32 %v3437, %v3597
      %v3599 = vpop.f32.mrb[0].mxu0
      %v3600 = vpop.f32.mrb[0].mxu0
      %v3601 = vadd.f32 %v3440, %v3600
      %v3602 = vpop.f32.mrb[0].mxu0
      %3603 = vmatprep.mubr.bf16.mxu0 0
      %3604 = vmatmul.mubr.bf16.gmra.mrb[0].mxu0 %v3107
      %v3605 = vpop.f32.mrb[0].mxu0
      %v3606 = vadd.f32 %v3445, %v3605
      %v3607 = vpop.f32.mrb[0].mxu0
      %v3608 = vpop.f32.mrb[0].mxu0
      %v3609 = vadd.f32 %v3448, %v3608
      %v3610 = vpop.f32.mrb[0].mxu0
      %3611 = vmatprep.mubr.bf16.mxu0 0
      %3612 = vmatmul.mubr.bf16.gmra.mrb[0].mxu0 %v3110
      %v3613 = vpop.f32.mrb[0].mxu0
      %v3614 = vadd.f32 %v3453, %v3613
      %v3615 = vpop.f32.mrb[0].mxu0
      %v3616 = vpop.f32.mrb[0].mxu0
      %v3617 = vadd.f32 %v3456, %v3616
      %v3618 = vpop.f32.mrb[0].mxu0
      %3619 = vmatprep.mubr.bf16.mxu0 0
      %3620 = vmatmul.mubr.bf16.gmra.mrb[0].mxu0 %v3113
      %v3621 = vpop.f32.mrb[0].mxu0
      %v3622 = vadd.f32 %v3461, %v3621
      %v3623 = vpop.f32.mrb[0].mxu0
      %v3624 = vpop.f32.mrb[0].mxu0
      %v3625 = vadd.f32 %v3464, %v3624
      %v3626 = vpop.f32.mrb[0].mxu0
      %3627 = vdwg.mxu0
      %v3628 = vld [vmem:[#allocation4] sm:$0xff]
      %v3629 = vld [vmem:[#allocation4 + $0x8] sm:$0xff]
      %v3630 = vld [vmem:[#allocation4 + $0x10] sm:$0xff]
      %v3631 = vld [vmem:[#allocation4 + $0x18] sm:$0xff]
      %v3632 = vld [vmem:[#allocation4 + $0x20] sm:$0xff]
      %v3633 = vld [vmem:[#allocation4 + $0x28] sm:$0xff]
      %v3634 = vld [vmem:[#allocation4 + $0x30] sm:$0xff]
      %v3635 = vld [vmem:[#allocation4 + $0x38] sm:$0xff]
      %v3636 = vld [vmem:[#allocation4 + $0x40] sm:$0xff]
      %v3637 = vld [vmem:[#allocation4 + $0x48] sm:$0xff]
      %v3638 = vld [vmem:[#allocation4 + $0x50] sm:$0xff]
      %v3639 = vld [vmem:[#allocation4 + $0x58] sm:$0xff]
      %v3640 = vld [vmem:[#allocation4 + $0x60] sm:$0xff]
      %v3641 = vld [vmem:[#allocation4 + $0x68] sm:$0xff]
      %v3642 = vld [vmem:[#allocation4 + $0x70] sm:$0xff]
      %v3643 = vld [vmem:[#allocation4 + $0x78] sm:$0xff]
      %v3644 = vld [vmem:[#allocation4 + $0x80] sm:$0xff]
      %v3645 = vld [vmem:[#allocation4 + $0x88] sm:$0xff]
      %v3646 = vld [vmem:[#allocation4 + $0x90] sm:$0xff]
      %v3647 = vld [vmem:[#allocation4 + $0x98] sm:$0xff]
      %v3648 = vld [vmem:[#allocation4 + $0xa0] sm:$0xff]
      %v3649 = vld [vmem:[#allocation4 + $0xa8] sm:$0xff]
      %v3650 = vld [vmem:[#allocation4 + $0xb0] sm:$0xff]
      %v3651 = vld [vmem:[#allocation4 + $0xb8] sm:$0xff]
      %v3652 = vld [vmem:[#allocation4 + $0xc0] sm:$0xff]
      %v3653 = vld [vmem:[#allocation4 + $0xc8] sm:$0xff]
      %v3654 = vld [vmem:[#allocation4 + $0xd0] sm:$0xff]
      %v3655 = vld [vmem:[#allocation4 + $0xd8] sm:$0xff]
      %v3656 = vld [vmem:[#allocation4 + $0xe0] sm:$0xff]
      %v3657 = vld [vmem:[#allocation4 + $0xe8] sm:$0xff]
      %v3658 = vld [vmem:[#allocation4 + $0xf0] sm:$0xff]
      %v3659 = vld [vmem:[#allocation4 + $0xf8] sm:$0xff]
      %v3660 = vadd.f32 %v3628, %v3502
      %v3661 = vadd.f32 %v3629, %v3505
      %v3662 = vadd.f32 %v3630, %v3510
      %v3663 = vadd.f32 %v3631, %v3513
      %v3664 = vadd.f32 %v3632, %v3518
      %v3665 = vadd.f32 %v3633, %v3521
      %v3666 = vadd.f32 %v3634, %v3526
      %v3667 = vadd.f32 %v3635, %v3529
      %v3668 = vadd.f32 %v3636, %v3534
      %v3669 = vadd.f32 %v3637, %v3537
      %v3670 = vadd.f32 %v3638, %v3542
      %v3671 = vadd.f32 %v3639, %v3545
      %v3672 = vadd.f32 %v3640, %v3550
      %v3673 = vadd.f32 %v3641, %v3553
      %v3674 = vadd.f32 %v3642, %v3558
      %v3675 = vadd.f32 %v3643, %v3561
      %v3676 = vadd.f32 %v3644, %v3566
      %v3677 = vadd.f32 %v3645, %v3569
      %v3678 = vadd.f32 %v3646, %v3574
      %v3679 = vadd.f32 %v3647, %v3577
      %v3680 = vadd.f32 %v3648, %v3582
      %v3681 = vadd.f32 %v3649, %v3585
      %v3682 = vadd.f32 %v3650, %v3590
      %v3683 = vadd.f32 %v3651, %v3593
      %v3684 = vadd.f32 %v3652, %v3598
      %v3685 = vadd.f32 %v3653, %v3601
      %v3686 = vadd.f32 %v3654, %v3606
      %v3687 = vadd.f32 %v3655, %v3609
      %v3688 = vadd.f32 %v3656, %v3614
      %v3689 = vadd.f32 %v3657, %v3617
      %v3690 = vadd.f32 %v3658, %v3622
      %v3691 = vadd.f32 %v3659, %v3625
      %3692 = vst [vmem:[#allocation4] sm:$0xff] %v3660
      %3693 = vst [vmem:[#allocation4 + $0x8] sm:$0xff] %v3661
      %3694 = vst [vmem:[#allocation4 + $0x10] sm:$0xff] %v3662
      %3695 = vst [vmem:[#allocation4 + $0x18] sm:$0xff] %v3663
      %3696 = vst [vmem:[#allocation4 + $0x20] sm:$0xff] %v3664
      %3697 = vst [vmem:[#allocation4 + $0x28] sm:$0xff] %v3665
      %3698 = vst [vmem:[#allocation4 + $0x30] sm:$0xff] %v3666
      %3699 = vst [vmem:[#allocation4 + $0x38] sm:$0xff] %v3667
      %3700 = vst [vmem:[#allocation4 + $0x40] sm:$0xff] %v3668
      %3701 = vst [vmem:[#allocation4 + $0x48] sm:$0xff] %v3669
      %3702 = vst [vmem:[#allocation4 + $0x50] sm:$0xff] %v3670
      %3703 = vst [vmem:[#allocation4 + $0x58] sm:$0xff] %v3671
      %3704 = vst [vmem:[#allocation4 + $0x60] sm:$0xff] %v3672
      %3705 = vst [vmem:[#allocation4 + $0x68] sm:$0xff] %v3673
      %3706 = vst [vmem:[#allocation4 + $0x70] sm:$0xff] %v3674
      %3707 = vst [vmem:[#allocation4 + $0x78] sm:$0xff] %v3675
      %3708 = vst [vmem:[#allocation4 + $0x80] sm:$0xff] %v3676
      %3709 = vst [vmem:[#allocation4 + $0x88] sm:$0xff] %v3677
      %3710 = vst [vmem:[#allocation4 + $0x90] sm:$0xff] %v3678
      %3711 = vst [vmem:[#allocation4 + $0x98] sm:$0xff] %v3679
      %3712 = vst [vmem:[#allocation4 + $0xa0] sm:$0xff] %v3680
      %3713 = vst [vmem:[#allocation4 + $0xa8] sm:$0xff] %v3681
      %3714 = vst [vmem:[#allocation4 + $0xb0] sm:$0xff] %v3682
      %3715 = vst [vmem:[#allocation4 + $0xb8] sm:$0xff] %v3683
      %3716 = vst [vmem:[#allocation4 + $0xc0] sm:$0xff] %v3684
      %3717 = vst [vmem:[#allocation4 + $0xc8] sm:$0xff] %v3685
      %3718 = vst [vmem:[#allocation4 + $0xd0] sm:$0xff] %v3686
      %3719 = vst [vmem:[#allocation4 + $0xd8] sm:$0xff] %v3687
      %3720 = vst [vmem:[#allocation4 + $0xe0] sm:$0xff] %v3688
      %3721 = vst [vmem:[#allocation4 + $0xe8] sm:$0xff] %v3689
      %3722 = vst [vmem:[#allocation4 + $0xf0] sm:$0xff] %v3690
      %3723 = vst [vmem:[#allocation4 + $0xf8] sm:$0xff] %v3691
      %s3724 = scalar_lea.vmem [#allocation2], 24
      %v3725 = vld [vmem:[%s3724] sm:$0xf]
      %v3726 = vld [vmem:[%s3724 + $0x4] sm:$0xf]
      %v3727 = vld [vmem:[%s3724 + $0x8] sm:$0xf]
      %v3728 = vld [vmem:[%s3724 + $0xc] sm:$0xf]
      %v3729 = vld [vmem:[%s3724 + $0x10] sm:$0xf]
      %v3730 = vld [vmem:[%s3724 + $0x14] sm:$0xf]
      %v3731 = vld [vmem:[%s3724 + $0x18] sm:$0xf]
      %v3732 = vld [vmem:[%s3724 + $0x1c] sm:$0xf]
      %v3733 = vld [vmem:[%s3724 + $0x20] sm:$0xf]
      %v3734 = vld [vmem:[%s3724 + $0x24] sm:$0xf]
      %v3735 = vld [vmem:[%s3724 + $0x28] sm:$0xf]
      %v3736 = vld [vmem:[%s3724 + $0x2c] sm:$0xf]
      %v3737 = vld [vmem:[%s3724 + $0x30] sm:$0xf]
      %v3738 = vld [vmem:[%s3724 + $0x34] sm:$0xf]
      %v3739 = vld [vmem:[%s3724 + $0x38] sm:$0xf]
      %v3740 = vld [vmem:[%s3724 + $0x3c] sm:$0xf]
      %v3741 = vld [vmem:[%s3724 + $0x40] sm:$0xf]
      %v3742 = vld [vmem:[%s3724 + $0x44] sm:$0xf]
      %v3743 = vld [vmem:[%s3724 + $0x48] sm:$0xf]
      %v3744 = vld [vmem:[%s3724 + $0x4c] sm:$0xf]
      %v3745 = vld [vmem:[%s3724 + $0x50] sm:$0xf]
      %v3746 = vld [vmem:[%s3724 + $0x54] sm:$0xf]
      %v3747 = vld [vmem:[%s3724 + $0x58] sm:$0xf]
      %v3748 = vld [vmem:[%s3724 + $0x5c] sm:$0xf]
      %v3749 = vld [vmem:[%s3724 + $0x60] sm:$0xf]
      %v3750 = vld [vmem:[%s3724 + $0x64] sm:$0xf]
      %v3751 = vld [vmem:[%s3724 + $0x68] sm:$0xf]
      %v3752 = vld [vmem:[%s3724 + $0x6c] sm:$0xf]
      %v3753 = vld [vmem:[%s3724 + $0x70] sm:$0xf]
      %v3754 = vld [vmem:[%s3724 + $0x74] sm:$0xf]
      %v3755 = vld [vmem:[%s3724 + $0x78] sm:$0xf]
      %v3756 = vld [vmem:[%s3724 + $0x7c] sm:$0xf]
      %v3757 = vld [vmem:[%s3724 + $0x80] sm:$0xf]
      %v3758 = vld [vmem:[%s3724 + $0x84] sm:$0xf]
      %v3759 = vld [vmem:[%s3724 + $0x88] sm:$0xf]
      %v3760 = vld [vmem:[%s3724 + $0x8c] sm:$0xf]
      %v3761 = vld [vmem:[%s3724 + $0x90] sm:$0xf]
      %v3762 = vld [vmem:[%s3724 + $0x94] sm:$0xf]
      %v3763 = vld [vmem:[%s3724 + $0x98] sm:$0xf]
      %v3764 = vld [vmem:[%s3724 + $0x9c] sm:$0xf]
      %v3765 = vld [vmem:[%s3724 + $0xa0] sm:$0xf]
      %v3766 = vld [vmem:[%s3724 + $0xa4] sm:$0xf]
      %v3767 = vld [vmem:[%s3724 + $0xa8] sm:$0xf]
      %v3768 = vld [vmem:[%s3724 + $0xac] sm:$0xf]
      %v3769 = vld [vmem:[%s3724 + $0xb0] sm:$0xf]
      %v3770 = vld [vmem:[%s3724 + $0xb4] sm:$0xf]
      %v3771 = vld [vmem:[%s3724 + $0xb8] sm:$0xf]
      %v3772 = vld [vmem:[%s3724 + $0xbc] sm:$0xf]
      %v3805 = vunpack.c.l.b16 %v3725
      %v3806 = vunpack.c.l.b16 %v3726
      %v3807 = vunpack.c.l.b16 %v3728
      %v3808 = vunpack.c.l.b16 %v3729
      %v3809 = vunpack.c.l.b16 %v3731
      %v3810 = vunpack.c.l.b16 %v3732
      %v3811 = vunpack.c.l.b16 %v3734
      %v3812 = vunpack.c.l.b16 %v3735
      %v3813 = vunpack.c.l.b16 %v3737
      %v3814 = vunpack.c.l.b16 %v3738
      %v3815 = vunpack.c.l.b16 %v3740
      %v3816 = vunpack.c.l.b16 %v3741
      %v3817 = vunpack.c.l.b16 %v3743
      %v3818 = vunpack.c.l.b16 %v3744
      %v3819 = vunpack.c.l.b16 %v3746
      %v3820 = vunpack.c.l.b16 %v3747
      %v3821 = vunpack.c.l.b16 %v3749
      %v3822 = vunpack.c.l.b16 %v3750
      %v3823 = vunpack.c.l.b16 %v3752
      %v3824 = vunpack.c.l.b16 %v3753
      %v3825 = vunpack.c.l.b16 %v3755
      %v3826 = vunpack.c.l.b16 %v3756
      %v3827 = vunpack.c.l.b16 %v3758
      %v3828 = vunpack.c.l.b16 %v3759
      %v3829 = vunpack.c.l.b16 %v3761
      %v3830 = vunpack.c.l.b16 %v3762
      %v3831 = vunpack.c.l.b16 %v3764
      %v3832 = vunpack.c.l.b16 %v3765
      %v3833 = vunpack.c.l.b16 %v3767
      %v3834 = vunpack.c.l.b16 %v3768
      %v3835 = vunpack.c.l.b16 %v3770
      %v3836 = vunpack.c.l.b16 %v3771
      %v3837 = vpack.c.b16 %v3806, %v3805
      %v3838 = vpack.c.b16 %v3808, %v3807
      %v3839 = vpack.c.b16 %v3810, %v3809
      %v3840 = vpack.c.b16 %v3812, %v3811
      %v3841 = vpack.c.b16 %v3814, %v3813
      %v3842 = vpack.c.b16 %v3816, %v3815
      %v3843 = vpack.c.b16 %v3818, %v3817
      %v3844 = vpack.c.b16 %v3820, %v3819
      %v3845 = vpack.c.b16 %v3822, %v3821
      %v3846 = vpack.c.b16 %v3824, %v3823
      %v3847 = vpack.c.b16 %v3826, %v3825
      %v3848 = vpack.c.b16 %v3828, %v3827
      %v3849 = vpack.c.b16 %v3830, %v3829
      %v3850 = vpack.c.b16 %v3832, %v3831
      %v3851 = vpack.c.b16 %v3834, %v3833
      %v3852 = vpack.c.b16 %v3836, %v3835
      %3869 = vst [vmem:[#allocation3] sm:$0xff] %v3837
      %3870 = vst [vmem:[#allocation3 + $0x18] sm:$0xff] %v3838
      %3871 = vst [vmem:[#allocation3 + $0x30] sm:$0xff] %v3839
      %3872 = vst [vmem:[#allocation3 + $0x48] sm:$0xff] %v3840
      %3873 = vst [vmem:[#allocation3 + $0x60] sm:$0xff] %v3841
      %3874 = vst [vmem:[#allocation3 + $0x78] sm:$0xff] %v3842
      %3875 = vst [vmem:[#allocation3 + $0x90] sm:$0xff] %v3843
      %3876 = vst [vmem:[#allocation3 + $0xa8] sm:$0xff] %v3844
      %3877 = vst [vmem:[#allocation3 + $0xc0] sm:$0xff] %v3845
      %3878 = vst [vmem:[#allocation3 + $0xd8] sm:$0xff] %v3846
      %3879 = vst [vmem:[#allocation3 + $0xf0] sm:$0xff] %v3847
      %3880 = vst [vmem:[#allocation3 + $0x108] sm:$0xff] %v3848
      %3881 = vst [vmem:[#allocation3 + $0x120] sm:$0xff] %v3849
      %3882 = vst [vmem:[#allocation3 + $0x138] sm:$0xff] %v3850
      %3883 = vst [vmem:[#allocation3 + $0x150] sm:$0xff] %v3851
      %3884 = vst [vmem:[#allocation3 + $0x168] sm:$0xff] %v3852
      %v3886 = vshrl.u32 %v3725, 16
      %v3888 = vrot.slane %v3886, 4
      %v3889 = vshll.u32 %v3725, 16
      %v3891 = vrot.slane %v3889, 5
      %v3892 = vor.u32 %v3888, %v3891
      %v3893 = vrot.slane %v3892, 4
      %v3895 = vshll.u32 %v3726, 16
      %v3897 = vrot.slane %v3895, 5
      %v3898 = vsel %vm964, %v3893, %v3897
      %v3899 = vshrl.u32 %v3726, 16
      %v3901 = vrot.slane %v3899, 4
      %v3902 = vor.u32 %v3901, %v3897
      %v3903 = vrot.slane %v3902, 4
      %v3905 = vshll.u32 %v3727, 16
      %v3907 = vrot.slane %v3905, 5
      %v3908 = vsel %vm964, %v3903, %v3907
      %v3910 = vshrl.u32 %v3728, 16
      %v3912 = vrot.slane %v3910, 4
      %v3913 = vshll.u32 %v3728, 16
      %v3915 = vrot.slane %v3913, 5
      %v3916 = vor.u32 %v3912, %v3915
      %v3917 = vrot.slane %v3916, 4
      %v3919 = vshll.u32 %v3729, 16
      %v3921 = vrot.slane %v3919, 5
      %v3922 = vsel %vm964, %v3917, %v3921
      %v3923 = vshrl.u32 %v3729, 16
      %v3925 = vrot.slane %v3923, 4
      %v3926 = vor.u32 %v3925, %v3921
      %v3927 = vrot.slane %v3926, 4
      %v3929 = vshll.u32 %v3730, 16
      %v3931 = vrot.slane %v3929, 5
      %v3932 = vsel %vm964, %v3927, %v3931
      %v3934 = vshrl.u32 %v3731, 16
      %v3936 = vrot.slane %v3934, 4
      %v3937 = vshll.u32 %v3731, 16
      %v3939 = vrot.slane %v3937, 5
      %v3940 = vor.u32 %v3936, %v3939
      %v3941 = vrot.slane %v3940, 4
      %v3943 = vshll.u32 %v3732, 16
      %v3945 = vrot.slane %v3943, 5
      %v3946 = vsel %vm964, %v3941, %v3945
      %v3947 = vshrl.u32 %v3732, 16
      %v3949 = vrot.slane %v3947, 4
      %v3950 = vor.u32 %v3949, %v3945
      %v3951 = vrot.slane %v3950, 4
      %v3953 = vshll.u32 %v3733, 16
      %v3955 = vrot.slane %v3953, 5
      %v3956 = vsel %vm964, %v3951, %v3955
      %v3958 = vshrl.u32 %v3734, 16
      %v3960 = vrot.slane %v3958, 4
      %v3961 = vshll.u32 %v3734, 16
      %v3963 = vrot.slane %v3961, 5
      %v3964 = vor.u32 %v3960, %v3963
      %v3965 = vrot.slane %v3964, 4
      %v3967 = vshll.u32 %v3735, 16
      %v3969 = vrot.slane %v3967, 5
      %v3970 = vsel %vm964, %v3965, %v3969
      %v3971 = vshrl.u32 %v3735, 16
      %v3973 = vrot.slane %v3971, 4
      %v3974 = vor.u32 %v3973, %v3969
      %v3975 = vrot.slane %v3974, 4
      %v3977 = vshll.u32 %v3736, 16
      %v3979 = vrot.slane %v3977, 5
      %v3980 = vsel %vm964, %v3975, %v3979
      %v3982 = vshrl.u32 %v3737, 16
      %v3984 = vrot.slane %v3982, 4
      %v3985 = vshll.u32 %v3737, 16
      %v3987 = vrot.slane %v3985, 5
      %v3988 = vor.u32 %v3984, %v3987
      %v3989 = vrot.slane %v3988, 4
      %v3991 = vshll.u32 %v3738, 16
      %v3993 = vrot.slane %v3991, 5
      %v3994 = vsel %vm964, %v3989, %v3993
      %v3995 = vshrl.u32 %v3738, 16
      %v3997 = vrot.slane %v3995, 4
      %v3998 = vor.u32 %v3997, %v3993
      %v3999 = vrot.slane %v3998, 4
      %v4001 = vshll.u32 %v3739, 16
      %v4003 = vrot.slane %v4001, 5
      %v4004 = vsel %vm964, %v3999, %v4003
      %v4006 = vshrl.u32 %v3740, 16
      %v4008 = vrot.slane %v4006, 4
      %v4009 = vshll.u32 %v3740, 16
      %v4011 = vrot.slane %v4009, 5
      %v4012 = vor.u32 %v4008, %v4011
      %v4013 = vrot.slane %v4012, 4
      %v4015 = vshll.u32 %v3741, 16
      %v4017 = vrot.slane %v4015, 5
      %v4018 = vsel %vm964, %v4013, %v4017
      %v4019 = vshrl.u32 %v3741, 16
      %v4021 = vrot.slane %v4019, 4
      %v4022 = vor.u32 %v4021, %v4017
      %v4023 = vrot.slane %v4022, 4
      %v4025 = vshll.u32 %v3742, 16
      %v4027 = vrot.slane %v4025, 5
      %v4028 = vsel %vm964, %v4023, %v4027
      %v4030 = vshrl.u32 %v3743, 16
      %v4032 = vrot.slane %v4030, 4
      %v4033 = vshll.u32 %v3743, 16
      %v4035 = vrot.slane %v4033, 5
      %v4036 = vor.u32 %v4032, %v4035
      %v4037 = vrot.slane %v4036, 4
      %v4039 = vshll.u32 %v3744, 16
      %v4041 = vrot.slane %v4039, 5
      %v4042 = vsel %vm964, %v4037, %v4041
      %v4043 = vshrl.u32 %v3744, 16
      %v4045 = vrot.slane %v4043, 4
      %v4046 = vor.u32 %v4045, %v4041
      %v4047 = vrot.slane %v4046, 4
      %v4049 = vshll.u32 %v3745, 16
      %v4051 = vrot.slane %v4049, 5
      %v4052 = vsel %vm964, %v4047, %v4051
      %v4054 = vshrl.u32 %v3746, 16
      %v4056 = vrot.slane %v4054, 4
      %v4057 = vshll.u32 %v3746, 16
      %v4059 = vrot.slane %v4057, 5
      %v4060 = vor.u32 %v4056, %v4059
      %v4061 = vrot.slane %v4060, 4
      %v4063 = vshll.u32 %v3747, 16
      %v4065 = vrot.slane %v4063, 5
      %v4066 = vsel %vm964, %v4061, %v4065
      %v4067 = vshrl.u32 %v3747, 16
      %v4069 = vrot.slane %v4067, 4
      %v4070 = vor.u32 %v4069, %v4065
      %v4071 = vrot.slane %v4070, 4
      %v4073 = vshll.u32 %v3748, 16
      %v4075 = vrot.slane %v4073, 5
      %v4076 = vsel %vm964, %v4071, %v4075
      %v4078 = vshrl.u32 %v3749, 16
      %v4080 = vrot.slane %v4078, 4
      %v4081 = vshll.u32 %v3749, 16
      %v4083 = vrot.slane %v4081, 5
      %v4084 = vor.u32 %v4080, %v4083
      %v4085 = vrot.slane %v4084, 4
      %v4087 = vshll.u32 %v3750, 16
      %v4089 = vrot.slane %v4087, 5
      %v4090 = vsel %vm964, %v4085, %v4089
      %v4091 = vshrl.u32 %v3750, 16
      %v4093 = vrot.slane %v4091, 4
      %v4094 = vor.u32 %v4093, %v4089
      %v4095 = vrot.slane %v4094, 4
      %v4097 = vshll.u32 %v3751, 16
      %v4099 = vrot.slane %v4097, 5
      %v4100 = vsel %vm964, %v4095, %v4099
      %v4102 = vshrl.u32 %v3752, 16
      %v4104 = vrot.slane %v4102, 4
      %v4105 = vshll.u32 %v3752, 16
      %v4107 = vrot.slane %v4105, 5
      %v4108 = vor.u32 %v4104, %v4107
      %v4109 = vrot.slane %v4108, 4
      %v4111 = vshll.u32 %v3753, 16
      %v4113 = vrot.slane %v4111, 5
      %v4114 = vsel %vm964, %v4109, %v4113
      %v4115 = vshrl.u32 %v3753, 16
      %v4117 = vrot.slane %v4115, 4
      %v4118 = vor.u32 %v4117, %v4113
      %v4119 = vrot.slane %v4118, 4
      %v4121 = vshll.u32 %v3754, 16
      %v4123 = vrot.slane %v4121, 5
      %v4124 = vsel %vm964, %v4119, %v4123
      %v4126 = vshrl.u32 %v3755, 16
      %v4128 = vrot.slane %v4126, 4
      %v4129 = vshll.u32 %v3755, 16
      %v4131 = vrot.slane %v4129, 5
      %v4132 = vor.u32 %v4128, %v4131
      %v4133 = vrot.slane %v4132, 4
      %v4135 = vshll.u32 %v3756, 16
      %v4137 = vrot.slane %v4135, 5
      %v4138 = vsel %vm964, %v4133, %v4137
      %v4139 = vshrl.u32 %v3756, 16
      %v4141 = vrot.slane %v4139, 4
      %v4142 = vor.u32 %v4141, %v4137
      %v4143 = vrot.slane %v4142, 4
      %v4145 = vshll.u32 %v3757, 16
      %v4147 = vrot.slane %v4145, 5
      %v4148 = vsel %vm964, %v4143, %v4147
      %v4150 = vshrl.u32 %v3758, 16
      %v4152 = vrot.slane %v4150, 4
      %v4153 = vshll.u32 %v3758, 16
      %v4155 = vrot.slane %v4153, 5
      %v4156 = vor.u32 %v4152, %v4155
      %v4157 = vrot.slane %v4156, 4
      %v4159 = vshll.u32 %v3759, 16
      %v4161 = vrot.slane %v4159, 5
      %v4162 = vsel %vm964, %v4157, %v4161
      %v4163 = vshrl.u32 %v3759, 16
      %v4165 = vrot.slane %v4163, 4
      %v4166 = vor.u32 %v4165, %v4161
      %v4167 = vrot.slane %v4166, 4
      %v4169 = vshll.u32 %v3760, 16
      %v4171 = vrot.slane %v4169, 5
      %v4172 = vsel %vm964, %v4167, %v4171
      %v4174 = vshrl.u32 %v3761, 16
      %v4176 = vrot.slane %v4174, 4
      %v4177 = vshll.u32 %v3761, 16
      %v4179 = vrot.slane %v4177, 5
      %v4180 = vor.u32 %v4176, %v4179
      %v4181 = vrot.slane %v4180, 4
      %v4183 = vshll.u32 %v3762, 16
      %v4185 = vrot.slane %v4183, 5
      %v4186 = vsel %vm964, %v4181, %v4185
      %v4187 = vshrl.u32 %v3762, 16
      %v4189 = vrot.slane %v4187, 4
      %v4190 = vor.u32 %v4189, %v4185
      %v4191 = vrot.slane %v4190, 4
      %v4193 = vshll.u32 %v3763, 16
      %v4195 = vrot.slane %v4193, 5
      %v4196 = vsel %vm964, %v4191, %v4195
      %v4198 = vshrl.u32 %v3764, 16
      %v4200 = vrot.slane %v4198, 4
      %v4201 = vshll.u32 %v3764, 16
      %v4203 = vrot.slane %v4201, 5
      %v4204 = vor.u32 %v4200, %v4203
      %v4205 = vrot.slane %v4204, 4
      %v4207 = vshll.u32 %v3765, 16
      %v4209 = vrot.slane %v4207, 5
      %v4210 = vsel %vm964, %v4205, %v4209
      %v4211 = vshrl.u32 %v3765, 16
      %v4213 = vrot.slane %v4211, 4
      %v4214 = vor.u32 %v4213, %v4209
      %v4215 = vrot.slane %v4214, 4
      %v4217 = vshll.u32 %v3766, 16
      %v4219 = vrot.slane %v4217, 5
      %v4220 = vsel %vm964, %v4215, %v4219
      %v4222 = vshrl.u32 %v3767, 16
      %v4224 = vrot.slane %v4222, 4
      %v4225 = vshll.u32 %v3767, 16
      %v4227 = vrot.slane %v4225, 5
      %v4228 = vor.u32 %v4224, %v4227
      %v4229 = vrot.slane %v4228, 4
      %v4231 = vshll.u32 %v3768, 16
      %v4233 = vrot.slane %v4231, 5
      %v4234 = vsel %vm964, %v4229, %v4233
      %v4235 = vshrl.u32 %v3768, 16
      %v4237 = vrot.slane %v4235, 4
      %v4238 = vor.u32 %v4237, %v4233
      %v4239 = vrot.slane %v4238, 4
      %v4241 = vshll.u32 %v3769, 16
      %v4243 = vrot.slane %v4241, 5
      %v4244 = vsel %vm964, %v4239, %v4243
      %v4246 = vshrl.u32 %v3770, 16
      %v4248 = vrot.slane %v4246, 4
      %v4249 = vshll.u32 %v3770, 16
      %v4251 = vrot.slane %v4249, 5
      %v4252 = vor.u32 %v4248, %v4251
      %v4253 = vrot.slane %v4252, 4
      %v4255 = vshll.u32 %v3771, 16
      %v4257 = vrot.slane %v4255, 5
      %v4258 = vsel %vm964, %v4253, %v4257
      %v4259 = vshrl.u32 %v3771, 16
      %v4261 = vrot.slane %v4259, 4
      %v4262 = vor.u32 %v4261, %v4257
      %v4263 = vrot.slane %v4262, 4
      %v4265 = vshll.u32 %v3772, 16
      %v4267 = vrot.slane %v4265, 5
      %v4268 = vsel %vm964, %v4263, %v4267
      %v4269 = vunpack.c.l.b16 %v3898
      %v4270 = vunpack.c.l.b16 %v3908
      %v4271 = vunpack.c.l.b16 %v3922
      %v4272 = vunpack.c.l.b16 %v3932
      %v4273 = vunpack.c.l.b16 %v3946
      %v4274 = vunpack.c.l.b16 %v3956
      %v4275 = vunpack.c.l.b16 %v3970
      %v4276 = vunpack.c.l.b16 %v3980
      %v4277 = vunpack.c.l.b16 %v3994
      %v4278 = vunpack.c.l.b16 %v4004
      %v4279 = vunpack.c.l.b16 %v4018
      %v4280 = vunpack.c.l.b16 %v4028
      %v4281 = vunpack.c.l.b16 %v4042
      %v4282 = vunpack.c.l.b16 %v4052
      %v4283 = vunpack.c.l.b16 %v4066
      %v4284 = vunpack.c.l.b16 %v4076
      %v4285 = vunpack.c.l.b16 %v4090
      %v4286 = vunpack.c.l.b16 %v4100
      %v4287 = vunpack.c.l.b16 %v4114
      %v4288 = vunpack.c.l.b16 %v4124
      %v4289 = vunpack.c.l.b16 %v4138
      %v4290 = vunpack.c.l.b16 %v4148
      %v4291 = vunpack.c.l.b16 %v4162
      %v4292 = vunpack.c.l.b16 %v4172
      %v4293 = vunpack.c.l.b16 %v4186
      %v4294 = vunpack.c.l.b16 %v4196
      %v4295 = vunpack.c.l.b16 %v4210
      %v4296 = vunpack.c.l.b16 %v4220
      %v4297 = vunpack.c.l.b16 %v4234
      %v4298 = vunpack.c.l.b16 %v4244
      %v4299 = vunpack.c.l.b16 %v4258
      %v4300 = vunpack.c.l.b16 %v4268
      %v4301 = vpack.c.b16 %v4270, %v4269
      %v4302 = vpack.c.b16 %v4272, %v4271
      %v4303 = vpack.c.b16 %v4274, %v4273
      %v4304 = vpack.c.b16 %v4276, %v4275
      %v4305 = vpack.c.b16 %v4278, %v4277
      %v4306 = vpack.c.b16 %v4280, %v4279
      %v4307 = vpack.c.b16 %v4282, %v4281
      %v4308 = vpack.c.b16 %v4284, %v4283
      %v4309 = vpack.c.b16 %v4286, %v4285
      %v4310 = vpack.c.b16 %v4288, %v4287
      %v4311 = vpack.c.b16 %v4290, %v4289
      %v4312 = vpack.c.b16 %v4292, %v4291
      %v4313 = vpack.c.b16 %v4294, %v4293
      %v4314 = vpack.c.b16 %v4296, %v4295
      %v4315 = vpack.c.b16 %v4298, %v4297
      %v4316 = vpack.c.b16 %v4300, %v4299
      %4333 = vst [vmem:[#allocation3 + $0x8] sm:$0xff] %v4301
      %4334 = vst [vmem:[#allocation3 + $0x20] sm:$0xff] %v4302
      %4335 = vst [vmem:[#allocation3 + $0x38] sm:$0xff] %v4303
      %4336 = vst [vmem:[#allocation3 + $0x50] sm:$0xff] %v4304
      %4337 = vst [vmem:[#allocation3 + $0x68] sm:$0xff] %v4305
      %4338 = vst [vmem:[#allocation3 + $0x80] sm:$0xff] %v4306
      %4339 = vst [vmem:[#allocation3 + $0x98] sm:$0xff] %v4307
      %4340 = vst [vmem:[#allocation3 + $0xb0] sm:$0xff] %v4308
      %4341 = vst [vmem:[#allocation3 + $0xc8] sm:$0xff] %v4309
      %4342 = vst [vmem:[#allocation3 + $0xe0] sm:$0xff] %v4310
      %4343 = vst [vmem:[#allocation3 + $0xf8] sm:$0xff] %v4311
      %4344 = vst [vmem:[#allocation3 + $0x110] sm:$0xff] %v4312
      %4345 = vst [vmem:[#allocation3 + $0x128] sm:$0xff] %v4313
      %4346 = vst [vmem:[#allocation3 + $0x140] sm:$0xff] %v4314
      %4347 = vst [vmem:[#allocation3 + $0x158] sm:$0xff] %v4315
      %4348 = vst [vmem:[#allocation3 + $0x170] sm:$0xff] %v4316
      %v4365 = vrot.slane %v3725, 5
      %v4366 = vrot.slane %v4365, 4
      %v4367 = vrot.slane %v3726, 5
      %v4368 = vsel %vm1447, %v4366, %v4367
      %v4369 = vrot.slane %v4367, 4
      %v4370 = vrot.slane %v3727, 5
      %v4371 = vsel %vm1447, %v4369, %v4370
      %v4372 = vrot.slane %v3728, 5
      %v4373 = vrot.slane %v4372, 4
      %v4374 = vrot.slane %v3729, 5
      %v4375 = vsel %vm1447, %v4373, %v4374
      %v4376 = vrot.slane %v4374, 4
      %v4377 = vrot.slane %v3730, 5
      %v4378 = vsel %vm1447, %v4376, %v4377
      %v4379 = vrot.slane %v3731, 5
      %v4380 = vrot.slane %v4379, 4
      %v4381 = vrot.slane %v3732, 5
      %v4382 = vsel %vm1447, %v4380, %v4381
      %v4383 = vrot.slane %v4381, 4
      %v4384 = vrot.slane %v3733, 5
      %v4385 = vsel %vm1447, %v4383, %v4384
      %v4386 = vrot.slane %v3734, 5
      %v4387 = vrot.slane %v4386, 4
      %v4388 = vrot.slane %v3735, 5
      %v4389 = vsel %vm1447, %v4387, %v4388
      %v4390 = vrot.slane %v4388, 4
      %v4391 = vrot.slane %v3736, 5
      %v4392 = vsel %vm1447, %v4390, %v4391
      %v4393 = vrot.slane %v3737, 5
      %v4394 = vrot.slane %v4393, 4
      %v4395 = vrot.slane %v3738, 5
      %v4396 = vsel %vm1447, %v4394, %v4395
      %v4397 = vrot.slane %v4395, 4
      %v4398 = vrot.slane %v3739, 5
      %v4399 = vsel %vm1447, %v4397, %v4398
      %v4400 = vrot.slane %v3740, 5
      %v4401 = vrot.slane %v4400, 4
      %v4402 = vrot.slane %v3741, 5
      %v4403 = vsel %vm1447, %v4401, %v4402
      %v4404 = vrot.slane %v4402, 4
      %v4405 = vrot.slane %v3742, 5
      %v4406 = vsel %vm1447, %v4404, %v4405
      %v4407 = vrot.slane %v3743, 5
      %v4408 = vrot.slane %v4407, 4
      %v4409 = vrot.slane %v3744, 5
      %v4410 = vsel %vm1447, %v4408, %v4409
      %v4411 = vrot.slane %v4409, 4
      %v4412 = vrot.slane %v3745, 5
      %v4413 = vsel %vm1447, %v4411, %v4412
      %v4414 = vrot.slane %v3746, 5
      %v4415 = vrot.slane %v4414, 4
      %v4416 = vrot.slane %v3747, 5
      %v4417 = vsel %vm1447, %v4415, %v4416
      %v4418 = vrot.slane %v4416, 4
      %v4419 = vrot.slane %v3748, 5
      %v4420 = vsel %vm1447, %v4418, %v4419
      %v4421 = vrot.slane %v3749, 5
      %v4422 = vrot.slane %v4421, 4
      %v4423 = vrot.slane %v3750, 5
      %v4424 = vsel %vm1447, %v4422, %v4423
      %v4425 = vrot.slane %v4423, 4
      %v4426 = vrot.slane %v3751, 5
      %v4427 = vsel %vm1447, %v4425, %v4426
      %v4428 = vrot.slane %v3752, 5
      %v4429 = vrot.slane %v4428, 4
      %v4430 = vrot.slane %v3753, 5
      %v4431 = vsel %vm1447, %v4429, %v4430
      %v4432 = vrot.slane %v4430, 4
      %v4433 = vrot.slane %v3754, 5
      %v4434 = vsel %vm1447, %v4432, %v4433
      %v4435 = vrot.slane %v3755, 5
      %v4436 = vrot.slane %v4435, 4
      %v4437 = vrot.slane %v3756, 5
      %v4438 = vsel %vm1447, %v4436, %v4437
      %v4439 = vrot.slane %v4437, 4
      %v4440 = vrot.slane %v3757, 5
      %v4441 = vsel %vm1447, %v4439, %v4440
      %v4442 = vrot.slane %v3758, 5
      %v4443 = vrot.slane %v4442, 4
      %v4444 = vrot.slane %v3759, 5
      %v4445 = vsel %vm1447, %v4443, %v4444
      %v4446 = vrot.slane %v4444, 4
      %v4447 = vrot.slane %v3760, 5
      %v4448 = vsel %vm1447, %v4446, %v4447
      %v4449 = vrot.slane %v3761, 5
      %v4450 = vrot.slane %v4449, 4
      %v4451 = vrot.slane %v3762, 5
      %v4452 = vsel %vm1447, %v4450, %v4451
      %v4453 = vrot.slane %v4451, 4
      %v4454 = vrot.slane %v3763, 5
      %v4455 = vsel %vm1447, %v4453, %v4454
      %v4456 = vrot.slane %v3764, 5
      %v4457 = vrot.slane %v4456, 4
      %v4458 = vrot.slane %v3765, 5
      %v4459 = vsel %vm1447, %v4457, %v4458
      %v4460 = vrot.slane %v4458, 4
      %v4461 = vrot.slane %v3766, 5
      %v4462 = vsel %vm1447, %v4460, %v4461
      %v4463 = vrot.slane %v3767, 5
      %v4464 = vrot.slane %v4463, 4
      %v4465 = vrot.slane %v3768, 5
      %v4466 = vsel %vm1447, %v4464, %v4465
      %v4467 = vrot.slane %v4465, 4
      %v4468 = vrot.slane %v3769, 5
      %v4469 = vsel %vm1447, %v4467, %v4468
      %v4470 = vrot.slane %v3770, 5
      %v4471 = vrot.slane %v4470, 4
      %v4472 = vrot.slane %v3771, 5
      %v4473 = vsel %vm1447, %v4471, %v4472
      %v4474 = vrot.slane %v4472, 4
      %v4475 = vrot.slane %v3772, 5
      %v4476 = vsel %vm1447, %v4474, %v4475
      %v4477 = vunpack.c.l.b16 %v4368
      %v4478 = vunpack.c.l.b16 %v4371
      %v4479 = vunpack.c.l.b16 %v4375
      %v4480 = vunpack.c.l.b16 %v4378
      %v4481 = vunpack.c.l.b16 %v4382
      %v4482 = vunpack.c.l.b16 %v4385
      %v4483 = vunpack.c.l.b16 %v4389
      %v4484 = vunpack.c.l.b16 %v4392
      %v4485 = vunpack.c.l.b16 %v4396
      %v4486 = vunpack.c.l.b16 %v4399
      %v4487 = vunpack.c.l.b16 %v4403
      %v4488 = vunpack.c.l.b16 %v4406
      %v4489 = vunpack.c.l.b16 %v4410
      %v4490 = vunpack.c.l.b16 %v4413
      %v4491 = vunpack.c.l.b16 %v4417
      %v4492 = vunpack.c.l.b16 %v4420
      %v4493 = vunpack.c.l.b16 %v4424
      %v4494 = vunpack.c.l.b16 %v4427
      %v4495 = vunpack.c.l.b16 %v4431
      %v4496 = vunpack.c.l.b16 %v4434
      %v4497 = vunpack.c.l.b16 %v4438
      %v4498 = vunpack.c.l.b16 %v4441
      %v4499 = vunpack.c.l.b16 %v4445
      %v4500 = vunpack.c.l.b16 %v4448
      %v4501 = vunpack.c.l.b16 %v4452
      %v4502 = vunpack.c.l.b16 %v4455
      %v4503 = vunpack.c.l.b16 %v4459
      %v4504 = vunpack.c.l.b16 %v4462
      %v4505 = vunpack.c.l.b16 %v4466
      %v4506 = vunpack.c.l.b16 %v4469
      %v4507 = vunpack.c.l.b16 %v4473
      %v4508 = vunpack.c.l.b16 %v4476
      %v4509 = vpack.c.b16 %v4478, %v4477
      %v4510 = vpack.c.b16 %v4480, %v4479
      %v4511 = vpack.c.b16 %v4482, %v4481
      %v4512 = vpack.c.b16 %v4484, %v4483
      %v4513 = vpack.c.b16 %v4486, %v4485
      %v4514 = vpack.c.b16 %v4488, %v4487
      %v4515 = vpack.c.b16 %v4490, %v4489
      %v4516 = vpack.c.b16 %v4492, %v4491
      %v4517 = vpack.c.b16 %v4494, %v4493
      %v4518 = vpack.c.b16 %v4496, %v4495
      %v4519 = vpack.c.b16 %v4498, %v4497
      %v4520 = vpack.c.b16 %v4500, %v4499
      %v4521 = vpack.c.b16 %v4502, %v4501
      %v4522 = vpack.c.b16 %v4504, %v4503
      %v4523 = vpack.c.b16 %v4506, %v4505
      %v4524 = vpack.c.b16 %v4508, %v4507
      %4541 = vst [vmem:[#allocation3 + $0x10] sm:$0xff] %v4509
      %4542 = vst [vmem:[#allocation3 + $0x28] sm:$0xff] %v4510
      %4543 = vst [vmem:[#allocation3 + $0x40] sm:$0xff] %v4511
      %4544 = vst [vmem:[#allocation3 + $0x58] sm:$0xff] %v4512
      %4545 = vst [vmem:[#allocation3 + $0x70] sm:$0xff] %v4513
      %4546 = vst [vmem:[#allocation3 + $0x88] sm:$0xff] %v4514
      %4547 = vst [vmem:[#allocation3 + $0xa0] sm:$0xff] %v4515
      %4548 = vst [vmem:[#allocation3 + $0xb8] sm:$0xff] %v4516
      %4549 = vst [vmem:[#allocation3 + $0xd0] sm:$0xff] %v4517
      %4550 = vst [vmem:[#allocation3 + $0xe8] sm:$0xff] %v4518
      %4551 = vst [vmem:[#allocation3 + $0x100] sm:$0xff] %v4519
      %4552 = vst [vmem:[#allocation3 + $0x118] sm:$0xff] %v4520
      %4553 = vst [vmem:[#allocation3 + $0x130] sm:$0xff] %v4521
      %4554 = vst [vmem:[#allocation3 + $0x148] sm:$0xff] %v4522
      %4555 = vst [vmem:[#allocation3 + $0x160] sm:$0xff] %v4523
      %4556 = vst [vmem:[#allocation3 + $0x178] sm:$0xff] %v4524
      %v4557 = vld [vmem:[#allocation3] sm:$0xff]
      %v4558 = vld [vmem:[#allocation3 + $0x8] sm:$0xff]
      %v4559 = vld [vmem:[#allocation3 + $0x10] sm:$0xff]
      %v4560 = vld [vmem:[#allocation3 + $0x18] sm:$0xff]
      %v4561 = vld [vmem:[#allocation3 + $0x20] sm:$0xff]
      %v4562 = vld [vmem:[#allocation3 + $0x28] sm:$0xff]
      %v4563 = vld [vmem:[#allocation3 + $0x30] sm:$0xff]
      %v4564 = vld [vmem:[#allocation3 + $0x38] sm:$0xff]
      %v4565 = vld [vmem:[#allocation3 + $0x40] sm:$0xff]
      %v4566 = vld [vmem:[#allocation3 + $0x48] sm:$0xff]
      %v4567 = vld [vmem:[#allocation3 + $0x50] sm:$0xff]
      %v4568 = vld [vmem:[#allocation3 + $0x58] sm:$0xff]
      %v4569 = vld [vmem:[#allocation3 + $0x60] sm:$0xff]
      %v4570 = vld [vmem:[#allocation3 + $0x68] sm:$0xff]
      %v4571 = vld [vmem:[#allocation3 + $0x70] sm:$0xff]
      %v4572 = vld [vmem:[#allocation3 + $0x78] sm:$0xff]
      %v4573 = vld [vmem:[#allocation3 + $0x80] sm:$0xff]
      %v4574 = vld [vmem:[#allocation3 + $0x88] sm:$0xff]
      %v4575 = vld [vmem:[#allocation3 + $0x90] sm:$0xff]
      %v4576 = vld [vmem:[#allocation3 + $0x98] sm:$0xff]
      %v4577 = vld [vmem:[#allocation3 + $0xa0] sm:$0xff]
      %v4578 = vld [vmem:[#allocation3 + $0xa8] sm:$0xff]
      %v4579 = vld [vmem:[#allocation3 + $0xb0] sm:$0xff]
      %v4580 = vld [vmem:[#allocation3 + $0xb8] sm:$0xff]
      %v4581 = vld [vmem:[#allocation3 + $0xc0] sm:$0xff]
      %v4582 = vld [vmem:[#allocation3 + $0xc8] sm:$0xff]
      %v4583 = vld [vmem:[#allocation3 + $0xd0] sm:$0xff]
      %v4584 = vld [vmem:[#allocation3 + $0xd8] sm:$0xff]
      %v4585 = vld [vmem:[#allocation3 + $0xe0] sm:$0xff]
      %v4586 = vld [vmem:[#allocation3 + $0xe8] sm:$0xff]
      %v4587 = vld [vmem:[#allocation3 + $0xf0] sm:$0xff]
      %v4588 = vld [vmem:[#allocation3 + $0xf8] sm:$0xff]
      %v4589 = vld [vmem:[#allocation3 + $0x100] sm:$0xff]
      %v4590 = vld [vmem:[#allocation3 + $0x108] sm:$0xff]
      %v4591 = vld [vmem:[#allocation3 + $0x110] sm:$0xff]
      %v4592 = vld [vmem:[#allocation3 + $0x118] sm:$0xff]
      %v4593 = vld [vmem:[#allocation3 + $0x120] sm:$0xff]
      %v4594 = vld [vmem:[#allocation3 + $0x128] sm:$0xff]
      %v4595 = vld [vmem:[#allocation3 + $0x130] sm:$0xff]
      %v4596 = vld [vmem:[#allocation3 + $0x138] sm:$0xff]
      %v4597 = vld [vmem:[#allocation3 + $0x140] sm:$0xff]
      %v4598 = vld [vmem:[#allocation3 + $0x148] sm:$0xff]
      %v4599 = vld [vmem:[#allocation3 + $0x150] sm:$0xff]
      %v4600 = vld [vmem:[#allocation3 + $0x158] sm:$0xff]
      %v4601 = vld [vmem:[#allocation3 + $0x160] sm:$0xff]
      %v4602 = vld [vmem:[#allocation3 + $0x168] sm:$0xff]
      %v4603 = vld [vmem:[#allocation3 + $0x170] sm:$0xff]
      %v4604 = vld [vmem:[#allocation3 + $0x178] sm:$0xff]
      %v4605 = vld [vmem:[%s1 + $0x180] sm:$0xf]
      %v4606 = vld [vmem:[%s1 + $0x184] sm:$0xf]
      %v4607 = vld [vmem:[%s1 + $0x188] sm:$0xf]
      %v4608 = vld [vmem:[%s1 + $0x18c] sm:$0xf]
      %v4609 = vld [vmem:[%s1 + $0x190] sm:$0xf]
      %v4610 = vld [vmem:[%s1 + $0x194] sm:$0xf]
      %v4611 = vld [vmem:[%s1 + $0x198] sm:$0xf]
      %v4612 = vld [vmem:[%s1 + $0x19c] sm:$0xf]
      %v4613 = vld [vmem:[%s1 + $0x1a0] sm:$0xf]
      %v4614 = vld [vmem:[%s1 + $0x1a4] sm:$0xf]
      %v4615 = vld [vmem:[%s1 + $0x1a8] sm:$0xf]
      %v4616 = vld [vmem:[%s1 + $0x1ac] sm:$0xf]
      %v4617 = vld [vmem:[%s1 + $0x1b0] sm:$0xf]
      %v4618 = vld [vmem:[%s1 + $0x1b4] sm:$0xf]
      %v4619 = vld [vmem:[%s1 + $0x1b8] sm:$0xf]
      %v4620 = vld [vmem:[%s1 + $0x1bc] sm:$0xf]
      %v4621 = vld [vmem:[%s1 + $0x1c0] sm:$0xf]
      %v4622 = vld [vmem:[%s1 + $0x1c4] sm:$0xf]
      %v4623 = vld [vmem:[%s1 + $0x1c8] sm:$0xf]
      %v4624 = vld [vmem:[%s1 + $0x1cc] sm:$0xf]
      %v4625 = vld [vmem:[%s1 + $0x1d0] sm:$0xf]
      %v4626 = vld [vmem:[%s1 + $0x1d4] sm:$0xf]
      %v4627 = vld [vmem:[%s1 + $0x1d8] sm:$0xf]
      %v4628 = vld [vmem:[%s1 + $0x1dc] sm:$0xf]
      %v4629 = vld [vmem:[%s1 + $0x1e0] sm:$0xf]
      %v4630 = vld [vmem:[%s1 + $0x1e4] sm:$0xf]
      %v4631 = vld [vmem:[%s1 + $0x1e8] sm:$0xf]
      %v4632 = vld [vmem:[%s1 + $0x1ec] sm:$0xf]
      %v4633 = vld [vmem:[%s1 + $0x1f0] sm:$0xf]
      %v4634 = vld [vmem:[%s1 + $0x1f4] sm:$0xf]
      %v4635 = vld [vmem:[%s1 + $0x1f8] sm:$0xf]
      %v4636 = vld [vmem:[%s1 + $0x1fc] sm:$0xf]
      %v4637 = vld [vmem:[%s1 + $0x200] sm:$0xf]
      %v4638 = vld [vmem:[%s1 + $0x204] sm:$0xf]
      %v4639 = vld [vmem:[%s1 + $0x208] sm:$0xf]
      %v4640 = vld [vmem:[%s1 + $0x20c] sm:$0xf]
      %v4641 = vld [vmem:[%s1 + $0x210] sm:$0xf]
      %v4642 = vld [vmem:[%s1 + $0x214] sm:$0xf]
      %v4643 = vld [vmem:[%s1 + $0x218] sm:$0xf]
      %v4644 = vld [vmem:[%s1 + $0x21c] sm:$0xf]
      %v4645 = vld [vmem:[%s1 + $0x220] sm:$0xf]
      %v4646 = vld [vmem:[%s1 + $0x224] sm:$0xf]
      %v4647 = vld [vmem:[%s1 + $0x228] sm:$0xf]
      %v4648 = vld [vmem:[%s1 + $0x22c] sm:$0xf]
      %v4649 = vld [vmem:[%s1 + $0x230] sm:$0xf]
      %v4650 = vld [vmem:[%s1 + $0x234] sm:$0xf]
      %v4651 = vld [vmem:[%s1 + $0x238] sm:$0xf]
      %v4652 = vld [vmem:[%s1 + $0x23c] sm:$0xf]
      %v4701 = vunpack.c.l.b16 %v4605
      %v4702 = vunpack.c.l.b16 %v4606
      %v4703 = vunpack.c.l.b16 %v4607
      %v4704 = vunpack.c.l.b16 %v4608
      %v4705 = vunpack.c.l.b16 %v4609
      %v4706 = vunpack.c.l.b16 %v4610
      %v4707 = vunpack.c.l.b16 %v4611
      %v4708 = vunpack.c.l.b16 %v4612
      %v4709 = vunpack.c.l.b16 %v4613
      %v4710 = vunpack.c.l.b16 %v4614
      %v4711 = vunpack.c.l.b16 %v4615
      %v4712 = vunpack.c.l.b16 %v4616
      %v4713 = vunpack.c.l.b16 %v4617
      %v4714 = vunpack.c.l.b16 %v4618
      %v4715 = vunpack.c.l.b16 %v4619
      %v4716 = vunpack.c.l.b16 %v4620
      %v4717 = vunpack.c.l.b16 %v4621
      %v4718 = vunpack.c.l.b16 %v4622
      %v4719 = vunpack.c.l.b16 %v4623
      %v4720 = vunpack.c.l.b16 %v4624
      %v4721 = vunpack.c.l.b16 %v4625
      %v4722 = vunpack.c.l.b16 %v4626
      %v4723 = vunpack.c.l.b16 %v4627
      %v4724 = vunpack.c.l.b16 %v4628
      %v4725 = vunpack.c.l.b16 %v4629
      %v4726 = vunpack.c.l.b16 %v4630
      %v4727 = vunpack.c.l.b16 %v4631
      %v4728 = vunpack.c.l.b16 %v4632
      %v4729 = vunpack.c.l.b16 %v4633
      %v4730 = vunpack.c.l.b16 %v4634
      %v4731 = vunpack.c.l.b16 %v4635
      %v4732 = vunpack.c.l.b16 %v4636
      %v4733 = vunpack.c.l.b16 %v4637
      %v4734 = vunpack.c.l.b16 %v4638
      %v4735 = vunpack.c.l.b16 %v4639
      %v4736 = vunpack.c.l.b16 %v4640
      %v4737 = vunpack.c.l.b16 %v4641
      %v4738 = vunpack.c.l.b16 %v4642
      %v4739 = vunpack.c.l.b16 %v4643
      %v4740 = vunpack.c.l.b16 %v4644
      %v4741 = vunpack.c.l.b16 %v4645
      %v4742 = vunpack.c.l.b16 %v4646
      %v4743 = vunpack.c.l.b16 %v4647
      %v4744 = vunpack.c.l.b16 %v4648
      %v4745 = vunpack.c.l.b16 %v4649
      %v4746 = vunpack.c.l.b16 %v4650
      %v4747 = vunpack.c.l.b16 %v4651
      %v4748 = vunpack.c.l.b16 %v4652
      %v4749 = vpack.c.b16 %v4702, %v4701
      %v4750 = vpack.c.b16 %v4704, %v4703
      %v4751 = vpack.c.b16 %v4706, %v4705
      %v4752 = vpack.c.b16 %v4708, %v4707
      %v4753 = vpack.c.b16 %v4710, %v4709
      %v4754 = vpack.c.b16 %v4712, %v4711
      %v4755 = vpack.c.b16 %v4714, %v4713
      %v4756 = vpack.c.b16 %v4716, %v4715
      %v4757 = vpack.c.b16 %v4718, %v4717
      %v4758 = vpack.c.b16 %v4720, %v4719
      %v4759 = vpack.c.b16 %v4722, %v4721
      %v4760 = vpack.c.b16 %v4724, %v4723
      %v4761 = vpack.c.b16 %v4726, %v4725
      %v4762 = vpack.c.b16 %v4728, %v4727
      %v4763 = vpack.c.b16 %v4730, %v4729
      %v4764 = vpack.c.b16 %v4732, %v4731
      %v4765 = vpack.c.b16 %v4734, %v4733
      %v4766 = vpack.c.b16 %v4736, %v4735
      %v4767 = vpack.c.b16 %v4738, %v4737
      %v4768 = vpack.c.b16 %v4740, %v4739
      %v4769 = vpack.c.b16 %v4742, %v4741
      %v4770 = vpack.c.b16 %v4744, %v4743
      %v4771 = vpack.c.b16 %v4746, %v4745
      %v4772 = vpack.c.b16 %v4748, %v4747
      %4797 = vmatprep.subr.bf16.mxu0 0
      %4798 = vmatpush1.bf16.msra.mxu0 %v4749
      %4799 = vmatprep.subr.bf16.mxu0 0
      %4800 = vmatpush1.bf16.msra.mxu0 %v4750
      %4801 = vmatprep.subr.bf16.mxu0 0
      %4802 = vmatpush1.bf16.msra.mxu0 %v4751
      %4803 = vmatprep.subr.bf16.mxu0 0
      %4804 = vmatpush1.bf16.msra.mxu0 %v4752
      %4805 = vmatprep.subr.bf16.mxu0 0
      %4806 = vmatpush1.bf16.msra.mxu0 %v4753
      %4807 = vmatprep.subr.bf16.mxu0 0
      %4808 = vmatpush1.bf16.msra.mxu0 %v4754
      %4809 = vmatprep.subr.bf16.mxu0 0
      %4810 = vmatpush1.bf16.msra.mxu0 %v4755
      %4811 = vmatprep.subr.bf16.mxu0 0
      %4812 = vmatpush1.bf16.msra.mxu0 %v4756
      %4813 = vmatprep.subr.bf16.mxu0 0
      %4814 = vmatpush1.bf16.msra.mxu0 %v4757
      %4815 = vmatprep.subr.bf16.mxu0 0
      %4816 = vmatpush1.bf16.msra.mxu0 %v4758
      %4817 = vmatprep.subr.bf16.mxu0 0
      %4818 = vmatpush1.bf16.msra.mxu0 %v4759
      %4819 = vmatprep.subr.bf16.mxu0 0
      %4820 = vmatpush1.bf16.msra.mxu0 %v4760
      %4821 = vmatprep.subr.bf16.mxu0 0
      %4822 = vmatpush1.bf16.msra.mxu0 %v4761
      %4823 = vmatprep.subr.bf16.mxu0 0
      %4824 = vmatpush1.bf16.msra.mxu0 %v4762
      %4825 = vmatprep.subr.bf16.mxu0 0
      %4826 = vmatpush1.bf16.msra.mxu0 %v4763
      %4827 = vmatprep.subr.bf16.mxu0 0
      %4828 = vmatpush1.bf16.msra.mxu0 %v4764
      %4829 = vmatprep.mubr.bf16.mxu0 %v4558
      %4830 = vmatmul.mubr.bf16.gmra.mrb[0].mxu0 %v4557
      %v4831 = vpop.f32.mrb[0].mxu0
      %v4832 = vadd.f32 0.0, %v4831
      %v4833 = vpop.f32.mrb[0].mxu0
      %v4834 = vpop.f32.mrb[0].mxu0
      %v4835 = vadd.f32 0.0, %v4834
      %v4836 = vpop.f32.mrb[0].mxu0
      %4837 = vmatprep.mubr.bf16.mxu0 %v4561
      %4838 = vmatmul.mubr.bf16.gmra.mrb[0].mxu0 %v4560
      %v4839 = vpop.f32.mrb[0].mxu0
      %v4840 = vadd.f32 0.0, %v4839
      %v4841 = vpop.f32.mrb[0].mxu0
      %v4842 = vpop.f32.mrb[0].mxu0
      %v4843 = vadd.f32 0.0, %v4842
      %v4844 = vpop.f32.mrb[0].mxu0
      %4845 = vmatprep.mubr.bf16.mxu0 %v4564
      %4846 = vmatmul.mubr.bf16.gmra.mrb[0].mxu0 %v4563
      %v4847 = vpop.f32.mrb[0].mxu0
      %v4848 = vadd.f32 0.0, %v4847
      %v4849 = vpop.f32.mrb[0].mxu0
      %v4850 = vpop.f32.mrb[0].mxu0
      %v4851 = vadd.f32 0.0, %v4850
      %v4852 = vpop.f32.mrb[0].mxu0
      %4853 = vmatprep.mubr.bf16.mxu0 %v4567
      %4854 = vmatmul.mubr.bf16.gmra.mrb[0].mxu0 %v4566
      %v4855 = vpop.f32.mrb[0].mxu0
      %v4856 = vadd.f32 0.0, %v4855
      %v4857 = vpop.f32.mrb[0].mxu0
      %v4858 = vpop.f32.mrb[0].mxu0
      %v4859 = vadd.f32 0.0, %v4858
      %v4860 = vpop.f32.mrb[0].mxu0
      %4861 = vmatprep.mubr.bf16.mxu0 %v4570
      %4862 = vmatmul.mubr.bf16.gmra.mrb[0].mxu0 %v4569
      %v4863 = vpop.f32.mrb[0].mxu0
      %v4864 = vadd.f32 0.0, %v4863
      %v4865 = vpop.f32.mrb[0].mxu0
      %v4866 = vpop.f32.mrb[0].mxu0
      %v4867 = vadd.f32 0.0, %v4866
      %v4868 = vpop.f32.mrb[0].mxu0
      %4869 = vmatprep.mubr.bf16.mxu0 %v4573
      %4870 = vmatmul.mubr.bf16.gmra.mrb[0].mxu0 %v4572
      %v4871 = vpop.f32.mrb[0].mxu0
      %v4872 = vadd.f32 0.0, %v4871
      %v4873 = vpop.f32.mrb[0].mxu0
      %v4874 = vpop.f32.mrb[0].mxu0
      %v4875 = vadd.f32 0.0, %v4874
      %v4876 = vpop.f32.mrb[0].mxu0
      %4877 = vmatprep.mubr.bf16.mxu0 %v4576
      %4878 = vmatmul.mubr.bf16.gmra.mrb[0].mxu0 %v4575
      %v4879 = vpop.f32.mrb[0].mxu0
      %v4880 = vadd.f32 0.0, %v4879
      %v4881 = vpop.f32.mrb[0].mxu0
      %v4882 = vpop.f32.mrb[0].mxu0
      %v4883 = vadd.f32 0.0, %v4882
      %v4884 = vpop.f32.mrb[0].mxu0
      %4885 = vmatprep.mubr.bf16.mxu0 %v4579
      %4886 = vmatmul.mubr.bf16.gmra.mrb[0].mxu0 %v4578
      %v4887 = vpop.f32.mrb[0].mxu0
      %v4888 = vadd.f32 0.0, %v4887
      %v4889 = vpop.f32.mrb[0].mxu0
      %v4890 = vpop.f32.mrb[0].mxu0
      %v4891 = vadd.f32 0.0, %v4890
      %v4892 = vpop.f32.mrb[0].mxu0
      %4893 = vmatprep.mubr.bf16.mxu0 %v4582
      %4894 = vmatmul.mubr.bf16.gmra.mrb[0].mxu0 %v4581
      %v4895 = vpop.f32.mrb[0].mxu0
      %v4896 = vadd.f32 0.0, %v4895
      %v4897 = vpop.f32.mrb[0].mxu0
      %v4898 = vpop.f32.mrb[0].mxu0
      %v4899 = vadd.f32 0.0, %v4898
      %v4900 = vpop.f32.mrb[0].mxu0
      %4901 = vmatprep.mubr.bf16.mxu0 %v4585
      %4902 = vmatmul.mubr.bf16.gmra.mrb[0].mxu0 %v4584
      %v4903 = vpop.f32.mrb[0].mxu0
      %v4904 = vadd.f32 0.0, %v4903
      %v4905 = vpop.f32.mrb[0].mxu0
      %v4906 = vpop.f32.mrb[0].mxu0
      %v4907 = vadd.f32 0.0, %v4906
      %v4908 = vpop.f32.mrb[0].mxu0
      %4909 = vmatprep.mubr.bf16.mxu0 %v4588
      %4910 = vmatmul.mubr.bf16.gmra.mrb[0].mxu0 %v4587
      %v4911 = vpop.f32.mrb[0].mxu0
      %v4912 = vadd.f32 0.0, %v4911
      %v4913 = vpop.f32.mrb[0].mxu0
      %v4914 = vpop.f32.mrb[0].mxu0
      %v4915 = vadd.f32 0.0, %v4914
      %v4916 = vpop.f32.mrb[0].mxu0
      %4917 = vmatprep.mubr.bf16.mxu0 %v4591
      %4918 = vmatmul.mubr.bf16.gmra.mrb[0].mxu0 %v4590
      %v4919 = vpop.f32.mrb[0].mxu0
      %v4920 = vadd.f32 0.0, %v4919
      %v4921 = vpop.f32.mrb[0].mxu0
      %v4922 = vpop.f32.mrb[0].mxu0
      %v4923 = vadd.f32 0.0, %v4922
      %v4924 = vpop.f32.mrb[0].mxu0
      %4925 = vmatprep.mubr.bf16.mxu0 %v4594
      %4926 = vmatmul.mubr.bf16.gmra.mrb[0].mxu0 %v4593
      %v4927 = vpop.f32.mrb[0].mxu0
      %v4928 = vadd.f32 0.0, %v4927
      %v4929 = vpop.f32.mrb[0].mxu0
      %v4930 = vpop.f32.mrb[0].mxu0
      %v4931 = vadd.f32 0.0, %v4930
      %v4932 = vpop.f32.mrb[0].mxu0
      %4933 = vmatprep.mubr.bf16.mxu0 %v4597
      %4934 = vmatmul.mubr.bf16.gmra.mrb[0].mxu0 %v4596
      %v4935 = vpop.f32.mrb[0].mxu0
      %v4936 = vadd.f32 0.0, %v4935
      %v4937 = vpop.f32.mrb[0].mxu0
      %v4938 = vpop.f32.mrb[0].mxu0
      %v4939 = vadd.f32 0.0, %v4938
      %v4940 = vpop.f32.mrb[0].mxu0
      %4941 = vmatprep.mubr.bf16.mxu0 %v4600
      %4942 = vmatmul.mubr.bf16.gmra.mrb[0].mxu0 %v4599
      %v4943 = vpop.f32.mrb[0].mxu0
      %v4944 = vadd.f32 0.0, %v4943
      %v4945 = vpop.f32.mrb[0].mxu0
      %v4946 = vpop.f32.mrb[0].mxu0
      %v4947 = vadd.f32 0.0, %v4946
      %v4948 = vpop.f32.mrb[0].mxu0
      %4949 = vmatprep.mubr.bf16.mxu0 %v4603
      %4950 = vmatmul.mubr.bf16.gmra.mrb[0].mxu0 %v4602
      %v4951 = vpop.f32.mrb[0].mxu0
      %v4952 = vadd.f32 0.0, %v4951
      %v4953 = vpop.f32.mrb[0].mxu0
      %v4954 = vpop.f32.mrb[0].mxu0
      %v4955 = vadd.f32 0.0, %v4954
      %v4956 = vpop.f32.mrb[0].mxu0
      %4957 = vdwg.mxu0
      %4958 = vmatprep.subr.bf16.mxu0 0
      %4959 = vmatpush1.bf16.msra.mxu0 %v4765
      %4960 = vmatprep.subr.bf16.mxu0 0
      %4961 = vmatpush1.bf16.msra.mxu0 %v4766
      %4962 = vmatprep.subr.bf16.mxu0 0
      %4963 = vmatpush1.bf16.msra.mxu0 %v4767
      %4964 = vmatprep.subr.bf16.mxu0 0
      %4965 = vmatpush1.bf16.msra.mxu0 %v4768
      %4966 = vmatprep.subr.bf16.mxu0 0
      %4967 = vmatpush1.bf16.msra.mxu0 %v4769
      %4968 = vmatprep.subr.bf16.mxu0 0
      %4969 = vmatpush1.bf16.msra.mxu0 %v4770
      %4970 = vmatprep.subr.bf16.mxu0 0
      %4971 = vmatpush1.bf16.msra.mxu0 %v4771
      %4972 = vmatprep.subr.bf16.mxu0 0
      %4973 = vmatpush1.bf16.msra.mxu0 %v4772
      %4974 = vmatprep.subr.bf16.mxu0 0
      %4975 = vmatpush1.bf16.msra.mxu0 0
      %4976 = vmatprep.subr.bf16.mxu0 0
      %4977 = vmatpush1.bf16.msra.mxu0 0
      %4978 = vmatprep.subr.bf16.mxu0 0
      %4979 = vmatpush1.bf16.msra.mxu0 0
      %4980 = vmatprep.subr.bf16.mxu0 0
      %4981 = vmatpush1.bf16.msra.mxu0 0
      %4982 = vmatprep.subr.bf16.mxu0 0
      %4983 = vmatpush1.bf16.msra.mxu0 0
      %4984 = vmatprep.subr.bf16.mxu0 0
      %4985 = vmatpush1.bf16.msra.mxu0 0
      %4986 = vmatprep.subr.bf16.mxu0 0
      %4987 = vmatpush1.bf16.msra.mxu0 0
      %4988 = vmatprep.subr.bf16.mxu0 0
      %4989 = vmatpush1.bf16.msra.mxu0 0
      %4990 = vmatprep.mubr.bf16.mxu0 0
      %4991 = vmatmul.mubr.bf16.gmra.mrb[0].mxu0 %v4559
      %v4992 = vpop.f32.mrb[0].mxu0
      %v4993 = vadd.f32 %v4832, %v4992
      %v4994 = vpop.f32.mrb[0].mxu0
      %v4995 = vpop.f32.mrb[0].mxu0
      %v4996 = vadd.f32 %v4835, %v4995
      %v4997 = vpop.f32.mrb[0].mxu0
      %4998 = vmatprep.mubr.bf16.mxu0 0
      %4999 = vmatmul.mubr.bf16.gmra.mrb[0].mxu0 %v4562
      %v5000 = vpop.f32.mrb[0].mxu0
      %v5001 = vadd.f32 %v4840, %v5000
      %v5002 = vpop.f32.mrb[0].mxu0
      %v5003 = vpop.f32.mrb[0].mxu0
      %v5004 = vadd.f32 %v4843, %v5003
      %v5005 = vpop.f32.mrb[0].mxu0
      %5006 = vmatprep.mubr.bf16.mxu0 0
      %5007 = vmatmul.mubr.bf16.gmra.mrb[0].mxu0 %v4565
      %v5008 = vpop.f32.mrb[0].mxu0
      %v5009 = vadd.f32 %v4848, %v5008
      %v5010 = vpop.f32.mrb[0].mxu0
      %v5011 = vpop.f32.mrb[0].mxu0
      %v5012 = vadd.f32 %v4851, %v5011
      %v5013 = vpop.f32.mrb[0].mxu0
      %5014 = vmatprep.mubr.bf16.mxu0 0
      %5015 = vmatmul.mubr.bf16.gmra.mrb[0].mxu0 %v4568
      %v5016 = vpop.f32.mrb[0].mxu0
      %v5017 = vadd.f32 %v4856, %v5016
      %v5018 = vpop.f32.mrb[0].mxu0
      %v5019 = vpop.f32.mrb[0].mxu0
      %v5020 = vadd.f32 %v4859, %v5019
      %v5021 = vpop.f32.mrb[0].mxu0
      %5022 = vmatprep.mubr.bf16.mxu0 0
      %5023 = vmatmul.mubr.bf16.gmra.mrb[0].mxu0 %v4571
      %v5024 = vpop.f32.mrb[0].mxu0
      %v5025 = vadd.f32 %v4864, %v5024
      %v5026 = vpop.f32.mrb[0].mxu0
      %v5027 = vpop.f32.mrb[0].mxu0
      %v5028 = vadd.f32 %v4867, %v5027
      %v5029 = vpop.f32.mrb[0].mxu0
      %5030 = vmatprep.mubr.bf16.mxu0 0
      %5031 = vmatmul.mubr.bf16.gmra.mrb[0].mxu0 %v4574
      %v5032 = vpop.f32.mrb[0].mxu0
      %v5033 = vadd.f32 %v4872, %v5032
      %v5034 = vpop.f32.mrb[0].mxu0
      %v5035 = vpop.f32.mrb[0].mxu0
      %v5036 = vadd.f32 %v4875, %v5035
      %v5037 = vpop.f32.mrb[0].mxu0
      %5038 = vmatprep.mubr.bf16.mxu0 0
      %5039 = vmatmul.mubr.bf16.gmra.mrb[0].mxu0 %v4577
      %v5040 = vpop.f32.mrb[0].mxu0
      %v5041 = vadd.f32 %v4880, %v5040
      %v5042 = vpop.f32.mrb[0].mxu0
      %v5043 = vpop.f32.mrb[0].mxu0
      %v5044 = vadd.f32 %v4883, %v5043
      %v5045 = vpop.f32.mrb[0].mxu0
      %5046 = vmatprep.mubr.bf16.mxu0 0
      %5047 = vmatmul.mubr.bf16.gmra.mrb[0].mxu0 %v4580
      %v5048 = vpop.f32.mrb[0].mxu0
      %v5049 = vadd.f32 %v4888, %v5048
      %v5050 = vpop.f32.mrb[0].mxu0
      %v5051 = vpop.f32.mrb[0].mxu0
      %v5052 = vadd.f32 %v4891, %v5051
      %v5053 = vpop.f32.mrb[0].mxu0
      %5054 = vmatprep.mubr.bf16.mxu0 0
      %5055 = vmatmul.mubr.bf16.gmra.mrb[0].mxu0 %v4583
      %v5056 = vpop.f32.mrb[0].mxu0
      %v5057 = vadd.f32 %v4896, %v5056
      %v5058 = vpop.f32.mrb[0].mxu0
      %v5059 = vpop.f32.mrb[0].mxu0
      %v5060 = vadd.f32 %v4899, %v5059
      %v5061 = vpop.f32.mrb[0].mxu0
      %5062 = vmatprep.mubr.bf16.mxu0 0
      %5063 = vmatmul.mubr.bf16.gmra.mrb[0].mxu0 %v4586
      %v5064 = vpop.f32.mrb[0].mxu0
      %v5065 = vadd.f32 %v4904, %v5064
      %v5066 = vpop.f32.mrb[0].mxu0
      %v5067 = vpop.f32.mrb[0].mxu0
      %v5068 = vadd.f32 %v4907, %v5067
      %v5069 = vpop.f32.mrb[0].mxu0
      %5070 = vmatprep.mubr.bf16.mxu0 0
      %5071 = vmatmul.mubr.bf16.gmra.mrb[0].mxu0 %v4589
      %v5072 = vpop.f32.mrb[0].mxu0
      %v5073 = vadd.f32 %v4912, %v5072
      %v5074 = vpop.f32.mrb[0].mxu0
      %v5075 = vpop.f32.mrb[0].mxu0
      %v5076 = vadd.f32 %v4915, %v5075
      %v5077 = vpop.f32.mrb[0].mxu0
      %5078 = vmatprep.mubr.bf16.mxu0 0
      %5079 = vmatmul.mubr.bf16.gmra.mrb[0].mxu0 %v4592
      %v5080 = vpop.f32.mrb[0].mxu0
      %v5081 = vadd.f32 %v4920, %v5080
      %v5082 = vpop.f32.mrb[0].mxu0
      %v5083 = vpop.f32.mrb[0].mxu0
      %v5084 = vadd.f32 %v4923, %v5083
      %v5085 = vpop.f32.mrb[0].mxu0
      %5086 = vmatprep.mubr.bf16.mxu0 0
      %5087 = vmatmul.mubr.bf16.gmra.mrb[0].mxu0 %v4595
      %v5088 = vpop.f32.mrb[0].mxu0
      %v5089 = vadd.f32 %v4928, %v5088
      %v5090 = vpop.f32.mrb[0].mxu0
      %v5091 = vpop.f32.mrb[0].mxu0
      %v5092 = vadd.f32 %v4931, %v5091
      %v5093 = vpop.f32.mrb[0].mxu0
      %5094 = vmatprep.mubr.bf16.mxu0 0
      %5095 = vmatmul.mubr.bf16.gmra.mrb[0].mxu0 %v4598
      %v5096 = vpop.f32.mrb[0].mxu0
      %v5097 = vadd.f32 %v4936, %v5096
      %v5098 = vpop.f32.mrb[0].mxu0
      %v5099 = vpop.f32.mrb[0].mxu0
      %v5100 = vadd.f32 %v4939, %v5099
      %v5101 = vpop.f32.mrb[0].mxu0
      %5102 = vmatprep.mubr.bf16.mxu0 0
      %5103 = vmatmul.mubr.bf16.gmra.mrb[0].mxu0 %v4601
      %v5104 = vpop.f32.mrb[0].mxu0
      %v5105 = vadd.f32 %v4944, %v5104
      %v5106 = vpop.f32.mrb[0].mxu0
      %v5107 = vpop.f32.mrb[0].mxu0
      %v5108 = vadd.f32 %v4947, %v5107
      %v5109 = vpop.f32.mrb[0].mxu0
      %5110 = vmatprep.mubr.bf16.mxu0 0
      %5111 = vmatmul.mubr.bf16.gmra.mrb[0].mxu0 %v4604
      %v5112 = vpop.f32.mrb[0].mxu0
      %v5113 = vadd.f32 %v4952, %v5112
      %v5114 = vpop.f32.mrb[0].mxu0
      %v5115 = vpop.f32.mrb[0].mxu0
      %v5116 = vadd.f32 %v4955, %v5115
      %v5117 = vpop.f32.mrb[0].mxu0
      %5118 = vdwg.mxu0
      %v5119 = vld [vmem:[#allocation4] sm:$0xff]
      %v5120 = vld [vmem:[#allocation4 + $0x8] sm:$0xff]
      %v5121 = vld [vmem:[#allocation4 + $0x10] sm:$0xff]
      %v5122 = vld [vmem:[#allocation4 + $0x18] sm:$0xff]
      %v5123 = vld [vmem:[#allocation4 + $0x20] sm:$0xff]
      %v5124 = vld [vmem:[#allocation4 + $0x28] sm:$0xff]
      %v5125 = vld [vmem:[#allocation4 + $0x30] sm:$0xff]
      %v5126 = vld [vmem:[#allocation4 + $0x38] sm:$0xff]
      %v5127 = vld [vmem:[#allocation4 + $0x40] sm:$0xff]
      %v5128 = vld [vmem:[#allocation4 + $0x48] sm:$0xff]
      %v5129 = vld [vmem:[#allocation4 + $0x50] sm:$0xff]
      %v5130 = vld [vmem:[#allocation4 + $0x58] sm:$0xff]
      %v5131 = vld [vmem:[#allocation4 + $0x60] sm:$0xff]
      %v5132 = vld [vmem:[#allocation4 + $0x68] sm:$0xff]
      %v5133 = vld [vmem:[#allocation4 + $0x70] sm:$0xff]
      %v5134 = vld [vmem:[#allocation4 + $0x78] sm:$0xff]
      %v5135 = vld [vmem:[#allocation4 + $0x80] sm:$0xff]
      %v5136 = vld [vmem:[#allocation4 + $0x88] sm:$0xff]
      %v5137 = vld [vmem:[#allocation4 + $0x90] sm:$0xff]
      %v5138 = vld [vmem:[#allocation4 + $0x98] sm:$0xff]
      %v5139 = vld [vmem:[#allocation4 + $0xa0] sm:$0xff]
      %v5140 = vld [vmem:[#allocation4 + $0xa8] sm:$0xff]
      %v5141 = vld [vmem:[#allocation4 + $0xb0] sm:$0xff]
      %v5142 = vld [vmem:[#allocation4 + $0xb8] sm:$0xff]
      %v5143 = vld [vmem:[#allocation4 + $0xc0] sm:$0xff]
      %v5144 = vld [vmem:[#allocation4 + $0xc8] sm:$0xff]
      %v5145 = vld [vmem:[#allocation4 + $0xd0] sm:$0xff]
      %v5146 = vld [vmem:[#allocation4 + $0xd8] sm:$0xff]
      %v5147 = vld [vmem:[#allocation4 + $0xe0] sm:$0xff]
      %v5148 = vld [vmem:[#allocation4 + $0xe8] sm:$0xff]
      %v5149 = vld [vmem:[#allocation4 + $0xf0] sm:$0xff]
      %v5150 = vld [vmem:[#allocation4 + $0xf8] sm:$0xff]
      %v5151 = vadd.f32 %v5119, %v4993
      %v5152 = vadd.f32 %v5120, %v4996
      %v5153 = vadd.f32 %v5121, %v5001
      %v5154 = vadd.f32 %v5122, %v5004
      %v5155 = vadd.f32 %v5123, %v5009
      %v5156 = vadd.f32 %v5124, %v5012
      %v5157 = vadd.f32 %v5125, %v5017
      %v5158 = vadd.f32 %v5126, %v5020
      %v5159 = vadd.f32 %v5127, %v5025
      %v5160 = vadd.f32 %v5128, %v5028
      %v5161 = vadd.f32 %v5129, %v5033
      %v5162 = vadd.f32 %v5130, %v5036
      %v5163 = vadd.f32 %v5131, %v5041
      %v5164 = vadd.f32 %v5132, %v5044
      %v5165 = vadd.f32 %v5133, %v5049
      %v5166 = vadd.f32 %v5134, %v5052
      %v5167 = vadd.f32 %v5135, %v5057
      %v5168 = vadd.f32 %v5136, %v5060
      %v5169 = vadd.f32 %v5137, %v5065
      %v5170 = vadd.f32 %v5138, %v5068
      %v5171 = vadd.f32 %v5139, %v5073
      %v5172 = vadd.f32 %v5140, %v5076
      %v5173 = vadd.f32 %v5141, %v5081
      %v5174 = vadd.f32 %v5142, %v5084
      %v5175 = vadd.f32 %v5143, %v5089
      %v5176 = vadd.f32 %v5144, %v5092
      %v5177 = vadd.f32 %v5145, %v5097
      %v5178 = vadd.f32 %v5146, %v5100
      %v5179 = vadd.f32 %v5147, %v5105
      %v5180 = vadd.f32 %v5148, %v5108
      %v5181 = vadd.f32 %v5149, %v5113
      %v5182 = vadd.f32 %v5150, %v5116
      %5183 = vst [vmem:[#allocation4] sm:$0xff] %v5151
      %5184 = vst [vmem:[#allocation4 + $0x8] sm:$0xff] %v5152
      %5185 = vst [vmem:[#allocation4 + $0x10] sm:$0xff] %v5153
      %5186 = vst [vmem:[#allocation4 + $0x18] sm:$0xff] %v5154
      %5187 = vst [vmem:[#allocation4 + $0x20] sm:$0xff] %v5155
      %5188 = vst [vmem:[#allocation4 + $0x28] sm:$0xff] %v5156
      %5189 = vst [vmem:[#allocation4 + $0x30] sm:$0xff] %v5157
      %5190 = vst [vmem:[#allocation4 + $0x38] sm:$0xff] %v5158
      %5191 = vst [vmem:[#allocation4 + $0x40] sm:$0xff] %v5159
      %5192 = vst [vmem:[#allocation4 + $0x48] sm:$0xff] %v5160
      %5193 = vst [vmem:[#allocation4 + $0x50] sm:$0xff] %v5161
      %5194 = vst [vmem:[#allocation4 + $0x58] sm:$0xff] %v5162
      %5195 = vst [vmem:[#allocation4 + $0x60] sm:$0xff] %v5163
      %5196 = vst [vmem:[#allocation4 + $0x68] sm:$0xff] %v5164
      %5197 = vst [vmem:[#allocation4 + $0x70] sm:$0xff] %v5165
      %5198 = vst [vmem:[#allocation4 + $0x78] sm:$0xff] %v5166
      %5199 = vst [vmem:[#allocation4 + $0x80] sm:$0xff] %v5167
      %5200 = vst [vmem:[#allocation4 + $0x88] sm:$0xff] %v5168
      %5201 = vst [vmem:[#allocation4 + $0x90] sm:$0xff] %v5169
      %5202 = vst [vmem:[#allocation4 + $0x98] sm:$0xff] %v5170
      %5203 = vst [vmem:[#allocation4 + $0xa0] sm:$0xff] %v5171
      %5204 = vst [vmem:[#allocation4 + $0xa8] sm:$0xff] %v5172
      %5205 = vst [vmem:[#allocation4 + $0xb0] sm:$0xff] %v5173
      %5206 = vst [vmem:[#allocation4 + $0xb8] sm:$0xff] %v5174
      %5207 = vst [vmem:[#allocation4 + $0xc0] sm:$0xff] %v5175
      %5208 = vst [vmem:[#allocation4 + $0xc8] sm:$0xff] %v5176
      %5209 = vst [vmem:[#allocation4 + $0xd0] sm:$0xff] %v5177
      %5210 = vst [vmem:[#allocation4 + $0xd8] sm:$0xff] %v5178
      %5211 = vst [vmem:[#allocation4 + $0xe0] sm:$0xff] %v5179
      %5212 = vst [vmem:[#allocation4 + $0xe8] sm:$0xff] %v5180
      %5213 = vst [vmem:[#allocation4 + $0xf0] sm:$0xff] %v5181
      %5214 = vst [vmem:[#allocation4 + $0xf8] sm:$0xff] %v5182
      %v5215 = vld [vmem:[#allocation4] sm:$0xff]
      %v5216 = vld [vmem:[#allocation4 + $0x8] sm:$0xff]
      %v5217 = vld [vmem:[#allocation4 + $0x10] sm:$0xff]
      %v5218 = vld [vmem:[#allocation4 + $0x18] sm:$0xff]
      %v5219 = vld [vmem:[#allocation4 + $0x20] sm:$0xff]
      %v5220 = vld [vmem:[#allocation4 + $0x28] sm:$0xff]
      %v5221 = vld [vmem:[#allocation4 + $0x30] sm:$0xff]
      %v5222 = vld [vmem:[#allocation4 + $0x38] sm:$0xff]
      %v5223 = vld [vmem:[#allocation4 + $0x40] sm:$0xff]
      %v5224 = vld [vmem:[#allocation4 + $0x48] sm:$0xff]
      %v5225 = vld [vmem:[#allocation4 + $0x50] sm:$0xff]
      %v5226 = vld [vmem:[#allocation4 + $0x58] sm:$0xff]
      %v5227 = vld [vmem:[#allocation4 + $0x60] sm:$0xff]
      %v5228 = vld [vmem:[#allocation4 + $0x68] sm:$0xff]
      %v5229 = vld [vmem:[#allocation4 + $0x70] sm:$0xff]
      %v5230 = vld [vmem:[#allocation4 + $0x78] sm:$0xff]
      %v5231 = vld [vmem:[#allocation4 + $0x80] sm:$0xff]
      %v5232 = vld [vmem:[#allocation4 + $0x88] sm:$0xff]
      %v5233 = vld [vmem:[#allocation4 + $0x90] sm:$0xff]
      %v5234 = vld [vmem:[#allocation4 + $0x98] sm:$0xff]
      %v5235 = vld [vmem:[#allocation4 + $0xa0] sm:$0xff]
      %v5236 = vld [vmem:[#allocation4 + $0xa8] sm:$0xff]
      %v5237 = vld [vmem:[#allocation4 + $0xb0] sm:$0xff]
      %v5238 = vld [vmem:[#allocation4 + $0xb8] sm:$0xff]
      %v5239 = vld [vmem:[#allocation4 + $0xc0] sm:$0xff]
      %v5240 = vld [vmem:[#allocation4 + $0xc8] sm:$0xff]
      %v5241 = vld [vmem:[#allocation4 + $0xd0] sm:$0xff]
      %v5242 = vld [vmem:[#allocation4 + $0xd8] sm:$0xff]
      %v5243 = vld [vmem:[#allocation4 + $0xe0] sm:$0xff]
      %v5244 = vld [vmem:[#allocation4 + $0xe8] sm:$0xff]
      %v5245 = vld [vmem:[#allocation4 + $0xf0] sm:$0xff]
      %v5246 = vld [vmem:[#allocation4 + $0xf8] sm:$0xff]
      %v5247 = vld [vmem:[%s2] sm:$0x1]
      %v5249 = vlaneseq
      %v5250 = vshrl.u32 %v5249, 7
      %v5251 = vsub.s32 0, %v5250
      %v5252 = vrot.slane %v5247, %v5251
      %vm5254 = vcmp.ge.f32.partialorder %v5215, %v5252
      %vm5255 = vcmp.ge.f32.partialorder %v5216, %v5252
      %vm5256 = vcmp.ge.f32.partialorder %v5217, %v5252
      %vm5257 = vcmp.ge.f32.partialorder %v5218, %v5252
      %vm5258 = vcmp.ge.f32.partialorder %v5219, %v5252
      %vm5259 = vcmp.ge.f32.partialorder %v5220, %v5252
      %vm5260 = vcmp.ge.f32.partialorder %v5221, %v5252
      %vm5261 = vcmp.ge.f32.partialorder %v5222, %v5252
      %vm5262 = vcmp.ge.f32.partialorder %v5223, %v5252
      %vm5263 = vcmp.ge.f32.partialorder %v5224, %v5252
      %vm5264 = vcmp.ge.f32.partialorder %v5225, %v5252
      %vm5265 = vcmp.ge.f32.partialorder %v5226, %v5252
      %vm5266 = vcmp.ge.f32.partialorder %v5227, %v5252
      %vm5267 = vcmp.ge.f32.partialorder %v5228, %v5252
      %vm5268 = vcmp.ge.f32.partialorder %v5229, %v5252
      %vm5269 = vcmp.ge.f32.partialorder %v5230, %v5252
      %vm5270 = vcmp.ge.f32.partialorder %v5231, %v5252
      %vm5271 = vcmp.ge.f32.partialorder %v5232, %v5252
      %vm5272 = vcmp.ge.f32.partialorder %v5233, %v5252
      %vm5273 = vcmp.ge.f32.partialorder %v5234, %v5252
      %vm5274 = vcmp.ge.f32.partialorder %v5235, %v5252
      %vm5275 = vcmp.ge.f32.partialorder %v5236, %v5252
      %vm5276 = vcmp.ge.f32.partialorder %v5237, %v5252
      %vm5277 = vcmp.ge.f32.partialorder %v5238, %v5252
      %vm5278 = vcmp.ge.f32.partialorder %v5239, %v5252
      %vm5279 = vcmp.ge.f32.partialorder %v5240, %v5252
      %vm5280 = vcmp.ge.f32.partialorder %v5241, %v5252
      %vm5281 = vcmp.ge.f32.partialorder %v5242, %v5252
      %vm5282 = vcmp.ge.f32.partialorder %v5243, %v5252
      %vm5283 = vcmp.ge.f32.partialorder %v5244, %v5252
      %vm5284 = vcmp.ge.f32.partialorder %v5245, %v5252
      %vm5285 = vcmp.ge.f32.partialorder %v5246, %v5252
      %v5286 = vsel %vm5254, 1, 0
      %v5287 = vsel %vm5255, 1, 0
      %v5288 = vsel %vm5256, 1, 0
      %v5289 = vsel %vm5257, 1, 0
      %v5290 = vsel %vm5258, 1, 0
      %v5291 = vsel %vm5259, 1, 0
      %v5292 = vsel %vm5260, 1, 0
      %v5293 = vsel %vm5261, 1, 0
      %v5294 = vsel %vm5262, 1, 0
      %v5295 = vsel %vm5263, 1, 0
      %v5296 = vsel %vm5264, 1, 0
      %v5297 = vsel %vm5265, 1, 0
      %v5298 = vsel %vm5266, 1, 0
      %v5299 = vsel %vm5267, 1, 0
      %v5300 = vsel %vm5268, 1, 0
      %v5301 = vsel %vm5269, 1, 0
      %v5302 = vsel %vm5270, 1, 0
      %v5303 = vsel %vm5271, 1, 0
      %v5304 = vsel %vm5272, 1, 0
      %v5305 = vsel %vm5273, 1, 0
      %v5306 = vsel %vm5274, 1, 0
      %v5307 = vsel %vm5275, 1, 0
      %v5308 = vsel %vm5276, 1, 0
      %v5309 = vsel %vm5277, 1, 0
      %v5310 = vsel %vm5278, 1, 0
      %v5311 = vsel %vm5279, 1, 0
      %v5312 = vsel %vm5280, 1, 0
      %v5313 = vsel %vm5281, 1, 0
      %v5314 = vsel %vm5282, 1, 0
      %v5315 = vsel %vm5283, 1, 0
      %v5316 = vsel %vm5284, 1, 0
      %v5317 = vsel %vm5285, 1, 0
      %v5318 = vcvt.s32.f32 %v5286
      %v5319 = vcvt.s32.f32 %v5287
      %v5320 = vcvt.s32.f32 %v5288
      %v5321 = vcvt.s32.f32 %v5289
      %v5322 = vcvt.s32.f32 %v5290
      %v5323 = vcvt.s32.f32 %v5291
      %v5324 = vcvt.s32.f32 %v5292
      %v5325 = vcvt.s32.f32 %v5293
      %v5326 = vcvt.s32.f32 %v5294
      %v5327 = vcvt.s32.f32 %v5295
      %v5328 = vcvt.s32.f32 %v5296
      %v5329 = vcvt.s32.f32 %v5297
      %v5330 = vcvt.s32.f32 %v5298
      %v5331 = vcvt.s32.f32 %v5299
      %v5332 = vcvt.s32.f32 %v5300
      %v5333 = vcvt.s32.f32 %v5301
      %v5334 = vcvt.s32.f32 %v5302
      %v5335 = vcvt.s32.f32 %v5303
      %v5336 = vcvt.s32.f32 %v5304
      %v5337 = vcvt.s32.f32 %v5305
      %v5338 = vcvt.s32.f32 %v5306
      %v5339 = vcvt.s32.f32 %v5307
      %v5340 = vcvt.s32.f32 %v5308
      %v5341 = vcvt.s32.f32 %v5309
      %v5342 = vcvt.s32.f32 %v5310
      %v5343 = vcvt.s32.f32 %v5311
      %v5344 = vcvt.s32.f32 %v5312
      %v5345 = vcvt.s32.f32 %v5313
      %v5346 = vcvt.s32.f32 %v5314
      %v5347 = vcvt.s32.f32 %v5315
      %v5348 = vcvt.s32.f32 %v5316
      %v5349 = vcvt.s32.f32 %v5317
      %v5350 = vpack.c.bf16 %v5319, %v5318
      %v5351 = vpack.c.bf16 %v5321, %v5320
      %v5352 = vpack.c.bf16 %v5323, %v5322
      %v5353 = vpack.c.bf16 %v5325, %v5324
      %v5354 = vpack.c.bf16 %v5327, %v5326
      %v5355 = vpack.c.bf16 %v5329, %v5328
      %v5356 = vpack.c.bf16 %v5331, %v5330
      %v5357 = vpack.c.bf16 %v5333, %v5332
      %v5358 = vpack.c.bf16 %v5335, %v5334
      %v5359 = vpack.c.bf16 %v5337, %v5336
      %v5360 = vpack.c.bf16 %v5339, %v5338
      %v5361 = vpack.c.bf16 %v5341, %v5340
      %v5362 = vpack.c.bf16 %v5343, %v5342
      %v5363 = vpack.c.bf16 %v5345, %v5344
      %v5364 = vpack.c.bf16 %v5347, %v5346
      %v5365 = vpack.c.bf16 %v5349, %v5348
      %v5382 = vunpack.c.l.b16 %v5350
      %v5383 = vunpack.c.h.b16 %v5350
      %v5384 = vunpack.c.l.b16 %v5351
      %v5385 = vunpack.c.h.b16 %v5351
      %v5386 = vunpack.c.l.b16 %v5352
      %v5387 = vunpack.c.h.b16 %v5352
      %v5388 = vunpack.c.l.b16 %v5353
      %v5389 = vunpack.c.h.b16 %v5353
      %v5390 = vunpack.c.l.b16 %v5354
      %v5391 = vunpack.c.h.b16 %v5354
      %v5392 = vunpack.c.l.b16 %v5355
      %v5393 = vunpack.c.h.b16 %v5355
      %v5394 = vunpack.c.l.b16 %v5356
      %v5395 = vunpack.c.h.b16 %v5356
      %v5396 = vunpack.c.l.b16 %v5357
      %v5397 = vunpack.c.h.b16 %v5357
      %v5398 = vunpack.c.l.b16 %v5358
      %v5399 = vunpack.c.h.b16 %v5358
      %v5400 = vunpack.c.l.b16 %v5359
      %v5401 = vunpack.c.h.b16 %v5359
      %v5402 = vunpack.c.l.b16 %v5360
      %v5403 = vunpack.c.h.b16 %v5360
      %v5404 = vunpack.c.l.b16 %v5361
      %v5405 = vunpack.c.h.b16 %v5361
      %v5406 = vunpack.c.l.b16 %v5362
      %v5407 = vunpack.c.h.b16 %v5362
      %v5408 = vunpack.c.l.b16 %v5363
      %v5409 = vunpack.c.h.b16 %v5363
      %v5410 = vunpack.c.l.b16 %v5364
      %v5411 = vunpack.c.h.b16 %v5364
      %v5412 = vunpack.c.l.b16 %v5365
      %v5413 = vunpack.c.h.b16 %v5365
      %v5414 = vpack.c.b16 %v5382, %v5382
      %v5415 = vpack.c.b16 %v5383, %v5383
      %v5416 = vpack.c.b16 %v5384, %v5384
      %v5417 = vpack.c.b16 %v5385, %v5385
      %v5418 = vpack.c.b16 %v5386, %v5386
      %v5419 = vpack.c.b16 %v5387, %v5387
      %v5420 = vpack.c.b16 %v5388, %v5388
      %v5421 = vpack.c.b16 %v5389, %v5389
      %v5422 = vpack.c.b16 %v5390, %v5390
      %v5423 = vpack.c.b16 %v5391, %v5391
      %v5424 = vpack.c.b16 %v5392, %v5392
      %v5425 = vpack.c.b16 %v5393, %v5393
      %v5426 = vpack.c.b16 %v5394, %v5394
      %v5427 = vpack.c.b16 %v5395, %v5395
      %v5428 = vpack.c.b16 %v5396, %v5396
      %v5429 = vpack.c.b16 %v5397, %v5397
      %v5430 = vpack.c.b16 %v5398, %v5398
      %v5431 = vpack.c.b16 %v5399, %v5399
      %v5432 = vpack.c.b16 %v5400, %v5400
      %v5433 = vpack.c.b16 %v5401, %v5401
      %v5434 = vpack.c.b16 %v5402, %v5402
      %v5435 = vpack.c.b16 %v5403, %v5403
      %v5436 = vpack.c.b16 %v5404, %v5404
      %v5437 = vpack.c.b16 %v5405, %v5405
      %v5438 = vpack.c.b16 %v5406, %v5406
      %v5439 = vpack.c.b16 %v5407, %v5407
      %v5440 = vpack.c.b16 %v5408, %v5408
      %v5441 = vpack.c.b16 %v5409, %v5409
      %v5442 = vpack.c.b16 %v5410, %v5410
      %v5443 = vpack.c.b16 %v5411, %v5411
      %v5444 = vpack.c.b16 %v5412, %v5412
      %v5445 = vpack.c.b16 %v5413, %v5413
      %v5447 = vshrl.u32 %v5414, 16
      %v5449 = vrot.slane %v5447, 7
      %v5450 = vshll.u32 %v5414, 16
      %v5452 = vor.u32 %v5449, %v5450
      %v5453 = vrot.slane %v5449, 4
      %v5455 = vshrl.u32 %v5415, 16
      %v5457 = vrot.slane %v5455, 7
      %v5458 = vshll.u32 %v5415, 16
      %v5460 = vor.u32 %v5457, %v5458
      %v5461 = vsel %vm369, %v5453, %v5460
      %v5462 = vrot.slane %v5457, 4
      %v5464 = vshrl.u32 %v5416, 16
      %v5466 = vrot.slane %v5464, 7
      %v5467 = vshll.u32 %v5416, 16
      %v5469 = vor.u32 %v5466, %v5467
      %v5470 = vrot.slane %v5466, 4
      %v5472 = vshrl.u32 %v5417, 16
      %v5474 = vrot.slane %v5472, 7
      %v5475 = vshll.u32 %v5417, 16
      %v5477 = vor.u32 %v5474, %v5475
      %v5478 = vsel %vm369, %v5470, %v5477
      %v5479 = vrot.slane %v5474, 4
      %v5481 = vshrl.u32 %v5418, 16
      %v5483 = vrot.slane %v5481, 7
      %v5484 = vshll.u32 %v5418, 16
      %v5486 = vor.u32 %v5483, %v5484
      %v5487 = vrot.slane %v5483, 4
      %v5489 = vshrl.u32 %v5419, 16
      %v5491 = vrot.slane %v5489, 7
      %v5492 = vshll.u32 %v5419, 16
      %v5494 = vor.u32 %v5491, %v5492
      %v5495 = vsel %vm369, %v5487, %v5494
      %v5496 = vrot.slane %v5491, 4
      %v5498 = vshrl.u32 %v5420, 16
      %v5500 = vrot.slane %v5498, 7
      %v5501 = vshll.u32 %v5420, 16
      %v5503 = vor.u32 %v5500, %v5501
      %v5504 = vrot.slane %v5500, 4
      %v5506 = vshrl.u32 %v5421, 16
      %v5508 = vrot.slane %v5506, 7
      %v5509 = vshll.u32 %v5421, 16
      %v5511 = vor.u32 %v5508, %v5509
      %v5512 = vsel %vm369, %v5504, %v5511
      %v5513 = vrot.slane %v5508, 4
      %v5515 = vshrl.u32 %v5422, 16
      %v5517 = vrot.slane %v5515, 7
      %v5518 = vshll.u32 %v5422, 16
      %v5520 = vor.u32 %v5517, %v5518
      %v5521 = vrot.slane %v5517, 4
      %v5523 = vshrl.u32 %v5423, 16
      %v5525 = vrot.slane %v5523, 7
      %v5526 = vshll.u32 %v5423, 16
      %v5528 = vor.u32 %v5525, %v5526
      %v5529 = vsel %vm369, %v5521, %v5528
      %v5530 = vrot.slane %v5525, 4
      %v5532 = vshrl.u32 %v5424, 16
      %v5534 = vrot.slane %v5532, 7
      %v5535 = vshll.u32 %v5424, 16
      %v5537 = vor.u32 %v5534, %v5535
      %v5538 = vrot.slane %v5534, 4
      %v5540 = vshrl.u32 %v5425, 16
      %v5542 = vrot.slane %v5540, 7
      %v5543 = vshll.u32 %v5425, 16
      %v5545 = vor.u32 %v5542, %v5543
      %v5546 = vsel %vm369, %v5538, %v5545
      %v5547 = vrot.slane %v5542, 4
      %v5549 = vshrl.u32 %v5426, 16
      %v5551 = vrot.slane %v5549, 7
      %v5552 = vshll.u32 %v5426, 16
      %v5554 = vor.u32 %v5551, %v5552
      %v5555 = vrot.slane %v5551, 4
      %v5557 = vshrl.u32 %v5427, 16
      %v5559 = vrot.slane %v5557, 7
      %v5560 = vshll.u32 %v5427, 16
      %v5562 = vor.u32 %v5559, %v5560
      %v5563 = vsel %vm369, %v5555, %v5562
      %v5564 = vrot.slane %v5559, 4
      %v5566 = vshrl.u32 %v5428, 16
      %v5568 = vrot.slane %v5566, 7
      %v5569 = vshll.u32 %v5428, 16
      %v5571 = vor.u32 %v5568, %v5569
      %v5572 = vrot.slane %v5568, 4
      %v5574 = vshrl.u32 %v5429, 16
      %v5576 = vrot.slane %v5574, 7
      %v5577 = vshll.u32 %v5429, 16
      %v5579 = vor.u32 %v5576, %v5577
      %v5580 = vsel %vm369, %v5572, %v5579
      %v5581 = vrot.slane %v5576, 4
      %v5583 = vshrl.u32 %v5430, 16
      %v5585 = vrot.slane %v5583, 7
      %v5586 = vshll.u32 %v5430, 16
      %v5588 = vor.u32 %v5585, %v5586
      %v5589 = vrot.slane %v5585, 4
      %v5591 = vshrl.u32 %v5431, 16
      %v5593 = vrot.slane %v5591, 7
      %v5594 = vshll.u32 %v5431, 16
      %v5596 = vor.u32 %v5593, %v5594
      %v5597 = vsel %vm369, %v5589, %v5596
      %v5598 = vrot.slane %v5593, 4
      %v5600 = vshrl.u32 %v5432, 16
      %v5602 = vrot.slane %v5600, 7
      %v5603 = vshll.u32 %v5432, 16
      %v5605 = vor.u32 %v5602, %v5603
      %v5606 = vrot.slane %v5602, 4
      %v5608 = vshrl.u32 %v5433, 16
      %v5610 = vrot.slane %v5608, 7
      %v5611 = vshll.u32 %v5433, 16
      %v5613 = vor.u32 %v5610, %v5611
      %v5614 = vsel %vm369, %v5606, %v5613
      %v5615 = vrot.slane %v5610, 4
      %v5617 = vshrl.u32 %v5434, 16
      %v5619 = vrot.slane %v5617, 7
      %v5620 = vshll.u32 %v5434, 16
      %v5622 = vor.u32 %v5619, %v5620
      %v5623 = vrot.slane %v5619, 4
      %v5625 = vshrl.u32 %v5435, 16
      %v5627 = vrot.slane %v5625, 7
      %v5628 = vshll.u32 %v5435, 16
      %v5630 = vor.u32 %v5627, %v5628
      %v5631 = vsel %vm369, %v5623, %v5630
      %v5632 = vrot.slane %v5627, 4
      %v5634 = vshrl.u32 %v5436, 16
      %v5636 = vrot.slane %v5634, 7
      %v5637 = vshll.u32 %v5436, 16
      %v5639 = vor.u32 %v5636, %v5637
      %v5640 = vrot.slane %v5636, 4
      %v5642 = vshrl.u32 %v5437, 16
      %v5644 = vrot.slane %v5642, 7
      %v5645 = vshll.u32 %v5437, 16
      %v5647 = vor.u32 %v5644, %v5645
      %v5648 = vsel %vm369, %v5640, %v5647
      %v5649 = vrot.slane %v5644, 4
      %v5651 = vshrl.u32 %v5438, 16
      %v5653 = vrot.slane %v5651, 7
      %v5654 = vshll.u32 %v5438, 16
      %v5656 = vor.u32 %v5653, %v5654
      %v5657 = vrot.slane %v5653, 4
      %v5659 = vshrl.u32 %v5439, 16
      %v5661 = vrot.slane %v5659, 7
      %v5662 = vshll.u32 %v5439, 16
      %v5664 = vor.u32 %v5661, %v5662
      %v5665 = vsel %vm369, %v5657, %v5664
      %v5666 = vrot.slane %v5661, 4
      %v5668 = vshrl.u32 %v5440, 16
      %v5670 = vrot.slane %v5668, 7
      %v5671 = vshll.u32 %v5440, 16
      %v5673 = vor.u32 %v5670, %v5671
      %v5674 = vrot.slane %v5670, 4
      %v5676 = vshrl.u32 %v5441, 16
      %v5678 = vrot.slane %v5676, 7
      %v5679 = vshll.u32 %v5441, 16
      %v5681 = vor.u32 %v5678, %v5679
      %v5682 = vsel %vm369, %v5674, %v5681
      %v5683 = vrot.slane %v5678, 4
      %v5685 = vshrl.u32 %v5442, 16
      %v5687 = vrot.slane %v5685, 7
      %v5688 = vshll.u32 %v5442, 16
      %v5690 = vor.u32 %v5687, %v5688
      %v5691 = vrot.slane %v5687, 4
      %v5693 = vshrl.u32 %v5443, 16
      %v5695 = vrot.slane %v5693, 7
      %v5696 = vshll.u32 %v5443, 16
      %v5698 = vor.u32 %v5695, %v5696
      %v5699 = vsel %vm369, %v5691, %v5698
      %v5700 = vrot.slane %v5695, 4
      %v5702 = vshrl.u32 %v5444, 16
      %v5704 = vrot.slane %v5702, 7
      %v5705 = vshll.u32 %v5444, 16
      %v5707 = vor.u32 %v5704, %v5705
      %v5708 = vrot.slane %v5704, 4
      %v5710 = vshrl.u32 %v5445, 16
      %v5712 = vrot.slane %v5710, 7
      %v5713 = vshll.u32 %v5445, 16
      %v5715 = vor.u32 %v5712, %v5713
      %v5716 = vsel %vm369, %v5708, %v5715
      %v5717 = vrot.slane %v5712, 4
      %v5766 = vld [vmem:[%s233] sm:$0xf]
      %v5767 = vsel %vm287, %v5452, %v5766
      %5768 = vst [vmem:[%s233] sm:$0xf] %v5767
      %5769 = vst [vmem:[%s233 + $0x4] sm:$0xf] %v5461
      %v5770 = vld [vmem:[%s233 + $0x8] sm:$0x1]
      %v5771 = vsel %vm236, %v5462, %v5770
      %5772 = vst [vmem:[%s233 + $0x8] sm:$0x1] %v5771
      %v5773 = vld [vmem:[%s233 + $0xc] sm:$0xf]
      %v5774 = vsel %vm287, %v5469, %v5773
      %5775 = vst [vmem:[%s233 + $0xc] sm:$0xf] %v5774
      %5776 = vst [vmem:[%s233 + $0x10] sm:$0xf] %v5478
      %v5777 = vld [vmem:[%s233 + $0x14] sm:$0x1]
      %v5778 = vsel %vm236, %v5479, %v5777
      %5779 = vst [vmem:[%s233 + $0x14] sm:$0x1] %v5778
      %v5780 = vld [vmem:[%s233 + $0x18] sm:$0xf]
      %v5781 = vsel %vm287, %v5486, %v5780
      %5782 = vst [vmem:[%s233 + $0x18] sm:$0xf] %v5781
      %5783 = vst [vmem:[%s233 + $0x1c] sm:$0xf] %v5495
      %v5784 = vld [vmem:[%s233 + $0x20] sm:$0x1]
      %v5785 = vsel %vm236, %v5496, %v5784
      %5786 = vst [vmem:[%s233 + $0x20] sm:$0x1] %v5785
      %v5787 = vld [vmem:[%s233 + $0x24] sm:$0xf]
      %v5788 = vsel %vm287, %v5503, %v5787
      %5789 = vst [vmem:[%s233 + $0x24] sm:$0xf] %v5788
      %5790 = vst [vmem:[%s233 + $0x28] sm:$0xf] %v5512
      %v5791 = vld [vmem:[%s233 + $0x2c] sm:$0x1]
      %v5792 = vsel %vm236, %v5513, %v5791
      %5793 = vst [vmem:[%s233 + $0x2c] sm:$0x1] %v5792
      %v5794 = vld [vmem:[%s233 + $0x30] sm:$0xf]
      %v5795 = vsel %vm287, %v5520, %v5794
      %5796 = vst [vmem:[%s233 + $0x30] sm:$0xf] %v5795
      %5797 = vst [vmem:[%s233 + $0x34] sm:$0xf] %v5529
      %v5798 = vld [vmem:[%s233 + $0x38] sm:$0x1]
      %v5799 = vsel %vm236, %v5530, %v5798
      %5800 = vst [vmem:[%s233 + $0x38] sm:$0x1] %v5799
      %v5801 = vld [vmem:[%s233 + $0x3c] sm:$0xf]
      %v5802 = vsel %vm287, %v5537, %v5801
      %5803 = vst [vmem:[%s233 + $0x3c] sm:$0xf] %v5802
      %5804 = vst [vmem:[%s233 + $0x40] sm:$0xf] %v5546
      %v5805 = vld [vmem:[%s233 + $0x44] sm:$0x1]
      %v5806 = vsel %vm236, %v5547, %v5805
      %5807 = vst [vmem:[%s233 + $0x44] sm:$0x1] %v5806
      %v5808 = vld [vmem:[%s233 + $0x48] sm:$0xf]
      %v5809 = vsel %vm287, %v5554, %v5808
      %5810 = vst [vmem:[%s233 + $0x48] sm:$0xf] %v5809
      %5811 = vst [vmem:[%s233 + $0x4c] sm:$0xf] %v5563
      %v5812 = vld [vmem:[%s233 + $0x50] sm:$0x1]
      %v5813 = vsel %vm236, %v5564, %v5812
      %5814 = vst [vmem:[%s233 + $0x50] sm:$0x1] %v5813
      %v5815 = vld [vmem:[%s233 + $0x54] sm:$0xf]
      %v5816 = vsel %vm287, %v5571, %v5815
      %5817 = vst [vmem:[%s233 + $0x54] sm:$0xf] %v5816
      %5818 = vst [vmem:[%s233 + $0x58] sm:$0xf] %v5580
      %v5819 = vld [vmem:[%s233 + $0x5c] sm:$0x1]
      %v5820 = vsel %vm236, %v5581, %v5819
      %5821 = vst [vmem:[%s233 + $0x5c] sm:$0x1] %v5820
      %v5822 = vld [vmem:[%s233 + $0x60] sm:$0xf]
      %v5823 = vsel %vm287, %v5588, %v5822
      %5824 = vst [vmem:[%s233 + $0x60] sm:$0xf] %v5823
      %5825 = vst [vmem:[%s233 + $0x64] sm:$0xf] %v5597
      %v5826 = vld [vmem:[%s233 + $0x68] sm:$0x1]
      %v5827 = vsel %vm236, %v5598, %v5826
      %5828 = vst [vmem:[%s233 + $0x68] sm:$0x1] %v5827
      %v5829 = vld [vmem:[%s233 + $0x6c] sm:$0xf]
      %v5830 = vsel %vm287, %v5605, %v5829
      %5831 = vst [vmem:[%s233 + $0x6c] sm:$0xf] %v5830
      %5832 = vst [vmem:[%s233 + $0x70] sm:$0xf] %v5614
      %v5833 = vld [vmem:[%s233 + $0x74] sm:$0x1]
      %v5834 = vsel %vm236, %v5615, %v5833
      %5835 = vst [vmem:[%s233 + $0x74] sm:$0x1] %v5834
      %v5836 = vld [vmem:[%s233 + $0x78] sm:$0xf]
      %v5837 = vsel %vm287, %v5622, %v5836
      %5838 = vst [vmem:[%s233 + $0x78] sm:$0xf] %v5837
      %5839 = vst [vmem:[%s233 + $0x7c] sm:$0xf] %v5631
      %v5840 = vld [vmem:[%s233 + $0x80] sm:$0x1]
      %v5841 = vsel %vm236, %v5632, %v5840
      %5842 = vst [vmem:[%s233 + $0x80] sm:$0x1] %v5841
      %v5843 = vld [vmem:[%s233 + $0x84] sm:$0xf]
      %v5844 = vsel %vm287, %v5639, %v5843
      %5845 = vst [vmem:[%s233 + $0x84] sm:$0xf] %v5844
      %5846 = vst [vmem:[%s233 + $0x88] sm:$0xf] %v5648
      %v5847 = vld [vmem:[%s233 + $0x8c] sm:$0x1]
      %v5848 = vsel %vm236, %v5649, %v5847
      %5849 = vst [vmem:[%s233 + $0x8c] sm:$0x1] %v5848
      %v5850 = vld [vmem:[%s233 + $0x90] sm:$0xf]
      %v5851 = vsel %vm287, %v5656, %v5850
      %5852 = vst [vmem:[%s233 + $0x90] sm:$0xf] %v5851
      %5853 = vst [vmem:[%s233 + $0x94] sm:$0xf] %v5665
      %v5854 = vld [vmem:[%s233 + $0x98] sm:$0x1]
      %v5855 = vsel %vm236, %v5666, %v5854
      %5856 = vst [vmem:[%s233 + $0x98] sm:$0x1] %v5855
      %v5857 = vld [vmem:[%s233 + $0x9c] sm:$0xf]
      %v5858 = vsel %vm287, %v5673, %v5857
      %5859 = vst [vmem:[%s233 + $0x9c] sm:$0xf] %v5858
      %5860 = vst [vmem:[%s233 + $0xa0] sm:$0xf] %v5682
      %v5861 = vld [vmem:[%s233 + $0xa4] sm:$0x1]
      %v5862 = vsel %vm236, %v5683, %v5861
      %5863 = vst [vmem:[%s233 + $0xa4] sm:$0x1] %v5862
      %v5864 = vld [vmem:[%s233 + $0xa8] sm:$0xf]
      %v5865 = vsel %vm287, %v5690, %v5864
      %5866 = vst [vmem:[%s233 + $0xa8] sm:$0xf] %v5865
      %5867 = vst [vmem:[%s233 + $0xac] sm:$0xf] %v5699
      %v5868 = vld [vmem:[%s233 + $0xb0] sm:$0x1]
      %v5869 = vsel %vm236, %v5700, %v5868
      %5870 = vst [vmem:[%s233 + $0xb0] sm:$0x1] %v5869
      %v5871 = vld [vmem:[%s233 + $0xb4] sm:$0xf]
      %v5872 = vsel %vm287, %v5707, %v5871
      %5873 = vst [vmem:[%s233 + $0xb4] sm:$0xf] %v5872
      %5874 = vst [vmem:[%s233 + $0xb8] sm:$0xf] %v5716
      %v5875 = vld [vmem:[%s233 + $0xbc] sm:$0x1]
      %v5876 = vsel %vm236, %v5717, %v5875
      %5877 = vst [vmem:[%s233 + $0xbc] sm:$0x1] %v5876
      %v5878 = vld [vmem:[#allocation2] sm:$0xf]
      %v5879 = vld [vmem:[#allocation2 + $0x4] sm:$0xf]
      %v5880 = vld [vmem:[#allocation2 + $0x8] sm:$0xf]
      %v5881 = vld [vmem:[#allocation2 + $0xc] sm:$0xf]
      %v5882 = vld [vmem:[#allocation2 + $0x10] sm:$0xf]
      %v5883 = vld [vmem:[#allocation2 + $0x14] sm:$0xf]
      %v5884 = vld [vmem:[#allocation2 + $0x18] sm:$0xf]
      %v5885 = vld [vmem:[#allocation2 + $0x1c] sm:$0xf]
      %v5886 = vld [vmem:[#allocation2 + $0x20] sm:$0xf]
      %v5887 = vld [vmem:[#allocation2 + $0x24] sm:$0xf]
      %v5888 = vld [vmem:[#allocation2 + $0x28] sm:$0xf]
      %v5889 = vld [vmem:[#allocation2 + $0x2c] sm:$0xf]
      %v5890 = vld [vmem:[#allocation2 + $0x30] sm:$0xf]
      %v5891 = vld [vmem:[#allocation2 + $0x34] sm:$0xf]
      %v5892 = vld [vmem:[#allocation2 + $0x38] sm:$0xf]
      %v5893 = vld [vmem:[#allocation2 + $0x3c] sm:$0xf]
      %v5894 = vld [vmem:[#allocation2 + $0x40] sm:$0xf]
      %v5895 = vld [vmem:[#allocation2 + $0x44] sm:$0xf]
      %v5896 = vld [vmem:[#allocation2 + $0x48] sm:$0xf]
      %v5897 = vld [vmem:[#allocation2 + $0x4c] sm:$0xf]
      %v5898 = vld [vmem:[#allocation2 + $0x50] sm:$0xf]
      %v5899 = vld [vmem:[#allocation2 + $0x54] sm:$0xf]
      %v5900 = vld [vmem:[#allocation2 + $0x58] sm:$0xf]
      %v5901 = vld [vmem:[#allocation2 + $0x5c] sm:$0xf]
      %v5902 = vld [vmem:[#allocation2 + $0x60] sm:$0xf]
      %v5903 = vld [vmem:[#allocation2 + $0x64] sm:$0xf]
      %v5904 = vld [vmem:[#allocation2 + $0x68] sm:$0xf]
      %v5905 = vld [vmem:[#allocation2 + $0x6c] sm:$0xf]
      %v5906 = vld [vmem:[#allocation2 + $0x70] sm:$0xf]
      %v5907 = vld [vmem:[#allocation2 + $0x74] sm:$0xf]
      %v5908 = vld [vmem:[#allocation2 + $0x78] sm:$0xf]
      %v5909 = vld [vmem:[#allocation2 + $0x7c] sm:$0xf]
      %v5910 = vld [vmem:[#allocation2 + $0x80] sm:$0xf]
      %v5911 = vld [vmem:[#allocation2 + $0x84] sm:$0xf]
      %v5912 = vld [vmem:[#allocation2 + $0x88] sm:$0xf]
      %v5913 = vld [vmem:[#allocation2 + $0x8c] sm:$0xf]
      %v5914 = vld [vmem:[#allocation2 + $0x90] sm:$0xf]
      %v5915 = vld [vmem:[#allocation2 + $0x94] sm:$0xf]
      %v5916 = vld [vmem:[#allocation2 + $0x98] sm:$0xf]
      %v5917 = vld [vmem:[#allocation2 + $0x9c] sm:$0xf]
      %v5918 = vld [vmem:[#allocation2 + $0xa0] sm:$0xf]
      %v5919 = vld [vmem:[#allocation2 + $0xa4] sm:$0xf]
      %v5920 = vld [vmem:[#allocation2 + $0xa8] sm:$0xf]
      %v5921 = vld [vmem:[#allocation2 + $0xac] sm:$0xf]
      %v5922 = vld [vmem:[#allocation2 + $0xb0] sm:$0xf]
      %v5923 = vld [vmem:[#allocation2 + $0xb4] sm:$0xf]
      %v5924 = vld [vmem:[#allocation2 + $0xb8] sm:$0xf]
      %v5925 = vld [vmem:[#allocation2 + $0xbc] sm:$0xf]
      %v5958 = vunpack.c.l.b16 %v5878
      %v5959 = vunpack.c.l.b16 %v5879
      %v5960 = vunpack.c.l.b16 %v5881
      %v5961 = vunpack.c.l.b16 %v5882
      %v5962 = vunpack.c.l.b16 %v5884
      %v5963 = vunpack.c.l.b16 %v5885
      %v5964 = vunpack.c.l.b16 %v5887
      %v5965 = vunpack.c.l.b16 %v5888
      %v5966 = vunpack.c.l.b16 %v5890
      %v5967 = vunpack.c.l.b16 %v5891
      %v5968 = vunpack.c.l.b16 %v5893
      %v5969 = vunpack.c.l.b16 %v5894
      %v5970 = vunpack.c.l.b16 %v5896
      %v5971 = vunpack.c.l.b16 %v5897
      %v5972 = vunpack.c.l.b16 %v5899
      %v5973 = vunpack.c.l.b16 %v5900
      %v5974 = vunpack.c.l.b16 %v5902
      %v5975 = vunpack.c.l.b16 %v5903
      %v5976 = vunpack.c.l.b16 %v5905
      %v5977 = vunpack.c.l.b16 %v5906
      %v5978 = vunpack.c.l.b16 %v5908
      %v5979 = vunpack.c.l.b16 %v5909
      %v5980 = vunpack.c.l.b16 %v5911
      %v5981 = vunpack.c.l.b16 %v5912
      %v5982 = vunpack.c.l.b16 %v5914
      %v5983 = vunpack.c.l.b16 %v5915
      %v5984 = vunpack.c.l.b16 %v5917
      %v5985 = vunpack.c.l.b16 %v5918
      %v5986 = vunpack.c.l.b16 %v5920
      %v5987 = vunpack.c.l.b16 %v5921
      %v5988 = vunpack.c.l.b16 %v5923
      %v5989 = vunpack.c.l.b16 %v5924
      %v5990 = vpack.c.b16 %v5959, %v5958
      %v5991 = vpack.c.b16 %v5961, %v5960
      %v5992 = vpack.c.b16 %v5963, %v5962
      %v5993 = vpack.c.b16 %v5965, %v5964
      %v5994 = vpack.c.b16 %v5967, %v5966
      %v5995 = vpack.c.b16 %v5969, %v5968
      %v5996 = vpack.c.b16 %v5971, %v5970
      %v5997 = vpack.c.b16 %v5973, %v5972
      %v5998 = vpack.c.b16 %v5975, %v5974
      %v5999 = vpack.c.b16 %v5977, %v5976
      %v6000 = vpack.c.b16 %v5979, %v5978
      %v6001 = vpack.c.b16 %v5981, %v5980
      %v6002 = vpack.c.b16 %v5983, %v5982
      %v6003 = vpack.c.b16 %v5985, %v5984
      %v6004 = vpack.c.b16 %v5987, %v5986
      %v6005 = vpack.c.b16 %v5989, %v5988
      %6022 = vst [vmem:[#allocation3] sm:$0xff] %v5990
      %6023 = vst [vmem:[#allocation3 + $0x18] sm:$0xff] %v5991
      %6024 = vst [vmem:[#allocation3 + $0x30] sm:$0xff] %v5992
      %6025 = vst [vmem:[#allocation3 + $0x48] sm:$0xff] %v5993
      %6026 = vst [vmem:[#allocation3 + $0x60] sm:$0xff] %v5994
      %6027 = vst [vmem:[#allocation3 + $0x78] sm:$0xff] %v5995
      %6028 = vst [vmem:[#allocation3 + $0x90] sm:$0xff] %v5996
      %6029 = vst [vmem:[#allocation3 + $0xa8] sm:$0xff] %v5997
      %6030 = vst [vmem:[#allocation3 + $0xc0] sm:$0xff] %v5998
      %6031 = vst [vmem:[#allocation3 + $0xd8] sm:$0xff] %v5999
      %6032 = vst [vmem:[#allocation3 + $0xf0] sm:$0xff] %v6000
      %6033 = vst [vmem:[#allocation3 + $0x108] sm:$0xff] %v6001
      %6034 = vst [vmem:[#allocation3 + $0x120] sm:$0xff] %v6002
      %6035 = vst [vmem:[#allocation3 + $0x138] sm:$0xff] %v6003
      %6036 = vst [vmem:[#allocation3 + $0x150] sm:$0xff] %v6004
      %6037 = vst [vmem:[#allocation3 + $0x168] sm:$0xff] %v6005
      %v6039 = vshrl.u32 %v5878, 16
      %v6041 = vrot.slane %v6039, 4
      %v6042 = vshll.u32 %v5878, 16
      %v6044 = vrot.slane %v6042, 5
      %v6045 = vor.u32 %v6041, %v6044
      %v6046 = vrot.slane %v6045, 4
      %v6048 = vshll.u32 %v5879, 16
      %v6050 = vrot.slane %v6048, 5
      %v6051 = vsel %vm964, %v6046, %v6050
      %v6052 = vshrl.u32 %v5879, 16
      %v6054 = vrot.slane %v6052, 4
      %v6055 = vor.u32 %v6054, %v6050
      %v6056 = vrot.slane %v6055, 4
      %v6058 = vshll.u32 %v5880, 16
      %v6060 = vrot.slane %v6058, 5
      %v6061 = vsel %vm964, %v6056, %v6060
      %v6063 = vshrl.u32 %v5881, 16
      %v6065 = vrot.slane %v6063, 4
      %v6066 = vshll.u32 %v5881, 16
      %v6068 = vrot.slane %v6066, 5
      %v6069 = vor.u32 %v6065, %v6068
      %v6070 = vrot.slane %v6069, 4
      %v6072 = vshll.u32 %v5882, 16
      %v6074 = vrot.slane %v6072, 5
      %v6075 = vsel %vm964, %v6070, %v6074
      %v6076 = vshrl.u32 %v5882, 16
      %v6078 = vrot.slane %v6076, 4
      %v6079 = vor.u32 %v6078, %v6074
      %v6080 = vrot.slane %v6079, 4
      %v6082 = vshll.u32 %v5883, 16
      %v6084 = vrot.slane %v6082, 5
      %v6085 = vsel %vm964, %v6080, %v6084
      %v6087 = vshrl.u32 %v5884, 16
      %v6089 = vrot.slane %v6087, 4
      %v6090 = vshll.u32 %v5884, 16
      %v6092 = vrot.slane %v6090, 5
      %v6093 = vor.u32 %v6089, %v6092
      %v6094 = vrot.slane %v6093, 4
      %v6096 = vshll.u32 %v5885, 16
      %v6098 = vrot.slane %v6096, 5
      %v6099 = vsel %vm964, %v6094, %v6098
      %v6100 = vshrl.u32 %v5885, 16
      %v6102 = vrot.slane %v6100, 4
      %v6103 = vor.u32 %v6102, %v6098
      %v6104 = vrot.slane %v6103, 4
      %v6106 = vshll.u32 %v5886, 16
      %v6108 = vrot.slane %v6106, 5
      %v6109 = vsel %vm964, %v6104, %v6108
      %v6111 = vshrl.u32 %v5887, 16
      %v6113 = vrot.slane %v6111, 4
      %v6114 = vshll.u32 %v5887, 16
      %v6116 = vrot.slane %v6114, 5
      %v6117 = vor.u32 %v6113, %v6116
      %v6118 = vrot.slane %v6117, 4
      %v6120 = vshll.u32 %v5888, 16
      %v6122 = vrot.slane %v6120, 5
      %v6123 = vsel %vm964, %v6118, %v6122
      %v6124 = vshrl.u32 %v5888, 16
      %v6126 = vrot.slane %v6124, 4
      %v6127 = vor.u32 %v6126, %v6122
      %v6128 = vrot.slane %v6127, 4
      %v6130 = vshll.u32 %v5889, 16
      %v6132 = vrot.slane %v6130, 5
      %v6133 = vsel %vm964, %v6128, %v6132
      %v6135 = vshrl.u32 %v5890, 16
      %v6137 = vrot.slane %v6135, 4
      %v6138 = vshll.u32 %v5890, 16
      %v6140 = vrot.slane %v6138, 5
      %v6141 = vor.u32 %v6137, %v6140
      %v6142 = vrot.slane %v6141, 4
      %v6144 = vshll.u32 %v5891, 16
      %v6146 = vrot.slane %v6144, 5
      %v6147 = vsel %vm964, %v6142, %v6146
      %v6148 = vshrl.u32 %v5891, 16
      %v6150 = vrot.slane %v6148, 4
      %v6151 = vor.u32 %v6150, %v6146
      %v6152 = vrot.slane %v6151, 4
      %v6154 = vshll.u32 %v5892, 16
      %v6156 = vrot.slane %v6154, 5
      %v6157 = vsel %vm964, %v6152, %v6156
      %v6159 = vshrl.u32 %v5893, 16
      %v6161 = vrot.slane %v6159, 4
      %v6162 = vshll.u32 %v5893, 16
      %v6164 = vrot.slane %v6162, 5
      %v6165 = vor.u32 %v6161, %v6164
      %v6166 = vrot.slane %v6165, 4
      %v6168 = vshll.u32 %v5894, 16
      %v6170 = vrot.slane %v6168, 5
      %v6171 = vsel %vm964, %v6166, %v6170
      %v6172 = vshrl.u32 %v5894, 16
      %v6174 = vrot.slane %v6172, 4
      %v6175 = vor.u32 %v6174, %v6170
      %v6176 = vrot.slane %v6175, 4
      %v6178 = vshll.u32 %v5895, 16
      %v6180 = vrot.slane %v6178, 5
      %v6181 = vsel %vm964, %v6176, %v6180
      %v6183 = vshrl.u32 %v5896, 16
      %v6185 = vrot.slane %v6183, 4
      %v6186 = vshll.u32 %v5896, 16
      %v6188 = vrot.slane %v6186, 5
      %v6189 = vor.u32 %v6185, %v6188
      %v6190 = vrot.slane %v6189, 4
      %v6192 = vshll.u32 %v5897, 16
      %v6194 = vrot.slane %v6192, 5
      %v6195 = vsel %vm964, %v6190, %v6194
      %v6196 = vshrl.u32 %v5897, 16
      %v6198 = vrot.slane %v6196, 4
      %v6199 = vor.u32 %v6198, %v6194
      %v6200 = vrot.slane %v6199, 4
      %v6202 = vshll.u32 %v5898, 16
      %v6204 = vrot.slane %v6202, 5
      %v6205 = vsel %vm964, %v6200, %v6204
      %v6207 = vshrl.u32 %v5899, 16
      %v6209 = vrot.slane %v6207, 4
      %v6210 = vshll.u32 %v5899, 16
      %v6212 = vrot.slane %v6210, 5
      %v6213 = vor.u32 %v6209, %v6212
      %v6214 = vrot.slane %v6213, 4
      %v6216 = vshll.u32 %v5900, 16
      %v6218 = vrot.slane %v6216, 5
      %v6219 = vsel %vm964, %v6214, %v6218
      %v6220 = vshrl.u32 %v5900, 16
      %v6222 = vrot.slane %v6220, 4
      %v6223 = vor.u32 %v6222, %v6218
      %v6224 = vrot.slane %v6223, 4
      %v6226 = vshll.u32 %v5901, 16
      %v6228 = vrot.slane %v6226, 5
      %v6229 = vsel %vm964, %v6224, %v6228
      %v6231 = vshrl.u32 %v5902, 16
      %v6233 = vrot.slane %v6231, 4
      %v6234 = vshll.u32 %v5902, 16
      %v6236 = vrot.slane %v6234, 5
      %v6237 = vor.u32 %v6233, %v6236
      %v6238 = vrot.slane %v6237, 4
      %v6240 = vshll.u32 %v5903, 16
      %v6242 = vrot.slane %v6240, 5
      %v6243 = vsel %vm964, %v6238, %v6242
      %v6244 = vshrl.u32 %v5903, 16
      %v6246 = vrot.slane %v6244, 4
      %v6247 = vor.u32 %v6246, %v6242
      %v6248 = vrot.slane %v6247, 4
      %v6250 = vshll.u32 %v5904, 16
      %v6252 = vrot.slane %v6250, 5
      %v6253 = vsel %vm964, %v6248, %v6252
      %v6255 = vshrl.u32 %v5905, 16
      %v6257 = vrot.slane %v6255, 4
      %v6258 = vshll.u32 %v5905, 16
      %v6260 = vrot.slane %v6258, 5
      %v6261 = vor.u32 %v6257, %v6260
      %v6262 = vrot.slane %v6261, 4
      %v6264 = vshll.u32 %v5906, 16
      %v6266 = vrot.slane %v6264, 5
      %v6267 = vsel %vm964, %v6262, %v6266
      %v6268 = vshrl.u32 %v5906, 16
      %v6270 = vrot.slane %v6268, 4
      %v6271 = vor.u32 %v6270, %v6266
      %v6272 = vrot.slane %v6271, 4
      %v6274 = vshll.u32 %v5907, 16
      %v6276 = vrot.slane %v6274, 5
      %v6277 = vsel %vm964, %v6272, %v6276
      %v6279 = vshrl.u32 %v5908, 16
      %v6281 = vrot.slane %v6279, 4
      %v6282 = vshll.u32 %v5908, 16
      %v6284 = vrot.slane %v6282, 5
      %v6285 = vor.u32 %v6281, %v6284
      %v6286 = vrot.slane %v6285, 4
      %v6288 = vshll.u32 %v5909, 16
      %v6290 = vrot.slane %v6288, 5
      %v6291 = vsel %vm964, %v6286, %v6290
      %v6292 = vshrl.u32 %v5909, 16
      %v6294 = vrot.slane %v6292, 4
      %v6295 = vor.u32 %v6294, %v6290
      %v6296 = vrot.slane %v6295, 4
      %v6298 = vshll.u32 %v5910, 16
      %v6300 = vrot.slane %v6298, 5
      %v6301 = vsel %vm964, %v6296, %v6300
      %v6303 = vshrl.u32 %v5911, 16
      %v6305 = vrot.slane %v6303, 4
      %v6306 = vshll.u32 %v5911, 16
      %v6308 = vrot.slane %v6306, 5
      %v6309 = vor.u32 %v6305, %v6308
      %v6310 = vrot.slane %v6309, 4
      %v6312 = vshll.u32 %v5912, 16
      %v6314 = vrot.slane %v6312, 5
      %v6315 = vsel %vm964, %v6310, %v6314
      %v6316 = vshrl.u32 %v5912, 16
      %v6318 = vrot.slane %v6316, 4
      %v6319 = vor.u32 %v6318, %v6314
      %v6320 = vrot.slane %v6319, 4
      %v6322 = vshll.u32 %v5913, 16
      %v6324 = vrot.slane %v6322, 5
      %v6325 = vsel %vm964, %v6320, %v6324
      %v6327 = vshrl.u32 %v5914, 16
      %v6329 = vrot.slane %v6327, 4
      %v6330 = vshll.u32 %v5914, 16
      %v6332 = vrot.slane %v6330, 5
      %v6333 = vor.u32 %v6329, %v6332
      %v6334 = vrot.slane %v6333, 4
      %v6336 = vshll.u32 %v5915, 16
      %v6338 = vrot.slane %v6336, 5
      %v6339 = vsel %vm964, %v6334, %v6338
      %v6340 = vshrl.u32 %v5915, 16
      %v6342 = vrot.slane %v6340, 4
      %v6343 = vor.u32 %v6342, %v6338
      %v6344 = vrot.slane %v6343, 4
      %v6346 = vshll.u32 %v5916, 16
      %v6348 = vrot.slane %v6346, 5
      %v6349 = vsel %vm964, %v6344, %v6348
      %v6351 = vshrl.u32 %v5917, 16
      %v6353 = vrot.slane %v6351, 4
      %v6354 = vshll.u32 %v5917, 16
      %v6356 = vrot.slane %v6354, 5
      %v6357 = vor.u32 %v6353, %v6356
      %v6358 = vrot.slane %v6357, 4
      %v6360 = vshll.u32 %v5918, 16
      %v6362 = vrot.slane %v6360, 5
      %v6363 = vsel %vm964, %v6358, %v6362
      %v6364 = vshrl.u32 %v5918, 16
      %v6366 = vrot.slane %v6364, 4
      %v6367 = vor.u32 %v6366, %v6362
      %v6368 = vrot.slane %v6367, 4
      %v6370 = vshll.u32 %v5919, 16
      %v6372 = vrot.slane %v6370, 5
      %v6373 = vsel %vm964, %v6368, %v6372
      %v6375 = vshrl.u32 %v5920, 16
      %v6377 = vrot.slane %v6375, 4
      %v6378 = vshll.u32 %v5920, 16
      %v6380 = vrot.slane %v6378, 5
      %v6381 = vor.u32 %v6377, %v6380
      %v6382 = vrot.slane %v6381, 4
      %v6384 = vshll.u32 %v5921, 16
      %v6386 = vrot.slane %v6384, 5
      %v6387 = vsel %vm964, %v6382, %v6386
      %v6388 = vshrl.u32 %v5921, 16
      %v6390 = vrot.slane %v6388, 4
      %v6391 = vor.u32 %v6390, %v6386
      %v6392 = vrot.slane %v6391, 4
      %v6394 = vshll.u32 %v5922, 16
      %v6396 = vrot.slane %v6394, 5
      %v6397 = vsel %vm964, %v6392, %v6396
      %v6399 = vshrl.u32 %v5923, 16
      %v6401 = vrot.slane %v6399, 4
      %v6402 = vshll.u32 %v5923, 16
      %v6404 = vrot.slane %v6402, 5
      %v6405 = vor.u32 %v6401, %v6404
      %v6406 = vrot.slane %v6405, 4
      %v6408 = vshll.u32 %v5924, 16
      %v6410 = vrot.slane %v6408, 5
      %v6411 = vsel %vm964, %v6406, %v6410
      %v6412 = vshrl.u32 %v5924, 16
      %v6414 = vrot.slane %v6412, 4
      %v6415 = vor.u32 %v6414, %v6410
      %v6416 = vrot.slane %v6415, 4
      %v6418 = vshll.u32 %v5925, 16
      %v6420 = vrot.slane %v6418, 5
      %v6421 = vsel %vm964, %v6416, %v6420
      %v6422 = vunpack.c.l.b16 %v6051
      %v6423 = vunpack.c.l.b16 %v6061
      %v6424 = vunpack.c.l.b16 %v6075
      %v6425 = vunpack.c.l.b16 %v6085
      %v6426 = vunpack.c.l.b16 %v6099
      %v6427 = vunpack.c.l.b16 %v6109
      %v6428 = vunpack.c.l.b16 %v6123
      %v6429 = vunpack.c.l.b16 %v6133
      %v6430 = vunpack.c.l.b16 %v6147
      %v6431 = vunpack.c.l.b16 %v6157
      %v6432 = vunpack.c.l.b16 %v6171
      %v6433 = vunpack.c.l.b16 %v6181
      %v6434 = vunpack.c.l.b16 %v6195
      %v6435 = vunpack.c.l.b16 %v6205
      %v6436 = vunpack.c.l.b16 %v6219
      %v6437 = vunpack.c.l.b16 %v6229
      %v6438 = vunpack.c.l.b16 %v6243
      %v6439 = vunpack.c.l.b16 %v6253
      %v6440 = vunpack.c.l.b16 %v6267
      %v6441 = vunpack.c.l.b16 %v6277
      %v6442 = vunpack.c.l.b16 %v6291
      %v6443 = vunpack.c.l.b16 %v6301
      %v6444 = vunpack.c.l.b16 %v6315
      %v6445 = vunpack.c.l.b16 %v6325
      %v6446 = vunpack.c.l.b16 %v6339
      %v6447 = vunpack.c.l.b16 %v6349
      %v6448 = vunpack.c.l.b16 %v6363
      %v6449 = vunpack.c.l.b16 %v6373
      %v6450 = vunpack.c.l.b16 %v6387
      %v6451 = vunpack.c.l.b16 %v6397
      %v6452 = vunpack.c.l.b16 %v6411
      %v6453 = vunpack.c.l.b16 %v6421
      %v6454 = vpack.c.b16 %v6423, %v6422
      %v6455 = vpack.c.b16 %v6425, %v6424
      %v6456 = vpack.c.b16 %v6427, %v6426
      %v6457 = vpack.c.b16 %v6429, %v6428
      %v6458 = vpack.c.b16 %v6431, %v6430
      %v6459 = vpack.c.b16 %v6433, %v6432
      %v6460 = vpack.c.b16 %v6435, %v6434
      %v6461 = vpack.c.b16 %v6437, %v6436
      %v6462 = vpack.c.b16 %v6439, %v6438
      %v6463 = vpack.c.b16 %v6441, %v6440
      %v6464 = vpack.c.b16 %v6443, %v6442
      %v6465 = vpack.c.b16 %v6445, %v6444
      %v6466 = vpack.c.b16 %v6447, %v6446
      %v6467 = vpack.c.b16 %v6449, %v6448
      %v6468 = vpack.c.b16 %v6451, %v6450
      %v6469 = vpack.c.b16 %v6453, %v6452
      %6486 = vst [vmem:[#allocation3 + $0x8] sm:$0xff] %v6454
      %6487 = vst [vmem:[#allocation3 + $0x20] sm:$0xff] %v6455
      %6488 = vst [vmem:[#allocation3 + $0x38] sm:$0xff] %v6456
      %6489 = vst [vmem:[#allocation3 + $0x50] sm:$0xff] %v6457
      %6490 = vst [vmem:[#allocation3 + $0x68] sm:$0xff] %v6458
      %6491 = vst [vmem:[#allocation3 + $0x80] sm:$0xff] %v6459
      %6492 = vst [vmem:[#allocation3 + $0x98] sm:$0xff] %v6460
      %6493 = vst [vmem:[#allocation3 + $0xb0] sm:$0xff] %v6461
      %6494 = vst [vmem:[#allocation3 + $0xc8] sm:$0xff] %v6462
      %6495 = vst [vmem:[#allocation3 + $0xe0] sm:$0xff] %v6463
      %6496 = vst [vmem:[#allocation3 + $0xf8] sm:$0xff] %v6464
      %6497 = vst [vmem:[#allocation3 + $0x110] sm:$0xff] %v6465
      %6498 = vst [vmem:[#allocation3 + $0x128] sm:$0xff] %v6466
      %6499 = vst [vmem:[#allocation3 + $0x140] sm:$0xff] %v6467
      %6500 = vst [vmem:[#allocation3 + $0x158] sm:$0xff] %v6468
      %6501 = vst [vmem:[#allocation3 + $0x170] sm:$0xff] %v6469
      %v6518 = vrot.slane %v5878, 5
      %v6519 = vrot.slane %v6518, 4
      %v6520 = vrot.slane %v5879, 5
      %v6521 = vsel %vm1447, %v6519, %v6520
      %v6522 = vrot.slane %v6520, 4
      %v6523 = vrot.slane %v5880, 5
      %v6524 = vsel %vm1447, %v6522, %v6523
      %v6525 = vrot.slane %v5881, 5
      %v6526 = vrot.slane %v6525, 4
      %v6527 = vrot.slane %v5882, 5
      %v6528 = vsel %vm1447, %v6526, %v6527
      %v6529 = vrot.slane %v6527, 4
      %v6530 = vrot.slane %v5883, 5
      %v6531 = vsel %vm1447, %v6529, %v6530
      %v6532 = vrot.slane %v5884, 5
      %v6533 = vrot.slane %v6532, 4
      %v6534 = vrot.slane %v5885, 5
      %v6535 = vsel %vm1447, %v6533, %v6534
      %v6536 = vrot.slane %v6534, 4
      %v6537 = vrot.slane %v5886, 5
      %v6538 = vsel %vm1447, %v6536, %v6537
      %v6539 = vrot.slane %v5887, 5
      %v6540 = vrot.slane %v6539, 4
      %v6541 = vrot.slane %v5888, 5
      %v6542 = vsel %vm1447, %v6540, %v6541
      %v6543 = vrot.slane %v6541, 4
      %v6544 = vrot.slane %v5889, 5
      %v6545 = vsel %vm1447, %v6543, %v6544
      %v6546 = vrot.slane %v5890, 5
      %v6547 = vrot.slane %v6546, 4
      %v6548 = vrot.slane %v5891, 5
      %v6549 = vsel %vm1447, %v6547, %v6548
      %v6550 = vrot.slane %v6548, 4
      %v6551 = vrot.slane %v5892, 5
      %v6552 = vsel %vm1447, %v6550, %v6551
      %v6553 = vrot.slane %v5893, 5
      %v6554 = vrot.slane %v6553, 4
      %v6555 = vrot.slane %v5894, 5
      %v6556 = vsel %vm1447, %v6554, %v6555
      %v6557 = vrot.slane %v6555, 4
      %v6558 = vrot.slane %v5895, 5
      %v6559 = vsel %vm1447, %v6557, %v6558
      %v6560 = vrot.slane %v5896, 5
      %v6561 = vrot.slane %v6560, 4
      %v6562 = vrot.slane %v5897, 5
      %v6563 = vsel %vm1447, %v6561, %v6562
      %v6564 = vrot.slane %v6562, 4
      %v6565 = vrot.slane %v5898, 5
      %v6566 = vsel %vm1447, %v6564, %v6565
      %v6567 = vrot.slane %v5899, 5
      %v6568 = vrot.slane %v6567, 4
      %v6569 = vrot.slane %v5900, 5
      %v6570 = vsel %vm1447, %v6568, %v6569
      %v6571 = vrot.slane %v6569, 4
      %v6572 = vrot.slane %v5901, 5
      %v6573 = vsel %vm1447, %v6571, %v6572
      %v6574 = vrot.slane %v5902, 5
      %v6575 = vrot.slane %v6574, 4
      %v6576 = vrot.slane %v5903, 5
      %v6577 = vsel %vm1447, %v6575, %v6576
      %v6578 = vrot.slane %v6576, 4
      %v6579 = vrot.slane %v5904, 5
      %v6580 = vsel %vm1447, %v6578, %v6579
      %v6581 = vrot.slane %v5905, 5
      %v6582 = vrot.slane %v6581, 4
      %v6583 = vrot.slane %v5906, 5
      %v6584 = vsel %vm1447, %v6582, %v6583
      %v6585 = vrot.slane %v6583, 4
      %v6586 = vrot.slane %v5907, 5
      %v6587 = vsel %vm1447, %v6585, %v6586
      %v6588 = vrot.slane %v5908, 5
      %v6589 = vrot.slane %v6588, 4
      %v6590 = vrot.slane %v5909, 5
      %v6591 = vsel %vm1447, %v6589, %v6590
      %v6592 = vrot.slane %v6590, 4
      %v6593 = vrot.slane %v5910, 5
      %v6594 = vsel %vm1447, %v6592, %v6593
      %v6595 = vrot.slane %v5911, 5
      %v6596 = vrot.slane %v6595, 4
      %v6597 = vrot.slane %v5912, 5
      %v6598 = vsel %vm1447, %v6596, %v6597
      %v6599 = vrot.slane %v6597, 4
      %v6600 = vrot.slane %v5913, 5
      %v6601 = vsel %vm1447, %v6599, %v6600
      %v6602 = vrot.slane %v5914, 5
      %v6603 = vrot.slane %v6602, 4
      %v6604 = vrot.slane %v5915, 5
      %v6605 = vsel %vm1447, %v6603, %v6604
      %v6606 = vrot.slane %v6604, 4
      %v6607 = vrot.slane %v5916, 5
      %v6608 = vsel %vm1447, %v6606, %v6607
      %v6609 = vrot.slane %v5917, 5
      %v6610 = vrot.slane %v6609, 4
      %v6611 = vrot.slane %v5918, 5
      %v6612 = vsel %vm1447, %v6610, %v6611
      %v6613 = vrot.slane %v6611, 4
      %v6614 = vrot.slane %v5919, 5
      %v6615 = vsel %vm1447, %v6613, %v6614
      %v6616 = vrot.slane %v5920, 5
      %v6617 = vrot.slane %v6616, 4
      %v6618 = vrot.slane %v5921, 5
      %v6619 = vsel %vm1447, %v6617, %v6618
      %v6620 = vrot.slane %v6618, 4
      %v6621 = vrot.slane %v5922, 5
      %v6622 = vsel %vm1447, %v6620, %v6621
      %v6623 = vrot.slane %v5923, 5
      %v6624 = vrot.slane %v6623, 4
      %v6625 = vrot.slane %v5924, 5
      %v6626 = vsel %vm1447, %v6624, %v6625
      %v6627 = vrot.slane %v6625, 4
      %v6628 = vrot.slane %v5925, 5
      %v6629 = vsel %vm1447, %v6627, %v6628
      %v6630 = vunpack.c.l.b16 %v6521
      %v6631 = vunpack.c.l.b16 %v6524
      %v6632 = vunpack.c.l.b16 %v6528
      %v6633 = vunpack.c.l.b16 %v6531
      %v6634 = vunpack.c.l.b16 %v6535
      %v6635 = vunpack.c.l.b16 %v6538
      %v6636 = vunpack.c.l.b16 %v6542
      %v6637 = vunpack.c.l.b16 %v6545
      %v6638 = vunpack.c.l.b16 %v6549
      %v6639 = vunpack.c.l.b16 %v6552
      %v6640 = vunpack.c.l.b16 %v6556
      %v6641 = vunpack.c.l.b16 %v6559
      %v6642 = vunpack.c.l.b16 %v6563
      %v6643 = vunpack.c.l.b16 %v6566
      %v6644 = vunpack.c.l.b16 %v6570
      %v6645 = vunpack.c.l.b16 %v6573
      %v6646 = vunpack.c.l.b16 %v6577
      %v6647 = vunpack.c.l.b16 %v6580
      %v6648 = vunpack.c.l.b16 %v6584
      %v6649 = vunpack.c.l.b16 %v6587
      %v6650 = vunpack.c.l.b16 %v6591
      %v6651 = vunpack.c.l.b16 %v6594
      %v6652 = vunpack.c.l.b16 %v6598
      %v6653 = vunpack.c.l.b16 %v6601
      %v6654 = vunpack.c.l.b16 %v6605
      %v6655 = vunpack.c.l.b16 %v6608
      %v6656 = vunpack.c.l.b16 %v6612
      %v6657 = vunpack.c.l.b16 %v6615
      %v6658 = vunpack.c.l.b16 %v6619
      %v6659 = vunpack.c.l.b16 %v6622
      %v6660 = vunpack.c.l.b16 %v6626
      %v6661 = vunpack.c.l.b16 %v6629
      %v6662 = vpack.c.b16 %v6631, %v6630
      %v6663 = vpack.c.b16 %v6633, %v6632
      %v6664 = vpack.c.b16 %v6635, %v6634
      %v6665 = vpack.c.b16 %v6637, %v6636
      %v6666 = vpack.c.b16 %v6639, %v6638
      %v6667 = vpack.c.b16 %v6641, %v6640
      %v6668 = vpack.c.b16 %v6643, %v6642
      %v6669 = vpack.c.b16 %v6645, %v6644
      %v6670 = vpack.c.b16 %v6647, %v6646
      %v6671 = vpack.c.b16 %v6649, %v6648
      %v6672 = vpack.c.b16 %v6651, %v6650
      %v6673 = vpack.c.b16 %v6653, %v6652
      %v6674 = vpack.c.b16 %v6655, %v6654
      %v6675 = vpack.c.b16 %v6657, %v6656
      %v6676 = vpack.c.b16 %v6659, %v6658
      %v6677 = vpack.c.b16 %v6661, %v6660
      %6694 = vst [vmem:[#allocation3 + $0x10] sm:$0xff] %v6662
      %6695 = vst [vmem:[#allocation3 + $0x28] sm:$0xff] %v6663
      %6696 = vst [vmem:[#allocation3 + $0x40] sm:$0xff] %v6664
      %6697 = vst [vmem:[#allocation3 + $0x58] sm:$0xff] %v6665
      %6698 = vst [vmem:[#allocation3 + $0x70] sm:$0xff] %v6666
      %6699 = vst [vmem:[#allocation3 + $0x88] sm:$0xff] %v6667
      %6700 = vst [vmem:[#allocation3 + $0xa0] sm:$0xff] %v6668
      %6701 = vst [vmem:[#allocation3 + $0xb8] sm:$0xff] %v6669
      %6702 = vst [vmem:[#allocation3 + $0xd0] sm:$0xff] %v6670
      %6703 = vst [vmem:[#allocation3 + $0xe8] sm:$0xff] %v6671
      %6704 = vst [vmem:[#allocation3 + $0x100] sm:$0xff] %v6672
      %6705 = vst [vmem:[#allocation3 + $0x118] sm:$0xff] %v6673
      %6706 = vst [vmem:[#allocation3 + $0x130] sm:$0xff] %v6674
      %6707 = vst [vmem:[#allocation3 + $0x148] sm:$0xff] %v6675
      %6708 = vst [vmem:[#allocation3 + $0x160] sm:$0xff] %v6676
      %6709 = vst [vmem:[#allocation3 + $0x178] sm:$0xff] %v6677
      %v6710 = vld [vmem:[#allocation3] sm:$0xff]
      %v6711 = vld [vmem:[#allocation3 + $0x8] sm:$0xff]
      %v6712 = vld [vmem:[#allocation3 + $0x10] sm:$0xff]
      %v6713 = vld [vmem:[#allocation3 + $0x18] sm:$0xff]
      %v6714 = vld [vmem:[#allocation3 + $0x20] sm:$0xff]
      %v6715 = vld [vmem:[#allocation3 + $0x28] sm:$0xff]
      %v6716 = vld [vmem:[#allocation3 + $0x30] sm:$0xff]
      %v6717 = vld [vmem:[#allocation3 + $0x38] sm:$0xff]
      %v6718 = vld [vmem:[#allocation3 + $0x40] sm:$0xff]
      %v6719 = vld [vmem:[#allocation3 + $0x48] sm:$0xff]
      %v6720 = vld [vmem:[#allocation3 + $0x50] sm:$0xff]
      %v6721 = vld [vmem:[#allocation3 + $0x58] sm:$0xff]
      %v6722 = vld [vmem:[#allocation3 + $0x60] sm:$0xff]
      %v6723 = vld [vmem:[#allocation3 + $0x68] sm:$0xff]
      %v6724 = vld [vmem:[#allocation3 + $0x70] sm:$0xff]
      %v6725 = vld [vmem:[#allocation3 + $0x78] sm:$0xff]
      %v6726 = vld [vmem:[#allocation3 + $0x80] sm:$0xff]
      %v6727 = vld [vmem:[#allocation3 + $0x88] sm:$0xff]
      %v6728 = vld [vmem:[#allocation3 + $0x90] sm:$0xff]
      %v6729 = vld [vmem:[#allocation3 + $0x98] sm:$0xff]
      %v6730 = vld [vmem:[#allocation3 + $0xa0] sm:$0xff]
      %v6731 = vld [vmem:[#allocation3 + $0xa8] sm:$0xff]
      %v6732 = vld [vmem:[#allocation3 + $0xb0] sm:$0xff]
      %v6733 = vld [vmem:[#allocation3 + $0xb8] sm:$0xff]
      %v6734 = vld [vmem:[#allocation3 + $0xc0] sm:$0xff]
      %v6735 = vld [vmem:[#allocation3 + $0xc8] sm:$0xff]
      %v6736 = vld [vmem:[#allocation3 + $0xd0] sm:$0xff]
      %v6737 = vld [vmem:[#allocation3 + $0xd8] sm:$0xff]
      %v6738 = vld [vmem:[#allocation3 + $0xe0] sm:$0xff]
      %v6739 = vld [vmem:[#allocation3 + $0xe8] sm:$0xff]
      %v6740 = vld [vmem:[#allocation3 + $0xf0] sm:$0xff]
      %v6741 = vld [vmem:[#allocation3 + $0xf8] sm:$0xff]
      %v6742 = vld [vmem:[#allocation3 + $0x100] sm:$0xff]
      %v6743 = vld [vmem:[#allocation3 + $0x108] sm:$0xff]
      %v6744 = vld [vmem:[#allocation3 + $0x110] sm:$0xff]
      %v6745 = vld [vmem:[#allocation3 + $0x118] sm:$0xff]
      %v6746 = vld [vmem:[#allocation3 + $0x120] sm:$0xff]
      %v6747 = vld [vmem:[#allocation3 + $0x128] sm:$0xff]
      %v6748 = vld [vmem:[#allocation3 + $0x130] sm:$0xff]
      %v6749 = vld [vmem:[#allocation3 + $0x138] sm:$0xff]
      %v6750 = vld [vmem:[#allocation3 + $0x140] sm:$0xff]
      %v6751 = vld [vmem:[#allocation3 + $0x148] sm:$0xff]
      %v6752 = vld [vmem:[#allocation3 + $0x150] sm:$0xff]
      %v6753 = vld [vmem:[#allocation3 + $0x158] sm:$0xff]
      %v6754 = vld [vmem:[#allocation3 + $0x160] sm:$0xff]
      %v6755 = vld [vmem:[#allocation3 + $0x168] sm:$0xff]
      %v6756 = vld [vmem:[#allocation3 + $0x170] sm:$0xff]
      %v6757 = vld [vmem:[#allocation3 + $0x178] sm:$0xff]
      %v6758 = vld [vmem:[%s3] sm:$0xf]
      %v6759 = vld [vmem:[%s3 + $0x4] sm:$0xf]
      %v6760 = vld [vmem:[%s3 + $0x8] sm:$0xf]
      %v6761 = vld [vmem:[%s3 + $0xc] sm:$0xf]
      %v6762 = vld [vmem:[%s3 + $0x10] sm:$0xf]
      %v6763 = vld [vmem:[%s3 + $0x14] sm:$0xf]
      %v6764 = vld [vmem:[%s3 + $0x18] sm:$0xf]
      %v6765 = vld [vmem:[%s3 + $0x1c] sm:$0xf]
      %v6766 = vld [vmem:[%s3 + $0x20] sm:$0xf]
      %v6767 = vld [vmem:[%s3 + $0x24] sm:$0xf]
      %v6768 = vld [vmem:[%s3 + $0x28] sm:$0xf]
      %v6769 = vld [vmem:[%s3 + $0x2c] sm:$0xf]
      %v6770 = vld [vmem:[%s3 + $0x30] sm:$0xf]
      %v6771 = vld [vmem:[%s3 + $0x34] sm:$0xf]
      %v6772 = vld [vmem:[%s3 + $0x38] sm:$0xf]
      %v6773 = vld [vmem:[%s3 + $0x3c] sm:$0xf]
      %v6774 = vld [vmem:[%s3 + $0x40] sm:$0xf]
      %v6775 = vld [vmem:[%s3 + $0x44] sm:$0xf]
      %v6776 = vld [vmem:[%s3 + $0x48] sm:$0xf]
      %v6777 = vld [vmem:[%s3 + $0x4c] sm:$0xf]
      %v6778 = vld [vmem:[%s3 + $0x50] sm:$0xf]
      %v6779 = vld [vmem:[%s3 + $0x54] sm:$0xf]
      %v6780 = vld [vmem:[%s3 + $0x58] sm:$0xf]
      %v6781 = vld [vmem:[%s3 + $0x5c] sm:$0xf]
      %v6782 = vld [vmem:[%s3 + $0x60] sm:$0xf]
      %v6783 = vld [vmem:[%s3 + $0x64] sm:$0xf]
      %v6784 = vld [vmem:[%s3 + $0x68] sm:$0xf]
      %v6785 = vld [vmem:[%s3 + $0x6c] sm:$0xf]
      %v6786 = vld [vmem:[%s3 + $0x70] sm:$0xf]
      %v6787 = vld [vmem:[%s3 + $0x74] sm:$0xf]
      %v6788 = vld [vmem:[%s3 + $0x78] sm:$0xf]
      %v6789 = vld [vmem:[%s3 + $0x7c] sm:$0xf]
      %v6790 = vld [vmem:[%s3 + $0x80] sm:$0xf]
      %v6791 = vld [vmem:[%s3 + $0x84] sm:$0xf]
      %v6792 = vld [vmem:[%s3 + $0x88] sm:$0xf]
      %v6793 = vld [vmem:[%s3 + $0x8c] sm:$0xf]
      %v6794 = vld [vmem:[%s3 + $0x90] sm:$0xf]
      %v6795 = vld [vmem:[%s3 + $0x94] sm:$0xf]
      %v6796 = vld [vmem:[%s3 + $0x98] sm:$0xf]
      %v6797 = vld [vmem:[%s3 + $0x9c] sm:$0xf]
      %v6798 = vld [vmem:[%s3 + $0xa0] sm:$0xf]
      %v6799 = vld [vmem:[%s3 + $0xa4] sm:$0xf]
      %v6800 = vld [vmem:[%s3 + $0xa8] sm:$0xf]
      %v6801 = vld [vmem:[%s3 + $0xac] sm:$0xf]
      %v6802 = vld [vmem:[%s3 + $0xb0] sm:$0xf]
      %v6803 = vld [vmem:[%s3 + $0xb4] sm:$0xf]
      %v6804 = vld [vmem:[%s3 + $0xb8] sm:$0xf]
      %v6805 = vld [vmem:[%s3 + $0xbc] sm:$0xf]
      %v6854 = vunpack.c.l.b16 %v6758
      %v6855 = vunpack.c.l.b16 %v6759
      %v6856 = vunpack.c.l.b16 %v6760
      %v6857 = vunpack.c.l.b16 %v6761
      %v6858 = vunpack.c.l.b16 %v6762
      %v6859 = vunpack.c.l.b16 %v6763
      %v6860 = vunpack.c.l.b16 %v6764
      %v6861 = vunpack.c.l.b16 %v6765
      %v6862 = vunpack.c.l.b16 %v6766
      %v6863 = vunpack.c.l.b16 %v6767
      %v6864 = vunpack.c.l.b16 %v6768
      %v6865 = vunpack.c.l.b16 %v6769
      %v6866 = vunpack.c.l.b16 %v6770
      %v6867 = vunpack.c.l.b16 %v6771
      %v6868 = vunpack.c.l.b16 %v6772
      %v6869 = vunpack.c.l.b16 %v6773
      %v6870 = vunpack.c.l.b16 %v6774
      %v6871 = vunpack.c.l.b16 %v6775
      %v6872 = vunpack.c.l.b16 %v6776
      %v6873 = vunpack.c.l.b16 %v6777
      %v6874 = vunpack.c.l.b16 %v6778
      %v6875 = vunpack.c.l.b16 %v6779
      %v6876 = vunpack.c.l.b16 %v6780
      %v6877 = vunpack.c.l.b16 %v6781
      %v6878 = vunpack.c.l.b16 %v6782
      %v6879 = vunpack.c.l.b16 %v6783
      %v6880 = vunpack.c.l.b16 %v6784
      %v6881 = vunpack.c.l.b16 %v6785
      %v6882 = vunpack.c.l.b16 %v6786
      %v6883 = vunpack.c.l.b16 %v6787
      %v6884 = vunpack.c.l.b16 %v6788
      %v6885 = vunpack.c.l.b16 %v6789
      %v6886 = vunpack.c.l.b16 %v6790
      %v6887 = vunpack.c.l.b16 %v6791
      %v6888 = vunpack.c.l.b16 %v6792
      %v6889 = vunpack.c.l.b16 %v6793
      %v6890 = vunpack.c.l.b16 %v6794
      %v6891 = vunpack.c.l.b16 %v6795
      %v6892 = vunpack.c.l.b16 %v6796
      %v6893 = vunpack.c.l.b16 %v6797
      %v6894 = vunpack.c.l.b16 %v6798
      %v6895 = vunpack.c.l.b16 %v6799
      %v6896 = vunpack.c.l.b16 %v6800
      %v6897 = vunpack.c.l.b16 %v6801
      %v6898 = vunpack.c.l.b16 %v6802
      %v6899 = vunpack.c.l.b16 %v6803
      %v6900 = vunpack.c.l.b16 %v6804
      %v6901 = vunpack.c.l.b16 %v6805
      %v6902 = vpack.c.b16 %v6855, %v6854
      %v6903 = vpack.c.b16 %v6857, %v6856
      %v6904 = vpack.c.b16 %v6859, %v6858
      %v6905 = vpack.c.b16 %v6861, %v6860
      %v6906 = vpack.c.b16 %v6863, %v6862
      %v6907 = vpack.c.b16 %v6865, %v6864
      %v6908 = vpack.c.b16 %v6867, %v6866
      %v6909 = vpack.c.b16 %v6869, %v6868
      %v6910 = vpack.c.b16 %v6871, %v6870
      %v6911 = vpack.c.b16 %v6873, %v6872
      %v6912 = vpack.c.b16 %v6875, %v6874
      %v6913 = vpack.c.b16 %v6877, %v6876
      %v6914 = vpack.c.b16 %v6879, %v6878
      %v6915 = vpack.c.b16 %v6881, %v6880
      %v6916 = vpack.c.b16 %v6883, %v6882
      %v6917 = vpack.c.b16 %v6885, %v6884
      %v6918 = vpack.c.b16 %v6887, %v6886
      %v6919 = vpack.c.b16 %v6889, %v6888
      %v6920 = vpack.c.b16 %v6891, %v6890
      %v6921 = vpack.c.b16 %v6893, %v6892
      %v6922 = vpack.c.b16 %v6895, %v6894
      %v6923 = vpack.c.b16 %v6897, %v6896
      %v6924 = vpack.c.b16 %v6899, %v6898
      %v6925 = vpack.c.b16 %v6901, %v6900
      %6950 = vmatprep.subr.bf16.mxu0 0
      %6951 = vmatpush1.bf16.msra.mxu0 %v6902
      %6952 = vmatprep.subr.bf16.mxu0 0
      %6953 = vmatpush1.bf16.msra.mxu0 %v6903
      %6954 = vmatprep.subr.bf16.mxu0 0
      %6955 = vmatpush1.bf16.msra.mxu0 %v6904
      %6956 = vmatprep.subr.bf16.mxu0 0
      %6957 = vmatpush1.bf16.msra.mxu0 %v6905
      %6958 = vmatprep.subr.bf16.mxu0 0
      %6959 = vmatpush1.bf16.msra.mxu0 %v6906
      %6960 = vmatprep.subr.bf16.mxu0 0
      %6961 = vmatpush1.bf16.msra.mxu0 %v6907
      %6962 = vmatprep.subr.bf16.mxu0 0
      %6963 = vmatpush1.bf16.msra.mxu0 %v6908
      %6964 = vmatprep.subr.bf16.mxu0 0
      %6965 = vmatpush1.bf16.msra.mxu0 %v6909
      %6966 = vmatprep.subr.bf16.mxu0 0
      %6967 = vmatpush1.bf16.msra.mxu0 %v6910
      %6968 = vmatprep.subr.bf16.mxu0 0
      %6969 = vmatpush1.bf16.msra.mxu0 %v6911
      %6970 = vmatprep.subr.bf16.mxu0 0
      %6971 = vmatpush1.bf16.msra.mxu0 %v6912
      %6972 = vmatprep.subr.bf16.mxu0 0
      %6973 = vmatpush1.bf16.msra.mxu0 %v6913
      %6974 = vmatprep.subr.bf16.mxu0 0
      %6975 = vmatpush1.bf16.msra.mxu0 %v6914
      %6976 = vmatprep.subr.bf16.mxu0 0
      %6977 = vmatpush1.bf16.msra.mxu0 %v6915
      %6978 = vmatprep.subr.bf16.mxu0 0
      %6979 = vmatpush1.bf16.msra.mxu0 %v6916
      %6980 = vmatprep.subr.bf16.mxu0 0
      %6981 = vmatpush1.bf16.msra.mxu0 %v6917
      %6982 = vmatprep.mubr.bf16.mxu0 %v6711
      %6983 = vmatmul.mubr.bf16.gmra.mrb[0].mxu0 %v6710
      %v6984 = vpop.f32.mrb[0].mxu0
      %v6985 = vadd.f32 0.0, %v6984
      %v6986 = vpop.f32.mrb[0].mxu0
      %v6987 = vpop.f32.mrb[0].mxu0
      %v6988 = vadd.f32 0.0, %v6987
      %v6989 = vpop.f32.mrb[0].mxu0
      %6990 = vmatprep.mubr.bf16.mxu0 %v6714
      %6991 = vmatmul.mubr.bf16.gmra.mrb[0].mxu0 %v6713
      %v6992 = vpop.f32.mrb[0].mxu0
      %v6993 = vadd.f32 0.0, %v6992
      %v6994 = vpop.f32.mrb[0].mxu0
      %v6995 = vpop.f32.mrb[0].mxu0
      %v6996 = vadd.f32 0.0, %v6995
      %v6997 = vpop.f32.mrb[0].mxu0
      %6998 = vmatprep.mubr.bf16.mxu0 %v6717
      %6999 = vmatmul.mubr.bf16.gmra.mrb[0].mxu0 %v6716
      %v7000 = vpop.f32.mrb[0].mxu0
      %v7001 = vadd.f32 0.0, %v7000
      %v7002 = vpop.f32.mrb[0].mxu0
      %v7003 = vpop.f32.mrb[0].mxu0
      %v7004 = vadd.f32 0.0, %v7003
      %v7005 = vpop.f32.mrb[0].mxu0
      %7006 = vmatprep.mubr.bf16.mxu0 %v6720
      %7007 = vmatmul.mubr.bf16.gmra.mrb[0].mxu0 %v6719
      %v7008 = vpop.f32.mrb[0].mxu0
      %v7009 = vadd.f32 0.0, %v7008
      %v7010 = vpop.f32.mrb[0].mxu0
      %v7011 = vpop.f32.mrb[0].mxu0
      %v7012 = vadd.f32 0.0, %v7011
      %v7013 = vpop.f32.mrb[0].mxu0
      %7014 = vmatprep.mubr.bf16.mxu0 %v6723
      %7015 = vmatmul.mubr.bf16.gmra.mrb[0].mxu0 %v6722
      %v7016 = vpop.f32.mrb[0].mxu0
      %v7017 = vadd.f32 0.0, %v7016
      %v7018 = vpop.f32.mrb[0].mxu0
      %v7019 = vpop.f32.mrb[0].mxu0
      %v7020 = vadd.f32 0.0, %v7019
      %v7021 = vpop.f32.mrb[0].mxu0
      %7022 = vmatprep.mubr.bf16.mxu0 %v6726
      %7023 = vmatmul.mubr.bf16.gmra.mrb[0].mxu0 %v6725
      %v7024 = vpop.f32.mrb[0].mxu0
      %v7025 = vadd.f32 0.0, %v7024
      %v7026 = vpop.f32.mrb[0].mxu0
      %v7027 = vpop.f32.mrb[0].mxu0
      %v7028 = vadd.f32 0.0, %v7027
      %v7029 = vpop.f32.mrb[0].mxu0
      %7030 = vmatprep.mubr.bf16.mxu0 %v6729
      %7031 = vmatmul.mubr.bf16.gmra.mrb[0].mxu0 %v6728
      %v7032 = vpop.f32.mrb[0].mxu0
      %v7033 = vadd.f32 0.0, %v7032
      %v7034 = vpop.f32.mrb[0].mxu0
      %v7035 = vpop.f32.mrb[0].mxu0
      %v7036 = vadd.f32 0.0, %v7035
      %v7037 = vpop.f32.mrb[0].mxu0
      %7038 = vmatprep.mubr.bf16.mxu0 %v6732
      %7039 = vmatmul.mubr.bf16.gmra.mrb[0].mxu0 %v6731
      %v7040 = vpop.f32.mrb[0].mxu0
      %v7041 = vadd.f32 0.0, %v7040
      %v7042 = vpop.f32.mrb[0].mxu0
      %v7043 = vpop.f32.mrb[0].mxu0
      %v7044 = vadd.f32 0.0, %v7043
      %v7045 = vpop.f32.mrb[0].mxu0
      %7046 = vmatprep.mubr.bf16.mxu0 %v6735
      %7047 = vmatmul.mubr.bf16.gmra.mrb[0].mxu0 %v6734
      %v7048 = vpop.f32.mrb[0].mxu0
      %v7049 = vadd.f32 0.0, %v7048
      %v7050 = vpop.f32.mrb[0].mxu0
      %v7051 = vpop.f32.mrb[0].mxu0
      %v7052 = vadd.f32 0.0, %v7051
      %v7053 = vpop.f32.mrb[0].mxu0
      %7054 = vmatprep.mubr.bf16.mxu0 %v6738
      %7055 = vmatmul.mubr.bf16.gmra.mrb[0].mxu0 %v6737
      %v7056 = vpop.f32.mrb[0].mxu0
      %v7057 = vadd.f32 0.0, %v7056
      %v7058 = vpop.f32.mrb[0].mxu0
      %v7059 = vpop.f32.mrb[0].mxu0
      %v7060 = vadd.f32 0.0, %v7059
      %v7061 = vpop.f32.mrb[0].mxu0
      %7062 = vmatprep.mubr.bf16.mxu0 %v6741
      %7063 = vmatmul.mubr.bf16.gmra.mrb[0].mxu0 %v6740
      %v7064 = vpop.f32.mrb[0].mxu0
      %v7065 = vadd.f32 0.0, %v7064
      %v7066 = vpop.f32.mrb[0].mxu0
      %v7067 = vpop.f32.mrb[0].mxu0
      %v7068 = vadd.f32 0.0, %v7067
      %v7069 = vpop.f32.mrb[0].mxu0
      %7070 = vmatprep.mubr.bf16.mxu0 %v6744
      %7071 = vmatmul.mubr.bf16.gmra.mrb[0].mxu0 %v6743
      %v7072 = vpop.f32.mrb[0].mxu0
      %v7073 = vadd.f32 0.0, %v7072
      %v7074 = vpop.f32.mrb[0].mxu0
      %v7075 = vpop.f32.mrb[0].mxu0
      %v7076 = vadd.f32 0.0, %v7075
      %v7077 = vpop.f32.mrb[0].mxu0
      %7078 = vmatprep.mubr.bf16.mxu0 %v6747
      %7079 = vmatmul.mubr.bf16.gmra.mrb[0].mxu0 %v6746
      %v7080 = vpop.f32.mrb[0].mxu0
      %v7081 = vadd.f32 0.0, %v7080
      %v7082 = vpop.f32.mrb[0].mxu0
      %v7083 = vpop.f32.mrb[0].mxu0
      %v7084 = vadd.f32 0.0, %v7083
      %v7085 = vpop.f32.mrb[0].mxu0
      %7086 = vmatprep.mubr.bf16.mxu0 %v6750
      %7087 = vmatmul.mubr.bf16.gmra.mrb[0].mxu0 %v6749
      %v7088 = vpop.f32.mrb[0].mxu0
      %v7089 = vadd.f32 0.0, %v7088
      %v7090 = vpop.f32.mrb[0].mxu0
      %v7091 = vpop.f32.mrb[0].mxu0
      %v7092 = vadd.f32 0.0, %v7091
      %v7093 = vpop.f32.mrb[0].mxu0
      %7094 = vmatprep.mubr.bf16.mxu0 %v6753
      %7095 = vmatmul.mubr.bf16.gmra.mrb[0].mxu0 %v6752
      %v7096 = vpop.f32.mrb[0].mxu0
      %v7097 = vadd.f32 0.0, %v7096
      %v7098 = vpop.f32.mrb[0].mxu0
      %v7099 = vpop.f32.mrb[0].mxu0
      %v7100 = vadd.f32 0.0, %v7099
      %v7101 = vpop.f32.mrb[0].mxu0
      %7102 = vmatprep.mubr.bf16.mxu0 %v6756
      %7103 = vmatmul.mubr.bf16.gmra.mrb[0].mxu0 %v6755
      %v7104 = vpop.f32.mrb[0].mxu0
      %v7105 = vadd.f32 0.0, %v7104
      %v7106 = vpop.f32.mrb[0].mxu0
      %v7107 = vpop.f32.mrb[0].mxu0
      %v7108 = vadd.f32 0.0, %v7107
      %v7109 = vpop.f32.mrb[0].mxu0
      %7110 = vdwg.mxu0
      %7111 = vmatprep.subr.bf16.mxu0 0
      %7112 = vmatpush1.bf16.msra.mxu0 %v6918
      %7113 = vmatprep.subr.bf16.mxu0 0
      %7114 = vmatpush1.bf16.msra.mxu0 %v6919
      %7115 = vmatprep.subr.bf16.mxu0 0
      %7116 = vmatpush1.bf16.msra.mxu0 %v6920
      %7117 = vmatprep.subr.bf16.mxu0 0
      %7118 = vmatpush1.bf16.msra.mxu0 %v6921
      %7119 = vmatprep.subr.bf16.mxu0 0
      %7120 = vmatpush1.bf16.msra.mxu0 %v6922
      %7121 = vmatprep.subr.bf16.mxu0 0
      %7122 = vmatpush1.bf16.msra.mxu0 %v6923
      %7123 = vmatprep.subr.bf16.mxu0 0
      %7124 = vmatpush1.bf16.msra.mxu0 %v6924
      %7125 = vmatprep.subr.bf16.mxu0 0
      %7126 = vmatpush1.bf16.msra.mxu0 %v6925
      %7127 = vmatprep.subr.bf16.mxu0 0
      %7128 = vmatpush1.bf16.msra.mxu0 0
      %7129 = vmatprep.subr.bf16.mxu0 0
      %7130 = vmatpush1.bf16.msra.mxu0 0
      %7131 = vmatprep.subr.bf16.mxu0 0
      %7132 = vmatpush1.bf16.msra.mxu0 0
      %7133 = vmatprep.subr.bf16.mxu0 0
      %7134 = vmatpush1.bf16.msra.mxu0 0
      %7135 = vmatprep.subr.bf16.mxu0 0
      %7136 = vmatpush1.bf16.msra.mxu0 0
      %7137 = vmatprep.subr.bf16.mxu0 0
      %7138 = vmatpush1.bf16.msra.mxu0 0
      %7139 = vmatprep.subr.bf16.mxu0 0
      %7140 = vmatpush1.bf16.msra.mxu0 0
      %7141 = vmatprep.subr.bf16.mxu0 0
      %7142 = vmatpush1.bf16.msra.mxu0 0
      %7143 = vmatprep.mubr.bf16.mxu0 0
      %7144 = vmatmul.mubr.bf16.gmra.mrb[0].mxu0 %v6712
      %v7145 = vpop.f32.mrb[0].mxu0
      %v7146 = vadd.f32 %v6985, %v7145
      %v7147 = vpop.f32.mrb[0].mxu0
      %v7148 = vpop.f32.mrb[0].mxu0
      %v7149 = vadd.f32 %v6988, %v7148
      %v7150 = vpop.f32.mrb[0].mxu0
      %7151 = vmatprep.mubr.bf16.mxu0 0
      %7152 = vmatmul.mubr.bf16.gmra.mrb[0].mxu0 %v6715
      %v7153 = vpop.f32.mrb[0].mxu0
      %v7154 = vadd.f32 %v6993, %v7153
      %v7155 = vpop.f32.mrb[0].mxu0
      %v7156 = vpop.f32.mrb[0].mxu0
      %v7157 = vadd.f32 %v6996, %v7156
      %v7158 = vpop.f32.mrb[0].mxu0
      %7159 = vmatprep.mubr.bf16.mxu0 0
      %7160 = vmatmul.mubr.bf16.gmra.mrb[0].mxu0 %v6718
      %v7161 = vpop.f32.mrb[0].mxu0
      %v7162 = vadd.f32 %v7001, %v7161
      %v7163 = vpop.f32.mrb[0].mxu0
      %v7164 = vpop.f32.mrb[0].mxu0
      %v7165 = vadd.f32 %v7004, %v7164
      %v7166 = vpop.f32.mrb[0].mxu0
      %7167 = vmatprep.mubr.bf16.mxu0 0
      %7168 = vmatmul.mubr.bf16.gmra.mrb[0].mxu0 %v6721
      %v7169 = vpop.f32.mrb[0].mxu0
      %v7170 = vadd.f32 %v7009, %v7169
      %v7171 = vpop.f32.mrb[0].mxu0
      %v7172 = vpop.f32.mrb[0].mxu0
      %v7173 = vadd.f32 %v7012, %v7172
      %v7174 = vpop.f32.mrb[0].mxu0
      %7175 = vmatprep.mubr.bf16.mxu0 0
      %7176 = vmatmul.mubr.bf16.gmra.mrb[0].mxu0 %v6724
      %v7177 = vpop.f32.mrb[0].mxu0
      %v7178 = vadd.f32 %v7017, %v7177
      %v7179 = vpop.f32.mrb[0].mxu0
      %v7180 = vpop.f32.mrb[0].mxu0
      %v7181 = vadd.f32 %v7020, %v7180
      %v7182 = vpop.f32.mrb[0].mxu0
      %7183 = vmatprep.mubr.bf16.mxu0 0
      %7184 = vmatmul.mubr.bf16.gmra.mrb[0].mxu0 %v6727
      %v7185 = vpop.f32.mrb[0].mxu0
      %v7186 = vadd.f32 %v7025, %v7185
      %v7187 = vpop.f32.mrb[0].mxu0
      %v7188 = vpop.f32.mrb[0].mxu0
      %v7189 = vadd.f32 %v7028, %v7188
      %v7190 = vpop.f32.mrb[0].mxu0
      %7191 = vmatprep.mubr.bf16.mxu0 0
      %7192 = vmatmul.mubr.bf16.gmra.mrb[0].mxu0 %v6730
      %v7193 = vpop.f32.mrb[0].mxu0
      %v7194 = vadd.f32 %v7033, %v7193
      %v7195 = vpop.f32.mrb[0].mxu0
      %v7196 = vpop.f32.mrb[0].mxu0
      %v7197 = vadd.f32 %v7036, %v7196
      %v7198 = vpop.f32.mrb[0].mxu0
      %7199 = vmatprep.mubr.bf16.mxu0 0
      %7200 = vmatmul.mubr.bf16.gmra.mrb[0].mxu0 %v6733
      %v7201 = vpop.f32.mrb[0].mxu0
      %v7202 = vadd.f32 %v7041, %v7201
      %v7203 = vpop.f32.mrb[0].mxu0
      %v7204 = vpop.f32.mrb[0].mxu0
      %v7205 = vadd.f32 %v7044, %v7204
      %v7206 = vpop.f32.mrb[0].mxu0
      %7207 = vmatprep.mubr.bf16.mxu0 0
      %7208 = vmatmul.mubr.bf16.gmra.mrb[0].mxu0 %v6736
      %v7209 = vpop.f32.mrb[0].mxu0
      %v7210 = vadd.f32 %v7049, %v7209
      %v7211 = vpop.f32.mrb[0].mxu0
      %v7212 = vpop.f32.mrb[0].mxu0
      %v7213 = vadd.f32 %v7052, %v7212
      %v7214 = vpop.f32.mrb[0].mxu0
      %7215 = vmatprep.mubr.bf16.mxu0 0
      %7216 = vmatmul.mubr.bf16.gmra.mrb[0].mxu0 %v6739
      %v7217 = vpop.f32.mrb[0].mxu0
      %v7218 = vadd.f32 %v7057, %v7217
      %v7219 = vpop.f32.mrb[0].mxu0
      %v7220 = vpop.f32.mrb[0].mxu0
      %v7221 = vadd.f32 %v7060, %v7220
      %v7222 = vpop.f32.mrb[0].mxu0
      %7223 = vmatprep.mubr.bf16.mxu0 0
      %7224 = vmatmul.mubr.bf16.gmra.mrb[0].mxu0 %v6742
      %v7225 = vpop.f32.mrb[0].mxu0
      %v7226 = vadd.f32 %v7065, %v7225
      %v7227 = vpop.f32.mrb[0].mxu0
      %v7228 = vpop.f32.mrb[0].mxu0
      %v7229 = vadd.f32 %v7068, %v7228
      %v7230 = vpop.f32.mrb[0].mxu0
      %7231 = vmatprep.mubr.bf16.mxu0 0
      %7232 = vmatmul.mubr.bf16.gmra.mrb[0].mxu0 %v6745
      %v7233 = vpop.f32.mrb[0].mxu0
      %v7234 = vadd.f32 %v7073, %v7233
      %v7235 = vpop.f32.mrb[0].mxu0
      %v7236 = vpop.f32.mrb[0].mxu0
      %v7237 = vadd.f32 %v7076, %v7236
      %v7238 = vpop.f32.mrb[0].mxu0
      %7239 = vmatprep.mubr.bf16.mxu0 0
      %7240 = vmatmul.mubr.bf16.gmra.mrb[0].mxu0 %v6748
      %v7241 = vpop.f32.mrb[0].mxu0
      %v7242 = vadd.f32 %v7081, %v7241
      %v7243 = vpop.f32.mrb[0].mxu0
      %v7244 = vpop.f32.mrb[0].mxu0
      %v7245 = vadd.f32 %v7084, %v7244
      %v7246 = vpop.f32.mrb[0].mxu0
      %7247 = vmatprep.mubr.bf16.mxu0 0
      %7248 = vmatmul.mubr.bf16.gmra.mrb[0].mxu0 %v6751
      %v7249 = vpop.f32.mrb[0].mxu0
      %v7250 = vadd.f32 %v7089, %v7249
      %v7251 = vpop.f32.mrb[0].mxu0
      %v7252 = vpop.f32.mrb[0].mxu0
      %v7253 = vadd.f32 %v7092, %v7252
      %v7254 = vpop.f32.mrb[0].mxu0
      %7255 = vmatprep.mubr.bf16.mxu0 0
      %7256 = vmatmul.mubr.bf16.gmra.mrb[0].mxu0 %v6754
      %v7257 = vpop.f32.mrb[0].mxu0
      %v7258 = vadd.f32 %v7097, %v7257
      %v7259 = vpop.f32.mrb[0].mxu0
      %v7260 = vpop.f32.mrb[0].mxu0
      %v7261 = vadd.f32 %v7100, %v7260
      %v7262 = vpop.f32.mrb[0].mxu0
      %7263 = vmatprep.mubr.bf16.mxu0 0
      %7264 = vmatmul.mubr.bf16.gmra.mrb[0].mxu0 %v6757
      %v7265 = vpop.f32.mrb[0].mxu0
      %v7266 = vadd.f32 %v7105, %v7265
      %v7267 = vpop.f32.mrb[0].mxu0
      %v7268 = vpop.f32.mrb[0].mxu0
      %v7269 = vadd.f32 %v7108, %v7268
      %v7270 = vpop.f32.mrb[0].mxu0
      %7271 = vdwg.mxu0
      %7272 = vst [vmem:[#allocation4] sm:$0xff] %v7146
      %7273 = vst [vmem:[#allocation4 + $0x8] sm:$0xff] %v7149
      %7274 = vst [vmem:[#allocation4 + $0x10] sm:$0xff] %v7154
      %7275 = vst [vmem:[#allocation4 + $0x18] sm:$0xff] %v7157
      %7276 = vst [vmem:[#allocation4 + $0x20] sm:$0xff] %v7162
      %7277 = vst [vmem:[#allocation4 + $0x28] sm:$0xff] %v7165
      %7278 = vst [vmem:[#allocation4 + $0x30] sm:$0xff] %v7170
      %7279 = vst [vmem:[#allocation4 + $0x38] sm:$0xff] %v7173
      %7280 = vst [vmem:[#allocation4 + $0x40] sm:$0xff] %v7178
      %7281 = vst [vmem:[#allocation4 + $0x48] sm:$0xff] %v7181
      %7282 = vst [vmem:[#allocation4 + $0x50] sm:$0xff] %v7186
      %7283 = vst [vmem:[#allocation4 + $0x58] sm:$0xff] %v7189
      %7284 = vst [vmem:[#allocation4 + $0x60] sm:$0xff] %v7194
      %7285 = vst [vmem:[#allocation4 + $0x68] sm:$0xff] %v7197
      %7286 = vst [vmem:[#allocation4 + $0x70] sm:$0xff] %v7202
      %7287 = vst [vmem:[#allocation4 + $0x78] sm:$0xff] %v7205
      %7288 = vst [vmem:[#allocation4 + $0x80] sm:$0xff] %v7210
      %7289 = vst [vmem:[#allocation4 + $0x88] sm:$0xff] %v7213
      %7290 = vst [vmem:[#allocation4 + $0x90] sm:$0xff] %v7218
      %7291 = vst [vmem:[#allocation4 + $0x98] sm:$0xff] %v7221
      %7292 = vst [vmem:[#allocation4 + $0xa0] sm:$0xff] %v7226
      %7293 = vst [vmem:[#allocation4 + $0xa8] sm:$0xff] %v7229
      %7294 = vst [vmem:[#allocation4 + $0xb0] sm:$0xff] %v7234
      %7295 = vst [vmem:[#allocation4 + $0xb8] sm:$0xff] %v7237
      %7296 = vst [vmem:[#allocation4 + $0xc0] sm:$0xff] %v7242
      %7297 = vst [vmem:[#allocation4 + $0xc8] sm:$0xff] %v7245
      %7298 = vst [vmem:[#allocation4 + $0xd0] sm:$0xff] %v7250
      %7299 = vst [vmem:[#allocation4 + $0xd8] sm:$0xff] %v7253
      %7300 = vst [vmem:[#allocation4 + $0xe0] sm:$0xff] %v7258
      %7301 = vst [vmem:[#allocation4 + $0xe8] sm:$0xff] %v7261
      %7302 = vst [vmem:[#allocation4 + $0xf0] sm:$0xff] %v7266
      %7303 = vst [vmem:[#allocation4 + $0xf8] sm:$0xff] %v7269
      %v7304 = vld [vmem:[%s233] sm:$0xf]
      %v7305 = vld [vmem:[%s233 + $0x4] sm:$0xf]
      %v7306 = vld [vmem:[%s233 + $0x8] sm:$0xf]
      %v7307 = vld [vmem:[%s233 + $0xc] sm:$0xf]
      %v7308 = vld [vmem:[%s233 + $0x10] sm:$0xf]
      %v7309 = vld [vmem:[%s233 + $0x14] sm:$0xf]
      %v7310 = vld [vmem:[%s233 + $0x18] sm:$0xf]
      %v7311 = vld [vmem:[%s233 + $0x1c] sm:$0xf]
      %v7312 = vld [vmem:[%s233 + $0x20] sm:$0xf]
      %v7313 = vld [vmem:[%s233 + $0x24] sm:$0xf]
      %v7314 = vld [vmem:[%s233 + $0x28] sm:$0xf]
      %v7315 = vld [vmem:[%s233 + $0x2c] sm:$0xf]
      %v7316 = vld [vmem:[%s233 + $0x30] sm:$0xf]
      %v7317 = vld [vmem:[%s233 + $0x34] sm:$0xf]
      %v7318 = vld [vmem:[%s233 + $0x38] sm:$0xf]
      %v7319 = vld [vmem:[%s233 + $0x3c] sm:$0xf]
      %v7320 = vld [vmem:[%s233 + $0x40] sm:$0xf]
      %v7321 = vld [vmem:[%s233 + $0x44] sm:$0xf]
      %v7322 = vld [vmem:[%s233 + $0x48] sm:$0xf]
      %v7323 = vld [vmem:[%s233 + $0x4c] sm:$0xf]
      %v7324 = vld [vmem:[%s233 + $0x50] sm:$0xf]
      %v7325 = vld [vmem:[%s233 + $0x54] sm:$0xf]
      %v7326 = vld [vmem:[%s233 + $0x58] sm:$0xf]
      %v7327 = vld [vmem:[%s233 + $0x5c] sm:$0xf]
      %v7328 = vld [vmem:[%s233 + $0x60] sm:$0xf]
      %v7329 = vld [vmem:[%s233 + $0x64] sm:$0xf]
      %v7330 = vld [vmem:[%s233 + $0x68] sm:$0xf]
      %v7331 = vld [vmem:[%s233 + $0x6c] sm:$0xf]
      %v7332 = vld [vmem:[%s233 + $0x70] sm:$0xf]
      %v7333 = vld [vmem:[%s233 + $0x74] sm:$0xf]
      %v7334 = vld [vmem:[%s233 + $0x78] sm:$0xf]
      %v7335 = vld [vmem:[%s233 + $0x7c] sm:$0xf]
      %v7336 = vld [vmem:[%s233 + $0x80] sm:$0xf]
      %v7337 = vld [vmem:[%s233 + $0x84] sm:$0xf]
      %v7338 = vld [vmem:[%s233 + $0x88] sm:$0xf]
      %v7339 = vld [vmem:[%s233 + $0x8c] sm:$0xf]
      %v7340 = vld [vmem:[%s233 + $0x90] sm:$0xf]
      %v7341 = vld [vmem:[%s233 + $0x94] sm:$0xf]
      %v7342 = vld [vmem:[%s233 + $0x98] sm:$0xf]
      %v7343 = vld [vmem:[%s233 + $0x9c] sm:$0xf]
      %v7344 = vld [vmem:[%s233 + $0xa0] sm:$0xf]
      %v7345 = vld [vmem:[%s233 + $0xa4] sm:$0xf]
      %v7346 = vld [vmem:[%s233 + $0xa8] sm:$0xf]
      %v7347 = vld [vmem:[%s233 + $0xac] sm:$0xf]
      %v7348 = vld [vmem:[%s233 + $0xb0] sm:$0xf]
      %v7349 = vld [vmem:[%s233 + $0xb4] sm:$0xf]
      %v7350 = vld [vmem:[%s233 + $0xb8] sm:$0xf]
      %v7351 = vld [vmem:[%s233 + $0xbc] sm:$0xf]
      %v7384 = vunpack.c.l.b16 %v7304
      %v7385 = vunpack.c.l.b16 %v7305
      %v7386 = vunpack.c.l.b16 %v7307
      %v7387 = vunpack.c.l.b16 %v7308
      %v7388 = vunpack.c.l.b16 %v7310
      %v7389 = vunpack.c.l.b16 %v7311
      %v7390 = vunpack.c.l.b16 %v7313
      %v7391 = vunpack.c.l.b16 %v7314
      %v7392 = vunpack.c.l.b16 %v7316
      %v7393 = vunpack.c.l.b16 %v7317
      %v7394 = vunpack.c.l.b16 %v7319
      %v7395 = vunpack.c.l.b16 %v7320
      %v7396 = vunpack.c.l.b16 %v7322
      %v7397 = vunpack.c.l.b16 %v7323
      %v7398 = vunpack.c.l.b16 %v7325
      %v7399 = vunpack.c.l.b16 %v7326
      %v7400 = vunpack.c.l.b16 %v7328
      %v7401 = vunpack.c.l.b16 %v7329
      %v7402 = vunpack.c.l.b16 %v7331
      %v7403 = vunpack.c.l.b16 %v7332
      %v7404 = vunpack.c.l.b16 %v7334
      %v7405 = vunpack.c.l.b16 %v7335
      %v7406 = vunpack.c.l.b16 %v7337
      %v7407 = vunpack.c.l.b16 %v7338
      %v7408 = vunpack.c.l.b16 %v7340
      %v7409 = vunpack.c.l.b16 %v7341
      %v7410 = vunpack.c.l.b16 %v7343
      %v7411 = vunpack.c.l.b16 %v7344
      %v7412 = vunpack.c.l.b16 %v7346
      %v7413 = vunpack.c.l.b16 %v7347
      %v7414 = vunpack.c.l.b16 %v7349
      %v7415 = vunpack.c.l.b16 %v7350
      %v7416 = vpack.c.b16 %v7385, %v7384
      %v7417 = vpack.c.b16 %v7387, %v7386
      %v7418 = vpack.c.b16 %v7389, %v7388
      %v7419 = vpack.c.b16 %v7391, %v7390
      %v7420 = vpack.c.b16 %v7393, %v7392
      %v7421 = vpack.c.b16 %v7395, %v7394
      %v7422 = vpack.c.b16 %v7397, %v7396
      %v7423 = vpack.c.b16 %v7399, %v7398
      %v7424 = vpack.c.b16 %v7401, %v7400
      %v7425 = vpack.c.b16 %v7403, %v7402
      %v7426 = vpack.c.b16 %v7405, %v7404
      %v7427 = vpack.c.b16 %v7407, %v7406
      %v7428 = vpack.c.b16 %v7409, %v7408
      %v7429 = vpack.c.b16 %v7411, %v7410
      %v7430 = vpack.c.b16 %v7413, %v7412
      %v7431 = vpack.c.b16 %v7415, %v7414
      %7448 = vst [vmem:[#allocation3] sm:$0xff] %v7416
      %7449 = vst [vmem:[#allocation3 + $0x18] sm:$0xff] %v7417
      %7450 = vst [vmem:[#allocation3 + $0x30] sm:$0xff] %v7418
      %7451 = vst [vmem:[#allocation3 + $0x48] sm:$0xff] %v7419
      %7452 = vst [vmem:[#allocation3 + $0x60] sm:$0xff] %v7420
      %7453 = vst [vmem:[#allocation3 + $0x78] sm:$0xff] %v7421
      %7454 = vst [vmem:[#allocation3 + $0x90] sm:$0xff] %v7422
      %7455 = vst [vmem:[#allocation3 + $0xa8] sm:$0xff] %v7423
      %7456 = vst [vmem:[#allocation3 + $0xc0] sm:$0xff] %v7424
      %7457 = vst [vmem:[#allocation3 + $0xd8] sm:$0xff] %v7425
      %7458 = vst [vmem:[#allocation3 + $0xf0] sm:$0xff] %v7426
      %7459 = vst [vmem:[#allocation3 + $0x108] sm:$0xff] %v7427
      %7460 = vst [vmem:[#allocation3 + $0x120] sm:$0xff] %v7428
      %7461 = vst [vmem:[#allocation3 + $0x138] sm:$0xff] %v7429
      %7462 = vst [vmem:[#allocation3 + $0x150] sm:$0xff] %v7430
      %7463 = vst [vmem:[#allocation3 + $0x168] sm:$0xff] %v7431
      %v7465 = vshrl.u32 %v7304, 16
      %v7467 = vrot.slane %v7465, 4
      %v7468 = vshll.u32 %v7304, 16
      %v7470 = vrot.slane %v7468, 5
      %v7471 = vor.u32 %v7467, %v7470
      %v7472 = vrot.slane %v7471, 4
      %v7474 = vshll.u32 %v7305, 16
      %v7476 = vrot.slane %v7474, 5
      %v7477 = vsel %vm964, %v7472, %v7476
      %v7478 = vshrl.u32 %v7305, 16
      %v7480 = vrot.slane %v7478, 4
      %v7481 = vor.u32 %v7480, %v7476
      %v7482 = vrot.slane %v7481, 4
      %v7484 = vshll.u32 %v7306, 16
      %v7486 = vrot.slane %v7484, 5
      %v7487 = vsel %vm964, %v7482, %v7486
      %v7489 = vshrl.u32 %v7307, 16
      %v7491 = vrot.slane %v7489, 4
      %v7492 = vshll.u32 %v7307, 16
      %v7494 = vrot.slane %v7492, 5
      %v7495 = vor.u32 %v7491, %v7494
      %v7496 = vrot.slane %v7495, 4
      %v7498 = vshll.u32 %v7308, 16
      %v7500 = vrot.slane %v7498, 5
      %v7501 = vsel %vm964, %v7496, %v7500
      %v7502 = vshrl.u32 %v7308, 16
      %v7504 = vrot.slane %v7502, 4
      %v7505 = vor.u32 %v7504, %v7500
      %v7506 = vrot.slane %v7505, 4
      %v7508 = vshll.u32 %v7309, 16
      %v7510 = vrot.slane %v7508, 5
      %v7511 = vsel %vm964, %v7506, %v7510
      %v7513 = vshrl.u32 %v7310, 16
      %v7515 = vrot.slane %v7513, 4
      %v7516 = vshll.u32 %v7310, 16
      %v7518 = vrot.slane %v7516, 5
      %v7519 = vor.u32 %v7515, %v7518
      %v7520 = vrot.slane %v7519, 4
      %v7522 = vshll.u32 %v7311, 16
      %v7524 = vrot.slane %v7522, 5
      %v7525 = vsel %vm964, %v7520, %v7524
      %v7526 = vshrl.u32 %v7311, 16
      %v7528 = vrot.slane %v7526, 4
      %v7529 = vor.u32 %v7528, %v7524
      %v7530 = vrot.slane %v7529, 4
      %v7532 = vshll.u32 %v7312, 16
      %v7534 = vrot.slane %v7532, 5
      %v7535 = vsel %vm964, %v7530, %v7534
      %v7537 = vshrl.u32 %v7313, 16
      %v7539 = vrot.slane %v7537, 4
      %v7540 = vshll.u32 %v7313, 16
      %v7542 = vrot.slane %v7540, 5
      %v7543 = vor.u32 %v7539, %v7542
      %v7544 = vrot.slane %v7543, 4
      %v7546 = vshll.u32 %v7314, 16
      %v7548 = vrot.slane %v7546, 5
      %v7549 = vsel %vm964, %v7544, %v7548
      %v7550 = vshrl.u32 %v7314, 16
      %v7552 = vrot.slane %v7550, 4
      %v7553 = vor.u32 %v7552, %v7548
      %v7554 = vrot.slane %v7553, 4
      %v7556 = vshll.u32 %v7315, 16
      %v7558 = vrot.slane %v7556, 5
      %v7559 = vsel %vm964, %v7554, %v7558
      %v7561 = vshrl.u32 %v7316, 16
      %v7563 = vrot.slane %v7561, 4
      %v7564 = vshll.u32 %v7316, 16
      %v7566 = vrot.slane %v7564, 5
      %v7567 = vor.u32 %v7563, %v7566
      %v7568 = vrot.slane %v7567, 4
      %v7570 = vshll.u32 %v7317, 16
      %v7572 = vrot.slane %v7570, 5
      %v7573 = vsel %vm964, %v7568, %v7572
      %v7574 = vshrl.u32 %v7317, 16
      %v7576 = vrot.slane %v7574, 4
      %v7577 = vor.u32 %v7576, %v7572
      %v7578 = vrot.slane %v7577, 4
      %v7580 = vshll.u32 %v7318, 16
      %v7582 = vrot.slane %v7580, 5
      %v7583 = vsel %vm964, %v7578, %v7582
      %v7585 = vshrl.u32 %v7319, 16
      %v7587 = vrot.slane %v7585, 4
      %v7588 = vshll.u32 %v7319, 16
      %v7590 = vrot.slane %v7588, 5
      %v7591 = vor.u32 %v7587, %v7590
      %v7592 = vrot.slane %v7591, 4
      %v7594 = vshll.u32 %v7320, 16
      %v7596 = vrot.slane %v7594, 5
      %v7597 = vsel %vm964, %v7592, %v7596
      %v7598 = vshrl.u32 %v7320, 16
      %v7600 = vrot.slane %v7598, 4
      %v7601 = vor.u32 %v7600, %v7596
      %v7602 = vrot.slane %v7601, 4
      %v7604 = vshll.u32 %v7321, 16
      %v7606 = vrot.slane %v7604, 5
      %v7607 = vsel %vm964, %v7602, %v7606
      %v7609 = vshrl.u32 %v7322, 16
      %v7611 = vrot.slane %v7609, 4
      %v7612 = vshll.u32 %v7322, 16
      %v7614 = vrot.slane %v7612, 5
      %v7615 = vor.u32 %v7611, %v7614
      %v7616 = vrot.slane %v7615, 4
      %v7618 = vshll.u32 %v7323, 16
      %v7620 = vrot.slane %v7618, 5
      %v7621 = vsel %vm964, %v7616, %v7620
      %v7622 = vshrl.u32 %v7323, 16
      %v7624 = vrot.slane %v7622, 4
      %v7625 = vor.u32 %v7624, %v7620
      %v7626 = vrot.slane %v7625, 4
      %v7628 = vshll.u32 %v7324, 16
      %v7630 = vrot.slane %v7628, 5
      %v7631 = vsel %vm964, %v7626, %v7630
      %v7633 = vshrl.u32 %v7325, 16
      %v7635 = vrot.slane %v7633, 4
      %v7636 = vshll.u32 %v7325, 16
      %v7638 = vrot.slane %v7636, 5
      %v7639 = vor.u32 %v7635, %v7638
      %v7640 = vrot.slane %v7639, 4
      %v7642 = vshll.u32 %v7326, 16
      %v7644 = vrot.slane %v7642, 5
      %v7645 = vsel %vm964, %v7640, %v7644
      %v7646 = vshrl.u32 %v7326, 16
      %v7648 = vrot.slane %v7646, 4
      %v7649 = vor.u32 %v7648, %v7644
      %v7650 = vrot.slane %v7649, 4
      %v7652 = vshll.u32 %v7327, 16
      %v7654 = vrot.slane %v7652, 5
      %v7655 = vsel %vm964, %v7650, %v7654
      %v7657 = vshrl.u32 %v7328, 16
      %v7659 = vrot.slane %v7657, 4
      %v7660 = vshll.u32 %v7328, 16
      %v7662 = vrot.slane %v7660, 5
      %v7663 = vor.u32 %v7659, %v7662
      %v7664 = vrot.slane %v7663, 4
      %v7666 = vshll.u32 %v7329, 16
      %v7668 = vrot.slane %v7666, 5
      %v7669 = vsel %vm964, %v7664, %v7668
      %v7670 = vshrl.u32 %v7329, 16
      %v7672 = vrot.slane %v7670, 4
      %v7673 = vor.u32 %v7672, %v7668
      %v7674 = vrot.slane %v7673, 4
      %v7676 = vshll.u32 %v7330, 16
      %v7678 = vrot.slane %v7676, 5
      %v7679 = vsel %vm964, %v7674, %v7678
      %v7681 = vshrl.u32 %v7331, 16
      %v7683 = vrot.slane %v7681, 4
      %v7684 = vshll.u32 %v7331, 16
      %v7686 = vrot.slane %v7684, 5
      %v7687 = vor.u32 %v7683, %v7686
      %v7688 = vrot.slane %v7687, 4
      %v7690 = vshll.u32 %v7332, 16
      %v7692 = vrot.slane %v7690, 5
      %v7693 = vsel %vm964, %v7688, %v7692
      %v7694 = vshrl.u32 %v7332, 16
      %v7696 = vrot.slane %v7694, 4
      %v7697 = vor.u32 %v7696, %v7692
      %v7698 = vrot.slane %v7697, 4
      %v7700 = vshll.u32 %v7333, 16
      %v7702 = vrot.slane %v7700, 5
      %v7703 = vsel %vm964, %v7698, %v7702
      %v7705 = vshrl.u32 %v7334, 16
      %v7707 = vrot.slane %v7705, 4
      %v7708 = vshll.u32 %v7334, 16
      %v7710 = vrot.slane %v7708, 5
      %v7711 = vor.u32 %v7707, %v7710
      %v7712 = vrot.slane %v7711, 4
      %v7714 = vshll.u32 %v7335, 16
      %v7716 = vrot.slane %v7714, 5
      %v7717 = vsel %vm964, %v7712, %v7716
      %v7718 = vshrl.u32 %v7335, 16
      %v7720 = vrot.slane %v7718, 4
      %v7721 = vor.u32 %v7720, %v7716
      %v7722 = vrot.slane %v7721, 4
      %v7724 = vshll.u32 %v7336, 16
      %v7726 = vrot.slane %v7724, 5
      %v7727 = vsel %vm964, %v7722, %v7726
      %v7729 = vshrl.u32 %v7337, 16
      %v7731 = vrot.slane %v7729, 4
      %v7732 = vshll.u32 %v7337, 16
      %v7734 = vrot.slane %v7732, 5
      %v7735 = vor.u32 %v7731, %v7734
      %v7736 = vrot.slane %v7735, 4
      %v7738 = vshll.u32 %v7338, 16
      %v7740 = vrot.slane %v7738, 5
      %v7741 = vsel %vm964, %v7736, %v7740
      %v7742 = vshrl.u32 %v7338, 16
      %v7744 = vrot.slane %v7742, 4
      %v7745 = vor.u32 %v7744, %v7740
      %v7746 = vrot.slane %v7745, 4
      %v7748 = vshll.u32 %v7339, 16
      %v7750 = vrot.slane %v7748, 5
      %v7751 = vsel %vm964, %v7746, %v7750
      %v7753 = vshrl.u32 %v7340, 16
      %v7755 = vrot.slane %v7753, 4
      %v7756 = vshll.u32 %v7340, 16
      %v7758 = vrot.slane %v7756, 5
      %v7759 = vor.u32 %v7755, %v7758
      %v7760 = vrot.slane %v7759, 4
      %v7762 = vshll.u32 %v7341, 16
      %v7764 = vrot.slane %v7762, 5
      %v7765 = vsel %vm964, %v7760, %v7764
      %v7766 = vshrl.u32 %v7341, 16
      %v7768 = vrot.slane %v7766, 4
      %v7769 = vor.u32 %v7768, %v7764
      %v7770 = vrot.slane %v7769, 4
      %v7772 = vshll.u32 %v7342, 16
      %v7774 = vrot.slane %v7772, 5
      %v7775 = vsel %vm964, %v7770, %v7774
      %v7777 = vshrl.u32 %v7343, 16
      %v7779 = vrot.slane %v7777, 4
      %v7780 = vshll.u32 %v7343, 16
      %v7782 = vrot.slane %v7780, 5
      %v7783 = vor.u32 %v7779, %v7782
      %v7784 = vrot.slane %v7783, 4
      %v7786 = vshll.u32 %v7344, 16
      %v7788 = vrot.slane %v7786, 5
      %v7789 = vsel %vm964, %v7784, %v7788
      %v7790 = vshrl.u32 %v7344, 16
      %v7792 = vrot.slane %v7790, 4
      %v7793 = vor.u32 %v7792, %v7788
      %v7794 = vrot.slane %v7793, 4
      %v7796 = vshll.u32 %v7345, 16
      %v7798 = vrot.slane %v7796, 5
      %v7799 = vsel %vm964, %v7794, %v7798
      %v7801 = vshrl.u32 %v7346, 16
      %v7803 = vrot.slane %v7801, 4
      %v7804 = vshll.u32 %v7346, 16
      %v7806 = vrot.slane %v7804, 5
      %v7807 = vor.u32 %v7803, %v7806
      %v7808 = vrot.slane %v7807, 4
      %v7810 = vshll.u32 %v7347, 16
      %v7812 = vrot.slane %v7810, 5
      %v7813 = vsel %vm964, %v7808, %v7812
      %v7814 = vshrl.u32 %v7347, 16
      %v7816 = vrot.slane %v7814, 4
      %v7817 = vor.u32 %v7816, %v7812
      %v7818 = vrot.slane %v7817, 4
      %v7820 = vshll.u32 %v7348, 16
      %v7822 = vrot.slane %v7820, 5
      %v7823 = vsel %vm964, %v7818, %v7822
      %v7825 = vshrl.u32 %v7349, 16
      %v7827 = vrot.slane %v7825, 4
      %v7828 = vshll.u32 %v7349, 16
      %v7830 = vrot.slane %v7828, 5
      %v7831 = vor.u32 %v7827, %v7830
      %v7832 = vrot.slane %v7831, 4
      %v7834 = vshll.u32 %v7350, 16
      %v7836 = vrot.slane %v7834, 5
      %v7837 = vsel %vm964, %v7832, %v7836
      %v7838 = vshrl.u32 %v7350, 16
      %v7840 = vrot.slane %v7838, 4
      %v7841 = vor.u32 %v7840, %v7836
      %v7842 = vrot.slane %v7841, 4
      %v7844 = vshll.u32 %v7351, 16
      %v7846 = vrot.slane %v7844, 5
      %v7847 = vsel %vm964, %v7842, %v7846
      %v7848 = vunpack.c.l.b16 %v7477
      %v7849 = vunpack.c.l.b16 %v7487
      %v7850 = vunpack.c.l.b16 %v7501
      %v7851 = vunpack.c.l.b16 %v7511
      %v7852 = vunpack.c.l.b16 %v7525
      %v7853 = vunpack.c.l.b16 %v7535
      %v7854 = vunpack.c.l.b16 %v7549
      %v7855 = vunpack.c.l.b16 %v7559
      %v7856 = vunpack.c.l.b16 %v7573
      %v7857 = vunpack.c.l.b16 %v7583
      %v7858 = vunpack.c.l.b16 %v7597
      %v7859 = vunpack.c.l.b16 %v7607
      %v7860 = vunpack.c.l.b16 %v7621
      %v7861 = vunpack.c.l.b16 %v7631
      %v7862 = vunpack.c.l.b16 %v7645
      %v7863 = vunpack.c.l.b16 %v7655
      %v7864 = vunpack.c.l.b16 %v7669
      %v7865 = vunpack.c.l.b16 %v7679
      %v7866 = vunpack.c.l.b16 %v7693
      %v7867 = vunpack.c.l.b16 %v7703
      %v7868 = vunpack.c.l.b16 %v7717
      %v7869 = vunpack.c.l.b16 %v7727
      %v7870 = vunpack.c.l.b16 %v7741
      %v7871 = vunpack.c.l.b16 %v7751
      %v7872 = vunpack.c.l.b16 %v7765
      %v7873 = vunpack.c.l.b16 %v7775
      %v7874 = vunpack.c.l.b16 %v7789
      %v7875 = vunpack.c.l.b16 %v7799
      %v7876 = vunpack.c.l.b16 %v7813
      %v7877 = vunpack.c.l.b16 %v7823
      %v7878 = vunpack.c.l.b16 %v7837
      %v7879 = vunpack.c.l.b16 %v7847
      %v7880 = vpack.c.b16 %v7849, %v7848
      %v7881 = vpack.c.b16 %v7851, %v7850
      %v7882 = vpack.c.b16 %v7853, %v7852
      %v7883 = vpack.c.b16 %v7855, %v7854
      %v7884 = vpack.c.b16 %v7857, %v7856
      %v7885 = vpack.c.b16 %v7859, %v7858
      %v7886 = vpack.c.b16 %v7861, %v7860
      %v7887 = vpack.c.b16 %v7863, %v7862
      %v7888 = vpack.c.b16 %v7865, %v7864
      %v7889 = vpack.c.b16 %v7867, %v7866
      %v7890 = vpack.c.b16 %v7869, %v7868
      %v7891 = vpack.c.b16 %v7871, %v7870
      %v7892 = vpack.c.b16 %v7873, %v7872
      %v7893 = vpack.c.b16 %v7875, %v7874
      %v7894 = vpack.c.b16 %v7877, %v7876
      %v7895 = vpack.c.b16 %v7879, %v7878
      %7912 = vst [vmem:[#allocation3 + $0x8] sm:$0xff] %v7880
      %7913 = vst [vmem:[#allocation3 + $0x20] sm:$0xff] %v7881
      %7914 = vst [vmem:[#allocation3 + $0x38] sm:$0xff] %v7882
      %7915 = vst [vmem:[#allocation3 + $0x50] sm:$0xff] %v7883
      %7916 = vst [vmem:[#allocation3 + $0x68] sm:$0xff] %v7884
      %7917 = vst [vmem:[#allocation3 + $0x80] sm:$0xff] %v7885
      %7918 = vst [vmem:[#allocation3 + $0x98] sm:$0xff] %v7886
      %7919 = vst [vmem:[#allocation3 + $0xb0] sm:$0xff] %v7887
      %7920 = vst [vmem:[#allocation3 + $0xc8] sm:$0xff] %v7888
      %7921 = vst [vmem:[#allocation3 + $0xe0] sm:$0xff] %v7889
      %7922 = vst [vmem:[#allocation3 + $0xf8] sm:$0xff] %v7890
      %7923 = vst [vmem:[#allocation3 + $0x110] sm:$0xff] %v7891
      %7924 = vst [vmem:[#allocation3 + $0x128] sm:$0xff] %v7892
      %7925 = vst [vmem:[#allocation3 + $0x140] sm:$0xff] %v7893
      %7926 = vst [vmem:[#allocation3 + $0x158] sm:$0xff] %v7894
      %7927 = vst [vmem:[#allocation3 + $0x170] sm:$0xff] %v7895
      %v7944 = vrot.slane %v7304, 5
      %v7945 = vrot.slane %v7944, 4
      %v7946 = vrot.slane %v7305, 5
      %v7947 = vsel %vm1447, %v7945, %v7946
      %v7948 = vrot.slane %v7946, 4
      %v7949 = vrot.slane %v7306, 5
      %v7950 = vsel %vm1447, %v7948, %v7949
      %v7951 = vrot.slane %v7307, 5
      %v7952 = vrot.slane %v7951, 4
      %v7953 = vrot.slane %v7308, 5
      %v7954 = vsel %vm1447, %v7952, %v7953
      %v7955 = vrot.slane %v7953, 4
      %v7956 = vrot.slane %v7309, 5
      %v7957 = vsel %vm1447, %v7955, %v7956
      %v7958 = vrot.slane %v7310, 5
      %v7959 = vrot.slane %v7958, 4
      %v7960 = vrot.slane %v7311, 5
      %v7961 = vsel %vm1447, %v7959, %v7960
      %v7962 = vrot.slane %v7960, 4
      %v7963 = vrot.slane %v7312, 5
      %v7964 = vsel %vm1447, %v7962, %v7963
      %v7965 = vrot.slane %v7313, 5
      %v7966 = vrot.slane %v7965, 4
      %v7967 = vrot.slane %v7314, 5
      %v7968 = vsel %vm1447, %v7966, %v7967
      %v7969 = vrot.slane %v7967, 4
      %v7970 = vrot.slane %v7315, 5
      %v7971 = vsel %vm1447, %v7969, %v7970
      %v7972 = vrot.slane %v7316, 5
      %v7973 = vrot.slane %v7972, 4
      %v7974 = vrot.slane %v7317, 5
      %v7975 = vsel %vm1447, %v7973, %v7974
      %v7976 = vrot.slane %v7974, 4
      %v7977 = vrot.slane %v7318, 5
      %v7978 = vsel %vm1447, %v7976, %v7977
      %v7979 = vrot.slane %v7319, 5
      %v7980 = vrot.slane %v7979, 4
      %v7981 = vrot.slane %v7320, 5
      %v7982 = vsel %vm1447, %v7980, %v7981
      %v7983 = vrot.slane %v7981, 4
      %v7984 = vrot.slane %v7321, 5
      %v7985 = vsel %vm1447, %v7983, %v7984
      %v7986 = vrot.slane %v7322, 5
      %v7987 = vrot.slane %v7986, 4
      %v7988 = vrot.slane %v7323, 5
      %v7989 = vsel %vm1447, %v7987, %v7988
      %v7990 = vrot.slane %v7988, 4
      %v7991 = vrot.slane %v7324, 5
      %v7992 = vsel %vm1447, %v7990, %v7991
      %v7993 = vrot.slane %v7325, 5
      %v7994 = vrot.slane %v7993, 4
      %v7995 = vrot.slane %v7326, 5
      %v7996 = vsel %vm1447, %v7994, %v7995
      %v7997 = vrot.slane %v7995, 4
      %v7998 = vrot.slane %v7327, 5
      %v7999 = vsel %vm1447, %v7997, %v7998
      %v8000 = vrot.slane %v7328, 5
      %v8001 = vrot.slane %v8000, 4
      %v8002 = vrot.slane %v7329, 5
      %v8003 = vsel %vm1447, %v8001, %v8002
      %v8004 = vrot.slane %v8002, 4
      %v8005 = vrot.slane %v7330, 5
      %v8006 = vsel %vm1447, %v8004, %v8005
      %v8007 = vrot.slane %v7331, 5
      %v8008 = vrot.slane %v8007, 4
      %v8009 = vrot.slane %v7332, 5
      %v8010 = vsel %vm1447, %v8008, %v8009
      %v8011 = vrot.slane %v8009, 4
      %v8012 = vrot.slane %v7333, 5
      %v8013 = vsel %vm1447, %v8011, %v8012
      %v8014 = vrot.slane %v7334, 5
      %v8015 = vrot.slane %v8014, 4
      %v8016 = vrot.slane %v7335, 5
      %v8017 = vsel %vm1447, %v8015, %v8016
      %v8018 = vrot.slane %v8016, 4
      %v8019 = vrot.slane %v7336, 5
      %v8020 = vsel %vm1447, %v8018, %v8019
      %v8021 = vrot.slane %v7337, 5
      %v8022 = vrot.slane %v8021, 4
      %v8023 = vrot.slane %v7338, 5
      %v8024 = vsel %vm1447, %v8022, %v8023
      %v8025 = vrot.slane %v8023, 4
      %v8026 = vrot.slane %v7339, 5
      %v8027 = vsel %vm1447, %v8025, %v8026
      %v8028 = vrot.slane %v7340, 5
      %v8029 = vrot.slane %v8028, 4
      %v8030 = vrot.slane %v7341, 5
      %v8031 = vsel %vm1447, %v8029, %v8030
      %v8032 = vrot.slane %v8030, 4
      %v8033 = vrot.slane %v7342, 5
      %v8034 = vsel %vm1447, %v8032, %v8033
      %v8035 = vrot.slane %v7343, 5
      %v8036 = vrot.slane %v8035, 4
      %v8037 = vrot.slane %v7344, 5
      %v8038 = vsel %vm1447, %v8036, %v8037
      %v8039 = vrot.slane %v8037, 4
      %v8040 = vrot.slane %v7345, 5
      %v8041 = vsel %vm1447, %v8039, %v8040
      %v8042 = vrot.slane %v7346, 5
      %v8043 = vrot.slane %v8042, 4
      %v8044 = vrot.slane %v7347, 5
      %v8045 = vsel %vm1447, %v8043, %v8044
      %v8046 = vrot.slane %v8044, 4
      %v8047 = vrot.slane %v7348, 5
      %v8048 = vsel %vm1447, %v8046, %v8047
      %v8049 = vrot.slane %v7349, 5
      %v8050 = vrot.slane %v8049, 4
      %v8051 = vrot.slane %v7350, 5
      %v8052 = vsel %vm1447, %v8050, %v8051
      %v8053 = vrot.slane %v8051, 4
      %v8054 = vrot.slane %v7351, 5
      %v8055 = vsel %vm1447, %v8053, %v8054
      %v8056 = vunpack.c.l.b16 %v7947
      %v8057 = vunpack.c.l.b16 %v7950
      %v8058 = vunpack.c.l.b16 %v7954
      %v8059 = vunpack.c.l.b16 %v7957
      %v8060 = vunpack.c.l.b16 %v7961
      %v8061 = vunpack.c.l.b16 %v7964
      %v8062 = vunpack.c.l.b16 %v7968
      %v8063 = vunpack.c.l.b16 %v7971
      %v8064 = vunpack.c.l.b16 %v7975
      %v8065 = vunpack.c.l.b16 %v7978
      %v8066 = vunpack.c.l.b16 %v7982
      %v8067 = vunpack.c.l.b16 %v7985
      %v8068 = vunpack.c.l.b16 %v7989
      %v8069 = vunpack.c.l.b16 %v7992
      %v8070 = vunpack.c.l.b16 %v7996
      %v8071 = vunpack.c.l.b16 %v7999
      %v8072 = vunpack.c.l.b16 %v8003
      %v8073 = vunpack.c.l.b16 %v8006
      %v8074 = vunpack.c.l.b16 %v8010
      %v8075 = vunpack.c.l.b16 %v8013
      %v8076 = vunpack.c.l.b16 %v8017
      %v8077 = vunpack.c.l.b16 %v8020
      %v8078 = vunpack.c.l.b16 %v8024
      %v8079 = vunpack.c.l.b16 %v8027
      %v8080 = vunpack.c.l.b16 %v8031
      %v8081 = vunpack.c.l.b16 %v8034
      %v8082 = vunpack.c.l.b16 %v8038
      %v8083 = vunpack.c.l.b16 %v8041
      %v8084 = vunpack.c.l.b16 %v8045
      %v8085 = vunpack.c.l.b16 %v8048
      %v8086 = vunpack.c.l.b16 %v8052
      %v8087 = vunpack.c.l.b16 %v8055
      %v8088 = vpack.c.b16 %v8057, %v8056
      %v8089 = vpack.c.b16 %v8059, %v8058
      %v8090 = vpack.c.b16 %v8061, %v8060
      %v8091 = vpack.c.b16 %v8063, %v8062
      %v8092 = vpack.c.b16 %v8065, %v8064
      %v8093 = vpack.c.b16 %v8067, %v8066
      %v8094 = vpack.c.b16 %v8069, %v8068
      %v8095 = vpack.c.b16 %v8071, %v8070
      %v8096 = vpack.c.b16 %v8073, %v8072
      %v8097 = vpack.c.b16 %v8075, %v8074
      %v8098 = vpack.c.b16 %v8077, %v8076
      %v8099 = vpack.c.b16 %v8079, %v8078
      %v8100 = vpack.c.b16 %v8081, %v8080
      %v8101 = vpack.c.b16 %v8083, %v8082
      %v8102 = vpack.c.b16 %v8085, %v8084
      %v8103 = vpack.c.b16 %v8087, %v8086
      %8120 = vst [vmem:[#allocation3 + $0x10] sm:$0xff] %v8088
      %8121 = vst [vmem:[#allocation3 + $0x28] sm:$0xff] %v8089
      %8122 = vst [vmem:[#allocation3 + $0x40] sm:$0xff] %v8090
      %8123 = vst [vmem:[#allocation3 + $0x58] sm:$0xff] %v8091
      %8124 = vst [vmem:[#allocation3 + $0x70] sm:$0xff] %v8092
      %8125 = vst [vmem:[#allocation3 + $0x88] sm:$0xff] %v8093
      %8126 = vst [vmem:[#allocation3 + $0xa0] sm:$0xff] %v8094
      %8127 = vst [vmem:[#allocation3 + $0xb8] sm:$0xff] %v8095
      %8128 = vst [vmem:[#allocation3 + $0xd0] sm:$0xff] %v8096
      %8129 = vst [vmem:[#allocation3 + $0xe8] sm:$0xff] %v8097
      %8130 = vst [vmem:[#allocation3 + $0x100] sm:$0xff] %v8098
      %8131 = vst [vmem:[#allocation3 + $0x118] sm:$0xff] %v8099
      %8132 = vst [vmem:[#allocation3 + $0x130] sm:$0xff] %v8100
      %8133 = vst [vmem:[#allocation3 + $0x148] sm:$0xff] %v8101
      %8134 = vst [vmem:[#allocation3 + $0x160] sm:$0xff] %v8102
      %8135 = vst [vmem:[#allocation3 + $0x178] sm:$0xff] %v8103
      %v8136 = vld [vmem:[#allocation3] sm:$0xff]
      %v8137 = vld [vmem:[#allocation3 + $0x8] sm:$0xff]
      %v8138 = vld [vmem:[#allocation3 + $0x10] sm:$0xff]
      %v8139 = vld [vmem:[#allocation3 + $0x18] sm:$0xff]
      %v8140 = vld [vmem:[#allocation3 + $0x20] sm:$0xff]
      %v8141 = vld [vmem:[#allocation3 + $0x28] sm:$0xff]
      %v8142 = vld [vmem:[#allocation3 + $0x30] sm:$0xff]
      %v8143 = vld [vmem:[#allocation3 + $0x38] sm:$0xff]
      %v8144 = vld [vmem:[#allocation3 + $0x40] sm:$0xff]
      %v8145 = vld [vmem:[#allocation3 + $0x48] sm:$0xff]
      %v8146 = vld [vmem:[#allocation3 + $0x50] sm:$0xff]
      %v8147 = vld [vmem:[#allocation3 + $0x58] sm:$0xff]
      %v8148 = vld [vmem:[#allocation3 + $0x60] sm:$0xff]
      %v8149 = vld [vmem:[#allocation3 + $0x68] sm:$0xff]
      %v8150 = vld [vmem:[#allocation3 + $0x70] sm:$0xff]
      %v8151 = vld [vmem:[#allocation3 + $0x78] sm:$0xff]
      %v8152 = vld [vmem:[#allocation3 + $0x80] sm:$0xff]
      %v8153 = vld [vmem:[#allocation3 + $0x88] sm:$0xff]
      %v8154 = vld [vmem:[#allocation3 + $0x90] sm:$0xff]
      %v8155 = vld [vmem:[#allocation3 + $0x98] sm:$0xff]
      %v8156 = vld [vmem:[#allocation3 + $0xa0] sm:$0xff]
      %v8157 = vld [vmem:[#allocation3 + $0xa8] sm:$0xff]
      %v8158 = vld [vmem:[#allocation3 + $0xb0] sm:$0xff]
      %v8159 = vld [vmem:[#allocation3 + $0xb8] sm:$0xff]
      %v8160 = vld [vmem:[#allocation3 + $0xc0] sm:$0xff]
      %v8161 = vld [vmem:[#allocation3 + $0xc8] sm:$0xff]
      %v8162 = vld [vmem:[#allocation3 + $0xd0] sm:$0xff]
      %v8163 = vld [vmem:[#allocation3 + $0xd8] sm:$0xff]
      %v8164 = vld [vmem:[#allocation3 + $0xe0] sm:$0xff]
      %v8165 = vld [vmem:[#allocation3 + $0xe8] sm:$0xff]
      %v8166 = vld [vmem:[#allocation3 + $0xf0] sm:$0xff]
      %v8167 = vld [vmem:[#allocation3 + $0xf8] sm:$0xff]
      %v8168 = vld [vmem:[#allocation3 + $0x100] sm:$0xff]
      %v8169 = vld [vmem:[#allocation3 + $0x108] sm:$0xff]
      %v8170 = vld [vmem:[#allocation3 + $0x110] sm:$0xff]
      %v8171 = vld [vmem:[#allocation3 + $0x118] sm:$0xff]
      %v8172 = vld [vmem:[#allocation3 + $0x120] sm:$0xff]
      %v8173 = vld [vmem:[#allocation3 + $0x128] sm:$0xff]
      %v8174 = vld [vmem:[#allocation3 + $0x130] sm:$0xff]
      %v8175 = vld [vmem:[#allocation3 + $0x138] sm:$0xff]
      %v8176 = vld [vmem:[#allocation3 + $0x140] sm:$0xff]
      %v8177 = vld [vmem:[#allocation3 + $0x148] sm:$0xff]
      %v8178 = vld [vmem:[#allocation3 + $0x150] sm:$0xff]
      %v8179 = vld [vmem:[#allocation3 + $0x158] sm:$0xff]
      %v8180 = vld [vmem:[#allocation3 + $0x160] sm:$0xff]
      %v8181 = vld [vmem:[#allocation3 + $0x168] sm:$0xff]
      %v8182 = vld [vmem:[#allocation3 + $0x170] sm:$0xff]
      %v8183 = vld [vmem:[#allocation3 + $0x178] sm:$0xff]
      %v8184 = vld [vmem:[%s3 + $0xc0] sm:$0xf]
      %v8185 = vld [vmem:[%s3 + $0xc4] sm:$0xf]
      %v8186 = vld [vmem:[%s3 + $0xc8] sm:$0xf]
      %v8187 = vld [vmem:[%s3 + $0xcc] sm:$0xf]
      %v8188 = vld [vmem:[%s3 + $0xd0] sm:$0xf]
      %v8189 = vld [vmem:[%s3 + $0xd4] sm:$0xf]
      %v8190 = vld [vmem:[%s3 + $0xd8] sm:$0xf]
      %v8191 = vld [vmem:[%s3 + $0xdc] sm:$0xf]
      %v8192 = vld [vmem:[%s3 + $0xe0] sm:$0xf]
      %v8193 = vld [vmem:[%s3 + $0xe4] sm:$0xf]
      %v8194 = vld [vmem:[%s3 + $0xe8] sm:$0xf]
      %v8195 = vld [vmem:[%s3 + $0xec] sm:$0xf]
      %v8196 = vld [vmem:[%s3 + $0xf0] sm:$0xf]
      %v8197 = vld [vmem:[%s3 + $0xf4] sm:$0xf]
      %v8198 = vld [vmem:[%s3 + $0xf8] sm:$0xf]
      %v8199 = vld [vmem:[%s3 + $0xfc] sm:$0xf]
      %v8200 = vld [vmem:[%s3 + $0x100] sm:$0xf]
      %v8201 = vld [vmem:[%s3 + $0x104] sm:$0xf]
      %v8202 = vld [vmem:[%s3 + $0x108] sm:$0xf]
      %v8203 = vld [vmem:[%s3 + $0x10c] sm:$0xf]
      %v8204 = vld [vmem:[%s3 + $0x110] sm:$0xf]
      %v8205 = vld [vmem:[%s3 + $0x114] sm:$0xf]
      %v8206 = vld [vmem:[%s3 + $0x118] sm:$0xf]
      %v8207 = vld [vmem:[%s3 + $0x11c] sm:$0xf]
      %v8208 = vld [vmem:[%s3 + $0x120] sm:$0xf]
      %v8209 = vld [vmem:[%s3 + $0x124] sm:$0xf]
      %v8210 = vld [vmem:[%s3 + $0x128] sm:$0xf]
      %v8211 = vld [vmem:[%s3 + $0x12c] sm:$0xf]
      %v8212 = vld [vmem:[%s3 + $0x130] sm:$0xf]
      %v8213 = vld [vmem:[%s3 + $0x134] sm:$0xf]
      %v8214 = vld [vmem:[%s3 + $0x138] sm:$0xf]
      %v8215 = vld [vmem:[%s3 + $0x13c] sm:$0xf]
      %v8216 = vld [vmem:[%s3 + $0x140] sm:$0xf]
      %v8217 = vld [vmem:[%s3 + $0x144] sm:$0xf]
      %v8218 = vld [vmem:[%s3 + $0x148] sm:$0xf]
      %v8219 = vld [vmem:[%s3 + $0x14c] sm:$0xf]
      %v8220 = vld [vmem:[%s3 + $0x150] sm:$0xf]
      %v8221 = vld [vmem:[%s3 + $0x154] sm:$0xf]
      %v8222 = vld [vmem:[%s3 + $0x158] sm:$0xf]
      %v8223 = vld [vmem:[%s3 + $0x15c] sm:$0xf]
      %v8224 = vld [vmem:[%s3 + $0x160] sm:$0xf]
      %v8225 = vld [vmem:[%s3 + $0x164] sm:$0xf]
      %v8226 = vld [vmem:[%s3 + $0x168] sm:$0xf]
      %v8227 = vld [vmem:[%s3 + $0x16c] sm:$0xf]
      %v8228 = vld [vmem:[%s3 + $0x170] sm:$0xf]
      %v8229 = vld [vmem:[%s3 + $0x174] sm:$0xf]
      %v8230 = vld [vmem:[%s3 + $0x178] sm:$0xf]
      %v8231 = vld [vmem:[%s3 + $0x17c] sm:$0xf]
      %v8280 = vunpack.c.l.b16 %v8184
      %v8281 = vunpack.c.l.b16 %v8185
      %v8282 = vunpack.c.l.b16 %v8186
      %v8283 = vunpack.c.l.b16 %v8187
      %v8284 = vunpack.c.l.b16 %v8188
      %v8285 = vunpack.c.l.b16 %v8189
      %v8286 = vunpack.c.l.b16 %v8190
      %v8287 = vunpack.c.l.b16 %v8191
      %v8288 = vunpack.c.l.b16 %v8192
      %v8289 = vunpack.c.l.b16 %v8193
      %v8290 = vunpack.c.l.b16 %v8194
      %v8291 = vunpack.c.l.b16 %v8195
      %v8292 = vunpack.c.l.b16 %v8196
      %v8293 = vunpack.c.l.b16 %v8197
      %v8294 = vunpack.c.l.b16 %v8198
      %v8295 = vunpack.c.l.b16 %v8199
      %v8296 = vunpack.c.l.b16 %v8200
      %v8297 = vunpack.c.l.b16 %v8201
      %v8298 = vunpack.c.l.b16 %v8202
      %v8299 = vunpack.c.l.b16 %v8203
      %v8300 = vunpack.c.l.b16 %v8204
      %v8301 = vunpack.c.l.b16 %v8205
      %v8302 = vunpack.c.l.b16 %v8206
      %v8303 = vunpack.c.l.b16 %v8207
      %v8304 = vunpack.c.l.b16 %v8208
      %v8305 = vunpack.c.l.b16 %v8209
      %v8306 = vunpack.c.l.b16 %v8210
      %v8307 = vunpack.c.l.b16 %v8211
      %v8308 = vunpack.c.l.b16 %v8212
      %v8309 = vunpack.c.l.b16 %v8213
      %v8310 = vunpack.c.l.b16 %v8214
      %v8311 = vunpack.c.l.b16 %v8215
      %v8312 = vunpack.c.l.b16 %v8216
      %v8313 = vunpack.c.l.b16 %v8217
      %v8314 = vunpack.c.l.b16 %v8218
      %v8315 = vunpack.c.l.b16 %v8219
      %v8316 = vunpack.c.l.b16 %v8220
      %v8317 = vunpack.c.l.b16 %v8221
      %v8318 = vunpack.c.l.b16 %v8222
      %v8319 = vunpack.c.l.b16 %v8223
      %v8320 = vunpack.c.l.b16 %v8224
      %v8321 = vunpack.c.l.b16 %v8225
      %v8322 = vunpack.c.l.b16 %v8226
      %v8323 = vunpack.c.l.b16 %v8227
      %v8324 = vunpack.c.l.b16 %v8228
      %v8325 = vunpack.c.l.b16 %v8229
      %v8326 = vunpack.c.l.b16 %v8230
      %v8327 = vunpack.c.l.b16 %v8231
      %v8328 = vpack.c.b16 %v8281, %v8280
      %v8329 = vpack.c.b16 %v8283, %v8282
      %v8330 = vpack.c.b16 %v8285, %v8284
      %v8331 = vpack.c.b16 %v8287, %v8286
      %v8332 = vpack.c.b16 %v8289, %v8288
      %v8333 = vpack.c.b16 %v8291, %v8290
      %v8334 = vpack.c.b16 %v8293, %v8292
      %v8335 = vpack.c.b16 %v8295, %v8294
      %v8336 = vpack.c.b16 %v8297, %v8296
      %v8337 = vpack.c.b16 %v8299, %v8298
      %v8338 = vpack.c.b16 %v8301, %v8300
      %v8339 = vpack.c.b16 %v8303, %v8302
      %v8340 = vpack.c.b16 %v8305, %v8304
      %v8341 = vpack.c.b16 %v8307, %v8306
      %v8342 = vpack.c.b16 %v8309, %v8308
      %v8343 = vpack.c.b16 %v8311, %v8310
      %v8344 = vpack.c.b16 %v8313, %v8312
      %v8345 = vpack.c.b16 %v8315, %v8314
      %v8346 = vpack.c.b16 %v8317, %v8316
      %v8347 = vpack.c.b16 %v8319, %v8318
      %v8348 = vpack.c.b16 %v8321, %v8320
      %v8349 = vpack.c.b16 %v8323, %v8322
      %v8350 = vpack.c.b16 %v8325, %v8324
      %v8351 = vpack.c.b16 %v8327, %v8326
      %8376 = vmatprep.subr.bf16.mxu0 0
      %8377 = vmatpush1.bf16.msra.mxu0 %v8328
      %8378 = vmatprep.subr.bf16.mxu0 0
      %8379 = vmatpush1.bf16.msra.mxu0 %v8329
      %8380 = vmatprep.subr.bf16.mxu0 0
      %8381 = vmatpush1.bf16.msra.mxu0 %v8330
      %8382 = vmatprep.subr.bf16.mxu0 0
      %8383 = vmatpush1.bf16.msra.mxu0 %v8331
      %8384 = vmatprep.subr.bf16.mxu0 0
      %8385 = vmatpush1.bf16.msra.mxu0 %v8332
      %8386 = vmatprep.subr.bf16.mxu0 0
      %8387 = vmatpush1.bf16.msra.mxu0 %v8333
      %8388 = vmatprep.subr.bf16.mxu0 0
      %8389 = vmatpush1.bf16.msra.mxu0 %v8334
      %8390 = vmatprep.subr.bf16.mxu0 0
      %8391 = vmatpush1.bf16.msra.mxu0 %v8335
      %8392 = vmatprep.subr.bf16.mxu0 0
      %8393 = vmatpush1.bf16.msra.mxu0 %v8336
      %8394 = vmatprep.subr.bf16.mxu0 0
      %8395 = vmatpush1.bf16.msra.mxu0 %v8337
      %8396 = vmatprep.subr.bf16.mxu0 0
      %8397 = vmatpush1.bf16.msra.mxu0 %v8338
      %8398 = vmatprep.subr.bf16.mxu0 0
      %8399 = vmatpush1.bf16.msra.mxu0 %v8339
      %8400 = vmatprep.subr.bf16.mxu0 0
      %8401 = vmatpush1.bf16.msra.mxu0 %v8340
      %8402 = vmatprep.subr.bf16.mxu0 0
      %8403 = vmatpush1.bf16.msra.mxu0 %v8341
      %8404 = vmatprep.subr.bf16.mxu0 0
      %8405 = vmatpush1.bf16.msra.mxu0 %v8342
      %8406 = vmatprep.subr.bf16.mxu0 0
      %8407 = vmatpush1.bf16.msra.mxu0 %v8343
      %8408 = vmatprep.mubr.bf16.mxu0 %v8137
      %8409 = vmatmul.mubr.bf16.gmra.mrb[0].mxu0 %v8136
      %v8410 = vpop.f32.mrb[0].mxu0
      %v8411 = vadd.f32 0.0, %v8410
      %v8412 = vpop.f32.mrb[0].mxu0
      %v8413 = vpop.f32.mrb[0].mxu0
      %v8414 = vadd.f32 0.0, %v8413
      %v8415 = vpop.f32.mrb[0].mxu0
      %8416 = vmatprep.mubr.bf16.mxu0 %v8140
      %8417 = vmatmul.mubr.bf16.gmra.mrb[0].mxu0 %v8139
      %v8418 = vpop.f32.mrb[0].mxu0
      %v8419 = vadd.f32 0.0, %v8418
      %v8420 = vpop.f32.mrb[0].mxu0
      %v8421 = vpop.f32.mrb[0].mxu0
      %v8422 = vadd.f32 0.0, %v8421
      %v8423 = vpop.f32.mrb[0].mxu0
      %8424 = vmatprep.mubr.bf16.mxu0 %v8143
      %8425 = vmatmul.mubr.bf16.gmra.mrb[0].mxu0 %v8142
      %v8426 = vpop.f32.mrb[0].mxu0
      %v8427 = vadd.f32 0.0, %v8426
      %v8428 = vpop.f32.mrb[0].mxu0
      %v8429 = vpop.f32.mrb[0].mxu0
      %v8430 = vadd.f32 0.0, %v8429
      %v8431 = vpop.f32.mrb[0].mxu0
      %8432 = vmatprep.mubr.bf16.mxu0 %v8146
      %8433 = vmatmul.mubr.bf16.gmra.mrb[0].mxu0 %v8145
      %v8434 = vpop.f32.mrb[0].mxu0
      %v8435 = vadd.f32 0.0, %v8434
      %v8436 = vpop.f32.mrb[0].mxu0
      %v8437 = vpop.f32.mrb[0].mxu0
      %v8438 = vadd.f32 0.0, %v8437
      %v8439 = vpop.f32.mrb[0].mxu0
      %8440 = vmatprep.mubr.bf16.mxu0 %v8149
      %8441 = vmatmul.mubr.bf16.gmra.mrb[0].mxu0 %v8148
      %v8442 = vpop.f32.mrb[0].mxu0
      %v8443 = vadd.f32 0.0, %v8442
      %v8444 = vpop.f32.mrb[0].mxu0
      %v8445 = vpop.f32.mrb[0].mxu0
      %v8446 = vadd.f32 0.0, %v8445
      %v8447 = vpop.f32.mrb[0].mxu0
      %8448 = vmatprep.mubr.bf16.mxu0 %v8152
      %8449 = vmatmul.mubr.bf16.gmra.mrb[0].mxu0 %v8151
      %v8450 = vpop.f32.mrb[0].mxu0
      %v8451 = vadd.f32 0.0, %v8450
      %v8452 = vpop.f32.mrb[0].mxu0
      %v8453 = vpop.f32.mrb[0].mxu0
      %v8454 = vadd.f32 0.0, %v8453
      %v8455 = vpop.f32.mrb[0].mxu0
      %8456 = vmatprep.mubr.bf16.mxu0 %v8155
      %8457 = vmatmul.mubr.bf16.gmra.mrb[0].mxu0 %v8154
      %v8458 = vpop.f32.mrb[0].mxu0
      %v8459 = vadd.f32 0.0, %v8458
      %v8460 = vpop.f32.mrb[0].mxu0
      %v8461 = vpop.f32.mrb[0].mxu0
      %v8462 = vadd.f32 0.0, %v8461
      %v8463 = vpop.f32.mrb[0].mxu0
      %8464 = vmatprep.mubr.bf16.mxu0 %v8158
      %8465 = vmatmul.mubr.bf16.gmra.mrb[0].mxu0 %v8157
      %v8466 = vpop.f32.mrb[0].mxu0
      %v8467 = vadd.f32 0.0, %v8466
      %v8468 = vpop.f32.mrb[0].mxu0
      %v8469 = vpop.f32.mrb[0].mxu0
      %v8470 = vadd.f32 0.0, %v8469
      %v8471 = vpop.f32.mrb[0].mxu0
      %8472 = vmatprep.mubr.bf16.mxu0 %v8161
      %8473 = vmatmul.mubr.bf16.gmra.mrb[0].mxu0 %v8160
      %v8474 = vpop.f32.mrb[0].mxu0
      %v8475 = vadd.f32 0.0, %v8474
      %v8476 = vpop.f32.mrb[0].mxu0
      %v8477 = vpop.f32.mrb[0].mxu0
      %v8478 = vadd.f32 0.0, %v8477
      %v8479 = vpop.f32.mrb[0].mxu0
      %8480 = vmatprep.mubr.bf16.mxu0 %v8164
      %8481 = vmatmul.mubr.bf16.gmra.mrb[0].mxu0 %v8163
      %v8482 = vpop.f32.mrb[0].mxu0
      %v8483 = vadd.f32 0.0, %v8482
      %v8484 = vpop.f32.mrb[0].mxu0
      %v8485 = vpop.f32.mrb[0].mxu0
      %v8486 = vadd.f32 0.0, %v8485
      %v8487 = vpop.f32.mrb[0].mxu0
      %8488 = vmatprep.mubr.bf16.mxu0 %v8167
      %8489 = vmatmul.mubr.bf16.gmra.mrb[0].mxu0 %v8166
      %v8490 = vpop.f32.mrb[0].mxu0
      %v8491 = vadd.f32 0.0, %v8490
      %v8492 = vpop.f32.mrb[0].mxu0
      %v8493 = vpop.f32.mrb[0].mxu0
      %v8494 = vadd.f32 0.0, %v8493
      %v8495 = vpop.f32.mrb[0].mxu0
      %8496 = vmatprep.mubr.bf16.mxu0 %v8170
      %8497 = vmatmul.mubr.bf16.gmra.mrb[0].mxu0 %v8169
      %v8498 = vpop.f32.mrb[0].mxu0
      %v8499 = vadd.f32 0.0, %v8498
      %v8500 = vpop.f32.mrb[0].mxu0
      %v8501 = vpop.f32.mrb[0].mxu0
      %v8502 = vadd.f32 0.0, %v8501
      %v8503 = vpop.f32.mrb[0].mxu0
      %8504 = vmatprep.mubr.bf16.mxu0 %v8173
      %8505 = vmatmul.mubr.bf16.gmra.mrb[0].mxu0 %v8172
      %v8506 = vpop.f32.mrb[0].mxu0
      %v8507 = vadd.f32 0.0, %v8506
      %v8508 = vpop.f32.mrb[0].mxu0
      %v8509 = vpop.f32.mrb[0].mxu0
      %v8510 = vadd.f32 0.0, %v8509
      %v8511 = vpop.f32.mrb[0].mxu0
      %8512 = vmatprep.mubr.bf16.mxu0 %v8176
      %8513 = vmatmul.mubr.bf16.gmra.mrb[0].mxu0 %v8175
      %v8514 = vpop.f32.mrb[0].mxu0
      %v8515 = vadd.f32 0.0, %v8514
      %v8516 = vpop.f32.mrb[0].mxu0
      %v8517 = vpop.f32.mrb[0].mxu0
      %v8518 = vadd.f32 0.0, %v8517
      %v8519 = vpop.f32.mrb[0].mxu0
      %8520 = vmatprep.mubr.bf16.mxu0 %v8179
      %8521 = vmatmul.mubr.bf16.gmra.mrb[0].mxu0 %v8178
      %v8522 = vpop.f32.mrb[0].mxu0
      %v8523 = vadd.f32 0.0, %v8522
      %v8524 = vpop.f32.mrb[0].mxu0
      %v8525 = vpop.f32.mrb[0].mxu0
      %v8526 = vadd.f32 0.0, %v8525
      %v8527 = vpop.f32.mrb[0].mxu0
      %8528 = vmatprep.mubr.bf16.mxu0 %v8182
      %8529 = vmatmul.mubr.bf16.gmra.mrb[0].mxu0 %v8181
      %v8530 = vpop.f32.mrb[0].mxu0
      %v8531 = vadd.f32 0.0, %v8530
      %v8532 = vpop.f32.mrb[0].mxu0
      %v8533 = vpop.f32.mrb[0].mxu0
      %v8534 = vadd.f32 0.0, %v8533
      %v8535 = vpop.f32.mrb[0].mxu0
      %8536 = vdwg.mxu0
      %8537 = vmatprep.subr.bf16.mxu0 0
      %8538 = vmatpush1.bf16.msra.mxu0 %v8344
      %8539 = vmatprep.subr.bf16.mxu0 0
      %8540 = vmatpush1.bf16.msra.mxu0 %v8345
      %8541 = vmatprep.subr.bf16.mxu0 0
      %8542 = vmatpush1.bf16.msra.mxu0 %v8346
      %8543 = vmatprep.subr.bf16.mxu0 0
      %8544 = vmatpush1.bf16.msra.mxu0 %v8347
      %8545 = vmatprep.subr.bf16.mxu0 0
      %8546 = vmatpush1.bf16.msra.mxu0 %v8348
      %8547 = vmatprep.subr.bf16.mxu0 0
      %8548 = vmatpush1.bf16.msra.mxu0 %v8349
      %8549 = vmatprep.subr.bf16.mxu0 0
      %8550 = vmatpush1.bf16.msra.mxu0 %v8350
      %8551 = vmatprep.subr.bf16.mxu0 0
      %8552 = vmatpush1.bf16.msra.mxu0 %v8351
      %8553 = vmatprep.subr.bf16.mxu0 0
      %8554 = vmatpush1.bf16.msra.mxu0 0
      %8555 = vmatprep.subr.bf16.mxu0 0
      %8556 = vmatpush1.bf16.msra.mxu0 0
      %8557 = vmatprep.subr.bf16.mxu0 0
      %8558 = vmatpush1.bf16.msra.mxu0 0
      %8559 = vmatprep.subr.bf16.mxu0 0
      %8560 = vmatpush1.bf16.msra.mxu0 0
      %8561 = vmatprep.subr.bf16.mxu0 0
      %8562 = vmatpush1.bf16.msra.mxu0 0
      %8563 = vmatprep.subr.bf16.mxu0 0
      %8564 = vmatpush1.bf16.msra.mxu0 0
      %8565 = vmatprep.subr.bf16.mxu0 0
      %8566 = vmatpush1.bf16.msra.mxu0 0
      %8567 = vmatprep.subr.bf16.mxu0 0
      %8568 = vmatpush1.bf16.msra.mxu0 0
      %8569 = vmatprep.mubr.bf16.mxu0 0
      %8570 = vmatmul.mubr.bf16.gmra.mrb[0].mxu0 %v8138
      %v8571 = vpop.f32.mrb[0].mxu0
      %v8572 = vadd.f32 %v8411, %v8571
      %v8573 = vpop.f32.mrb[0].mxu0
      %v8574 = vpop.f32.mrb[0].mxu0
      %v8575 = vadd.f32 %v8414, %v8574
      %v8576 = vpop.f32.mrb[0].mxu0
      %8577 = vmatprep.mubr.bf16.mxu0 0
      %8578 = vmatmul.mubr.bf16.gmra.mrb[0].mxu0 %v8141
      %v8579 = vpop.f32.mrb[0].mxu0
      %v8580 = vadd.f32 %v8419, %v8579
      %v8581 = vpop.f32.mrb[0].mxu0
      %v8582 = vpop.f32.mrb[0].mxu0
      %v8583 = vadd.f32 %v8422, %v8582
      %v8584 = vpop.f32.mrb[0].mxu0
      %8585 = vmatprep.mubr.bf16.mxu0 0
      %8586 = vmatmul.mubr.bf16.gmra.mrb[0].mxu0 %v8144
      %v8587 = vpop.f32.mrb[0].mxu0
      %v8588 = vadd.f32 %v8427, %v8587
      %v8589 = vpop.f32.mrb[0].mxu0
      %v8590 = vpop.f32.mrb[0].mxu0
      %v8591 = vadd.f32 %v8430, %v8590
      %v8592 = vpop.f32.mrb[0].mxu0
      %8593 = vmatprep.mubr.bf16.mxu0 0
      %8594 = vmatmul.mubr.bf16.gmra.mrb[0].mxu0 %v8147
      %v8595 = vpop.f32.mrb[0].mxu0
      %v8596 = vadd.f32 %v8435, %v8595
      %v8597 = vpop.f32.mrb[0].mxu0
      %v8598 = vpop.f32.mrb[0].mxu0
      %v8599 = vadd.f32 %v8438, %v8598
      %v8600 = vpop.f32.mrb[0].mxu0
      %8601 = vmatprep.mubr.bf16.mxu0 0
      %8602 = vmatmul.mubr.bf16.gmra.mrb[0].mxu0 %v8150
      %v8603 = vpop.f32.mrb[0].mxu0
      %v8604 = vadd.f32 %v8443, %v8603
      %v8605 = vpop.f32.mrb[0].mxu0
      %v8606 = vpop.f32.mrb[0].mxu0
      %v8607 = vadd.f32 %v8446, %v8606
      %v8608 = vpop.f32.mrb[0].mxu0
      %8609 = vmatprep.mubr.bf16.mxu0 0
      %8610 = vmatmul.mubr.bf16.gmra.mrb[0].mxu0 %v8153
      %v8611 = vpop.f32.mrb[0].mxu0
      %v8612 = vadd.f32 %v8451, %v8611
      %v8613 = vpop.f32.mrb[0].mxu0
      %v8614 = vpop.f32.mrb[0].mxu0
      %v8615 = vadd.f32 %v8454, %v8614
      %v8616 = vpop.f32.mrb[0].mxu0
      %8617 = vmatprep.mubr.bf16.mxu0 0
      %8618 = vmatmul.mubr.bf16.gmra.mrb[0].mxu0 %v8156
      %v8619 = vpop.f32.mrb[0].mxu0
      %v8620 = vadd.f32 %v8459, %v8619
      %v8621 = vpop.f32.mrb[0].mxu0
      %v8622 = vpop.f32.mrb[0].mxu0
      %v8623 = vadd.f32 %v8462, %v8622
      %v8624 = vpop.f32.mrb[0].mxu0
      %8625 = vmatprep.mubr.bf16.mxu0 0
      %8626 = vmatmul.mubr.bf16.gmra.mrb[0].mxu0 %v8159
      %v8627 = vpop.f32.mrb[0].mxu0
      %v8628 = vadd.f32 %v8467, %v8627
      %v8629 = vpop.f32.mrb[0].mxu0
      %v8630 = vpop.f32.mrb[0].mxu0
      %v8631 = vadd.f32 %v8470, %v8630
      %v8632 = vpop.f32.mrb[0].mxu0
      %8633 = vmatprep.mubr.bf16.mxu0 0
      %8634 = vmatmul.mubr.bf16.gmra.mrb[0].mxu0 %v8162
      %v8635 = vpop.f32.mrb[0].mxu0
      %v8636 = vadd.f32 %v8475, %v8635
      %v8637 = vpop.f32.mrb[0].mxu0
      %v8638 = vpop.f32.mrb[0].mxu0
      %v8639 = vadd.f32 %v8478, %v8638
      %v8640 = vpop.f32.mrb[0].mxu0
      %8641 = vmatprep.mubr.bf16.mxu0 0
      %8642 = vmatmul.mubr.bf16.gmra.mrb[0].mxu0 %v8165
      %v8643 = vpop.f32.mrb[0].mxu0
      %v8644 = vadd.f32 %v8483, %v8643
      %v8645 = vpop.f32.mrb[0].mxu0
      %v8646 = vpop.f32.mrb[0].mxu0
      %v8647 = vadd.f32 %v8486, %v8646
      %v8648 = vpop.f32.mrb[0].mxu0
      %8649 = vmatprep.mubr.bf16.mxu0 0
      %8650 = vmatmul.mubr.bf16.gmra.mrb[0].mxu0 %v8168
      %v8651 = vpop.f32.mrb[0].mxu0
      %v8652 = vadd.f32 %v8491, %v8651
      %v8653 = vpop.f32.mrb[0].mxu0
      %v8654 = vpop.f32.mrb[0].mxu0
      %v8655 = vadd.f32 %v8494, %v8654
      %v8656 = vpop.f32.mrb[0].mxu0
      %8657 = vmatprep.mubr.bf16.mxu0 0
      %8658 = vmatmul.mubr.bf16.gmra.mrb[0].mxu0 %v8171
      %v8659 = vpop.f32.mrb[0].mxu0
      %v8660 = vadd.f32 %v8499, %v8659
      %v8661 = vpop.f32.mrb[0].mxu0
      %v8662 = vpop.f32.mrb[0].mxu0
      %v8663 = vadd.f32 %v8502, %v8662
      %v8664 = vpop.f32.mrb[0].mxu0
      %8665 = vmatprep.mubr.bf16.mxu0 0
      %8666 = vmatmul.mubr.bf16.gmra.mrb[0].mxu0 %v8174
      %v8667 = vpop.f32.mrb[0].mxu0
      %v8668 = vadd.f32 %v8507, %v8667
      %v8669 = vpop.f32.mrb[0].mxu0
      %v8670 = vpop.f32.mrb[0].mxu0
      %v8671 = vadd.f32 %v8510, %v8670
      %v8672 = vpop.f32.mrb[0].mxu0
      %8673 = vmatprep.mubr.bf16.mxu0 0
      %8674 = vmatmul.mubr.bf16.gmra.mrb[0].mxu0 %v8177
      %v8675 = vpop.f32.mrb[0].mxu0
      %v8676 = vadd.f32 %v8515, %v8675
      %v8677 = vpop.f32.mrb[0].mxu0
      %v8678 = vpop.f32.mrb[0].mxu0
      %v8679 = vadd.f32 %v8518, %v8678
      %v8680 = vpop.f32.mrb[0].mxu0
      %8681 = vmatprep.mubr.bf16.mxu0 0
      %8682 = vmatmul.mubr.bf16.gmra.mrb[0].mxu0 %v8180
      %v8683 = vpop.f32.mrb[0].mxu0
      %v8684 = vadd.f32 %v8523, %v8683
      %v8685 = vpop.f32.mrb[0].mxu0
      %v8686 = vpop.f32.mrb[0].mxu0
      %v8687 = vadd.f32 %v8526, %v8686
      %v8688 = vpop.f32.mrb[0].mxu0
      %8689 = vmatprep.mubr.bf16.mxu0 0
      %8690 = vmatmul.mubr.bf16.gmra.mrb[0].mxu0 %v8183
      %v8691 = vpop.f32.mrb[0].mxu0
      %v8692 = vadd.f32 %v8531, %v8691
      %v8693 = vpop.f32.mrb[0].mxu0
      %v8694 = vpop.f32.mrb[0].mxu0
      %v8695 = vadd.f32 %v8534, %v8694
      %v8696 = vpop.f32.mrb[0].mxu0
      %8697 = vdwg.mxu0
      %v8698 = vld [vmem:[#allocation4] sm:$0xff]
      %v8699 = vld [vmem:[#allocation4 + $0x8] sm:$0xff]
      %v8700 = vld [vmem:[#allocation4 + $0x10] sm:$0xff]
      %v8701 = vld [vmem:[#allocation4 + $0x18] sm:$0xff]
      %v8702 = vld [vmem:[#allocation4 + $0x20] sm:$0xff]
      %v8703 = vld [vmem:[#allocation4 + $0x28] sm:$0xff]
      %v8704 = vld [vmem:[#allocation4 + $0x30] sm:$0xff]
      %v8705 = vld [vmem:[#allocation4 + $0x38] sm:$0xff]
      %v8706 = vld [vmem:[#allocation4 + $0x40] sm:$0xff]
      %v8707 = vld [vmem:[#allocation4 + $0x48] sm:$0xff]
      %v8708 = vld [vmem:[#allocation4 + $0x50] sm:$0xff]
      %v8709 = vld [vmem:[#allocation4 + $0x58] sm:$0xff]
      %v8710 = vld [vmem:[#allocation4 + $0x60] sm:$0xff]
      %v8711 = vld [vmem:[#allocation4 + $0x68] sm:$0xff]
      %v8712 = vld [vmem:[#allocation4 + $0x70] sm:$0xff]
      %v8713 = vld [vmem:[#allocation4 + $0x78] sm:$0xff]
      %v8714 = vld [vmem:[#allocation4 + $0x80] sm:$0xff]
      %v8715 = vld [vmem:[#allocation4 + $0x88] sm:$0xff]
      %v8716 = vld [vmem:[#allocation4 + $0x90] sm:$0xff]
      %v8717 = vld [vmem:[#allocation4 + $0x98] sm:$0xff]
      %v8718 = vld [vmem:[#allocation4 + $0xa0] sm:$0xff]
      %v8719 = vld [vmem:[#allocation4 + $0xa8] sm:$0xff]
      %v8720 = vld [vmem:[#allocation4 + $0xb0] sm:$0xff]
      %v8721 = vld [vmem:[#allocation4 + $0xb8] sm:$0xff]
      %v8722 = vld [vmem:[#allocation4 + $0xc0] sm:$0xff]
      %v8723 = vld [vmem:[#allocation4 + $0xc8] sm:$0xff]
      %v8724 = vld [vmem:[#allocation4 + $0xd0] sm:$0xff]
      %v8725 = vld [vmem:[#allocation4 + $0xd8] sm:$0xff]
      %v8726 = vld [vmem:[#allocation4 + $0xe0] sm:$0xff]
      %v8727 = vld [vmem:[#allocation4 + $0xe8] sm:$0xff]
      %v8728 = vld [vmem:[#allocation4 + $0xf0] sm:$0xff]
      %v8729 = vld [vmem:[#allocation4 + $0xf8] sm:$0xff]
      %v8730 = vadd.f32 %v8698, %v8572
      %v8731 = vadd.f32 %v8699, %v8575
      %v8732 = vadd.f32 %v8700, %v8580
      %v8733 = vadd.f32 %v8701, %v8583
      %v8734 = vadd.f32 %v8702, %v8588
      %v8735 = vadd.f32 %v8703, %v8591
      %v8736 = vadd.f32 %v8704, %v8596
      %v8737 = vadd.f32 %v8705, %v8599
      %v8738 = vadd.f32 %v8706, %v8604
      %v8739 = vadd.f32 %v8707, %v8607
      %v8740 = vadd.f32 %v8708, %v8612
      %v8741 = vadd.f32 %v8709, %v8615
      %v8742 = vadd.f32 %v8710, %v8620
      %v8743 = vadd.f32 %v8711, %v8623
      %v8744 = vadd.f32 %v8712, %v8628
      %v8745 = vadd.f32 %v8713, %v8631
      %v8746 = vadd.f32 %v8714, %v8636
      %v8747 = vadd.f32 %v8715, %v8639
      %v8748 = vadd.f32 %v8716, %v8644
      %v8749 = vadd.f32 %v8717, %v8647
      %v8750 = vadd.f32 %v8718, %v8652
      %v8751 = vadd.f32 %v8719, %v8655
      %v8752 = vadd.f32 %v8720, %v8660
      %v8753 = vadd.f32 %v8721, %v8663
      %v8754 = vadd.f32 %v8722, %v8668
      %v8755 = vadd.f32 %v8723, %v8671
      %v8756 = vadd.f32 %v8724, %v8676
      %v8757 = vadd.f32 %v8725, %v8679
      %v8758 = vadd.f32 %v8726, %v8684
      %v8759 = vadd.f32 %v8727, %v8687
      %v8760 = vadd.f32 %v8728, %v8692
      %v8761 = vadd.f32 %v8729, %v8695
      %8762 = vst [vmem:[#allocation4] sm:$0xff] %v8730
      %8763 = vst [vmem:[#allocation4 + $0x8] sm:$0xff] %v8731
      %8764 = vst [vmem:[#allocation4 + $0x10] sm:$0xff] %v8732
      %8765 = vst [vmem:[#allocation4 + $0x18] sm:$0xff] %v8733
      %8766 = vst [vmem:[#allocation4 + $0x20] sm:$0xff] %v8734
      %8767 = vst [vmem:[#allocation4 + $0x28] sm:$0xff] %v8735
      %8768 = vst [vmem:[#allocation4 + $0x30] sm:$0xff] %v8736
      %8769 = vst [vmem:[#allocation4 + $0x38] sm:$0xff] %v8737
      %8770 = vst [vmem:[#allocation4 + $0x40] sm:$0xff] %v8738
      %8771 = vst [vmem:[#allocation4 + $0x48] sm:$0xff] %v8739
      %8772 = vst [vmem:[#allocation4 + $0x50] sm:$0xff] %v8740
      %8773 = vst [vmem:[#allocation4 + $0x58] sm:$0xff] %v8741
      %8774 = vst [vmem:[#allocation4 + $0x60] sm:$0xff] %v8742
      %8775 = vst [vmem:[#allocation4 + $0x68] sm:$0xff] %v8743
      %8776 = vst [vmem:[#allocation4 + $0x70] sm:$0xff] %v8744
      %8777 = vst [vmem:[#allocation4 + $0x78] sm:$0xff] %v8745
      %8778 = vst [vmem:[#allocation4 + $0x80] sm:$0xff] %v8746
      %8779 = vst [vmem:[#allocation4 + $0x88] sm:$0xff] %v8747
      %8780 = vst [vmem:[#allocation4 + $0x90] sm:$0xff] %v8748
      %8781 = vst [vmem:[#allocation4 + $0x98] sm:$0xff] %v8749
      %8782 = vst [vmem:[#allocation4 + $0xa0] sm:$0xff] %v8750
      %8783 = vst [vmem:[#allocation4 + $0xa8] sm:$0xff] %v8751
      %8784 = vst [vmem:[#allocation4 + $0xb0] sm:$0xff] %v8752
      %8785 = vst [vmem:[#allocation4 + $0xb8] sm:$0xff] %v8753
      %8786 = vst [vmem:[#allocation4 + $0xc0] sm:$0xff] %v8754
      %8787 = vst [vmem:[#allocation4 + $0xc8] sm:$0xff] %v8755
      %8788 = vst [vmem:[#allocation4 + $0xd0] sm:$0xff] %v8756
      %8789 = vst [vmem:[#allocation4 + $0xd8] sm:$0xff] %v8757
      %8790 = vst [vmem:[#allocation4 + $0xe0] sm:$0xff] %v8758
      %8791 = vst [vmem:[#allocation4 + $0xe8] sm:$0xff] %v8759
      %8792 = vst [vmem:[#allocation4 + $0xf0] sm:$0xff] %v8760
      %8793 = vst [vmem:[#allocation4 + $0xf8] sm:$0xff] %v8761
      %v8794 = vld [vmem:[%s3724] sm:$0xf]
      %v8795 = vld [vmem:[%s3724 + $0x4] sm:$0xf]
      %v8796 = vld [vmem:[%s3724 + $0x8] sm:$0xf]
      %v8797 = vld [vmem:[%s3724 + $0xc] sm:$0xf]
      %v8798 = vld [vmem:[%s3724 + $0x10] sm:$0xf]
      %v8799 = vld [vmem:[%s3724 + $0x14] sm:$0xf]
      %v8800 = vld [vmem:[%s3724 + $0x18] sm:$0xf]
      %v8801 = vld [vmem:[%s3724 + $0x1c] sm:$0xf]
      %v8802 = vld [vmem:[%s3724 + $0x20] sm:$0xf]
      %v8803 = vld [vmem:[%s3724 + $0x24] sm:$0xf]
      %v8804 = vld [vmem:[%s3724 + $0x28] sm:$0xf]
      %v8805 = vld [vmem:[%s3724 + $0x2c] sm:$0xf]
      %v8806 = vld [vmem:[%s3724 + $0x30] sm:$0xf]
      %v8807 = vld [vmem:[%s3724 + $0x34] sm:$0xf]
      %v8808 = vld [vmem:[%s3724 + $0x38] sm:$0xf]
      %v8809 = vld [vmem:[%s3724 + $0x3c] sm:$0xf]
      %v8810 = vld [vmem:[%s3724 + $0x40] sm:$0xf]
      %v8811 = vld [vmem:[%s3724 + $0x44] sm:$0xf]
      %v8812 = vld [vmem:[%s3724 + $0x48] sm:$0xf]
      %v8813 = vld [vmem:[%s3724 + $0x4c] sm:$0xf]
      %v8814 = vld [vmem:[%s3724 + $0x50] sm:$0xf]
      %v8815 = vld [vmem:[%s3724 + $0x54] sm:$0xf]
      %v8816 = vld [vmem:[%s3724 + $0x58] sm:$0xf]
      %v8817 = vld [vmem:[%s3724 + $0x5c] sm:$0xf]
      %v8818 = vld [vmem:[%s3724 + $0x60] sm:$0xf]
      %v8819 = vld [vmem:[%s3724 + $0x64] sm:$0xf]
      %v8820 = vld [vmem:[%s3724 + $0x68] sm:$0xf]
      %v8821 = vld [vmem:[%s3724 + $0x6c] sm:$0xf]
      %v8822 = vld [vmem:[%s3724 + $0x70] sm:$0xf]
      %v8823 = vld [vmem:[%s3724 + $0x74] sm:$0xf]
      %v8824 = vld [vmem:[%s3724 + $0x78] sm:$0xf]
      %v8825 = vld [vmem:[%s3724 + $0x7c] sm:$0xf]
      %v8826 = vld [vmem:[%s3724 + $0x80] sm:$0xf]
      %v8827 = vld [vmem:[%s3724 + $0x84] sm:$0xf]
      %v8828 = vld [vmem:[%s3724 + $0x88] sm:$0xf]
      %v8829 = vld [vmem:[%s3724 + $0x8c] sm:$0xf]
      %v8830 = vld [vmem:[%s3724 + $0x90] sm:$0xf]
      %v8831 = vld [vmem:[%s3724 + $0x94] sm:$0xf]
      %v8832 = vld [vmem:[%s3724 + $0x98] sm:$0xf]
      %v8833 = vld [vmem:[%s3724 + $0x9c] sm:$0xf]
      %v8834 = vld [vmem:[%s3724 + $0xa0] sm:$0xf]
      %v8835 = vld [vmem:[%s3724 + $0xa4] sm:$0xf]
      %v8836 = vld [vmem:[%s3724 + $0xa8] sm:$0xf]
      %v8837 = vld [vmem:[%s3724 + $0xac] sm:$0xf]
      %v8838 = vld [vmem:[%s3724 + $0xb0] sm:$0xf]
      %v8839 = vld [vmem:[%s3724 + $0xb4] sm:$0xf]
      %v8840 = vld [vmem:[%s3724 + $0xb8] sm:$0xf]
      %v8841 = vld [vmem:[%s3724 + $0xbc] sm:$0xf]
      %v8874 = vunpack.c.l.b16 %v8794
      %v8875 = vunpack.c.l.b16 %v8795
      %v8876 = vunpack.c.l.b16 %v8797
      %v8877 = vunpack.c.l.b16 %v8798
      %v8878 = vunpack.c.l.b16 %v8800
      %v8879 = vunpack.c.l.b16 %v8801
      %v8880 = vunpack.c.l.b16 %v8803
      %v8881 = vunpack.c.l.b16 %v8804
      %v8882 = vunpack.c.l.b16 %v8806
      %v8883 = vunpack.c.l.b16 %v8807
      %v8884 = vunpack.c.l.b16 %v8809
      %v8885 = vunpack.c.l.b16 %v8810
      %v8886 = vunpack.c.l.b16 %v8812
      %v8887 = vunpack.c.l.b16 %v8813
      %v8888 = vunpack.c.l.b16 %v8815
      %v8889 = vunpack.c.l.b16 %v8816
      %v8890 = vunpack.c.l.b16 %v8818
      %v8891 = vunpack.c.l.b16 %v8819
      %v8892 = vunpack.c.l.b16 %v8821
      %v8893 = vunpack.c.l.b16 %v8822
      %v8894 = vunpack.c.l.b16 %v8824
      %v8895 = vunpack.c.l.b16 %v8825
      %v8896 = vunpack.c.l.b16 %v8827
      %v8897 = vunpack.c.l.b16 %v8828
      %v8898 = vunpack.c.l.b16 %v8830
      %v8899 = vunpack.c.l.b16 %v8831
      %v8900 = vunpack.c.l.b16 %v8833
      %v8901 = vunpack.c.l.b16 %v8834
      %v8902 = vunpack.c.l.b16 %v8836
      %v8903 = vunpack.c.l.b16 %v8837
      %v8904 = vunpack.c.l.b16 %v8839
      %v8905 = vunpack.c.l.b16 %v8840
      %v8906 = vpack.c.b16 %v8875, %v8874
      %v8907 = vpack.c.b16 %v8877, %v8876
      %v8908 = vpack.c.b16 %v8879, %v8878
      %v8909 = vpack.c.b16 %v8881, %v8880
      %v8910 = vpack.c.b16 %v8883, %v8882
      %v8911 = vpack.c.b16 %v8885, %v8884
      %v8912 = vpack.c.b16 %v8887, %v8886
      %v8913 = vpack.c.b16 %v8889, %v8888
      %v8914 = vpack.c.b16 %v8891, %v8890
      %v8915 = vpack.c.b16 %v8893, %v8892
      %v8916 = vpack.c.b16 %v8895, %v8894
      %v8917 = vpack.c.b16 %v8897, %v8896
      %v8918 = vpack.c.b16 %v8899, %v8898
      %v8919 = vpack.c.b16 %v8901, %v8900
      %v8920 = vpack.c.b16 %v8903, %v8902
      %v8921 = vpack.c.b16 %v8905, %v8904
      %8938 = vst [vmem:[#allocation3] sm:$0xff] %v8906
      %8939 = vst [vmem:[#allocation3 + $0x18] sm:$0xff] %v8907
      %8940 = vst [vmem:[#allocation3 + $0x30] sm:$0xff] %v8908
      %8941 = vst [vmem:[#allocation3 + $0x48] sm:$0xff] %v8909
      %8942 = vst [vmem:[#allocation3 + $0x60] sm:$0xff] %v8910
      %8943 = vst [vmem:[#allocation3 + $0x78] sm:$0xff] %v8911
      %8944 = vst [vmem:[#allocation3 + $0x90] sm:$0xff] %v8912
      %8945 = vst [vmem:[#allocation3 + $0xa8] sm:$0xff] %v8913
      %8946 = vst [vmem:[#allocation3 + $0xc0] sm:$0xff] %v8914
      %8947 = vst [vmem:[#allocation3 + $0xd8] sm:$0xff] %v8915
      %8948 = vst [vmem:[#allocation3 + $0xf0] sm:$0xff] %v8916
      %8949 = vst [vmem:[#allocation3 + $0x108] sm:$0xff] %v8917
      %8950 = vst [vmem:[#allocation3 + $0x120] sm:$0xff] %v8918
      %8951 = vst [vmem:[#allocation3 + $0x138] sm:$0xff] %v8919
      %8952 = vst [vmem:[#allocation3 + $0x150] sm:$0xff] %v8920
      %8953 = vst [vmem:[#allocation3 + $0x168] sm:$0xff] %v8921
      %v8955 = vshrl.u32 %v8794, 16
      %v8957 = vrot.slane %v8955, 4
      %v8958 = vshll.u32 %v8794, 16
      %v8960 = vrot.slane %v8958, 5
      %v8961 = vor.u32 %v8957, %v8960
      %v8962 = vrot.slane %v8961, 4
      %v8964 = vshll.u32 %v8795, 16
      %v8966 = vrot.slane %v8964, 5
      %v8967 = vsel %vm964, %v8962, %v8966
      %v8968 = vshrl.u32 %v8795, 16
      %v8970 = vrot.slane %v8968, 4
      %v8971 = vor.u32 %v8970, %v8966
      %v8972 = vrot.slane %v8971, 4
      %v8974 = vshll.u32 %v8796, 16
      %v8976 = vrot.slane %v8974, 5
      %v8977 = vsel %vm964, %v8972, %v8976
      %v8979 = vshrl.u32 %v8797, 16
      %v8981 = vrot.slane %v8979, 4
      %v8982 = vshll.u32 %v8797, 16
      %v8984 = vrot.slane %v8982, 5
      %v8985 = vor.u32 %v8981, %v8984
      %v8986 = vrot.slane %v8985, 4
      %v8988 = vshll.u32 %v8798, 16
      %v8990 = vrot.slane %v8988, 5
      %v8991 = vsel %vm964, %v8986, %v8990
      %v8992 = vshrl.u32 %v8798, 16
      %v8994 = vrot.slane %v8992, 4
      %v8995 = vor.u32 %v8994, %v8990
      %v8996 = vrot.slane %v8995, 4
      %v8998 = vshll.u32 %v8799, 16
      %v9000 = vrot.slane %v8998, 5
      %v9001 = vsel %vm964, %v8996, %v9000
      %v9003 = vshrl.u32 %v8800, 16
      %v9005 = vrot.slane %v9003, 4
      %v9006 = vshll.u32 %v8800, 16
      %v9008 = vrot.slane %v9006, 5
      %v9009 = vor.u32 %v9005, %v9008
      %v9010 = vrot.slane %v9009, 4
      %v9012 = vshll.u32 %v8801, 16
      %v9014 = vrot.slane %v9012, 5
      %v9015 = vsel %vm964, %v9010, %v9014
      %v9016 = vshrl.u32 %v8801, 16
      %v9018 = vrot.slane %v9016, 4
      %v9019 = vor.u32 %v9018, %v9014
      %v9020 = vrot.slane %v9019, 4
      %v9022 = vshll.u32 %v8802, 16
      %v9024 = vrot.slane %v9022, 5
      %v9025 = vsel %vm964, %v9020, %v9024
      %v9027 = vshrl.u32 %v8803, 16
      %v9029 = vrot.slane %v9027, 4
      %v9030 = vshll.u32 %v8803, 16
      %v9032 = vrot.slane %v9030, 5
      %v9033 = vor.u32 %v9029, %v9032
      %v9034 = vrot.slane %v9033, 4
      %v9036 = vshll.u32 %v8804, 16
      %v9038 = vrot.slane %v9036, 5
      %v9039 = vsel %vm964, %v9034, %v9038
      %v9040 = vshrl.u32 %v8804, 16
      %v9042 = vrot.slane %v9040, 4
      %v9043 = vor.u32 %v9042, %v9038
      %v9044 = vrot.slane %v9043, 4
      %v9046 = vshll.u32 %v8805, 16
      %v9048 = vrot.slane %v9046, 5
      %v9049 = vsel %vm964, %v9044, %v9048
      %v9051 = vshrl.u32 %v8806, 16
      %v9053 = vrot.slane %v9051, 4
      %v9054 = vshll.u32 %v8806, 16
      %v9056 = vrot.slane %v9054, 5
      %v9057 = vor.u32 %v9053, %v9056
      %v9058 = vrot.slane %v9057, 4
      %v9060 = vshll.u32 %v8807, 16
      %v9062 = vrot.slane %v9060, 5
      %v9063 = vsel %vm964, %v9058, %v9062
      %v9064 = vshrl.u32 %v8807, 16
      %v9066 = vrot.slane %v9064, 4
      %v9067 = vor.u32 %v9066, %v9062
      %v9068 = vrot.slane %v9067, 4
      %v9070 = vshll.u32 %v8808, 16
      %v9072 = vrot.slane %v9070, 5
      %v9073 = vsel %vm964, %v9068, %v9072
      %v9075 = vshrl.u32 %v8809, 16
      %v9077 = vrot.slane %v9075, 4
      %v9078 = vshll.u32 %v8809, 16
      %v9080 = vrot.slane %v9078, 5
      %v9081 = vor.u32 %v9077, %v9080
      %v9082 = vrot.slane %v9081, 4
      %v9084 = vshll.u32 %v8810, 16
      %v9086 = vrot.slane %v9084, 5
      %v9087 = vsel %vm964, %v9082, %v9086
      %v9088 = vshrl.u32 %v8810, 16
      %v9090 = vrot.slane %v9088, 4
      %v9091 = vor.u32 %v9090, %v9086
      %v9092 = vrot.slane %v9091, 4
      %v9094 = vshll.u32 %v8811, 16
      %v9096 = vrot.slane %v9094, 5
      %v9097 = vsel %vm964, %v9092, %v9096
      %v9099 = vshrl.u32 %v8812, 16
      %v9101 = vrot.slane %v9099, 4
      %v9102 = vshll.u32 %v8812, 16
      %v9104 = vrot.slane %v9102, 5
      %v9105 = vor.u32 %v9101, %v9104
      %v9106 = vrot.slane %v9105, 4
      %v9108 = vshll.u32 %v8813, 16
      %v9110 = vrot.slane %v9108, 5
      %v9111 = vsel %vm964, %v9106, %v9110
      %v9112 = vshrl.u32 %v8813, 16
      %v9114 = vrot.slane %v9112, 4
      %v9115 = vor.u32 %v9114, %v9110
      %v9116 = vrot.slane %v9115, 4
      %v9118 = vshll.u32 %v8814, 16
      %v9120 = vrot.slane %v9118, 5
      %v9121 = vsel %vm964, %v9116, %v9120
      %v9123 = vshrl.u32 %v8815, 16
      %v9125 = vrot.slane %v9123, 4
      %v9126 = vshll.u32 %v8815, 16
      %v9128 = vrot.slane %v9126, 5
      %v9129 = vor.u32 %v9125, %v9128
      %v9130 = vrot.slane %v9129, 4
      %v9132 = vshll.u32 %v8816, 16
      %v9134 = vrot.slane %v9132, 5
      %v9135 = vsel %vm964, %v9130, %v9134
      %v9136 = vshrl.u32 %v8816, 16
      %v9138 = vrot.slane %v9136, 4
      %v9139 = vor.u32 %v9138, %v9134
      %v9140 = vrot.slane %v9139, 4
      %v9142 = vshll.u32 %v8817, 16
      %v9144 = vrot.slane %v9142, 5
      %v9145 = vsel %vm964, %v9140, %v9144
      %v9147 = vshrl.u32 %v8818, 16
      %v9149 = vrot.slane %v9147, 4
      %v9150 = vshll.u32 %v8818, 16
      %v9152 = vrot.slane %v9150, 5
      %v9153 = vor.u32 %v9149, %v9152
      %v9154 = vrot.slane %v9153, 4
      %v9156 = vshll.u32 %v8819, 16
      %v9158 = vrot.slane %v9156, 5
      %v9159 = vsel %vm964, %v9154, %v9158
      %v9160 = vshrl.u32 %v8819, 16
      %v9162 = vrot.slane %v9160, 4
      %v9163 = vor.u32 %v9162, %v9158
      %v9164 = vrot.slane %v9163, 4
      %v9166 = vshll.u32 %v8820, 16
      %v9168 = vrot.slane %v9166, 5
      %v9169 = vsel %vm964, %v9164, %v9168
      %v9171 = vshrl.u32 %v8821, 16
      %v9173 = vrot.slane %v9171, 4
      %v9174 = vshll.u32 %v8821, 16
      %v9176 = vrot.slane %v9174, 5
      %v9177 = vor.u32 %v9173, %v9176
      %v9178 = vrot.slane %v9177, 4
      %v9180 = vshll.u32 %v8822, 16
      %v9182 = vrot.slane %v9180, 5
      %v9183 = vsel %vm964, %v9178, %v9182
      %v9184 = vshrl.u32 %v8822, 16
      %v9186 = vrot.slane %v9184, 4
      %v9187 = vor.u32 %v9186, %v9182
      %v9188 = vrot.slane %v9187, 4
      %v9190 = vshll.u32 %v8823, 16
      %v9192 = vrot.slane %v9190, 5
      %v9193 = vsel %vm964, %v9188, %v9192
      %v9195 = vshrl.u32 %v8824, 16
      %v9197 = vrot.slane %v9195, 4
      %v9198 = vshll.u32 %v8824, 16
      %v9200 = vrot.slane %v9198, 5
      %v9201 = vor.u32 %v9197, %v9200
      %v9202 = vrot.slane %v9201, 4
      %v9204 = vshll.u32 %v8825, 16
      %v9206 = vrot.slane %v9204, 5
      %v9207 = vsel %vm964, %v9202, %v9206
      %v9208 = vshrl.u32 %v8825, 16
      %v9210 = vrot.slane %v9208, 4
      %v9211 = vor.u32 %v9210, %v9206
      %v9212 = vrot.slane %v9211, 4
      %v9214 = vshll.u32 %v8826, 16
      %v9216 = vrot.slane %v9214, 5
      %v9217 = vsel %vm964, %v9212, %v9216
      %v9219 = vshrl.u32 %v8827, 16
      %v9221 = vrot.slane %v9219, 4
      %v9222 = vshll.u32 %v8827, 16
      %v9224 = vrot.slane %v9222, 5
      %v9225 = vor.u32 %v9221, %v9224
      %v9226 = vrot.slane %v9225, 4
      %v9228 = vshll.u32 %v8828, 16
      %v9230 = vrot.slane %v9228, 5
      %v9231 = vsel %vm964, %v9226, %v9230
      %v9232 = vshrl.u32 %v8828, 16
      %v9234 = vrot.slane %v9232, 4
      %v9235 = vor.u32 %v9234, %v9230
      %v9236 = vrot.slane %v9235, 4
      %v9238 = vshll.u32 %v8829, 16
      %v9240 = vrot.slane %v9238, 5
      %v9241 = vsel %vm964, %v9236, %v9240
      %v9243 = vshrl.u32 %v8830, 16
      %v9245 = vrot.slane %v9243, 4
      %v9246 = vshll.u32 %v8830, 16
      %v9248 = vrot.slane %v9246, 5
      %v9249 = vor.u32 %v9245, %v9248
      %v9250 = vrot.slane %v9249, 4
      %v9252 = vshll.u32 %v8831, 16
      %v9254 = vrot.slane %v9252, 5
      %v9255 = vsel %vm964, %v9250, %v9254
      %v9256 = vshrl.u32 %v8831, 16
      %v9258 = vrot.slane %v9256, 4
      %v9259 = vor.u32 %v9258, %v9254
      %v9260 = vrot.slane %v9259, 4
      %v9262 = vshll.u32 %v8832, 16
      %v9264 = vrot.slane %v9262, 5
      %v9265 = vsel %vm964, %v9260, %v9264
      %v9267 = vshrl.u32 %v8833, 16
      %v9269 = vrot.slane %v9267, 4
      %v9270 = vshll.u32 %v8833, 16
      %v9272 = vrot.slane %v9270, 5
      %v9273 = vor.u32 %v9269, %v9272
      %v9274 = vrot.slane %v9273, 4
      %v9276 = vshll.u32 %v8834, 16
      %v9278 = vrot.slane %v9276, 5
      %v9279 = vsel %vm964, %v9274, %v9278
      %v9280 = vshrl.u32 %v8834, 16
      %v9282 = vrot.slane %v9280, 4
      %v9283 = vor.u32 %v9282, %v9278
      %v9284 = vrot.slane %v9283, 4
      %v9286 = vshll.u32 %v8835, 16
      %v9288 = vrot.slane %v9286, 5
      %v9289 = vsel %vm964, %v9284, %v9288
      %v9291 = vshrl.u32 %v8836, 16
      %v9293 = vrot.slane %v9291, 4
      %v9294 = vshll.u32 %v8836, 16
      %v9296 = vrot.slane %v9294, 5
      %v9297 = vor.u32 %v9293, %v9296
      %v9298 = vrot.slane %v9297, 4
      %v9300 = vshll.u32 %v8837, 16
      %v9302 = vrot.slane %v9300, 5
      %v9303 = vsel %vm964, %v9298, %v9302
      %v9304 = vshrl.u32 %v8837, 16
      %v9306 = vrot.slane %v9304, 4
      %v9307 = vor.u32 %v9306, %v9302
      %v9308 = vrot.slane %v9307, 4
      %v9310 = vshll.u32 %v8838, 16
      %v9312 = vrot.slane %v9310, 5
      %v9313 = vsel %vm964, %v9308, %v9312
      %v9315 = vshrl.u32 %v8839, 16
      %v9317 = vrot.slane %v9315, 4
      %v9318 = vshll.u32 %v8839, 16
      %v9320 = vrot.slane %v9318, 5
      %v9321 = vor.u32 %v9317, %v9320
      %v9322 = vrot.slane %v9321, 4
      %v9324 = vshll.u32 %v8840, 16
      %v9326 = vrot.slane %v9324, 5
      %v9327 = vsel %vm964, %v9322, %v9326
      %v9328 = vshrl.u32 %v8840, 16
      %v9330 = vrot.slane %v9328, 4
      %v9331 = vor.u32 %v9330, %v9326
      %v9332 = vrot.slane %v9331, 4
      %v9334 = vshll.u32 %v8841, 16
      %v9336 = vrot.slane %v9334, 5
      %v9337 = vsel %vm964, %v9332, %v9336
      %v9338 = vunpack.c.l.b16 %v8967
      %v9339 = vunpack.c.l.b16 %v8977
      %v9340 = vunpack.c.l.b16 %v8991
      %v9341 = vunpack.c.l.b16 %v9001
      %v9342 = vunpack.c.l.b16 %v9015
      %v9343 = vunpack.c.l.b16 %v9025
      %v9344 = vunpack.c.l.b16 %v9039
      %v9345 = vunpack.c.l.b16 %v9049
      %v9346 = vunpack.c.l.b16 %v9063
      %v9347 = vunpack.c.l.b16 %v9073
      %v9348 = vunpack.c.l.b16 %v9087
      %v9349 = vunpack.c.l.b16 %v9097
      %v9350 = vunpack.c.l.b16 %v9111
      %v9351 = vunpack.c.l.b16 %v9121
      %v9352 = vunpack.c.l.b16 %v9135
      %v9353 = vunpack.c.l.b16 %v9145
      %v9354 = vunpack.c.l.b16 %v9159
      %v9355 = vunpack.c.l.b16 %v9169
      %v9356 = vunpack.c.l.b16 %v9183
      %v9357 = vunpack.c.l.b16 %v9193
      %v9358 = vunpack.c.l.b16 %v9207
      %v9359 = vunpack.c.l.b16 %v9217
      %v9360 = vunpack.c.l.b16 %v9231
      %v9361 = vunpack.c.l.b16 %v9241
      %v9362 = vunpack.c.l.b16 %v9255
      %v9363 = vunpack.c.l.b16 %v9265
      %v9364 = vunpack.c.l.b16 %v9279
      %v9365 = vunpack.c.l.b16 %v9289
      %v9366 = vunpack.c.l.b16 %v9303
      %v9367 = vunpack.c.l.b16 %v9313
      %v9368 = vunpack.c.l.b16 %v9327
      %v9369 = vunpack.c.l.b16 %v9337
      %v9370 = vpack.c.b16 %v9339, %v9338
      %v9371 = vpack.c.b16 %v9341, %v9340
      %v9372 = vpack.c.b16 %v9343, %v9342
      %v9373 = vpack.c.b16 %v9345, %v9344
      %v9374 = vpack.c.b16 %v9347, %v9346
      %v9375 = vpack.c.b16 %v9349, %v9348
      %v9376 = vpack.c.b16 %v9351, %v9350
      %v9377 = vpack.c.b16 %v9353, %v9352
      %v9378 = vpack.c.b16 %v9355, %v9354
      %v9379 = vpack.c.b16 %v9357, %v9356
      %v9380 = vpack.c.b16 %v9359, %v9358
      %v9381 = vpack.c.b16 %v9361, %v9360
      %v9382 = vpack.c.b16 %v9363, %v9362
      %v9383 = vpack.c.b16 %v9365, %v9364
      %v9384 = vpack.c.b16 %v9367, %v9366
      %v9385 = vpack.c.b16 %v9369, %v9368
      %9402 = vst [vmem:[#allocation3 + $0x8] sm:$0xff] %v9370
      %9403 = vst [vmem:[#allocation3 + $0x20] sm:$0xff] %v9371
      %9404 = vst [vmem:[#allocation3 + $0x38] sm:$0xff] %v9372
      %9405 = vst [vmem:[#allocation3 + $0x50] sm:$0xff] %v9373
      %9406 = vst [vmem:[#allocation3 + $0x68] sm:$0xff] %v9374
      %9407 = vst [vmem:[#allocation3 + $0x80] sm:$0xff] %v9375
      %9408 = vst [vmem:[#allocation3 + $0x98] sm:$0xff] %v9376
      %9409 = vst [vmem:[#allocation3 + $0xb0] sm:$0xff] %v9377
      %9410 = vst [vmem:[#allocation3 + $0xc8] sm:$0xff] %v9378
      %9411 = vst [vmem:[#allocation3 + $0xe0] sm:$0xff] %v9379
      %9412 = vst [vmem:[#allocation3 + $0xf8] sm:$0xff] %v9380
      %9413 = vst [vmem:[#allocation3 + $0x110] sm:$0xff] %v9381
      %9414 = vst [vmem:[#allocation3 + $0x128] sm:$0xff] %v9382
      %9415 = vst [vmem:[#allocation3 + $0x140] sm:$0xff] %v9383
      %9416 = vst [vmem:[#allocation3 + $0x158] sm:$0xff] %v9384
      %9417 = vst [vmem:[#allocation3 + $0x170] sm:$0xff] %v9385
      %v9434 = vrot.slane %v8794, 5
      %v9435 = vrot.slane %v9434, 4
      %v9436 = vrot.slane %v8795, 5
      %v9437 = vsel %vm1447, %v9435, %v9436
      %v9438 = vrot.slane %v9436, 4
      %v9439 = vrot.slane %v8796, 5
      %v9440 = vsel %vm1447, %v9438, %v9439
      %v9441 = vrot.slane %v8797, 5
      %v9442 = vrot.slane %v9441, 4
      %v9443 = vrot.slane %v8798, 5
      %v9444 = vsel %vm1447, %v9442, %v9443
      %v9445 = vrot.slane %v9443, 4
      %v9446 = vrot.slane %v8799, 5
      %v9447 = vsel %vm1447, %v9445, %v9446
      %v9448 = vrot.slane %v8800, 5
      %v9449 = vrot.slane %v9448, 4
      %v9450 = vrot.slane %v8801, 5
      %v9451 = vsel %vm1447, %v9449, %v9450
      %v9452 = vrot.slane %v9450, 4
      %v9453 = vrot.slane %v8802, 5
      %v9454 = vsel %vm1447, %v9452, %v9453
      %v9455 = vrot.slane %v8803, 5
      %v9456 = vrot.slane %v9455, 4
      %v9457 = vrot.slane %v8804, 5
      %v9458 = vsel %vm1447, %v9456, %v9457
      %v9459 = vrot.slane %v9457, 4
      %v9460 = vrot.slane %v8805, 5
      %v9461 = vsel %vm1447, %v9459, %v9460
      %v9462 = vrot.slane %v8806, 5
      %v9463 = vrot.slane %v9462, 4
      %v9464 = vrot.slane %v8807, 5
      %v9465 = vsel %vm1447, %v9463, %v9464
      %v9466 = vrot.slane %v9464, 4
      %v9467 = vrot.slane %v8808, 5
      %v9468 = vsel %vm1447, %v9466, %v9467
      %v9469 = vrot.slane %v8809, 5
      %v9470 = vrot.slane %v9469, 4
      %v9471 = vrot.slane %v8810, 5
      %v9472 = vsel %vm1447, %v9470, %v9471
      %v9473 = vrot.slane %v9471, 4
      %v9474 = vrot.slane %v8811, 5
      %v9475 = vsel %vm1447, %v9473, %v9474
      %v9476 = vrot.slane %v8812, 5
      %v9477 = vrot.slane %v9476, 4
      %v9478 = vrot.slane %v8813, 5
      %v9479 = vsel %vm1447, %v9477, %v9478
      %v9480 = vrot.slane %v9478, 4
      %v9481 = vrot.slane %v8814, 5
      %v9482 = vsel %vm1447, %v9480, %v9481
      %v9483 = vrot.slane %v8815, 5
      %v9484 = vrot.slane %v9483, 4
      %v9485 = vrot.slane %v8816, 5
      %v9486 = vsel %vm1447, %v9484, %v9485
      %v9487 = vrot.slane %v9485, 4
      %v9488 = vrot.slane %v8817, 5
      %v9489 = vsel %vm1447, %v9487, %v9488
      %v9490 = vrot.slane %v8818, 5
      %v9491 = vrot.slane %v9490, 4
      %v9492 = vrot.slane %v8819, 5
      %v9493 = vsel %vm1447, %v9491, %v9492
      %v9494 = vrot.slane %v9492, 4
      %v9495 = vrot.slane %v8820, 5
      %v9496 = vsel %vm1447, %v9494, %v9495
      %v9497 = vrot.slane %v8821, 5
      %v9498 = vrot.slane %v9497, 4
      %v9499 = vrot.slane %v8822, 5
      %v9500 = vsel %vm1447, %v9498, %v9499
      %v9501 = vrot.slane %v9499, 4
      %v9502 = vrot.slane %v8823, 5
      %v9503 = vsel %vm1447, %v9501, %v9502
      %v9504 = vrot.slane %v8824, 5
      %v9505 = vrot.slane %v9504, 4
      %v9506 = vrot.slane %v8825, 5
      %v9507 = vsel %vm1447, %v9505, %v9506
      %v9508 = vrot.slane %v9506, 4
      %v9509 = vrot.slane %v8826, 5
      %v9510 = vsel %vm1447, %v9508, %v9509
      %v9511 = vrot.slane %v8827, 5
      %v9512 = vrot.slane %v9511, 4
      %v9513 = vrot.slane %v8828, 5
      %v9514 = vsel %vm1447, %v9512, %v9513
      %v9515 = vrot.slane %v9513, 4
      %v9516 = vrot.slane %v8829, 5
      %v9517 = vsel %vm1447, %v9515, %v9516
      %v9518 = vrot.slane %v8830, 5
      %v9519 = vrot.slane %v9518, 4
      %v9520 = vrot.slane %v8831, 5
      %v9521 = vsel %vm1447, %v9519, %v9520
      %v9522 = vrot.slane %v9520, 4
      %v9523 = vrot.slane %v8832, 5
      %v9524 = vsel %vm1447, %v9522, %v9523
      %v9525 = vrot.slane %v8833, 5
      %v9526 = vrot.slane %v9525, 4
      %v9527 = vrot.slane %v8834, 5
      %v9528 = vsel %vm1447, %v9526, %v9527
      %v9529 = vrot.slane %v9527, 4
      %v9530 = vrot.slane %v8835, 5
      %v9531 = vsel %vm1447, %v9529, %v9530
      %v9532 = vrot.slane %v8836, 5
      %v9533 = vrot.slane %v9532, 4
      %v9534 = vrot.slane %v8837, 5
      %v9535 = vsel %vm1447, %v9533, %v9534
      %v9536 = vrot.slane %v9534, 4
      %v9537 = vrot.slane %v8838, 5
      %v9538 = vsel %vm1447, %v9536, %v9537
      %v9539 = vrot.slane %v8839, 5
      %v9540 = vrot.slane %v9539, 4
      %v9541 = vrot.slane %v8840, 5
      %v9542 = vsel %vm1447, %v9540, %v9541
      %v9543 = vrot.slane %v9541, 4
      %v9544 = vrot.slane %v8841, 5
      %v9545 = vsel %vm1447, %v9543, %v9544
      %v9546 = vunpack.c.l.b16 %v9437
      %v9547 = vunpack.c.l.b16 %v9440
      %v9548 = vunpack.c.l.b16 %v9444
      %v9549 = vunpack.c.l.b16 %v9447
      %v9550 = vunpack.c.l.b16 %v9451
      %v9551 = vunpack.c.l.b16 %v9454
      %v9552 = vunpack.c.l.b16 %v9458
      %v9553 = vunpack.c.l.b16 %v9461
      %v9554 = vunpack.c.l.b16 %v9465
      %v9555 = vunpack.c.l.b16 %v9468
      %v9556 = vunpack.c.l.b16 %v9472
      %v9557 = vunpack.c.l.b16 %v9475
      %v9558 = vunpack.c.l.b16 %v9479
      %v9559 = vunpack.c.l.b16 %v9482
      %v9560 = vunpack.c.l.b16 %v9486
      %v9561 = vunpack.c.l.b16 %v9489
      %v9562 = vunpack.c.l.b16 %v9493
      %v9563 = vunpack.c.l.b16 %v9496
      %v9564 = vunpack.c.l.b16 %v9500
      %v9565 = vunpack.c.l.b16 %v9503
      %v9566 = vunpack.c.l.b16 %v9507
      %v9567 = vunpack.c.l.b16 %v9510
      %v9568 = vunpack.c.l.b16 %v9514
      %v9569 = vunpack.c.l.b16 %v9517
      %v9570 = vunpack.c.l.b16 %v9521
      %v9571 = vunpack.c.l.b16 %v9524
      %v9572 = vunpack.c.l.b16 %v9528
      %v9573 = vunpack.c.l.b16 %v9531
      %v9574 = vunpack.c.l.b16 %v9535
      %v9575 = vunpack.c.l.b16 %v9538
      %v9576 = vunpack.c.l.b16 %v9542
      %v9577 = vunpack.c.l.b16 %v9545
      %v9578 = vpack.c.b16 %v9547, %v9546
      %v9579 = vpack.c.b16 %v9549, %v9548
      %v9580 = vpack.c.b16 %v9551, %v9550
      %v9581 = vpack.c.b16 %v9553, %v9552
      %v9582 = vpack.c.b16 %v9555, %v9554
      %v9583 = vpack.c.b16 %v9557, %v9556
      %v9584 = vpack.c.b16 %v9559, %v9558
      %v9585 = vpack.c.b16 %v9561, %v9560
      %v9586 = vpack.c.b16 %v9563, %v9562
      %v9587 = vpack.c.b16 %v9565, %v9564
      %v9588 = vpack.c.b16 %v9567, %v9566
      %v9589 = vpack.c.b16 %v9569, %v9568
      %v9590 = vpack.c.b16 %v9571, %v9570
      %v9591 = vpack.c.b16 %v9573, %v9572
      %v9592 = vpack.c.b16 %v9575, %v9574
      %v9593 = vpack.c.b16 %v9577, %v9576
      %9610 = vst [vmem:[#allocation3 + $0x10] sm:$0xff] %v9578
      %9611 = vst [vmem:[#allocation3 + $0x28] sm:$0xff] %v9579
      %9612 = vst [vmem:[#allocation3 + $0x40] sm:$0xff] %v9580
      %9613 = vst [vmem:[#allocation3 + $0x58] sm:$0xff] %v9581
      %9614 = vst [vmem:[#allocation3 + $0x70] sm:$0xff] %v9582
      %9615 = vst [vmem:[#allocation3 + $0x88] sm:$0xff] %v9583
      %9616 = vst [vmem:[#allocation3 + $0xa0] sm:$0xff] %v9584
      %9617 = vst [vmem:[#allocation3 + $0xb8] sm:$0xff] %v9585
      %9618 = vst [vmem:[#allocation3 + $0xd0] sm:$0xff] %v9586
      %9619 = vst [vmem:[#allocation3 + $0xe8] sm:$0xff] %v9587
      %9620 = vst [vmem:[#allocation3 + $0x100] sm:$0xff] %v9588
      %9621 = vst [vmem:[#allocation3 + $0x118] sm:$0xff] %v9589
      %9622 = vst [vmem:[#allocation3 + $0x130] sm:$0xff] %v9590
      %9623 = vst [vmem:[#allocation3 + $0x148] sm:$0xff] %v9591
      %9624 = vst [vmem:[#allocation3 + $0x160] sm:$0xff] %v9592
      %9625 = vst [vmem:[#allocation3 + $0x178] sm:$0xff] %v9593
      %v9626 = vld [vmem:[#allocation3] sm:$0xff]
      %v9627 = vld [vmem:[#allocation3 + $0x8] sm:$0xff]
      %v9628 = vld [vmem:[#allocation3 + $0x10] sm:$0xff]
      %v9629 = vld [vmem:[#allocation3 + $0x18] sm:$0xff]
      %v9630 = vld [vmem:[#allocation3 + $0x20] sm:$0xff]
      %v9631 = vld [vmem:[#allocation3 + $0x28] sm:$0xff]
      %v9632 = vld [vmem:[#allocation3 + $0x30] sm:$0xff]
      %v9633 = vld [vmem:[#allocation3 + $0x38] sm:$0xff]
      %v9634 = vld [vmem:[#allocation3 + $0x40] sm:$0xff]
      %v9635 = vld [vmem:[#allocation3 + $0x48] sm:$0xff]
      %v9636 = vld [vmem:[#allocation3 + $0x50] sm:$0xff]
      %v9637 = vld [vmem:[#allocation3 + $0x58] sm:$0xff]
      %v9638 = vld [vmem:[#allocation3 + $0x60] sm:$0xff]
      %v9639 = vld [vmem:[#allocation3 + $0x68] sm:$0xff]
      %v9640 = vld [vmem:[#allocation3 + $0x70] sm:$0xff]
      %v9641 = vld [vmem:[#allocation3 + $0x78] sm:$0xff]
      %v9642 = vld [vmem:[#allocation3 + $0x80] sm:$0xff]
      %v9643 = vld [vmem:[#allocation3 + $0x88] sm:$0xff]
      %v9644 = vld [vmem:[#allocation3 + $0x90] sm:$0xff]
      %v9645 = vld [vmem:[#allocation3 + $0x98] sm:$0xff]
      %v9646 = vld [vmem:[#allocation3 + $0xa0] sm:$0xff]
      %v9647 = vld [vmem:[#allocation3 + $0xa8] sm:$0xff]
      %v9648 = vld [vmem:[#allocation3 + $0xb0] sm:$0xff]
      %v9649 = vld [vmem:[#allocation3 + $0xb8] sm:$0xff]
      %v9650 = vld [vmem:[#allocation3 + $0xc0] sm:$0xff]
      %v9651 = vld [vmem:[#allocation3 + $0xc8] sm:$0xff]
      %v9652 = vld [vmem:[#allocation3 + $0xd0] sm:$0xff]
      %v9653 = vld [vmem:[#allocation3 + $0xd8] sm:$0xff]
      %v9654 = vld [vmem:[#allocation3 + $0xe0] sm:$0xff]
      %v9655 = vld [vmem:[#allocation3 + $0xe8] sm:$0xff]
      %v9656 = vld [vmem:[#allocation3 + $0xf0] sm:$0xff]
      %v9657 = vld [vmem:[#allocation3 + $0xf8] sm:$0xff]
      %v9658 = vld [vmem:[#allocation3 + $0x100] sm:$0xff]
      %v9659 = vld [vmem:[#allocation3 + $0x108] sm:$0xff]
      %v9660 = vld [vmem:[#allocation3 + $0x110] sm:$0xff]
      %v9661 = vld [vmem:[#allocation3 + $0x118] sm:$0xff]
      %v9662 = vld [vmem:[#allocation3 + $0x120] sm:$0xff]
      %v9663 = vld [vmem:[#allocation3 + $0x128] sm:$0xff]
      %v9664 = vld [vmem:[#allocation3 + $0x130] sm:$0xff]
      %v9665 = vld [vmem:[#allocation3 + $0x138] sm:$0xff]
      %v9666 = vld [vmem:[#allocation3 + $0x140] sm:$0xff]
      %v9667 = vld [vmem:[#allocation3 + $0x148] sm:$0xff]
      %v9668 = vld [vmem:[#allocation3 + $0x150] sm:$0xff]
      %v9669 = vld [vmem:[#allocation3 + $0x158] sm:$0xff]
      %v9670 = vld [vmem:[#allocation3 + $0x160] sm:$0xff]
      %v9671 = vld [vmem:[#allocation3 + $0x168] sm:$0xff]
      %v9672 = vld [vmem:[#allocation3 + $0x170] sm:$0xff]
      %v9673 = vld [vmem:[#allocation3 + $0x178] sm:$0xff]
      %v9674 = vld [vmem:[%s3 + $0x180] sm:$0xf]
      %v9675 = vld [vmem:[%s3 + $0x184] sm:$0xf]
      %v9676 = vld [vmem:[%s3 + $0x188] sm:$0xf]
      %v9677 = vld [vmem:[%s3 + $0x18c] sm:$0xf]
      %v9678 = vld [vmem:[%s3 + $0x190] sm:$0xf]
      %v9679 = vld [vmem:[%s3 + $0x194] sm:$0xf]
      %v9680 = vld [vmem:[%s3 + $0x198] sm:$0xf]
      %v9681 = vld [vmem:[%s3 + $0x19c] sm:$0xf]
      %v9682 = vld [vmem:[%s3 + $0x1a0] sm:$0xf]
      %v9683 = vld [vmem:[%s3 + $0x1a4] sm:$0xf]
      %v9684 = vld [vmem:[%s3 + $0x1a8] sm:$0xf]
      %v9685 = vld [vmem:[%s3 + $0x1ac] sm:$0xf]
      %v9686 = vld [vmem:[%s3 + $0x1b0] sm:$0xf]
      %v9687 = vld [vmem:[%s3 + $0x1b4] sm:$0xf]
      %v9688 = vld [vmem:[%s3 + $0x1b8] sm:$0xf]
      %v9689 = vld [vmem:[%s3 + $0x1bc] sm:$0xf]
      %v9690 = vld [vmem:[%s3 + $0x1c0] sm:$0xf]
      %v9691 = vld [vmem:[%s3 + $0x1c4] sm:$0xf]
      %v9692 = vld [vmem:[%s3 + $0x1c8] sm:$0xf]
      %v9693 = vld [vmem:[%s3 + $0x1cc] sm:$0xf]
      %v9694 = vld [vmem:[%s3 + $0x1d0] sm:$0xf]
      %v9695 = vld [vmem:[%s3 + $0x1d4] sm:$0xf]
      %v9696 = vld [vmem:[%s3 + $0x1d8] sm:$0xf]
      %v9697 = vld [vmem:[%s3 + $0x1dc] sm:$0xf]
      %v9698 = vld [vmem:[%s3 + $0x1e0] sm:$0xf]
      %v9699 = vld [vmem:[%s3 + $0x1e4] sm:$0xf]
      %v9700 = vld [vmem:[%s3 + $0x1e8] sm:$0xf]
      %v9701 = vld [vmem:[%s3 + $0x1ec] sm:$0xf]
      %v9702 = vld [vmem:[%s3 + $0x1f0] sm:$0xf]
      %v9703 = vld [vmem:[%s3 + $0x1f4] sm:$0xf]
      %v9704 = vld [vmem:[%s3 + $0x1f8] sm:$0xf]
      %v9705 = vld [vmem:[%s3 + $0x1fc] sm:$0xf]
      %v9706 = vld [vmem:[%s3 + $0x200] sm:$0xf]
      %v9707 = vld [vmem:[%s3 + $0x204] sm:$0xf]
      %v9708 = vld [vmem:[%s3 + $0x208] sm:$0xf]
      %v9709 = vld [vmem:[%s3 + $0x20c] sm:$0xf]
      %v9710 = vld [vmem:[%s3 + $0x210] sm:$0xf]
      %v9711 = vld [vmem:[%s3 + $0x214] sm:$0xf]
      %v9712 = vld [vmem:[%s3 + $0x218] sm:$0xf]
      %v9713 = vld [vmem:[%s3 + $0x21c] sm:$0xf]
      %v9714 = vld [vmem:[%s3 + $0x220] sm:$0xf]
      %v9715 = vld [vmem:[%s3 + $0x224] sm:$0xf]
      %v9716 = vld [vmem:[%s3 + $0x228] sm:$0xf]
      %v9717 = vld [vmem:[%s3 + $0x22c] sm:$0xf]
      %v9718 = vld [vmem:[%s3 + $0x230] sm:$0xf]
      %v9719 = vld [vmem:[%s3 + $0x234] sm:$0xf]
      %v9720 = vld [vmem:[%s3 + $0x238] sm:$0xf]
      %v9721 = vld [vmem:[%s3 + $0x23c] sm:$0xf]
      %v9770 = vunpack.c.l.b16 %v9674
      %v9771 = vunpack.c.l.b16 %v9675
      %v9772 = vunpack.c.l.b16 %v9676
      %v9773 = vunpack.c.l.b16 %v9677
      %v9774 = vunpack.c.l.b16 %v9678
      %v9775 = vunpack.c.l.b16 %v9679
      %v9776 = vunpack.c.l.b16 %v9680
      %v9777 = vunpack.c.l.b16 %v9681
      %v9778 = vunpack.c.l.b16 %v9682
      %v9779 = vunpack.c.l.b16 %v9683
      %v9780 = vunpack.c.l.b16 %v9684
      %v9781 = vunpack.c.l.b16 %v9685
      %v9782 = vunpack.c.l.b16 %v9686
      %v9783 = vunpack.c.l.b16 %v9687
      %v9784 = vunpack.c.l.b16 %v9688
      %v9785 = vunpack.c.l.b16 %v9689
      %v9786 = vunpack.c.l.b16 %v9690
      %v9787 = vunpack.c.l.b16 %v9691
      %v9788 = vunpack.c.l.b16 %v9692
      %v9789 = vunpack.c.l.b16 %v9693
      %v9790 = vunpack.c.l.b16 %v9694
      %v9791 = vunpack.c.l.b16 %v9695
      %v9792 = vunpack.c.l.b16 %v9696
      %v9793 = vunpack.c.l.b16 %v9697
      %v9794 = vunpack.c.l.b16 %v9698
      %v9795 = vunpack.c.l.b16 %v9699
      %v9796 = vunpack.c.l.b16 %v9700
      %v9797 = vunpack.c.l.b16 %v9701
      %v9798 = vunpack.c.l.b16 %v9702
      %v9799 = vunpack.c.l.b16 %v9703
      %v9800 = vunpack.c.l.b16 %v9704
      %v9801 = vunpack.c.l.b16 %v9705
      %v9802 = vunpack.c.l.b16 %v9706
      %v9803 = vunpack.c.l.b16 %v9707
      %v9804 = vunpack.c.l.b16 %v9708
      %v9805 = vunpack.c.l.b16 %v9709
      %v9806 = vunpack.c.l.b16 %v9710
      %v9807 = vunpack.c.l.b16 %v9711
      %v9808 = vunpack.c.l.b16 %v9712
      %v9809 = vunpack.c.l.b16 %v9713
      %v9810 = vunpack.c.l.b16 %v9714
      %v9811 = vunpack.c.l.b16 %v9715
      %v9812 = vunpack.c.l.b16 %v9716
      %v9813 = vunpack.c.l.b16 %v9717
      %v9814 = vunpack.c.l.b16 %v9718
      %v9815 = vunpack.c.l.b16 %v9719
      %v9816 = vunpack.c.l.b16 %v9720
      %v9817 = vunpack.c.l.b16 %v9721
      %v9818 = vpack.c.b16 %v9771, %v9770
      %v9819 = vpack.c.b16 %v9773, %v9772
      %v9820 = vpack.c.b16 %v9775, %v9774
      %v9821 = vpack.c.b16 %v9777, %v9776
      %v9822 = vpack.c.b16 %v9779, %v9778
      %v9823 = vpack.c.b16 %v9781, %v9780
      %v9824 = vpack.c.b16 %v9783, %v9782
      %v9825 = vpack.c.b16 %v9785, %v9784
      %v9826 = vpack.c.b16 %v9787, %v9786
      %v9827 = vpack.c.b16 %v9789, %v9788
      %v9828 = vpack.c.b16 %v9791, %v9790
      %v9829 = vpack.c.b16 %v9793, %v9792
      %v9830 = vpack.c.b16 %v9795, %v9794
      %v9831 = vpack.c.b16 %v9797, %v9796
      %v9832 = vpack.c.b16 %v9799, %v9798
      %v9833 = vpack.c.b16 %v9801, %v9800
      %v9834 = vpack.c.b16 %v9803, %v9802
      %v9835 = vpack.c.b16 %v9805, %v9804
      %v9836 = vpack.c.b16 %v9807, %v9806
      %v9837 = vpack.c.b16 %v9809, %v9808
      %v9838 = vpack.c.b16 %v9811, %v9810
      %v9839 = vpack.c.b16 %v9813, %v9812
      %v9840 = vpack.c.b16 %v9815, %v9814
      %v9841 = vpack.c.b16 %v9817, %v9816
      %9866 = vmatprep.subr.bf16.mxu0 0
      %9867 = vmatpush1.bf16.msra.mxu0 %v9818
      %9868 = vmatprep.subr.bf16.mxu0 0
      %9869 = vmatpush1.bf16.msra.mxu0 %v9819
      %9870 = vmatprep.subr.bf16.mxu0 0
      %9871 = vmatpush1.bf16.msra.mxu0 %v9820
      %9872 = vmatprep.subr.bf16.mxu0 0
      %9873 = vmatpush1.bf16.msra.mxu0 %v9821
      %9874 = vmatprep.subr.bf16.mxu0 0
      %9875 = vmatpush1.bf16.msra.mxu0 %v9822
      %9876 = vmatprep.subr.bf16.mxu0 0
      %9877 = vmatpush1.bf16.msra.mxu0 %v9823
      %9878 = vmatprep.subr.bf16.mxu0 0
      %9879 = vmatpush1.bf16.msra.mxu0 %v9824
      %9880 = vmatprep.subr.bf16.mxu0 0
      %9881 = vmatpush1.bf16.msra.mxu0 %v9825
      %9882 = vmatprep.subr.bf16.mxu0 0
      %9883 = vmatpush1.bf16.msra.mxu0 %v9826
      %9884 = vmatprep.subr.bf16.mxu0 0
      %9885 = vmatpush1.bf16.msra.mxu0 %v9827
      %9886 = vmatprep.subr.bf16.mxu0 0
      %9887 = vmatpush1.bf16.msra.mxu0 %v9828
      %9888 = vmatprep.subr.bf16.mxu0 0
      %9889 = vmatpush1.bf16.msra.mxu0 %v9829
      %9890 = vmatprep.subr.bf16.mxu0 0
      %9891 = vmatpush1.bf16.msra.mxu0 %v9830
      %9892 = vmatprep.subr.bf16.mxu0 0
      %9893 = vmatpush1.bf16.msra.mxu0 %v9831
      %9894 = vmatprep.subr.bf16.mxu0 0
      %9895 = vmatpush1.bf16.msra.mxu0 %v9832
      %9896 = vmatprep.subr.bf16.mxu0 0
      %9897 = vmatpush1.bf16.msra.mxu0 %v9833
      %9898 = vmatprep.mubr.bf16.mxu0 %v9627
      %9899 = vmatmul.mubr.bf16.gmra.mrb[0].mxu0 %v9626
      %v9900 = vpop.f32.mrb[0].mxu0
      %v9901 = vadd.f32 0.0, %v9900
      %v9902 = vpop.f32.mrb[0].mxu0
      %v9903 = vpop.f32.mrb[0].mxu0
      %v9904 = vadd.f32 0.0, %v9903
      %v9905 = vpop.f32.mrb[0].mxu0
      %9906 = vmatprep.mubr.bf16.mxu0 %v9630
      %9907 = vmatmul.mubr.bf16.gmra.mrb[0].mxu0 %v9629
      %v9908 = vpop.f32.mrb[0].mxu0
      %v9909 = vadd.f32 0.0, %v9908
      %v9910 = vpop.f32.mrb[0].mxu0
      %v9911 = vpop.f32.mrb[0].mxu0
      %v9912 = vadd.f32 0.0, %v9911
      %v9913 = vpop.f32.mrb[0].mxu0
      %9914 = vmatprep.mubr.bf16.mxu0 %v9633
      %9915 = vmatmul.mubr.bf16.gmra.mrb[0].mxu0 %v9632
      %v9916 = vpop.f32.mrb[0].mxu0
      %v9917 = vadd.f32 0.0, %v9916
      %v9918 = vpop.f32.mrb[0].mxu0
      %v9919 = vpop.f32.mrb[0].mxu0
      %v9920 = vadd.f32 0.0, %v9919
      %v9921 = vpop.f32.mrb[0].mxu0
      %9922 = vmatprep.mubr.bf16.mxu0 %v9636
      %9923 = vmatmul.mubr.bf16.gmra.mrb[0].mxu0 %v9635
      %v9924 = vpop.f32.mrb[0].mxu0
      %v9925 = vadd.f32 0.0, %v9924
      %v9926 = vpop.f32.mrb[0].mxu0
      %v9927 = vpop.f32.mrb[0].mxu0
      %v9928 = vadd.f32 0.0, %v9927
      %v9929 = vpop.f32.mrb[0].mxu0
      %9930 = vmatprep.mubr.bf16.mxu0 %v9639
      %9931 = vmatmul.mubr.bf16.gmra.mrb[0].mxu0 %v9638
      %v9932 = vpop.f32.mrb[0].mxu0
      %v9933 = vadd.f32 0.0, %v9932
      %v9934 = vpop.f32.mrb[0].mxu0
      %v9935 = vpop.f32.mrb[0].mxu0
      %v9936 = vadd.f32 0.0, %v9935
      %v9937 = vpop.f32.mrb[0].mxu0
      %9938 = vmatprep.mubr.bf16.mxu0 %v9642
      %9939 = vmatmul.mubr.bf16.gmra.mrb[0].mxu0 %v9641
      %v9940 = vpop.f32.mrb[0].mxu0
      %v9941 = vadd.f32 0.0, %v9940
      %v9942 = vpop.f32.mrb[0].mxu0
      %v9943 = vpop.f32.mrb[0].mxu0
      %v9944 = vadd.f32 0.0, %v9943
      %v9945 = vpop.f32.mrb[0].mxu0
      %9946 = vmatprep.mubr.bf16.mxu0 %v9645
      %9947 = vmatmul.mubr.bf16.gmra.mrb[0].mxu0 %v9644
      %v9948 = vpop.f32.mrb[0].mxu0
      %v9949 = vadd.f32 0.0, %v9948
      %v9950 = vpop.f32.mrb[0].mxu0
      %v9951 = vpop.f32.mrb[0].mxu0
      %v9952 = vadd.f32 0.0, %v9951
      %v9953 = vpop.f32.mrb[0].mxu0
      %9954 = vmatprep.mubr.bf16.mxu0 %v9648
      %9955 = vmatmul.mubr.bf16.gmra.mrb[0].mxu0 %v9647
      %v9956 = vpop.f32.mrb[0].mxu0
      %v9957 = vadd.f32 0.0, %v9956
      %v9958 = vpop.f32.mrb[0].mxu0
      %v9959 = vpop.f32.mrb[0].mxu0
      %v9960 = vadd.f32 0.0, %v9959
      %v9961 = vpop.f32.mrb[0].mxu0
      %9962 = vmatprep.mubr.bf16.mxu0 %v9651
      %9963 = vmatmul.mubr.bf16.gmra.mrb[0].mxu0 %v9650
      %v9964 = vpop.f32.mrb[0].mxu0
      %v9965 = vadd.f32 0.0, %v9964
      %v9966 = vpop.f32.mrb[0].mxu0
      %v9967 = vpop.f32.mrb[0].mxu0
      %v9968 = vadd.f32 0.0, %v9967
      %v9969 = vpop.f32.mrb[0].mxu0
      %9970 = vmatprep.mubr.bf16.mxu0 %v9654
      %9971 = vmatmul.mubr.bf16.gmra.mrb[0].mxu0 %v9653
      %v9972 = vpop.f32.mrb[0].mxu0
      %v9973 = vadd.f32 0.0, %v9972
      %v9974 = vpop.f32.mrb[0].mxu0
      %v9975 = vpop.f32.mrb[0].mxu0
      %v9976 = vadd.f32 0.0, %v9975
      %v9977 = vpop.f32.mrb[0].mxu0
      %9978 = vmatprep.mubr.bf16.mxu0 %v9657
      %9979 = vmatmul.mubr.bf16.gmra.mrb[0].mxu0 %v9656
      %v9980 = vpop.f32.mrb[0].mxu0
      %v9981 = vadd.f32 0.0, %v9980
      %v9982 = vpop.f32.mrb[0].mxu0
      %v9983 = vpop.f32.mrb[0].mxu0
      %v9984 = vadd.f32 0.0, %v9983
      %v9985 = vpop.f32.mrb[0].mxu0
      %9986 = vmatprep.mubr.bf16.mxu0 %v9660
      %9987 = vmatmul.mubr.bf16.gmra.mrb[0].mxu0 %v9659
      %v9988 = vpop.f32.mrb[0].mxu0
      %v9989 = vadd.f32 0.0, %v9988
      %v9990 = vpop.f32.mrb[0].mxu0
      %v9991 = vpop.f32.mrb[0].mxu0
      %v9992 = vadd.f32 0.0, %v9991
      %v9993 = vpop.f32.mrb[0].mxu0
      %9994 = vmatprep.mubr.bf16.mxu0 %v9663
      %9995 = vmatmul.mubr.bf16.gmra.mrb[0].mxu0 %v9662
      %v9996 = vpop.f32.mrb[0].mxu0
      %v9997 = vadd.f32 0.0, %v9996
      %v9998 = vpop.f32.mrb[0].mxu0
      %v9999 = vpop.f32.mrb[0].mxu0
      %v10000 = vadd.f32 0.0, %v9999
      %v10001 = vpop.f32.mrb[0].mxu0
      %10002 = vmatprep.mubr.bf16.mxu0 %v9666
      %10003 = vmatmul.mubr.bf16.gmra.mrb[0].mxu0 %v9665
      %v10004 = vpop.f32.mrb[0].mxu0
      %v10005 = vadd.f32 0.0, %v10004
      %v10006 = vpop.f32.mrb[0].mxu0
      %v10007 = vpop.f32.mrb[0].mxu0
      %v10008 = vadd.f32 0.0, %v10007
      %v10009 = vpop.f32.mrb[0].mxu0
      %10010 = vmatprep.mubr.bf16.mxu0 %v9669
      %10011 = vmatmul.mubr.bf16.gmra.mrb[0].mxu0 %v9668
      %v10012 = vpop.f32.mrb[0].mxu0
      %v10013 = vadd.f32 0.0, %v10012
      %v10014 = vpop.f32.mrb[0].mxu0
      %v10015 = vpop.f32.mrb[0].mxu0
      %v10016 = vadd.f32 0.0, %v10015
      %v10017 = vpop.f32.mrb[0].mxu0
      %10018 = vmatprep.mubr.bf16.mxu0 %v9672
      %10019 = vmatmul.mubr.bf16.gmra.mrb[0].mxu0 %v9671
      %v10020 = vpop.f32.mrb[0].mxu0
      %v10021 = vadd.f32 0.0, %v10020
      %v10022 = vpop.f32.mrb[0].mxu0
      %v10023 = vpop.f32.mrb[0].mxu0
      %v10024 = vadd.f32 0.0, %v10023
      %v10025 = vpop.f32.mrb[0].mxu0
      %10026 = vdwg.mxu0
      %10027 = vmatprep.subr.bf16.mxu0 0
      %10028 = vmatpush1.bf16.msra.mxu0 %v9834
      %10029 = vmatprep.subr.bf16.mxu0 0
      %10030 = vmatpush1.bf16.msra.mxu0 %v9835
      %10031 = vmatprep.subr.bf16.mxu0 0
      %10032 = vmatpush1.bf16.msra.mxu0 %v9836
      %10033 = vmatprep.subr.bf16.mxu0 0
      %10034 = vmatpush1.bf16.msra.mxu0 %v9837
      %10035 = vmatprep.subr.bf16.mxu0 0
      %10036 = vmatpush1.bf16.msra.mxu0 %v9838
      %10037 = vmatprep.subr.bf16.mxu0 0
      %10038 = vmatpush1.bf16.msra.mxu0 %v9839
      %10039 = vmatprep.subr.bf16.mxu0 0
      %10040 = vmatpush1.bf16.msra.mxu0 %v9840
      %10041 = vmatprep.subr.bf16.mxu0 0
      %10042 = vmatpush1.bf16.msra.mxu0 %v9841
      %10043 = vmatprep.subr.bf16.mxu0 0
      %10044 = vmatpush1.bf16.msra.mxu0 0
      %10045 = vmatprep.subr.bf16.mxu0 0
      %10046 = vmatpush1.bf16.msra.mxu0 0
      %10047 = vmatprep.subr.bf16.mxu0 0
      %10048 = vmatpush1.bf16.msra.mxu0 0
      %10049 = vmatprep.subr.bf16.mxu0 0
      %10050 = vmatpush1.bf16.msra.mxu0 0
      %10051 = vmatprep.subr.bf16.mxu0 0
      %10052 = vmatpush1.bf16.msra.mxu0 0
      %10053 = vmatprep.subr.bf16.mxu0 0
      %10054 = vmatpush1.bf16.msra.mxu0 0
      %10055 = vmatprep.subr.bf16.mxu0 0
      %10056 = vmatpush1.bf16.msra.mxu0 0
      %10057 = vmatprep.subr.bf16.mxu0 0
      %10058 = vmatpush1.bf16.msra.mxu0 0
      %10059 = vmatprep.mubr.bf16.mxu0 0
      %10060 = vmatmul.mubr.bf16.gmra.mrb[0].mxu0 %v9628
      %v10061 = vpop.f32.mrb[0].mxu0
      %v10062 = vadd.f32 %v9901, %v10061
      %v10063 = vpop.f32.mrb[0].mxu0
      %v10064 = vpop.f32.mrb[0].mxu0
      %v10065 = vadd.f32 %v9904, %v10064
      %v10066 = vpop.f32.mrb[0].mxu0
      %10067 = vmatprep.mubr.bf16.mxu0 0
      %10068 = vmatmul.mubr.bf16.gmra.mrb[0].mxu0 %v9631
      %v10069 = vpop.f32.mrb[0].mxu0
      %v10070 = vadd.f32 %v9909, %v10069
      %v10071 = vpop.f32.mrb[0].mxu0
      %v10072 = vpop.f32.mrb[0].mxu0
      %v10073 = vadd.f32 %v9912, %v10072
      %v10074 = vpop.f32.mrb[0].mxu0
      %10075 = vmatprep.mubr.bf16.mxu0 0
      %10076 = vmatmul.mubr.bf16.gmra.mrb[0].mxu0 %v9634
      %v10077 = vpop.f32.mrb[0].mxu0
      %v10078 = vadd.f32 %v9917, %v10077
      %v10079 = vpop.f32.mrb[0].mxu0
      %v10080 = vpop.f32.mrb[0].mxu0
      %v10081 = vadd.f32 %v9920, %v10080
      %v10082 = vpop.f32.mrb[0].mxu0
      %10083 = vmatprep.mubr.bf16.mxu0 0
      %10084 = vmatmul.mubr.bf16.gmra.mrb[0].mxu0 %v9637
      %v10085 = vpop.f32.mrb[0].mxu0
      %v10086 = vadd.f32 %v9925, %v10085
      %v10087 = vpop.f32.mrb[0].mxu0
      %v10088 = vpop.f32.mrb[0].mxu0
      %v10089 = vadd.f32 %v9928, %v10088
      %v10090 = vpop.f32.mrb[0].mxu0
      %10091 = vmatprep.mubr.bf16.mxu0 0
      %10092 = vmatmul.mubr.bf16.gmra.mrb[0].mxu0 %v9640
      %v10093 = vpop.f32.mrb[0].mxu0
      %v10094 = vadd.f32 %v9933, %v10093
      %v10095 = vpop.f32.mrb[0].mxu0
      %v10096 = vpop.f32.mrb[0].mxu0
      %v10097 = vadd.f32 %v9936, %v10096
      %v10098 = vpop.f32.mrb[0].mxu0
      %10099 = vmatprep.mubr.bf16.mxu0 0
      %10100 = vmatmul.mubr.bf16.gmra.mrb[0].mxu0 %v9643
      %v10101 = vpop.f32.mrb[0].mxu0
      %v10102 = vadd.f32 %v9941, %v10101
      %v10103 = vpop.f32.mrb[0].mxu0
      %v10104 = vpop.f32.mrb[0].mxu0
      %v10105 = vadd.f32 %v9944, %v10104
      %v10106 = vpop.f32.mrb[0].mxu0
      %10107 = vmatprep.mubr.bf16.mxu0 0
      %10108 = vmatmul.mubr.bf16.gmra.mrb[0].mxu0 %v9646
      %v10109 = vpop.f32.mrb[0].mxu0
      %v10110 = vadd.f32 %v9949, %v10109
      %v10111 = vpop.f32.mrb[0].mxu0
      %v10112 = vpop.f32.mrb[0].mxu0
      %v10113 = vadd.f32 %v9952, %v10112
      %v10114 = vpop.f32.mrb[0].mxu0
      %10115 = vmatprep.mubr.bf16.mxu0 0
      %10116 = vmatmul.mubr.bf16.gmra.mrb[0].mxu0 %v9649
      %v10117 = vpop.f32.mrb[0].mxu0
      %v10118 = vadd.f32 %v9957, %v10117
      %v10119 = vpop.f32.mrb[0].mxu0
      %v10120 = vpop.f32.mrb[0].mxu0
      %v10121 = vadd.f32 %v9960, %v10120
      %v10122 = vpop.f32.mrb[0].mxu0
      %10123 = vmatprep.mubr.bf16.mxu0 0
      %10124 = vmatmul.mubr.bf16.gmra.mrb[0].mxu0 %v9652
      %v10125 = vpop.f32.mrb[0].mxu0
      %v10126 = vadd.f32 %v9965, %v10125
      %v10127 = vpop.f32.mrb[0].mxu0
      %v10128 = vpop.f32.mrb[0].mxu0
      %v10129 = vadd.f32 %v9968, %v10128
      %v10130 = vpop.f32.mrb[0].mxu0
      %10131 = vmatprep.mubr.bf16.mxu0 0
      %10132 = vmatmul.mubr.bf16.gmra.mrb[0].mxu0 %v9655
      %v10133 = vpop.f32.mrb[0].mxu0
      %v10134 = vadd.f32 %v9973, %v10133
      %v10135 = vpop.f32.mrb[0].mxu0
      %v10136 = vpop.f32.mrb[0].mxu0
      %v10137 = vadd.f32 %v9976, %v10136
      %v10138 = vpop.f32.mrb[0].mxu0
      %10139 = vmatprep.mubr.bf16.mxu0 0
      %10140 = vmatmul.mubr.bf16.gmra.mrb[0].mxu0 %v9658
      %v10141 = vpop.f32.mrb[0].mxu0
      %v10142 = vadd.f32 %v9981, %v10141
      %v10143 = vpop.f32.mrb[0].mxu0
      %v10144 = vpop.f32.mrb[0].mxu0
      %v10145 = vadd.f32 %v9984, %v10144
      %v10146 = vpop.f32.mrb[0].mxu0
      %10147 = vmatprep.mubr.bf16.mxu0 0
      %10148 = vmatmul.mubr.bf16.gmra.mrb[0].mxu0 %v9661
      %v10149 = vpop.f32.mrb[0].mxu0
      %v10150 = vadd.f32 %v9989, %v10149
      %v10151 = vpop.f32.mrb[0].mxu0
      %v10152 = vpop.f32.mrb[0].mxu0
      %v10153 = vadd.f32 %v9992, %v10152
      %v10154 = vpop.f32.mrb[0].mxu0
      %10155 = vmatprep.mubr.bf16.mxu0 0
      %10156 = vmatmul.mubr.bf16.gmra.mrb[0].mxu0 %v9664
      %v10157 = vpop.f32.mrb[0].mxu0
      %v10158 = vadd.f32 %v9997, %v10157
      %v10159 = vpop.f32.mrb[0].mxu0
      %v10160 = vpop.f32.mrb[0].mxu0
      %v10161 = vadd.f32 %v10000, %v10160
      %v10162 = vpop.f32.mrb[0].mxu0
      %10163 = vmatprep.mubr.bf16.mxu0 0
      %10164 = vmatmul.mubr.bf16.gmra.mrb[0].mxu0 %v9667
      %v10165 = vpop.f32.mrb[0].mxu0
      %v10166 = vadd.f32 %v10005, %v10165
      %v10167 = vpop.f32.mrb[0].mxu0
      %v10168 = vpop.f32.mrb[0].mxu0
      %v10169 = vadd.f32 %v10008, %v10168
      %v10170 = vpop.f32.mrb[0].mxu0
      %10171 = vmatprep.mubr.bf16.mxu0 0
      %10172 = vmatmul.mubr.bf16.gmra.mrb[0].mxu0 %v9670
      %v10173 = vpop.f32.mrb[0].mxu0
      %v10174 = vadd.f32 %v10013, %v10173
      %v10175 = vpop.f32.mrb[0].mxu0
      %v10176 = vpop.f32.mrb[0].mxu0
      %v10177 = vadd.f32 %v10016, %v10176
      %v10178 = vpop.f32.mrb[0].mxu0
      %10179 = vmatprep.mubr.bf16.mxu0 0
      %10180 = vmatmul.mubr.bf16.gmra.mrb[0].mxu0 %v9673
      %v10181 = vpop.f32.mrb[0].mxu0
      %v10182 = vadd.f32 %v10021, %v10181
      %v10183 = vpop.f32.mrb[0].mxu0
      %v10184 = vpop.f32.mrb[0].mxu0
      %v10185 = vadd.f32 %v10024, %v10184
      %v10186 = vpop.f32.mrb[0].mxu0
      %10187 = vdwg.mxu0
      %v10188 = vld [vmem:[#allocation4] sm:$0xff]
      %v10189 = vld [vmem:[#allocation4 + $0x8] sm:$0xff]
      %v10190 = vld [vmem:[#allocation4 + $0x10] sm:$0xff]
      %v10191 = vld [vmem:[#allocation4 + $0x18] sm:$0xff]
      %v10192 = vld [vmem:[#allocation4 + $0x20] sm:$0xff]
      %v10193 = vld [vmem:[#allocation4 + $0x28] sm:$0xff]
      %v10194 = vld [vmem:[#allocation4 + $0x30] sm:$0xff]
      %v10195 = vld [vmem:[#allocation4 + $0x38] sm:$0xff]
      %v10196 = vld [vmem:[#allocation4 + $0x40] sm:$0xff]
      %v10197 = vld [vmem:[#allocation4 + $0x48] sm:$0xff]
      %v10198 = vld [vmem:[#allocation4 + $0x50] sm:$0xff]
      %v10199 = vld [vmem:[#allocation4 + $0x58] sm:$0xff]
      %v10200 = vld [vmem:[#allocation4 + $0x60] sm:$0xff]
      %v10201 = vld [vmem:[#allocation4 + $0x68] sm:$0xff]
      %v10202 = vld [vmem:[#allocation4 + $0x70] sm:$0xff]
      %v10203 = vld [vmem:[#allocation4 + $0x78] sm:$0xff]
      %v10204 = vld [vmem:[#allocation4 + $0x80] sm:$0xff]
      %v10205 = vld [vmem:[#allocation4 + $0x88] sm:$0xff]
      %v10206 = vld [vmem:[#allocation4 + $0x90] sm:$0xff]
      %v10207 = vld [vmem:[#allocation4 + $0x98] sm:$0xff]
      %v10208 = vld [vmem:[#allocation4 + $0xa0] sm:$0xff]
      %v10209 = vld [vmem:[#allocation4 + $0xa8] sm:$0xff]
      %v10210 = vld [vmem:[#allocation4 + $0xb0] sm:$0xff]
      %v10211 = vld [vmem:[#allocation4 + $0xb8] sm:$0xff]
      %v10212 = vld [vmem:[#allocation4 + $0xc0] sm:$0xff]
      %v10213 = vld [vmem:[#allocation4 + $0xc8] sm:$0xff]
      %v10214 = vld [vmem:[#allocation4 + $0xd0] sm:$0xff]
      %v10215 = vld [vmem:[#allocation4 + $0xd8] sm:$0xff]
      %v10216 = vld [vmem:[#allocation4 + $0xe0] sm:$0xff]
      %v10217 = vld [vmem:[#allocation4 + $0xe8] sm:$0xff]
      %v10218 = vld [vmem:[#allocation4 + $0xf0] sm:$0xff]
      %v10219 = vld [vmem:[#allocation4 + $0xf8] sm:$0xff]
      %v10220 = vadd.f32 %v10188, %v10062
      %v10221 = vadd.f32 %v10189, %v10065
      %v10222 = vadd.f32 %v10190, %v10070
      %v10223 = vadd.f32 %v10191, %v10073
      %v10224 = vadd.f32 %v10192, %v10078
      %v10225 = vadd.f32 %v10193, %v10081
      %v10226 = vadd.f32 %v10194, %v10086
      %v10227 = vadd.f32 %v10195, %v10089
      %v10228 = vadd.f32 %v10196, %v10094
      %v10229 = vadd.f32 %v10197, %v10097
      %v10230 = vadd.f32 %v10198, %v10102
      %v10231 = vadd.f32 %v10199, %v10105
      %v10232 = vadd.f32 %v10200, %v10110
      %v10233 = vadd.f32 %v10201, %v10113
      %v10234 = vadd.f32 %v10202, %v10118
      %v10235 = vadd.f32 %v10203, %v10121
      %v10236 = vadd.f32 %v10204, %v10126
      %v10237 = vadd.f32 %v10205, %v10129
      %v10238 = vadd.f32 %v10206, %v10134
      %v10239 = vadd.f32 %v10207, %v10137
      %v10240 = vadd.f32 %v10208, %v10142
      %v10241 = vadd.f32 %v10209, %v10145
      %v10242 = vadd.f32 %v10210, %v10150
      %v10243 = vadd.f32 %v10211, %v10153
      %v10244 = vadd.f32 %v10212, %v10158
      %v10245 = vadd.f32 %v10213, %v10161
      %v10246 = vadd.f32 %v10214, %v10166
      %v10247 = vadd.f32 %v10215, %v10169
      %v10248 = vadd.f32 %v10216, %v10174
      %v10249 = vadd.f32 %v10217, %v10177
      %v10250 = vadd.f32 %v10218, %v10182
      %v10251 = vadd.f32 %v10219, %v10185
      %10252 = vst [vmem:[#allocation4] sm:$0xff] %v10220
      %10253 = vst [vmem:[#allocation4 + $0x8] sm:$0xff] %v10221
      %10254 = vst [vmem:[#allocation4 + $0x10] sm:$0xff] %v10222
      %10255 = vst [vmem:[#allocation4 + $0x18] sm:$0xff] %v10223
      %10256 = vst [vmem:[#allocation4 + $0x20] sm:$0xff] %v10224
      %10257 = vst [vmem:[#allocation4 + $0x28] sm:$0xff] %v10225
      %10258 = vst [vmem:[#allocation4 + $0x30] sm:$0xff] %v10226
      %10259 = vst [vmem:[#allocation4 + $0x38] sm:$0xff] %v10227
      %10260 = vst [vmem:[#allocation4 + $0x40] sm:$0xff] %v10228
      %10261 = vst [vmem:[#allocation4 + $0x48] sm:$0xff] %v10229
      %10262 = vst [vmem:[#allocation4 + $0x50] sm:$0xff] %v10230
      %10263 = vst [vmem:[#allocation4 + $0x58] sm:$0xff] %v10231
      %10264 = vst [vmem:[#allocation4 + $0x60] sm:$0xff] %v10232
      %10265 = vst [vmem:[#allocation4 + $0x68] sm:$0xff] %v10233
      %10266 = vst [vmem:[#allocation4 + $0x70] sm:$0xff] %v10234
      %10267 = vst [vmem:[#allocation4 + $0x78] sm:$0xff] %v10235
      %10268 = vst [vmem:[#allocation4 + $0x80] sm:$0xff] %v10236
      %10269 = vst [vmem:[#allocation4 + $0x88] sm:$0xff] %v10237
      %10270 = vst [vmem:[#allocation4 + $0x90] sm:$0xff] %v10238
      %10271 = vst [vmem:[#allocation4 + $0x98] sm:$0xff] %v10239
      %10272 = vst [vmem:[#allocation4 + $0xa0] sm:$0xff] %v10240
      %10273 = vst [vmem:[#allocation4 + $0xa8] sm:$0xff] %v10241
      %10274 = vst [vmem:[#allocation4 + $0xb0] sm:$0xff] %v10242
      %10275 = vst [vmem:[#allocation4 + $0xb8] sm:$0xff] %v10243
      %10276 = vst [vmem:[#allocation4 + $0xc0] sm:$0xff] %v10244
      %10277 = vst [vmem:[#allocation4 + $0xc8] sm:$0xff] %v10245
      %10278 = vst [vmem:[#allocation4 + $0xd0] sm:$0xff] %v10246
      %10279 = vst [vmem:[#allocation4 + $0xd8] sm:$0xff] %v10247
      %10280 = vst [vmem:[#allocation4 + $0xe0] sm:$0xff] %v10248
      %10281 = vst [vmem:[#allocation4 + $0xe8] sm:$0xff] %v10249
      %10282 = vst [vmem:[#allocation4 + $0xf0] sm:$0xff] %v10250
      %10283 = vst [vmem:[#allocation4 + $0xf8] sm:$0xff] %v10251
      %v10284 = vld [vmem:[#allocation4] sm:$0xff]
      %v10285 = vld [vmem:[#allocation4 + $0x8] sm:$0xff]
      %v10286 = vld [vmem:[#allocation4 + $0x10] sm:$0xff]
      %v10287 = vld [vmem:[#allocation4 + $0x18] sm:$0xff]
      %v10288 = vld [vmem:[#allocation4 + $0x20] sm:$0xff]
      %v10289 = vld [vmem:[#allocation4 + $0x28] sm:$0xff]
      %v10290 = vld [vmem:[#allocation4 + $0x30] sm:$0xff]
      %v10291 = vld [vmem:[#allocation4 + $0x38] sm:$0xff]
      %v10292 = vld [vmem:[#allocation4 + $0x40] sm:$0xff]
      %v10293 = vld [vmem:[#allocation4 + $0x48] sm:$0xff]
      %v10294 = vld [vmem:[#allocation4 + $0x50] sm:$0xff]
      %v10295 = vld [vmem:[#allocation4 + $0x58] sm:$0xff]
      %v10296 = vld [vmem:[#allocation4 + $0x60] sm:$0xff]
      %v10297 = vld [vmem:[#allocation4 + $0x68] sm:$0xff]
      %v10298 = vld [vmem:[#allocation4 + $0x70] sm:$0xff]
      %v10299 = vld [vmem:[#allocation4 + $0x78] sm:$0xff]
      %v10300 = vld [vmem:[#allocation4 + $0x80] sm:$0xff]
      %v10301 = vld [vmem:[#allocation4 + $0x88] sm:$0xff]
      %v10302 = vld [vmem:[#allocation4 + $0x90] sm:$0xff]
      %v10303 = vld [vmem:[#allocation4 + $0x98] sm:$0xff]
      %v10304 = vld [vmem:[#allocation4 + $0xa0] sm:$0xff]
      %v10305 = vld [vmem:[#allocation4 + $0xa8] sm:$0xff]
      %v10306 = vld [vmem:[#allocation4 + $0xb0] sm:$0xff]
      %v10307 = vld [vmem:[#allocation4 + $0xb8] sm:$0xff]
      %v10308 = vld [vmem:[#allocation4 + $0xc0] sm:$0xff]
      %v10309 = vld [vmem:[#allocation4 + $0xc8] sm:$0xff]
      %v10310 = vld [vmem:[#allocation4 + $0xd0] sm:$0xff]
      %v10311 = vld [vmem:[#allocation4 + $0xd8] sm:$0xff]
      %v10312 = vld [vmem:[#allocation4 + $0xe0] sm:$0xff]
      %v10313 = vld [vmem:[#allocation4 + $0xe8] sm:$0xff]
      %v10314 = vld [vmem:[#allocation4 + $0xf0] sm:$0xff]
      %v10315 = vld [vmem:[#allocation4 + $0xf8] sm:$0xff]
      %v10316 = vld [vmem:[%s4] sm:$0x1]
      %v10318 = vlaneseq
      %v10319 = vshrl.u32 %v10318, 7
      %v10320 = vsub.s32 0, %v10319
      %v10321 = vrot.slane %v10316, %v10320
      %vm10323 = vcmp.ge.f32.partialorder %v10284, %v10321
      %vm10324 = vcmp.ge.f32.partialorder %v10285, %v10321
      %vm10325 = vcmp.ge.f32.partialorder %v10286, %v10321
      %vm10326 = vcmp.ge.f32.partialorder %v10287, %v10321
      %vm10327 = vcmp.ge.f32.partialorder %v10288, %v10321
      %vm10328 = vcmp.ge.f32.partialorder %v10289, %v10321
      %vm10329 = vcmp.ge.f32.partialorder %v10290, %v10321
      %vm10330 = vcmp.ge.f32.partialorder %v10291, %v10321
      %vm10331 = vcmp.ge.f32.partialorder %v10292, %v10321
      %vm10332 = vcmp.ge.f32.partialorder %v10293, %v10321
      %vm10333 = vcmp.ge.f32.partialorder %v10294, %v10321
      %vm10334 = vcmp.ge.f32.partialorder %v10295, %v10321
      %vm10335 = vcmp.ge.f32.partialorder %v10296, %v10321
      %vm10336 = vcmp.ge.f32.partialorder %v10297, %v10321
      %vm10337 = vcmp.ge.f32.partialorder %v10298, %v10321
      %vm10338 = vcmp.ge.f32.partialorder %v10299, %v10321
      %vm10339 = vcmp.ge.f32.partialorder %v10300, %v10321
      %vm10340 = vcmp.ge.f32.partialorder %v10301, %v10321
      %vm10341 = vcmp.ge.f32.partialorder %v10302, %v10321
      %vm10342 = vcmp.ge.f32.partialorder %v10303, %v10321
      %vm10343 = vcmp.ge.f32.partialorder %v10304, %v10321
      %vm10344 = vcmp.ge.f32.partialorder %v10305, %v10321
      %vm10345 = vcmp.ge.f32.partialorder %v10306, %v10321
      %vm10346 = vcmp.ge.f32.partialorder %v10307, %v10321
      %vm10347 = vcmp.ge.f32.partialorder %v10308, %v10321
      %vm10348 = vcmp.ge.f32.partialorder %v10309, %v10321
      %vm10349 = vcmp.ge.f32.partialorder %v10310, %v10321
      %vm10350 = vcmp.ge.f32.partialorder %v10311, %v10321
      %vm10351 = vcmp.ge.f32.partialorder %v10312, %v10321
      %vm10352 = vcmp.ge.f32.partialorder %v10313, %v10321
      %vm10353 = vcmp.ge.f32.partialorder %v10314, %v10321
      %vm10354 = vcmp.ge.f32.partialorder %v10315, %v10321
      %v10355 = vsel %vm10323, 1, 0
      %v10356 = vsel %vm10324, 1, 0
      %v10357 = vsel %vm10325, 1, 0
      %v10358 = vsel %vm10326, 1, 0
      %v10359 = vsel %vm10327, 1, 0
      %v10360 = vsel %vm10328, 1, 0
      %v10361 = vsel %vm10329, 1, 0
      %v10362 = vsel %vm10330, 1, 0
      %v10363 = vsel %vm10331, 1, 0
      %v10364 = vsel %vm10332, 1, 0
      %v10365 = vsel %vm10333, 1, 0
      %v10366 = vsel %vm10334, 1, 0
      %v10367 = vsel %vm10335, 1, 0
      %v10368 = vsel %vm10336, 1, 0
      %v10369 = vsel %vm10337, 1, 0
      %v10370 = vsel %vm10338, 1, 0
      %v10371 = vsel %vm10339, 1, 0
      %v10372 = vsel %vm10340, 1, 0
      %v10373 = vsel %vm10341, 1, 0
      %v10374 = vsel %vm10342, 1, 0
      %v10375 = vsel %vm10343, 1, 0
      %v10376 = vsel %vm10344, 1, 0
      %v10377 = vsel %vm10345, 1, 0
      %v10378 = vsel %vm10346, 1, 0
      %v10379 = vsel %vm10347, 1, 0
      %v10380 = vsel %vm10348, 1, 0
      %v10381 = vsel %vm10349, 1, 0
      %v10382 = vsel %vm10350, 1, 0
      %v10383 = vsel %vm10351, 1, 0
      %v10384 = vsel %vm10352, 1, 0
      %v10385 = vsel %vm10353, 1, 0
      %v10386 = vsel %vm10354, 1, 0
      %v10387 = vcvt.s32.f32 %v10355
      %v10388 = vcvt.s32.f32 %v10356
      %v10389 = vcvt.s32.f32 %v10357
      %v10390 = vcvt.s32.f32 %v10358
      %v10391 = vcvt.s32.f32 %v10359
      %v10392 = vcvt.s32.f32 %v10360
      %v10393 = vcvt.s32.f32 %v10361
      %v10394 = vcvt.s32.f32 %v10362
      %v10395 = vcvt.s32.f32 %v10363
      %v10396 = vcvt.s32.f32 %v10364
      %v10397 = vcvt.s32.f32 %v10365
      %v10398 = vcvt.s32.f32 %v10366
      %v10399 = vcvt.s32.f32 %v10367
      %v10400 = vcvt.s32.f32 %v10368
      %v10401 = vcvt.s32.f32 %v10369
      %v10402 = vcvt.s32.f32 %v10370
      %v10403 = vcvt.s32.f32 %v10371
      %v10404 = vcvt.s32.f32 %v10372
      %v10405 = vcvt.s32.f32 %v10373
      %v10406 = vcvt.s32.f32 %v10374
      %v10407 = vcvt.s32.f32 %v10375
      %v10408 = vcvt.s32.f32 %v10376
      %v10409 = vcvt.s32.f32 %v10377
      %v10410 = vcvt.s32.f32 %v10378
      %v10411 = vcvt.s32.f32 %v10379
      %v10412 = vcvt.s32.f32 %v10380
      %v10413 = vcvt.s32.f32 %v10381
      %v10414 = vcvt.s32.f32 %v10382
      %v10415 = vcvt.s32.f32 %v10383
      %v10416 = vcvt.s32.f32 %v10384
      %v10417 = vcvt.s32.f32 %v10385
      %v10418 = vcvt.s32.f32 %v10386
      %v10419 = vld [vmem:[%s219] sm:$0xf]
      %v10420 = vld [vmem:[%s219 + $0x4] sm:$0xf]
      %v10421 = vld [vmem:[%s219 + $0x8] sm:$0xf]
      %v10422 = vld [vmem:[%s219 + $0xc] sm:$0xf]
      %v10423 = vld [vmem:[%s219 + $0x10] sm:$0xf]
      %v10424 = vld [vmem:[%s219 + $0x14] sm:$0xf]
      %v10425 = vld [vmem:[%s219 + $0x18] sm:$0xf]
      %v10426 = vld [vmem:[%s219 + $0x1c] sm:$0xf]
      %v10427 = vld [vmem:[%s219 + $0x20] sm:$0xf]
      %v10428 = vld [vmem:[%s219 + $0x24] sm:$0xf]
      %v10429 = vld [vmem:[%s219 + $0x28] sm:$0xf]
      %v10430 = vld [vmem:[%s219 + $0x2c] sm:$0xf]
      %v10431 = vld [vmem:[%s219 + $0x30] sm:$0xf]
      %v10432 = vld [vmem:[%s219 + $0x34] sm:$0xf]
      %v10433 = vld [vmem:[%s219 + $0x38] sm:$0xf]
      %v10434 = vld [vmem:[%s219 + $0x3c] sm:$0xf]
      %v10435 = vld [vmem:[%s219 + $0x40] sm:$0xf]
      %v10436 = vld [vmem:[%s219 + $0x44] sm:$0xf]
      %v10437 = vld [vmem:[%s219 + $0x48] sm:$0xf]
      %v10438 = vld [vmem:[%s219 + $0x4c] sm:$0xf]
      %v10439 = vld [vmem:[%s219 + $0x50] sm:$0xf]
      %v10440 = vld [vmem:[%s219 + $0x54] sm:$0xf]
      %v10441 = vld [vmem:[%s219 + $0x58] sm:$0xf]
      %v10442 = vld [vmem:[%s219 + $0x5c] sm:$0xf]
      %v10443 = vld [vmem:[%s219 + $0x60] sm:$0xf]
      %v10444 = vld [vmem:[%s219 + $0x64] sm:$0xf]
      %v10445 = vld [vmem:[%s219 + $0x68] sm:$0xf]
      %v10446 = vld [vmem:[%s219 + $0x6c] sm:$0xf]
      %v10447 = vld [vmem:[%s219 + $0x70] sm:$0xf]
      %v10448 = vld [vmem:[%s219 + $0x74] sm:$0xf]
      %v10449 = vld [vmem:[%s219 + $0x78] sm:$0xf]
      %v10450 = vld [vmem:[%s219 + $0x7c] sm:$0xf]
      %v10451 = vunpack.c.l.bf16 %v10419
      %v10452 = vunpack.c.l.bf16 %v10420
      %v10453 = vunpack.c.l.bf16 %v10421
      %v10454 = vunpack.c.l.bf16 %v10422
      %v10455 = vunpack.c.l.bf16 %v10423
      %v10456 = vunpack.c.l.bf16 %v10424
      %v10457 = vunpack.c.l.bf16 %v10425
      %v10458 = vunpack.c.l.bf16 %v10426
      %v10459 = vunpack.c.l.bf16 %v10427
      %v10460 = vunpack.c.l.bf16 %v10428
      %v10461 = vunpack.c.l.bf16 %v10429
      %v10462 = vunpack.c.l.bf16 %v10430
      %v10463 = vunpack.c.l.bf16 %v10431
      %v10464 = vunpack.c.l.bf16 %v10432
      %v10465 = vunpack.c.l.bf16 %v10433
      %v10466 = vunpack.c.l.bf16 %v10434
      %v10467 = vunpack.c.l.bf16 %v10435
      %v10468 = vunpack.c.l.bf16 %v10436
      %v10469 = vunpack.c.l.bf16 %v10437
      %v10470 = vunpack.c.l.bf16 %v10438
      %v10471 = vunpack.c.l.bf16 %v10439
      %v10472 = vunpack.c.l.bf16 %v10440
      %v10473 = vunpack.c.l.bf16 %v10441
      %v10474 = vunpack.c.l.bf16 %v10442
      %v10475 = vunpack.c.l.bf16 %v10443
      %v10476 = vunpack.c.l.bf16 %v10444
      %v10477 = vunpack.c.l.bf16 %v10445
      %v10478 = vunpack.c.l.bf16 %v10446
      %v10479 = vunpack.c.l.bf16 %v10447
      %v10480 = vunpack.c.l.bf16 %v10448
      %v10481 = vunpack.c.l.bf16 %v10449
      %v10482 = vunpack.c.l.bf16 %v10450
      %v10483 = vadd.f32 %v10387, %v10451
      %v10484 = vadd.f32 %v10388, %v10452
      %v10485 = vadd.f32 %v10389, %v10453
      %v10486 = vadd.f32 %v10390, %v10454
      %v10487 = vadd.f32 %v10391, %v10455
      %v10488 = vadd.f32 %v10392, %v10456
      %v10489 = vadd.f32 %v10393, %v10457
      %v10490 = vadd.f32 %v10394, %v10458
      %v10491 = vadd.f32 %v10395, %v10459
      %v10492 = vadd.f32 %v10396, %v10460
      %v10493 = vadd.f32 %v10397, %v10461
      %v10494 = vadd.f32 %v10398, %v10462
      %v10495 = vadd.f32 %v10399, %v10463
      %v10496 = vadd.f32 %v10400, %v10464
      %v10497 = vadd.f32 %v10401, %v10465
      %v10498 = vadd.f32 %v10402, %v10466
      %v10499 = vadd.f32 %v10403, %v10467
      %v10500 = vadd.f32 %v10404, %v10468
      %v10501 = vadd.f32 %v10405, %v10469
      %v10502 = vadd.f32 %v10406, %v10470
      %v10503 = vadd.f32 %v10407, %v10471
      %v10504 = vadd.f32 %v10408, %v10472
      %v10505 = vadd.f32 %v10409, %v10473
      %v10506 = vadd.f32 %v10410, %v10474
      %v10507 = vadd.f32 %v10411, %v10475
      %v10508 = vadd.f32 %v10412, %v10476
      %v10509 = vadd.f32 %v10413, %v10477
      %v10510 = vadd.f32 %v10414, %v10478
      %v10511 = vadd.f32 %v10415, %v10479
      %v10512 = vadd.f32 %v10416, %v10480
      %v10513 = vadd.f32 %v10417, %v10481
      %v10514 = vadd.f32 %v10418, %v10482
      %v10515 = vpack.c.bf16 %v10484, %v10483
      %v10516 = vpack.c.bf16 %v10486, %v10485
      %v10517 = vpack.c.bf16 %v10488, %v10487
      %v10518 = vpack.c.bf16 %v10490, %v10489
      %v10519 = vpack.c.bf16 %v10492, %v10491
      %v10520 = vpack.c.bf16 %v10494, %v10493
      %v10521 = vpack.c.bf16 %v10496, %v10495
      %v10522 = vpack.c.bf16 %v10498, %v10497
      %v10523 = vpack.c.bf16 %v10500, %v10499
      %v10524 = vpack.c.bf16 %v10502, %v10501
      %v10525 = vpack.c.bf16 %v10504, %v10503
      %v10526 = vpack.c.bf16 %v10506, %v10505
      %v10527 = vpack.c.bf16 %v10508, %v10507
      %v10528 = vpack.c.bf16 %v10510, %v10509
      %v10529 = vpack.c.bf16 %v10512, %v10511
      %v10530 = vpack.c.bf16 %v10514, %v10513
      %v10547 = vunpack.c.l.b16 %v10515
      %v10548 = vunpack.c.h.b16 %v10515
      %v10549 = vunpack.c.l.b16 %v10516
      %v10550 = vunpack.c.h.b16 %v10516
      %v10551 = vunpack.c.l.b16 %v10517
      %v10552 = vunpack.c.h.b16 %v10517
      %v10553 = vunpack.c.l.b16 %v10518
      %v10554 = vunpack.c.h.b16 %v10518
      %v10555 = vunpack.c.l.b16 %v10519
      %v10556 = vunpack.c.h.b16 %v10519
      %v10557 = vunpack.c.l.b16 %v10520
      %v10558 = vunpack.c.h.b16 %v10520
      %v10559 = vunpack.c.l.b16 %v10521
      %v10560 = vunpack.c.h.b16 %v10521
      %v10561 = vunpack.c.l.b16 %v10522
      %v10562 = vunpack.c.h.b16 %v10522
      %v10563 = vunpack.c.l.b16 %v10523
      %v10564 = vunpack.c.h.b16 %v10523
      %v10565 = vunpack.c.l.b16 %v10524
      %v10566 = vunpack.c.h.b16 %v10524
      %v10567 = vunpack.c.l.b16 %v10525
      %v10568 = vunpack.c.h.b16 %v10525
      %v10569 = vunpack.c.l.b16 %v10526
      %v10570 = vunpack.c.h.b16 %v10526
      %v10571 = vunpack.c.l.b16 %v10527
      %v10572 = vunpack.c.h.b16 %v10527
      %v10573 = vunpack.c.l.b16 %v10528
      %v10574 = vunpack.c.h.b16 %v10528
      %v10575 = vunpack.c.l.b16 %v10529
      %v10576 = vunpack.c.h.b16 %v10529
      %v10577 = vunpack.c.l.b16 %v10530
      %v10578 = vunpack.c.h.b16 %v10530
      %v10579 = vpack.c.b16 %v10547, %v10547
      %v10580 = vpack.c.b16 %v10548, %v10548
      %v10581 = vpack.c.b16 %v10549, %v10549
      %v10582 = vpack.c.b16 %v10550, %v10550
      %v10583 = vpack.c.b16 %v10551, %v10551
      %v10584 = vpack.c.b16 %v10552, %v10552
      %v10585 = vpack.c.b16 %v10553, %v10553
      %v10586 = vpack.c.b16 %v10554, %v10554
      %v10587 = vpack.c.b16 %v10555, %v10555
      %v10588 = vpack.c.b16 %v10556, %v10556
      %v10589 = vpack.c.b16 %v10557, %v10557
      %v10590 = vpack.c.b16 %v10558, %v10558
      %v10591 = vpack.c.b16 %v10559, %v10559
      %v10592 = vpack.c.b16 %v10560, %v10560
      %v10593 = vpack.c.b16 %v10561, %v10561
      %v10594 = vpack.c.b16 %v10562, %v10562
      %v10595 = vpack.c.b16 %v10563, %v10563
      %v10596 = vpack.c.b16 %v10564, %v10564
      %v10597 = vpack.c.b16 %v10565, %v10565
      %v10598 = vpack.c.b16 %v10566, %v10566
      %v10599 = vpack.c.b16 %v10567, %v10567
      %v10600 = vpack.c.b16 %v10568, %v10568
      %v10601 = vpack.c.b16 %v10569, %v10569
      %v10602 = vpack.c.b16 %v10570, %v10570
      %v10603 = vpack.c.b16 %v10571, %v10571
      %v10604 = vpack.c.b16 %v10572, %v10572
      %v10605 = vpack.c.b16 %v10573, %v10573
      %v10606 = vpack.c.b16 %v10574, %v10574
      %v10607 = vpack.c.b16 %v10575, %v10575
      %v10608 = vpack.c.b16 %v10576, %v10576
      %v10609 = vpack.c.b16 %v10577, %v10577
      %v10610 = vpack.c.b16 %v10578, %v10578
      %10643 = vst [vmem:[%s224] sm:$0xf] %v10579
      %10644 = vst [vmem:[%s224 + $0x4] sm:$0xf] %v10580
      %10645 = vst [vmem:[%s224 + $0x8] sm:$0xf] %v10581
      %10646 = vst [vmem:[%s224 + $0xc] sm:$0xf] %v10582
      %10647 = vst [vmem:[%s224 + $0x10] sm:$0xf] %v10583
      %10648 = vst [vmem:[%s224 + $0x14] sm:$0xf] %v10584
      %10649 = vst [vmem:[%s224 + $0x18] sm:$0xf] %v10585
      %10650 = vst [vmem:[%s224 + $0x1c] sm:$0xf] %v10586
      %10651 = vst [vmem:[%s224 + $0x20] sm:$0xf] %v10587
      %10652 = vst [vmem:[%s224 + $0x24] sm:$0xf] %v10588
      %10653 = vst [vmem:[%s224 + $0x28] sm:$0xf] %v10589
      %10654 = vst [vmem:[%s224 + $0x2c] sm:$0xf] %v10590
      %10655 = vst [vmem:[%s224 + $0x30] sm:$0xf] %v10591
      %10656 = vst [vmem:[%s224 + $0x34] sm:$0xf] %v10592
      %10657 = vst [vmem:[%s224 + $0x38] sm:$0xf] %v10593
      %10658 = vst [vmem:[%s224 + $0x3c] sm:$0xf] %v10594
      %10659 = vst [vmem:[%s224 + $0x40] sm:$0xf] %v10595
      %10660 = vst [vmem:[%s224 + $0x44] sm:$0xf] %v10596
      %10661 = vst [vmem:[%s224 + $0x48] sm:$0xf] %v10597
      %10662 = vst [vmem:[%s224 + $0x4c] sm:$0xf] %v10598
      %10663 = vst [vmem:[%s224 + $0x50] sm:$0xf] %v10599
      %10664 = vst [vmem:[%s224 + $0x54] sm:$0xf] %v10600
      %10665 = vst [vmem:[%s224 + $0x58] sm:$0xf] %v10601
      %10666 = vst [vmem:[%s224 + $0x5c] sm:$0xf] %v10602
      %10667 = vst [vmem:[%s224 + $0x60] sm:$0xf] %v10603
      %10668 = vst [vmem:[%s224 + $0x64] sm:$0xf] %v10604
      %10669 = vst [vmem:[%s224 + $0x68] sm:$0xf] %v10605
      %10670 = vst [vmem:[%s224 + $0x6c] sm:$0xf] %v10606
      %10671 = vst [vmem:[%s224 + $0x70] sm:$0xf] %v10607
      %10672 = vst [vmem:[%s224 + $0x74] sm:$0xf] %v10608
      %10673 = vst [vmem:[%s224 + $0x78] sm:$0xf] %v10609
      %10674 = vst [vmem:[%s224 + $0x7c] sm:$0xf] %v10610
      %p10675 = scmp.lt.s32.totalorder %s16, 1
      %s10676 = scalar_select %p10675, %s16, 1
      %s10677 = smul.addr %s10676, 32
      %s10678 = smul.addr %s10677, 4
      %s10679 = scalar_lea.vmem %s5, %s10678
      // Predicated region
      $region41: #{basic_block_forward.1} parent=39 // pred_check
        %p10680 = pneg %p144
      $region42: #{basic_block_forward.1} parent=39 // pred_check_branch
        %10682 = sbr.rel (%p10680) target = $region44
      $region43: #{basic_block_forward.1} parent=39 // pred_region
        _
      $region44: #{basic_block_forward.1} parent=39 // pred_fallthru
        _
    $region40: #{basic_block_forward.1} parent=5 // pred_fallthru
      _
    %p10683 = scmp.le.s32.totalorder 2, %s11
    // Predicated region
    $region45: #{basic_block_forward.1} parent=5 // pred_check
      %p10684 = pneg %p10683
    $region46: #{basic_block_forward.1} parent=5 // pred_check_branch
      %10686 = sbr.rel (%p10684) target = $region48
    $region47: #{basic_block_forward.1} parent=5 // pred_region
      %s10687 = ssub.s32 %s11, 2
      // Predicated region
      $region49: #{basic_block_forward.1} parent=47 // pred_check
        %p10688 = pneg %p150
      $region50: #{basic_block_forward.1} parent=47 // pred_check_branch
        %10690 = sbr.rel (%p10688) target = $region52
      $region51: #{basic_block_forward.1} parent=47 // pred_region
        %p10691 = scmp.lt.s32.totalorder %s17, 1
        %s10692 = scalar_select %p10691, %s17, 1
        %s10693 = smul.addr %s10692, 32
        %s10694 = smul.addr %s10693, 4
        %s10695 = scalar_lea.vmem %s5, %s10694
      $region52: #{basic_block_forward.1} parent=47 // pred_fallthru
        _
    $region48: #{basic_block_forward.1} parent=5 // pred_fallthru
      _
  $region6: #{basic_block_forward.1} parent=0 // loop_footer
    %s15 = sadd.s32 1, %s11
  $region7: #{basic_block_forward.1} parent=0 // loop_footer_branch
    %10 = sbr.rel target = $region3
  $region8: #{basic_block_forward.1} parent=0 // loop_exit
    _

</llo_original>
